<compile_context>
chip_gen: v5e
topology: v5e:2x2
jax: 0.10.0
libtpu: 0.0.40
codegen_flags: <defaults>
</compile_context>

<pallas_src>
import jax
import jax.numpy as jnp
import numpy as np
from jax import lax
from jax.experimental import pallas as pl
from jax.experimental.pallas import tpu as pltpu


def _round_up(x, m):
    return (x + m - 1) // m * m


# ---------------- Pallas kernel (the whole block, fused) ----------------

def basic_block_kernel(x_ref, w1_ref, w2_ref, wsc_ref, b1_ref, b2_ref,
                       o_ref, h1_ref):
    # x_ref : (1, H+2, W+2, CP)  bf16   spatially padded input image
    # w1_ref: (9, CP, COP)       bf16   conv1 taps (BN1 scale folded in)
    # w2_ref: (9, COP, COP)      bf16   conv2 taps (BN2 scale folded in)
    # wsc_ref: (CP, COP)         bf16   1x1 shortcut (BN_sc scale folded in)
    # b1_ref: (1, COP) f32, b2_ref: (1, COP) f32 (= shift2 + shift_sc)
    # o_ref : (1, H, W, COP)     f32
    # h1_ref: (H+2, W+2, COP)    bf16   VMEM scratch for the padded h1
    _, h, w, cop = o_ref.shape
    cp = x_ref.shape[-1]
    m = h * w
    f32 = jnp.float32

    # ---- stage 1: h1 = relu(conv1(x)*s1 + b1); 3x3 conv == 9 shifted matmuls.
    acc = jnp.zeros((m, cop), f32)
    for kh in range(3):
        for kw in range(3):
            patch = x_ref[0, pl.ds(kh, h), pl.ds(kw, w), :].reshape(m, cp)
            acc = acc + jnp.dot(patch, w1_ref[kh * 3 + kw],
                                preferred_element_type=f32)
    h1 = jnp.maximum(acc + b1_ref[...], 0.0)

    # Stash h1 into the spatially padded VMEM scratch; re-zero every step so
    # the halo is valid on every core (megacore-safe), cost is negligible.
    h1_ref[...] = jnp.zeros_like(h1_ref)
    h1_ref[pl.ds(1, h), pl.ds(1, w), :] = (
        h1.reshape(h, w, cop).astype(h1_ref.dtype))

    # ---- stage 2: out = relu(conv2(h1)*s2 + (x @ wsc)*ssc + (b2 + bsc)).
    acc = jnp.zeros((m, cop), f32)
    for kh in range(3):
        for kw in range(3):
            patch = h1_ref[pl.ds(kh, h), pl.ds(kw, w), :].reshape(m, cop)
            acc = acc + jnp.dot(patch, w2_ref[kh * 3 + kw],
                                preferred_element_type=f32)
    x_center = x_ref[0, pl.ds(1, h), pl.ds(1, w), :].reshape(m, cp)
    acc = acc + jnp.dot(x_center, wsc_ref[...], preferred_element_type=f32)

    out = jnp.maximum(acc + b2_ref[...], 0.0)
    o_ref[...] = out.reshape(1, h, w, cop).astype(o_ref.dtype)


# ---------------- JAX wrapper ----------------

def basic_block_forward(x_nchw, params):
    w1, (s1, b1) = params["w1"], params["bn1"]
    w2, (s2, b2) = params["w2"], params["bn2"]
    wsc, (ssc, bsc) = params["wsc"], params["bnsc"]

    x = jnp.transpose(x_nchw, (0, 2, 3, 1))              # NCHW -> NHWC
    n, h, w, cin = x.shape
    cout = w1.shape[-1]
    cp = _round_up(cin, 128)                              # lane-dense channels
    cop = _round_up(cout, 128)

    # Fold BN scale into weights, zero-pad channels, cast matmul operands bf16.
    w1p = jnp.pad(w1 * s1, ((0, 0), (0, 0), (0, cp - cin), (0, cop - cout)))
    w2p = jnp.pad(w2 * s2, ((0, 0), (0, 0), (0, cop - cout), (0, cop - cout)))
    wscp = jnp.pad(wsc * ssc, ((0, cp - cin), (0, cop - cout)))
    w1p = w1p.reshape(9, cp, cop).astype(jnp.bfloat16)
    w2p = w2p.reshape(9, cop, cop).astype(jnp.bfloat16)
    wscp = wscp.astype(jnp.bfloat16)
    b1p = jnp.pad(b1, (0, cop - cout)).reshape(1, cop).astype(jnp.float32)
    b2p = jnp.pad(b2 + bsc, (0, cop - cout)).reshape(1, cop).astype(jnp.float32)

    # Spatial 'SAME' halo (+1 each side) + channel pad + bf16 activations.
    xp = jnp.pad(x, ((0, 0), (1, 1), (1, 1), (0, cp - cin))).astype(jnp.bfloat16)

    flops = 2 * n * h * w * (9 * cp * cop + 9 * cop * cop + cp * cop)
    bytes_accessed = int(xp.size * 2 + n * h * w * cop * 4
                         + w1p.size * 2 + w2p.size * 2 + wscp.size * 2
                         + b1p.size * 4 + b2p.size * 4)

    out = pl.pallas_call(
        basic_block_kernel,
        out_shape=jax.ShapeDtypeStruct((n, h, w, cop), jnp.float32),
        grid_spec=pltpu.PrefetchScalarGridSpec(
            num_scalar_prefetch=0,
            grid=(n,),
            in_specs=[
                pl.BlockSpec((1, h + 2, w + 2, cp), lambda i: (i, 0, 0, 0)),
                pl.BlockSpec((9, cp, cop), lambda i: (0, 0, 0)),
                pl.BlockSpec((9, cop, cop), lambda i: (0, 0, 0)),
                pl.BlockSpec((cp, cop), lambda i: (0, 0)),
                pl.BlockSpec((1, cop), lambda i: (0, 0)),
                pl.BlockSpec((1, cop), lambda i: (0, 0)),
            ],
            out_specs=pl.BlockSpec((1, h, w, cop), lambda i: (i, 0, 0, 0)),
            scratch_shapes=[pltpu.VMEM((h + 2, w + 2, cop), jnp.bfloat16)],
        ),
        compiler_params=pltpu.CompilerParams(
            dimension_semantics=("parallel",),
            vmem_limit_bytes=32 * 1024 * 1024,
        ),
        cost_estimate=pl.CostEstimate(
            flops=flops, transcendentals=0, bytes_accessed=bytes_accessed),
    )(xp, w1p, w2p, wscp, b1p, b2p)

    out = out[..., :cout]                                 # drop channel padding
    return jnp.transpose(out, (0, 3, 1, 2))               # NHWC -> NCHW


# ---------------- reference (pure JAX) for correctness check ----------------

def reference_forward(x_nchw, params):
    x = jnp.transpose(x_nchw, (0, 2, 3, 1))
    dn = ('NHWC', 'HWIO', 'NHWC')

    def bn(y, sb):
        s, b = sb
        return y * s + b

    h1 = jax.nn.relu(bn(lax.conv_general_dilated(
        x, params["w1"], (1, 1), 'SAME', dimension_numbers=dn), params["bn1"]))
    main = bn(lax.conv_general_dilated(
        h1, params["w2"], (1, 1), 'SAME', dimension_numbers=dn), params["bn2"])
    wsc4 = params["wsc"].reshape(1, 1, *params["wsc"].shape)
    sc = bn(lax.conv_general_dilated(
        x, wsc4, (1, 1), 'SAME', dimension_numbers=dn), params["bnsc"])
    out = jax.nn.relu(main + sc)
    return jnp.transpose(out, (0, 3, 1, 2))


# ---------------- deterministic parameter init ----------------

def init_params(key, cin, cout):
    ks = jax.random.split(key, 6)
    eps = 1e-5

    def fold(gamma, beta, mean, var):
        scale = gamma / jnp.sqrt(var + eps)
        return scale, beta - mean * scale

    def bn_params(kk):
        kg, kb, km, kv = jax.random.split(kk, 4)
        gamma = 1.0 + 0.1 * jax.random.normal(kg, (cout,), jnp.float32)
        beta = 0.1 * jax.random.normal(kb, (cout,), jnp.float32)
        mean = 0.1 * jax.random.normal(km, (cout,), jnp.float32)
        var = 1.0 + 0.1 * jax.random.uniform(kv, (cout,), jnp.float32)
        return fold(gamma, beta, mean, var)

    w1 = jax.random.normal(ks[0], (3, 3, cin, cout), jnp.float32) / np.sqrt(9 * cin)
    w2 = jax.random.normal(ks[1], (3, 3, cout, cout), jnp.float32) / np.sqrt(9 * cout)
    wsc = jax.random.normal(ks[2], (cin, cout), jnp.float32) / np.sqrt(cin)
    return {"w1": w1, "bn1": bn_params(ks[3]),
            "w2": w2, "bn2": bn_params(ks[4]),
            "wsc": wsc, "bnsc": bn_params(ks[5])}


if __name__ == "__main__":
    key = jax.random.PRNGKey(0)
    kx, kp = jax.random.split(key)

    # stride=1, in_channels != out_channels -> shortcut is 1x1 conv + BN
    N, Cin, Cout, H, W = 2, 4, 8, 16, 16
    x = jax.random.normal(kx, (N, Cin, H, W), jnp.float32)   # PyTorch-style NCHW
    params = init_params(kp, Cin, Cout)

    out = jax.jit(basic_block_forward)(x, params)
    out = jax.block_until_ready(out)

    ref = reference_forward(x, params)
    np.testing.assert_allclose(np.asarray(out), np.asarray(ref),
                               rtol=3e-2, atol=3e-2)   # bf16 matmul operands
    assert out.shape == (N, Cout, H, W)
    print("KERNEL_OK")
</pallas_src>

<mosaic_0001>
module attributes {stable_mosaic.version = 11 : i64} {
  func.func @basic_block_kernel(%arg0: i32, %arg1: memref<1x18x18x128xbf16, #tpu.memory_space<vmem>>, %arg2: memref<9x128x128xbf16, #tpu.memory_space<vmem>>, %arg3: memref<9x128x128xbf16, #tpu.memory_space<vmem>>, %arg4: memref<128x128xbf16, #tpu.memory_space<vmem>>, %arg5: memref<1x128xf32, #tpu.memory_space<vmem>>, %arg6: memref<1x128xf32, #tpu.memory_space<vmem>>, %arg7: memref<1x16x16x128xf32, #tpu.memory_space<vmem>>, %arg8: memref<18x18x128xbf16, #tpu.memory_space<vmem>>) attributes {dimension_semantics = [#tpu.dimension_semantics<parallel>], iteration_bounds = array<i64: 2>, scalar_prefetch = 0 : i64, scratch_operands = 1 : i64, tpu.core_type = #tpu.core_type<tc>, window_params = [{transform_indices = @transform_0, window_bounds = array<i64: 1, 18, 18, 128>}, {pipeline_mode = #tpu.pipeline_mode<synchronous>, transform_indices = @transform_1, window_bounds = array<i64: 9, 128, 128>}, {pipeline_mode = #tpu.pipeline_mode<synchronous>, transform_indices = @transform_2, window_bounds = array<i64: 9, 128, 128>}, {pipeline_mode = #tpu.pipeline_mode<synchronous>, transform_indices = @transform_3, window_bounds = array<i64: 128, 128>}, {pipeline_mode = #tpu.pipeline_mode<synchronous>, transform_indices = @transform_4, window_bounds = array<i64: 1, 128>}, {pipeline_mode = #tpu.pipeline_mode<synchronous>, transform_indices = @transform_5, window_bounds = array<i64: 1, 128>}, {transform_indices = @transform_6, window_bounds = array<i64: 1, 16, 16, 128>}]} {
    %cst = arith.constant 0.000000e+00 : f32
    %0 = vector.broadcast %cst : f32 to vector<256x128xf32>
    %c0 = arith.constant 0 : index
    %c0_0 = arith.constant 0 : index
    %c0_1 = arith.constant 0 : index
    %c0_2 = arith.constant 0 : index
    %1 = vector.load %arg1[%c0, %c0_0, %c0_1, %c0_2] : memref<1x18x18x128xbf16, #tpu.memory_space<vmem>>, vector<1x16x16x128xbf16>
    %2 = vector.shape_cast %1 : vector<1x16x16x128xbf16> to vector<16x16x128xbf16>
    %3 = vector.shape_cast %2 : vector<16x16x128xbf16> to vector<256x128xbf16>
    %c0_3 = arith.constant 0 : index
    %c0_4 = arith.constant 0 : index
    %c0_5 = arith.constant 0 : index
    %4 = vector.load %arg2[%c0_3, %c0_4, %c0_5] : memref<9x128x128xbf16, #tpu.memory_space<vmem>>, vector<1x128x128xbf16>
    %5 = vector.shape_cast %4 : vector<1x128x128xbf16> to vector<128x128xbf16>
    %cst_6 = arith.constant dense<0.000000e+00> : vector<256x128xf32>
    %6 = tpu.matmul %3, %5, %cst_6 {dimension_numbers = #tpu.dot_dimension_numbers<[1], [0], [0], [1], [0, 0, 1, 1], [], []>} : vector<256x128xbf16>, vector<128x128xbf16>, vector<256x128xf32> -> vector<256x128xf32>
    %7 = arith.addf %0, %6 : vector<256x128xf32>
    %c0_7 = arith.constant 0 : index
    %c0_8 = arith.constant 0 : index
    %c1 = arith.constant 1 : index
    %c0_9 = arith.constant 0 : index
    %8 = vector.load %arg1[%c0_7, %c0_8, %c1, %c0_9] : memref<1x18x18x128xbf16, #tpu.memory_space<vmem>>, vector<1x16x16x128xbf16>
    %9 = vector.shape_cast %8 : vector<1x16x16x128xbf16> to vector<16x16x128xbf16>
    %10 = vector.shape_cast %9 : vector<16x16x128xbf16> to vector<256x128xbf16>
    %c1_10 = arith.constant 1 : index
    %c0_11 = arith.constant 0 : index
    %c0_12 = arith.constant 0 : index
    %11 = vector.load %arg2[%c1_10, %c0_11, %c0_12] : memref<9x128x128xbf16, #tpu.memory_space<vmem>>, vector<1x128x128xbf16>
    %12 = vector.shape_cast %11 : vector<1x128x128xbf16> to vector<128x128xbf16>
    %cst_13 = arith.constant dense<0.000000e+00> : vector<256x128xf32>
    %13 = tpu.matmul %10, %12, %cst_13 {dimension_numbers = #tpu.dot_dimension_numbers<[1], [0], [0], [1], [0, 0, 1, 1], [], []>} : vector<256x128xbf16>, vector<128x128xbf16>, vector<256x128xf32> -> vector<256x128xf32>
    %14 = arith.addf %7, %13 : vector<256x128xf32>
    %c0_14 = arith.constant 0 : index
    %c0_15 = arith.constant 0 : index
    %c2 = arith.constant 2 : index
    %c0_16 = arith.constant 0 : index
    %15 = vector.load %arg1[%c0_14, %c0_15, %c2, %c0_16] : memref<1x18x18x128xbf16, #tpu.memory_space<vmem>>, vector<1x16x16x128xbf16>
    %16 = vector.shape_cast %15 : vector<1x16x16x128xbf16> to vector<16x16x128xbf16>
    %17 = vector.shape_cast %16 : vector<16x16x128xbf16> to vector<256x128xbf16>
    %c2_17 = arith.constant 2 : index
    %c0_18 = arith.constant 0 : index
    %c0_19 = arith.constant 0 : index
    %18 = vector.load %arg2[%c2_17, %c0_18, %c0_19] : memref<9x128x128xbf16, #tpu.memory_space<vmem>>, vector<1x128x128xbf16>
    %19 = vector.shape_cast %18 : vector<1x128x128xbf16> to vector<128x128xbf16>
    %cst_20 = arith.constant dense<0.000000e+00> : vector<256x128xf32>
    %20 = tpu.matmul %17, %19, %cst_20 {dimension_numbers = #tpu.dot_dimension_numbers<[1], [0], [0], [1], [0, 0, 1, 1], [], []>} : vector<256x128xbf16>, vector<128x128xbf16>, vector<256x128xf32> -> vector<256x128xf32>
    %21 = arith.addf %14, %20 : vector<256x128xf32>
    %c0_21 = arith.constant 0 : index
    %c1_22 = arith.constant 1 : index
    %c0_23 = arith.constant 0 : index
    %c0_24 = arith.constant 0 : index
    %22 = vector.load %arg1[%c0_21, %c1_22, %c0_23, %c0_24] : memref<1x18x18x128xbf16, #tpu.memory_space<vmem>>, vector<1x16x16x128xbf16>
    %23 = vector.shape_cast %22 : vector<1x16x16x128xbf16> to vector<16x16x128xbf16>
    %24 = vector.shape_cast %23 : vector<16x16x128xbf16> to vector<256x128xbf16>
    %c3 = arith.constant 3 : index
    %c0_25 = arith.constant 0 : index
    %c0_26 = arith.constant 0 : index
    %25 = vector.load %arg2[%c3, %c0_25, %c0_26] : memref<9x128x128xbf16, #tpu.memory_space<vmem>>, vector<1x128x128xbf16>
    %26 = vector.shape_cast %25 : vector<1x128x128xbf16> to vector<128x128xbf16>
    %cst_27 = arith.constant dense<0.000000e+00> : vector<256x128xf32>
    %27 = tpu.matmul %24, %26, %cst_27 {dimension_numbers = #tpu.dot_dimension_numbers<[1], [0], [0], [1], [0, 0, 1, 1], [], []>} : vector<256x128xbf16>, vector<128x128xbf16>, vector<256x128xf32> -> vector<256x128xf32>
    %28 = arith.addf %21, %27 : vector<256x128xf32>
    %c0_28 = arith.constant 0 : index
    %c1_29 = arith.constant 1 : index
    %c1_30 = arith.constant 1 : index
    %c0_31 = arith.constant 0 : index
    %29 = vector.load %arg1[%c0_28, %c1_29, %c1_30, %c0_31] : memref<1x18x18x128xbf16, #tpu.memory_space<vmem>>, vector<1x16x16x128xbf16>
    %30 = vector.shape_cast %29 : vector<1x16x16x128xbf16> to vector<16x16x128xbf16>
    %31 = vector.shape_cast %30 : vector<16x16x128xbf16> to vector<256x128xbf16>
    %c4 = arith.constant 4 : index
    %c0_32 = arith.constant 0 : index
    %c0_33 = arith.constant 0 : index
    %32 = vector.load %arg2[%c4, %c0_32, %c0_33] : memref<9x128x128xbf16, #tpu.memory_space<vmem>>, vector<1x128x128xbf16>
    %33 = vector.shape_cast %32 : vector<1x128x128xbf16> to vector<128x128xbf16>
    %cst_34 = arith.constant dense<0.000000e+00> : vector<256x128xf32>
    %34 = tpu.matmul %31, %33, %cst_34 {dimension_numbers = #tpu.dot_dimension_numbers<[1], [0], [0], [1], [0, 0, 1, 1], [], []>} : vector<256x128xbf16>, vector<128x128xbf16>, vector<256x128xf32> -> vector<256x128xf32>
    %35 = arith.addf %28, %34 : vector<256x128xf32>
    %c0_35 = arith.constant 0 : index
    %c1_36 = arith.constant 1 : index
    %c2_37 = arith.constant 2 : index
    %c0_38 = arith.constant 0 : index
    %36 = vector.load %arg1[%c0_35, %c1_36, %c2_37, %c0_38] : memref<1x18x18x128xbf16, #tpu.memory_space<vmem>>, vector<1x16x16x128xbf16>
    %37 = vector.shape_cast %36 : vector<1x16x16x128xbf16> to vector<16x16x128xbf16>
    %38 = vector.shape_cast %37 : vector<16x16x128xbf16> to vector<256x128xbf16>
    %c5 = arith.constant 5 : index
    %c0_39 = arith.constant 0 : index
    %c0_40 = arith.constant 0 : index
    %39 = vector.load %arg2[%c5, %c0_39, %c0_40] : memref<9x128x128xbf16, #tpu.memory_space<vmem>>, vector<1x128x128xbf16>
    %40 = vector.shape_cast %39 : vector<1x128x128xbf16> to vector<128x128xbf16>
    %cst_41 = arith.constant dense<0.000000e+00> : vector<256x128xf32>
    %41 = tpu.matmul %38, %40, %cst_41 {dimension_numbers = #tpu.dot_dimension_numbers<[1], [0], [0], [1], [0, 0, 1, 1], [], []>} : vector<256x128xbf16>, vector<128x128xbf16>, vector<256x128xf32> -> vector<256x128xf32>
    %42 = arith.addf %35, %41 : vector<256x128xf32>
    %c0_42 = arith.constant 0 : index
    %c2_43 = arith.constant 2 : index
    %c0_44 = arith.constant 0 : index
    %c0_45 = arith.constant 0 : index
    %43 = vector.load %arg1[%c0_42, %c2_43, %c0_44, %c0_45] : memref<1x18x18x128xbf16, #tpu.memory_space<vmem>>, vector<1x16x16x128xbf16>
    %44 = vector.shape_cast %43 : vector<1x16x16x128xbf16> to vector<16x16x128xbf16>
    %45 = vector.shape_cast %44 : vector<16x16x128xbf16> to vector<256x128xbf16>
    %c6 = arith.constant 6 : index
    %c0_46 = arith.constant 0 : index
    %c0_47 = arith.constant 0 : index
    %46 = vector.load %arg2[%c6, %c0_46, %c0_47] : memref<9x128x128xbf16, #tpu.memory_space<vmem>>, vector<1x128x128xbf16>
    %47 = vector.shape_cast %46 : vector<1x128x128xbf16> to vector<128x128xbf16>
    %cst_48 = arith.constant dense<0.000000e+00> : vector<256x128xf32>
    %48 = tpu.matmul %45, %47, %cst_48 {dimension_numbers = #tpu.dot_dimension_numbers<[1], [0], [0], [1], [0, 0, 1, 1], [], []>} : vector<256x128xbf16>, vector<128x128xbf16>, vector<256x128xf32> -> vector<256x128xf32>
    %49 = arith.addf %42, %48 : vector<256x128xf32>
    %c0_49 = arith.constant 0 : index
    %c2_50 = arith.constant 2 : index
    %c1_51 = arith.constant 1 : index
    %c0_52 = arith.constant 0 : index
    %50 = vector.load %arg1[%c0_49, %c2_50, %c1_51, %c0_52] : memref<1x18x18x128xbf16, #tpu.memory_space<vmem>>, vector<1x16x16x128xbf16>
    %51 = vector.shape_cast %50 : vector<1x16x16x128xbf16> to vector<16x16x128xbf16>
    %52 = vector.shape_cast %51 : vector<16x16x128xbf16> to vector<256x128xbf16>
    %c7 = arith.constant 7 : index
    %c0_53 = arith.constant 0 : index
    %c0_54 = arith.constant 0 : index
    %53 = vector.load %arg2[%c7, %c0_53, %c0_54] : memref<9x128x128xbf16, #tpu.memory_space<vmem>>, vector<1x128x128xbf16>
    %54 = vector.shape_cast %53 : vector<1x128x128xbf16> to vector<128x128xbf16>
    %cst_55 = arith.constant dense<0.000000e+00> : vector<256x128xf32>
    %55 = tpu.matmul %52, %54, %cst_55 {dimension_numbers = #tpu.dot_dimension_numbers<[1], [0], [0], [1], [0, 0, 1, 1], [], []>} : vector<256x128xbf16>, vector<128x128xbf16>, vector<256x128xf32> -> vector<256x128xf32>
    %56 = arith.addf %49, %55 : vector<256x128xf32>
    %c0_56 = arith.constant 0 : index
    %c2_57 = arith.constant 2 : index
    %c2_58 = arith.constant 2 : index
    %c0_59 = arith.constant 0 : index
    %57 = vector.load %arg1[%c0_56, %c2_57, %c2_58, %c0_59] : memref<1x18x18x128xbf16, #tpu.memory_space<vmem>>, vector<1x16x16x128xbf16>
    %58 = vector.shape_cast %57 : vector<1x16x16x128xbf16> to vector<16x16x128xbf16>
    %59 = vector.shape_cast %58 : vector<16x16x128xbf16> to vector<256x128xbf16>
    %c8 = arith.constant 8 : index
    %c0_60 = arith.constant 0 : index
    %c0_61 = arith.constant 0 : index
    %60 = vector.load %arg2[%c8, %c0_60, %c0_61] : memref<9x128x128xbf16, #tpu.memory_space<vmem>>, vector<1x128x128xbf16>
    %61 = vector.shape_cast %60 : vector<1x128x128xbf16> to vector<128x128xbf16>
    %cst_62 = arith.constant dense<0.000000e+00> : vector<256x128xf32>
    %62 = tpu.matmul %59, %61, %cst_62 {dimension_numbers = #tpu.dot_dimension_numbers<[1], [0], [0], [1], [0, 0, 1, 1], [], []>} : vector<256x128xbf16>, vector<128x128xbf16>, vector<256x128xf32> -> vector<256x128xf32>
    %63 = arith.addf %56, %62 : vector<256x128xf32>
    %c0_63 = arith.constant 0 : index
    %c0_64 = arith.constant 0 : index
    %64 = vector.load %arg5[%c0_63, %c0_64] : memref<1x128xf32, #tpu.memory_space<vmem>>, vector<1x128xf32>
    %65 = vector.broadcast %64 : vector<1x128xf32> to vector<256x128xf32>
    %66 = arith.addf %63, %65 : vector<256x128xf32>
    %cst_65 = arith.constant 0.000000e+00 : f32
    %67 = vector.broadcast %cst_65 : f32 to vector<256x128xf32>
    %68 = arith.maximumf %66, %67 : vector<256x128xf32>
    %cst_66 = arith.constant 0.000000e+00 : bf16
    %69 = vector.broadcast %cst_66 : bf16 to vector<18x18x128xbf16>
    %c0_67 = arith.constant 0 : index
    %c0_68 = arith.constant 0 : index
    %c0_69 = arith.constant 0 : index
    %70 = vector.load %arg8[%c0_67, %c0_68, %c0_69] : memref<18x18x128xbf16, #tpu.memory_space<vmem>>, vector<18x18x128xbf16>
    tpu.vector_store %arg8[%c0_67, %c0_68, %c0_69], %69 {strides = array<i32>} : memref<18x18x128xbf16, #tpu.memory_space<vmem>>, vector<18x18x128xbf16>,
    %71 = vector.shape_cast %68 : vector<256x128xf32> to vector<16x16x128xf32>
    %72 = arith.truncf %71 : vector<16x16x128xf32> to vector<16x16x128xbf16>
    %c1_70 = arith.constant 1 : index
    %c1_71 = arith.constant 1 : index
    %c0_72 = arith.constant 0 : index
    %73 = vector.load %arg8[%c1_70, %c1_71, %c0_72] : memref<18x18x128xbf16, #tpu.memory_space<vmem>>, vector<16x16x128xbf16>
    tpu.vector_store %arg8[%c1_70, %c1_71, %c0_72], %72 {strides = array<i32>} : memref<18x18x128xbf16, #tpu.memory_space<vmem>>, vector<16x16x128xbf16>,
    %cst_73 = arith.constant 0.000000e+00 : f32
    %74 = vector.broadcast %cst_73 : f32 to vector<256x128xf32>
    %c0_74 = arith.constant 0 : index
    %c0_75 = arith.constant 0 : index
    %c0_76 = arith.constant 0 : index
    %75 = vector.load %arg8[%c0_74, %c0_75, %c0_76] : memref<18x18x128xbf16, #tpu.memory_space<vmem>>, vector<16x16x128xbf16>
    %76 = vector.shape_cast %75 : vector<16x16x128xbf16> to vector<256x128xbf16>
    %c0_77 = arith.constant 0 : index
    %c0_78 = arith.constant 0 : index
    %c0_79 = arith.constant 0 : index
    %77 = vector.load %arg3[%c0_77, %c0_78, %c0_79] : memref<9x128x128xbf16, #tpu.memory_space<vmem>>, vector<1x128x128xbf16>
    %78 = vector.shape_cast %77 : vector<1x128x128xbf16> to vector<128x128xbf16>
    %cst_80 = arith.constant dense<0.000000e+00> : vector<256x128xf32>
    %79 = tpu.matmul %76, %78, %cst_80 {dimension_numbers = #tpu.dot_dimension_numbers<[1], [0], [0], [1], [0, 0, 1, 1], [], []>} : vector<256x128xbf16>, vector<128x128xbf16>, vector<256x128xf32> -> vector<256x128xf32>
    %80 = arith.addf %74, %79 : vector<256x128xf32>
    %c0_81 = arith.constant 0 : index
    %c1_82 = arith.constant 1 : index
    %c0_83 = arith.constant 0 : index
    %81 = vector.load %arg8[%c0_81, %c1_82, %c0_83] : memref<18x18x128xbf16, #tpu.memory_space<vmem>>, vector<16x16x128xbf16>
    %82 = vector.shape_cast %81 : vector<16x16x128xbf16> to vector<256x128xbf16>
    %c1_84 = arith.constant 1 : index
    %c0_85 = arith.constant 0 : index
    %c0_86 = arith.constant 0 : index
    %83 = vector.load %arg3[%c1_84, %c0_85, %c0_86] : memref<9x128x128xbf16, #tpu.memory_space<vmem>>, vector<1x128x128xbf16>
    %84 = vector.shape_cast %83 : vector<1x128x128xbf16> to vector<128x128xbf16>
    %cst_87 = arith.constant dense<0.000000e+00> : vector<256x128xf32>
    %85 = tpu.matmul %82, %84, %cst_87 {dimension_numbers = #tpu.dot_dimension_numbers<[1], [0], [0], [1], [0, 0, 1, 1], [], []>} : vector<256x128xbf16>, vector<128x128xbf16>, vector<256x128xf32> -> vector<256x128xf32>
    %86 = arith.addf %80, %85 : vector<256x128xf32>
    %c0_88 = arith.constant 0 : index
    %c2_89 = arith.constant 2 : index
    %c0_90 = arith.constant 0 : index
    %87 = vector.load %arg8[%c0_88, %c2_89, %c0_90] : memref<18x18x128xbf16, #tpu.memory_space<vmem>>, vector<16x16x128xbf16>
    %88 = vector.shape_cast %87 : vector<16x16x128xbf16> to vector<256x128xbf16>
    %c2_91 = arith.constant 2 : index
    %c0_92 = arith.constant 0 : index
    %c0_93 = arith.constant 0 : index
    %89 = vector.load %arg3[%c2_91, %c0_92, %c0_93] : memref<9x128x128xbf16, #tpu.memory_space<vmem>>, vector<1x128x128xbf16>
    %90 = vector.shape_cast %89 : vector<1x128x128xbf16> to vector<128x128xbf16>
    %cst_94 = arith.constant dense<0.000000e+00> : vector<256x128xf32>
    %91 = tpu.matmul %88, %90, %cst_94 {dimension_numbers = #tpu.dot_dimension_numbers<[1], [0], [0], [1], [0, 0, 1, 1], [], []>} : vector<256x128xbf16>, vector<128x128xbf16>, vector<256x128xf32> -> vector<256x128xf32>
    %92 = arith.addf %86, %91 : vector<256x128xf32>
    %c1_95 = arith.constant 1 : index
    %c0_96 = arith.constant 0 : index
    %c0_97 = arith.constant 0 : index
    %93 = vector.load %arg8[%c1_95, %c0_96, %c0_97] : memref<18x18x128xbf16, #tpu.memory_space<vmem>>, vector<16x16x128xbf16>
    %94 = vector.shape_cast %93 : vector<16x16x128xbf16> to vector<256x128xbf16>
    %c3_98 = arith.constant 3 : index
    %c0_99 = arith.constant 0 : index
    %c0_100 = arith.constant 0 : index
    %95 = vector.load %arg3[%c3_98, %c0_99, %c0_100] : memref<9x128x128xbf16, #tpu.memory_space<vmem>>, vector<1x128x128xbf16>
    %96 = vector.shape_cast %95 : vector<1x128x128xbf16> to vector<128x128xbf16>
    %cst_101 = arith.constant dense<0.000000e+00> : vector<256x128xf32>
    %97 = tpu.matmul %94, %96, %cst_101 {dimension_numbers = #tpu.dot_dimension_numbers<[1], [0], [0], [1], [0, 0, 1, 1], [], []>} : vector<256x128xbf16>, vector<128x128xbf16>, vector<256x128xf32> -> vector<256x128xf32>
    %98 = arith.addf %92, %97 : vector<256x128xf32>
    %c1_102 = arith.constant 1 : index
    %c1_103 = arith.constant 1 : index
    %c0_104 = arith.constant 0 : index
    %99 = vector.load %arg8[%c1_102, %c1_103, %c0_104] : memref<18x18x128xbf16, #tpu.memory_space<vmem>>, vector<16x16x128xbf16>
    %100 = vector.shape_cast %99 : vector<16x16x128xbf16> to vector<256x128xbf16>
    %c4_105 = arith.constant 4 : index
    %c0_106 = arith.constant 0 : index
    %c0_107 = arith.constant 0 : index
    %101 = vector.load %arg3[%c4_105, %c0_106, %c0_107] : memref<9x128x128xbf16, #tpu.memory_space<vmem>>, vector<1x128x128xbf16>
    %102 = vector.shape_cast %101 : vector<1x128x128xbf16> to vector<128x128xbf16>
    %cst_108 = arith.constant dense<0.000000e+00> : vector<256x128xf32>
    %103 = tpu.matmul %100, %102, %cst_108 {dimension_numbers = #tpu.dot_dimension_numbers<[1], [0], [0], [1], [0, 0, 1, 1], [], []>} : vector<256x128xbf16>, vector<128x128xbf16>, vector<256x128xf32> -> vector<256x128xf32>
    %104 = arith.addf %98, %103 : vector<256x128xf32>
    %c1_109 = arith.constant 1 : index
    %c2_110 = arith.constant 2 : index
    %c0_111 = arith.constant 0 : index
    %105 = vector.load %arg8[%c1_109, %c2_110, %c0_111] : memref<18x18x128xbf16, #tpu.memory_space<vmem>>, vector<16x16x128xbf16>
    %106 = vector.shape_cast %105 : vector<16x16x128xbf16> to vector<256x128xbf16>
    %c5_112 = arith.constant 5 : index
    %c0_113 = arith.constant 0 : index
    %c0_114 = arith.constant 0 : index
    %107 = vector.load %arg3[%c5_112, %c0_113, %c0_114] : memref<9x128x128xbf16, #tpu.memory_space<vmem>>, vector<1x128x128xbf16>
    %108 = vector.shape_cast %107 : vector<1x128x128xbf16> to vector<128x128xbf16>
    %cst_115 = arith.constant dense<0.000000e+00> : vector<256x128xf32>
    %109 = tpu.matmul %106, %108, %cst_115 {dimension_numbers = #tpu.dot_dimension_numbers<[1], [0], [0], [1], [0, 0, 1, 1], [], []>} : vector<256x128xbf16>, vector<128x128xbf16>, vector<256x128xf32> -> vector<256x128xf32>
    %110 = arith.addf %104, %109 : vector<256x128xf32>
    %c2_116 = arith.constant 2 : index
    %c0_117 = arith.constant 0 : index
    %c0_118 = arith.constant 0 : index
    %111 = vector.load %arg8[%c2_116, %c0_117, %c0_118] : memref<18x18x128xbf16, #tpu.memory_space<vmem>>, vector<16x16x128xbf16>
    %112 = vector.shape_cast %111 : vector<16x16x128xbf16> to vector<256x128xbf16>
    %c6_119 = arith.constant 6 : index
    %c0_120 = arith.constant 0 : index
    %c0_121 = arith.constant 0 : index
    %113 = vector.load %arg3[%c6_119, %c0_120, %c0_121] : memref<9x128x128xbf16, #tpu.memory_space<vmem>>, vector<1x128x128xbf16>
    %114 = vector.shape_cast %113 : vector<1x128x128xbf16> to vector<128x128xbf16>
    %cst_122 = arith.constant dense<0.000000e+00> : vector<256x128xf32>
    %115 = tpu.matmul %112, %114, %cst_122 {dimension_numbers = #tpu.dot_dimension_numbers<[1], [0], [0], [1], [0, 0, 1, 1], [], []>} : vector<256x128xbf16>, vector<128x128xbf16>, vector<256x128xf32> -> vector<256x128xf32>
    %116 = arith.addf %110, %115 : vector<256x128xf32>
    %c2_123 = arith.constant 2 : index
    %c1_124 = arith.constant 1 : index
    %c0_125 = arith.constant 0 : index
    %117 = vector.load %arg8[%c2_123, %c1_124, %c0_125] : memref<18x18x128xbf16, #tpu.memory_space<vmem>>, vector<16x16x128xbf16>
    %118 = vector.shape_cast %117 : vector<16x16x128xbf16> to vector<256x128xbf16>
    %c7_126 = arith.constant 7 : index
    %c0_127 = arith.constant 0 : index
    %c0_128 = arith.constant 0 : index
    %119 = vector.load %arg3[%c7_126, %c0_127, %c0_128] : memref<9x128x128xbf16, #tpu.memory_space<vmem>>, vector<1x128x128xbf16>
    %120 = vector.shape_cast %119 : vector<1x128x128xbf16> to vector<128x128xbf16>
    %cst_129 = arith.constant dense<0.000000e+00> : vector<256x128xf32>
    %121 = tpu.matmul %118, %120, %cst_129 {dimension_numbers = #tpu.dot_dimension_numbers<[1], [0], [0], [1], [0, 0, 1, 1], [], []>} : vector<256x128xbf16>, vector<128x128xbf16>, vector<256x128xf32> -> vector<256x128xf32>
    %122 = arith.addf %116, %121 : vector<256x128xf32>
    %c2_130 = arith.constant 2 : index
    %c2_131 = arith.constant 2 : index
    %c0_132 = arith.constant 0 : index
    %123 = vector.load %arg8[%c2_130, %c2_131, %c0_132] : memref<18x18x128xbf16, #tpu.memory_space<vmem>>, vector<16x16x128xbf16>
    %124 = vector.shape_cast %123 : vector<16x16x128xbf16> to vector<256x128xbf16>
    %c8_133 = arith.constant 8 : index
    %c0_134 = arith.constant 0 : index
    %c0_135 = arith.constant 0 : index
    %125 = vector.load %arg3[%c8_133, %c0_134, %c0_135] : memref<9x128x128xbf16, #tpu.memory_space<vmem>>, vector<1x128x128xbf16>
    %126 = vector.shape_cast %125 : vector<1x128x128xbf16> to vector<128x128xbf16>
    %cst_136 = arith.constant dense<0.000000e+00> : vector<256x128xf32>
    %127 = tpu.matmul %124, %126, %cst_136 {dimension_numbers = #tpu.dot_dimension_numbers<[1], [0], [0], [1], [0, 0, 1, 1], [], []>} : vector<256x128xbf16>, vector<128x128xbf16>, vector<256x128xf32> -> vector<256x128xf32>
    %128 = arith.addf %122, %127 : vector<256x128xf32>
    %c0_137 = arith.constant 0 : index
    %c1_138 = arith.constant 1 : index
    %c1_139 = arith.constant 1 : index
    %c0_140 = arith.constant 0 : index
    %129 = vector.load %arg1[%c0_137, %c1_138, %c1_139, %c0_140] : memref<1x18x18x128xbf16, #tpu.memory_space<vmem>>, vector<1x16x16x128xbf16>
    %130 = vector.shape_cast %129 : vector<1x16x16x128xbf16> to vector<16x16x128xbf16>
    %131 = vector.shape_cast %130 : vector<16x16x128xbf16> to vector<256x128xbf16>
    %c0_141 = arith.constant 0 : index
    %c0_142 = arith.constant 0 : index
    %132 = vector.load %arg4[%c0_141, %c0_142] : memref<128x128xbf16, #tpu.memory_space<vmem>>, vector<128x128xbf16>
    %cst_143 = arith.constant dense<0.000000e+00> : vector<256x128xf32>
    %133 = tpu.matmul %131, %132, %cst_143 {dimension_numbers = #tpu.dot_dimension_numbers<[1], [0], [0], [1], [0, 0, 1, 1], [], []>} : vector<256x128xbf16>, vector<128x128xbf16>, vector<256x128xf32> -> vector<256x128xf32>
    %134 = arith.addf %128, %133 : vector<256x128xf32>
    %c0_144 = arith.constant 0 : index
    %c0_145 = arith.constant 0 : index
    %135 = vector.load %arg6[%c0_144, %c0_145] : memref<1x128xf32, #tpu.memory_space<vmem>>, vector<1x128xf32>
    %136 = vector.broadcast %135 : vector<1x128xf32> to vector<256x128xf32>
    %137 = arith.addf %134, %136 : vector<256x128xf32>
    %cst_146 = arith.constant 0.000000e+00 : f32
    %138 = vector.broadcast %cst_146 : f32 to vector<256x128xf32>
    %139 = arith.maximumf %137, %138 : vector<256x128xf32>
    %140 = vector.shape_cast %139 : vector<256x128xf32> to vector<1x16x16x128xf32>
    %c0_147 = arith.constant 0 : index
    %c0_148 = arith.constant 0 : index
    %c0_149 = arith.constant 0 : index
    %c0_150 = arith.constant 0 : index
    %141 = vector.load %arg7[%c0_147, %c0_148, %c0_149, %c0_150] : memref<1x16x16x128xf32, #tpu.memory_space<vmem>>, vector<1x16x16x128xf32>
    tpu.vector_store %arg7[%c0_147, %c0_148, %c0_149, %c0_150], %140 {strides = array<i32>} : memref<1x16x16x128xf32, #tpu.memory_space<vmem>>, vector<1x16x16x128xf32>,
    return
  }
  func.func @transform_0(%arg0: i32) -> (i32, i32, i32, i32) {
    %c0_i32 = arith.constant 0 : i32
    %c0_i32_0 = arith.constant 0 : i32
    %c0_i32_1 = arith.constant 0 : i32
    %c0_i32_2 = arith.constant 0 : i32
    return %arg0, %c0_i32, %c0_i32_0, %c0_i32_1 : i32, i32, i32, i32
  }
  func.func @transform_1(%arg0: i32) -> (i32, i32, i32) {
    %c0_i32 = arith.constant 0 : i32
    %c0_i32_0 = arith.constant 0 : i32
    %c0_i32_1 = arith.constant 0 : i32
    %c0_i32_2 = arith.constant 0 : i32
    return %c0_i32, %c0_i32_0, %c0_i32_1 : i32, i32, i32
  }
  func.func @transform_2(%arg0: i32) -> (i32, i32, i32) {
    %c0_i32 = arith.constant 0 : i32
    %c0_i32_0 = arith.constant 0 : i32
    %c0_i32_1 = arith.constant 0 : i32
    %c0_i32_2 = arith.constant 0 : i32
    return %c0_i32, %c0_i32_0, %c0_i32_1 : i32, i32, i32
  }
  func.func @transform_3(%arg0: i32) -> (i32, i32) {
    %c0_i32 = arith.constant 0 : i32
    %c0_i32_0 = arith.constant 0 : i32
    %c0_i32_1 = arith.constant 0 : i32
    return %c0_i32, %c0_i32_0 : i32, i32
  }
  func.func @transform_4(%arg0: i32) -> (i32, i32) {
    %c0_i32 = arith.constant 0 : i32
    %c0_i32_0 = arith.constant 0 : i32
    %c0_i32_1 = arith.constant 0 : i32
    return %c0_i32, %c0_i32_0 : i32, i32
  }
  func.func @transform_5(%arg0: i32) -> (i32, i32) {
    %c0_i32 = arith.constant 0 : i32
    %c0_i32_0 = arith.constant 0 : i32
    %c0_i32_1 = arith.constant 0 : i32
    return %c0_i32, %c0_i32_0 : i32, i32
  }
  func.func @transform_6(%arg0: i32) -> (i32, i32, i32, i32) {
    %c0_i32 = arith.constant 0 : i32
    %c0_i32_0 = arith.constant 0 : i32
    %c0_i32_1 = arith.constant 0 : i32
    %c0_i32_2 = arith.constant 0 : i32
    return %arg0, %c0_i32, %c0_i32_0, %c0_i32_1 : i32, i32, i32, i32
  }
}

</mosaic_0001>

<llo_original>
// kernel: basic_block_forward.1
$region0: #{basic_block_forward.1}
  #allocation0 [shape = 'u32[]', space=smem, size = 0x4, offset = 0x4, fixed_abs, tag = 'smem constant byte address 0x4 - core index']
  #allocation1 [shape = 'u32[72,128]{1,0:T(1,128)}', space=vmem, size = 0x9000, scoped, tag = 'internal scratch']
  #allocation2 [shape = 'bf16[18,18,128]{2,1,0:T(8,128)(2,1)}', space=vmem, size = 0x1b000, scoped, tag = 'scratch operand']
  %s0 = inlined_call_operand.vmem [shape: bf16[2,18,18,128], index: 0, kind: input, shape index: {}]
  %s1 = inlined_call_operand.vmem [shape: bf16[9,128,128], index: 1, kind: input, shape index: {}]
  %s2 = inlined_call_operand.vmem [shape: bf16[9,128,128], index: 2, kind: input, shape index: {}]
  %s3 = inlined_call_operand.vmem [shape: bf16[128,128], index: 3, kind: input, shape index: {}]
  %s4 = inlined_call_operand.vmem [shape: f32[1,128], index: 4, kind: input, shape index: {}]
  %s5 = inlined_call_operand.vmem [shape: f32[1,128], index: 5, kind: input, shape index: {}]
  %s6 = inlined_call_operand.vmem [shape: f32[2,16,16,128], index: 6, kind: output, shape index: {}]
  %s7 = sld [smem:[#allocation0]]
  $region57: #{basic_block_forward.1} parent=0
    _
  %s9 = ssub.s32 1, %s7
  %s10 = scalar_select 0, %s9, %s7
  loop: start=0, step=1, limit=4
  $region2: #{basic_block_forward.1} parent=0 // loop_pre_header
    _
  $region3: #{basic_block_forward.1} parent=0 // loop_header
    %s12 = sphi 0, %s16
    %p13 = scmp.ge.s32.totalorder %s12, 4
    %s22 = sphi 0, %s24
    %s25 = sphi 0, %s22
    %s26 = sphi 0, %s25
    %s42 = sphi 0, %s26
    %s46 = sphi 0, %s46
    %s48 = sphi 0, %s46
    %s49 = sphi 0, %s48
    %s63 = sphi 0, %s49
    %s67 = sphi 0, %s67
    %s69 = sphi 0, %s67
    %s70 = sphi 0, %s69
    %s84 = sphi 0, %s70
    %s88 = sphi 0, %s88
    %s90 = sphi 0, %s88
    %s91 = sphi 0, %s90
    %s105 = sphi 0, %s91
    %s109 = sphi 0, %s109
    %s111 = sphi 0, %s109
    %s112 = sphi 0, %s111
    %s126 = sphi 0, %s112
    %s130 = sphi 0, %s130
    %s132 = sphi 0, %s130
    %s133 = sphi 0, %s132
    %s147 = sphi 0, %s133
    %s153 = sphi 0, %s155
    %s156 = sphi 0, %s153
    %s157 = sphi 0, %s156
    %s173 = sphi 0, %s157
  $region4: #{basic_block_forward.1} parent=0 // loop_header_branch
    %15 = sbr.rel (%p13) target = $region8
  $region5: #{basic_block_forward.1} parent=0 // loop_body
    %s17 = ssub.s32 %s12, 1
    %s18 = ssub.s32 %s12, 2
    %s19 = sadd.s32 %s12, 1
    %s20 = ssub.s32 %s12, %s19
    %p21 = scmp.eq.s32.totalorder %s20, 0
    %s23 = sadd.s32 %s22, 1
    %s24 = scalar_select %p21, %s22, %s23
    %p27 = pneg %p21
    %p28 = scmp.eq.s32.totalorder %s12, 1
    %p29 = por %p27, %p28
    %p30 = scmp.ne.s32.totalorder %s22, %s25
    %p31 = scmp.eq.s32.totalorder %s12, 0
    %p32 = por %p30, %p31
    %p33 = scmp.ne.s32.totalorder %s22, %s25
    %p34 = scmp.eq.s32.totalorder %s17, 1
    %p35 = por %p33, %p34
    %p36 = scmp.ne.s32.totalorder %s25, %s26
    %p37 = scmp.eq.s32.totalorder %s17, 0
    %p38 = por %p36, %p37
    %p39 = scmp.ne.s32.totalorder %s25, %s26
    %p40 = scmp.eq.s32.totalorder %s18, 1
    %p41 = por %p39, %p40
    %p43 = scmp.ne.s32.totalorder %s26, %s42
    %p44 = scmp.eq.s32.totalorder %s18, 0
    %p45 = por %p43, %p44
    %s47 = sadd.s32 %s46, 1
    %p50 = scmp.eq.s32.totalorder %s12, 1
    %p51 = scmp.ne.s32.totalorder %s46, %s48
    %p52 = scmp.eq.s32.totalorder %s12, 0
    %p53 = por %p51, %p52
    %p54 = scmp.ne.s32.totalorder %s46, %s48
    %p55 = scmp.eq.s32.totalorder %s17, 1
    %p56 = por %p54, %p55
    %p57 = scmp.ne.s32.totalorder %s48, %s49
    %p58 = scmp.eq.s32.totalorder %s17, 0
    %p59 = por %p57, %p58
    %p60 = scmp.ne.s32.totalorder %s48, %s49
    %p61 = scmp.eq.s32.totalorder %s18, 1
    %p62 = por %p60, %p61
    %p64 = scmp.ne.s32.totalorder %s49, %s63
    %p65 = scmp.eq.s32.totalorder %s18, 0
    %p66 = por %p64, %p65
    %s68 = sadd.s32 %s67, 1
    %p71 = scmp.eq.s32.totalorder %s12, 1
    %p72 = scmp.ne.s32.totalorder %s67, %s69
    %p73 = scmp.eq.s32.totalorder %s12, 0
    %p74 = por %p72, %p73
    %p75 = scmp.ne.s32.totalorder %s67, %s69
    %p76 = scmp.eq.s32.totalorder %s17, 1
    %p77 = por %p75, %p76
    %p78 = scmp.ne.s32.totalorder %s69, %s70
    %p79 = scmp.eq.s32.totalorder %s17, 0
    %p80 = por %p78, %p79
    %p81 = scmp.ne.s32.totalorder %s69, %s70
    %p82 = scmp.eq.s32.totalorder %s18, 1
    %p83 = por %p81, %p82
    %p85 = scmp.ne.s32.totalorder %s70, %s84
    %p86 = scmp.eq.s32.totalorder %s18, 0
    %p87 = por %p85, %p86
    %s89 = sadd.s32 %s88, 1
    %p92 = scmp.eq.s32.totalorder %s12, 1
    %p93 = scmp.ne.s32.totalorder %s88, %s90
    %p94 = scmp.eq.s32.totalorder %s12, 0
    %p95 = por %p93, %p94
    %p96 = scmp.ne.s32.totalorder %s88, %s90
    %p97 = scmp.eq.s32.totalorder %s17, 1
    %p98 = por %p96, %p97
    %p99 = scmp.ne.s32.totalorder %s90, %s91
    %p100 = scmp.eq.s32.totalorder %s17, 0
    %p101 = por %p99, %p100
    %p102 = scmp.ne.s32.totalorder %s90, %s91
    %p103 = scmp.eq.s32.totalorder %s18, 1
    %p104 = por %p102, %p103
    %p106 = scmp.ne.s32.totalorder %s91, %s105
    %p107 = scmp.eq.s32.totalorder %s18, 0
    %p108 = por %p106, %p107
    %s110 = sadd.s32 %s109, 1
    %p113 = scmp.eq.s32.totalorder %s12, 1
    %p114 = scmp.ne.s32.totalorder %s109, %s111
    %p115 = scmp.eq.s32.totalorder %s12, 0
    %p116 = por %p114, %p115
    %p117 = scmp.ne.s32.totalorder %s109, %s111
    %p118 = scmp.eq.s32.totalorder %s17, 1
    %p119 = por %p117, %p118
    %p120 = scmp.ne.s32.totalorder %s111, %s112
    %p121 = scmp.eq.s32.totalorder %s17, 0
    %p122 = por %p120, %p121
    %p123 = scmp.ne.s32.totalorder %s111, %s112
    %p124 = scmp.eq.s32.totalorder %s18, 1
    %p125 = por %p123, %p124
    %p127 = scmp.ne.s32.totalorder %s112, %s126
    %p128 = scmp.eq.s32.totalorder %s18, 0
    %p129 = por %p127, %p128
    %s131 = sadd.s32 %s130, 1
    %p134 = scmp.eq.s32.totalorder %s12, 1
    %p135 = scmp.ne.s32.totalorder %s130, %s132
    %p136 = scmp.eq.s32.totalorder %s12, 0
    %p137 = por %p135, %p136
    %p138 = scmp.ne.s32.totalorder %s130, %s132
    %p139 = scmp.eq.s32.totalorder %s17, 1
    %p140 = por %p138, %p139
    %p141 = scmp.ne.s32.totalorder %s132, %s133
    %p142 = scmp.eq.s32.totalorder %s17, 0
    %p143 = por %p141, %p142
    %p144 = scmp.ne.s32.totalorder %s132, %s133
    %p145 = scmp.eq.s32.totalorder %s18, 1
    %p146 = por %p144, %p145
    %p148 = scmp.ne.s32.totalorder %s133, %s147
    %p149 = scmp.eq.s32.totalorder %s18, 0
    %p150 = por %p148, %p149
    %s151 = ssub.s32 %s12, %s19
    %p152 = scmp.eq.s32.totalorder %s151, 0
    %s154 = sadd.s32 %s153, 1
    %s155 = scalar_select %p152, %s153, %s154
    %p158 = pneg %p152
    %p159 = scmp.eq.s32.totalorder %s12, 1
    %p160 = por %p158, %p159
    %p161 = scmp.ne.s32.totalorder %s153, %s156
    %p162 = scmp.eq.s32.totalorder %s12, 0
    %p163 = por %p161, %p162
    %p164 = scmp.ne.s32.totalorder %s153, %s156
    %p165 = scmp.eq.s32.totalorder %s17, 1
    %p166 = por %p164, %p165
    %p167 = scmp.ne.s32.totalorder %s156, %s157
    %p168 = scmp.eq.s32.totalorder %s17, 0
    %p169 = por %p167, %p168
    %p170 = scmp.ne.s32.totalorder %s156, %s157
    %p171 = scmp.eq.s32.totalorder %s18, 1
    %p172 = por %p170, %p171
    %p174 = scmp.ne.s32.totalorder %s157, %s173
    %p175 = scmp.eq.s32.totalorder %s18, 0
    %p176 = por %p174, %p175
    %p177 = scmp.le.s32.totalorder 1, %s12
    %p178 = scmp.lt.s32.totalorder %s12, 3
    %p179 = pnand %p177, %p178
    %p180 = pneg %p179
    // Predicated region
    $region9: #{basic_block_forward.1} parent=5 // pred_check
      _
    $region10: #{basic_block_forward.1} parent=5 // pred_check_branch
      %182 = sbr.rel (%p179) target = $region12
    $region11: #{basic_block_forward.1} parent=5 // pred_region
      %s183 = ssub.s32 %s12, 1
      // Predicated region
      $region13: #{basic_block_forward.1} parent=11 // pred_check
        %p184 = pneg %p59
      $region14: #{basic_block_forward.1} parent=11 // pred_check_branch
        %186 = sbr.rel (%p184) target = $region16
      $region15: #{basic_block_forward.1} parent=11 // pred_region
        _
      $region16: #{basic_block_forward.1} parent=11 // pred_fallthru
        _
      // Predicated region
      $region17: #{basic_block_forward.1} parent=11 // pred_check
        %p187 = pneg %p80
      $region18: #{basic_block_forward.1} parent=11 // pred_check_branch
        %189 = sbr.rel (%p187) target = $region20
      $region19: #{basic_block_forward.1} parent=11 // pred_region
        _
      $region20: #{basic_block_forward.1} parent=11 // pred_fallthru
        _
      // Predicated region
      $region21: #{basic_block_forward.1} parent=11 // pred_check
        %p190 = pneg %p101
      $region22: #{basic_block_forward.1} parent=11 // pred_check_branch
        %192 = sbr.rel (%p190) target = $region24
      $region23: #{basic_block_forward.1} parent=11 // pred_region
        _
      $region24: #{basic_block_forward.1} parent=11 // pred_fallthru
        _
      // Predicated region
      $region25: #{basic_block_forward.1} parent=11 // pred_check
        %p193 = pneg %p122
      $region26: #{basic_block_forward.1} parent=11 // pred_check_branch
        %195 = sbr.rel (%p193) target = $region28
      $region27: #{basic_block_forward.1} parent=11 // pred_region
        _
      $region28: #{basic_block_forward.1} parent=11 // pred_fallthru
        _
      // Predicated region
      $region29: #{basic_block_forward.1} parent=11 // pred_check
        %p196 = pneg %p143
      $region30: #{basic_block_forward.1} parent=11 // pred_check_branch
        %198 = sbr.rel (%p196) target = $region32
      $region31: #{basic_block_forward.1} parent=11 // pred_region
        _
      $region32: #{basic_block_forward.1} parent=11 // pred_fallthru
        _
    $region12: #{basic_block_forward.1} parent=5 // pred_fallthru
      _
    %p199 = scmp.lt.s32.totalorder %s12, 2
    // Predicated region
    $region33: #{basic_block_forward.1} parent=5 // pred_check
      %p200 = pneg %p199
    $region34: #{basic_block_forward.1} parent=5 // pred_check_branch
      %202 = sbr.rel (%p200) target = $region36
    $region35: #{basic_block_forward.1} parent=5 // pred_region
      // Predicated region
      $region37: #{basic_block_forward.1} parent=35 // pred_check
        %p203 = pneg %p32
      $region38: #{basic_block_forward.1} parent=35 // pred_check_branch
        %205 = sbr.rel (%p203) target = $region40
      $region39: #{basic_block_forward.1} parent=35 // pred_region
        %p206 = scmp.lt.s32.totalorder %s12, 1
        %s207 = scalar_select %p206, %s12, 1
        %s208 = smul.addr %s207, 54
        %s209 = smul.addr %s208, 4
        %s210 = scalar_lea.vmem %s0, %s209
      $region40: #{basic_block_forward.1} parent=35 // pred_fallthru
        _
    $region36: #{basic_block_forward.1} parent=5 // pred_fallthru
      _
    %p211 = scmp.le.s32.totalorder 1, %s12
    %p212 = scmp.lt.s32.totalorder %s12, 3
    %p213 = pnand %p211, %p212
    %p214 = pneg %p213
    // Predicated region
    $region41: #{basic_block_forward.1} parent=5 // pred_check
      _
    $region42: #{basic_block_forward.1} parent=5 // pred_check_branch
      %216 = sbr.rel (%p213) target = $region44
    $region43: #{basic_block_forward.1} parent=5 // pred_region
      %s217 = ssub.s32 %s12, 1
      %p218 = scmp.lt.s32.totalorder %s17, 1
      %s219 = scalar_select %p218, %s17, 1
      %s220 = smul.addr %s219, 54
      %s221 = smul.addr %s220, 4
      %s222 = scalar_lea.vmem %s0, %s221
      %p223 = pneg %p38
      %p224 = pneg %p35
      %p225 = pneg %p59
      %p226 = pneg %p56
      %p227 = pneg %p80
      %p228 = pneg %p77
      %p229 = pneg %p101
      %p230 = pneg %p98
      %p231 = pneg %p122
      %p232 = pneg %p119
      %p233 = pneg %p143
      %p234 = pneg %p140
      %p235 = pneg %p169
      %p236 = pneg %p166
      %p237 = scmp.lt.s32.totalorder %s17, 1
      %s238 = scalar_select %p237, %s17, 1
      %s239 = smul.addr %s238, 32
      %s240 = smul.addr %s239, 8
      %s241 = scalar_lea.vmem %s6, %s240
      %p242 = scmp.lt.s32.totalorder %s17, 1
      %s243 = scalar_select %p242, %s17, 1
      %s244 = smul.addr %s243, 54
      %s245 = smul.addr %s244, 4
      %s246 = scalar_lea.vmem %s0, %s245
      %p247 = scmp.lt.s32.totalorder %s17, 1
      %s248 = scalar_select %p247, %s17, 1
      %s249 = smul.addr %s248, 32
      %s250 = smul.addr %s249, 8
      %s251 = scalar_lea.vmem %s6, %s250
      %v253 = vld [vmem:[%s246] sm:$0xf]
      %v254 = vld [vmem:[%s246 + $0x4] sm:$0xf]
      %v255 = vld [vmem:[%s246 + $0xc] sm:$0xf]
      %v256 = vld [vmem:[%s246 + $0x10] sm:$0xf]
      %v257 = vld [vmem:[%s246 + $0x18] sm:$0xf]
      %v258 = vld [vmem:[%s246 + $0x1c] sm:$0xf]
      %v259 = vld [vmem:[%s246 + $0x24] sm:$0xf]
      %v260 = vld [vmem:[%s246 + $0x28] sm:$0xf]
      %v261 = vld [vmem:[%s246 + $0x30] sm:$0xf]
      %v262 = vld [vmem:[%s246 + $0x34] sm:$0xf]
      %v263 = vld [vmem:[%s246 + $0x3c] sm:$0xf]
      %v264 = vld [vmem:[%s246 + $0x40] sm:$0xf]
      %v265 = vld [vmem:[%s246 + $0x48] sm:$0xf]
      %v266 = vld [vmem:[%s246 + $0x4c] sm:$0xf]
      %v267 = vld [vmem:[%s246 + $0x54] sm:$0xf]
      %v268 = vld [vmem:[%s246 + $0x58] sm:$0xf]
      %v269 = vld [vmem:[%s246 + $0x60] sm:$0xf]
      %v270 = vld [vmem:[%s246 + $0x64] sm:$0xf]
      %v271 = vld [vmem:[%s246 + $0x6c] sm:$0xf]
      %v272 = vld [vmem:[%s246 + $0x70] sm:$0xf]
      %v273 = vld [vmem:[%s246 + $0x78] sm:$0xf]
      %v274 = vld [vmem:[%s246 + $0x7c] sm:$0xf]
      %v275 = vld [vmem:[%s246 + $0x84] sm:$0xf]
      %v276 = vld [vmem:[%s246 + $0x88] sm:$0xf]
      %v277 = vld [vmem:[%s246 + $0x90] sm:$0xf]
      %v278 = vld [vmem:[%s246 + $0x94] sm:$0xf]
      %v279 = vld [vmem:[%s246 + $0x9c] sm:$0xf]
      %v280 = vld [vmem:[%s246 + $0xa0] sm:$0xf]
      %v281 = vld [vmem:[%s246 + $0xa8] sm:$0xf]
      %v282 = vld [vmem:[%s246 + $0xac] sm:$0xf]
      %v283 = vld [vmem:[%s246 + $0xb4] sm:$0xf]
      %v284 = vld [vmem:[%s246 + $0xb8] sm:$0xf]
      %v285 = vld [vmem:[%s1] sm:$0xf]
      %v286 = vld [vmem:[%s1 + $0x4] sm:$0xf]
      %v287 = vld [vmem:[%s1 + $0x8] sm:$0xf]
      %v288 = vld [vmem:[%s1 + $0xc] sm:$0xf]
      %v289 = vld [vmem:[%s1 + $0x10] sm:$0xf]
      %v290 = vld [vmem:[%s1 + $0x14] sm:$0xf]
      %v291 = vld [vmem:[%s1 + $0x18] sm:$0xf]
      %v292 = vld [vmem:[%s1 + $0x1c] sm:$0xf]
      %v293 = vld [vmem:[%s1 + $0x20] sm:$0xf]
      %v294 = vld [vmem:[%s1 + $0x24] sm:$0xf]
      %v295 = vld [vmem:[%s1 + $0x28] sm:$0xf]
      %v296 = vld [vmem:[%s1 + $0x2c] sm:$0xf]
      %v297 = vld [vmem:[%s1 + $0x30] sm:$0xf]
      %v298 = vld [vmem:[%s1 + $0x34] sm:$0xf]
      %v299 = vld [vmem:[%s1 + $0x38] sm:$0xf]
      %v300 = vld [vmem:[%s1 + $0x3c] sm:$0xf]
      %v301 = vld [vmem:[%s246 + $0x8] sm:$0x1]
      %v302 = vld [vmem:[%s246 + $0x14] sm:$0x1]
      %v303 = vld [vmem:[%s246 + $0x20] sm:$0x1]
      %v304 = vld [vmem:[%s246 + $0x2c] sm:$0x1]
      %v305 = vld [vmem:[%s246 + $0x38] sm:$0x1]
      %v306 = vld [vmem:[%s246 + $0x44] sm:$0x1]
      %v307 = vld [vmem:[%s246 + $0x50] sm:$0x1]
      %v308 = vld [vmem:[%s246 + $0x5c] sm:$0x1]
      %v309 = vld [vmem:[%s246 + $0x68] sm:$0x1]
      %v310 = vld [vmem:[%s246 + $0x74] sm:$0x1]
      %v311 = vld [vmem:[%s246 + $0x80] sm:$0x1]
      %v312 = vld [vmem:[%s246 + $0x8c] sm:$0x1]
      %v313 = vld [vmem:[%s246 + $0x98] sm:$0x1]
      %v314 = vld [vmem:[%s246 + $0xa4] sm:$0x1]
      %v315 = vld [vmem:[%s246 + $0xb0] sm:$0x1]
      %v316 = vld [vmem:[%s246 + $0xbc] sm:$0x1]
      %vm317 = vsmask.f32 3328
      %vm318 = vsmask.f32 7440
      %vm319 = vmor %vm317, %vm318
      %v321 = vshrl.u32 %v253, 16
      %v323 = vrot.slane %v321, 4
      %v324 = vshll.u32 %v253, 16
      %v326 = vrot.slane %v324, 5
      %v327 = vor.u32 %v323, %v326
      %v328 = vrot.slane %v327, 4
      %v330 = vshll.u32 %v254, 16
      %v332 = vrot.slane %v330, 5
      %v333 = vsel %vm319, %v328, %v332
      %v334 = vshrl.u32 %v254, 16
      %v336 = vrot.slane %v334, 4
      %v337 = vor.u32 %v336, %v332
      %v338 = vrot.slane %v337, 4
      %v340 = vshll.u32 %v301, 16
      %v342 = vrot.slane %v340, 5
      %v343 = vsel %vm319, %v338, %v342
      %v345 = vshrl.u32 %v255, 16
      %v347 = vrot.slane %v345, 4
      %v348 = vshll.u32 %v255, 16
      %v350 = vrot.slane %v348, 5
      %v351 = vor.u32 %v347, %v350
      %v352 = vrot.slane %v351, 4
      %v354 = vshll.u32 %v256, 16
      %v356 = vrot.slane %v354, 5
      %v357 = vsel %vm319, %v352, %v356
      %v358 = vshrl.u32 %v256, 16
      %v360 = vrot.slane %v358, 4
      %v361 = vor.u32 %v360, %v356
      %v362 = vrot.slane %v361, 4
      %v364 = vshll.u32 %v302, 16
      %v366 = vrot.slane %v364, 5
      %v367 = vsel %vm319, %v362, %v366
      %v369 = vshrl.u32 %v257, 16
      %v371 = vrot.slane %v369, 4
      %v372 = vshll.u32 %v257, 16
      %v374 = vrot.slane %v372, 5
      %v375 = vor.u32 %v371, %v374
      %v376 = vrot.slane %v375, 4
      %v378 = vshll.u32 %v258, 16
      %v380 = vrot.slane %v378, 5
      %v381 = vsel %vm319, %v376, %v380
      %v382 = vshrl.u32 %v258, 16
      %v384 = vrot.slane %v382, 4
      %v385 = vor.u32 %v384, %v380
      %v386 = vrot.slane %v385, 4
      %v388 = vshll.u32 %v303, 16
      %v390 = vrot.slane %v388, 5
      %v391 = vsel %vm319, %v386, %v390
      %v393 = vshrl.u32 %v259, 16
      %v395 = vrot.slane %v393, 4
      %v396 = vshll.u32 %v259, 16
      %v398 = vrot.slane %v396, 5
      %v399 = vor.u32 %v395, %v398
      %v400 = vrot.slane %v399, 4
      %v402 = vshll.u32 %v260, 16
      %v404 = vrot.slane %v402, 5
      %v405 = vsel %vm319, %v400, %v404
      %v406 = vshrl.u32 %v260, 16
      %v408 = vrot.slane %v406, 4
      %v409 = vor.u32 %v408, %v404
      %v410 = vrot.slane %v409, 4
      %v412 = vshll.u32 %v304, 16
      %v414 = vrot.slane %v412, 5
      %v415 = vsel %vm319, %v410, %v414
      %v417 = vshrl.u32 %v261, 16
      %v419 = vrot.slane %v417, 4
      %v420 = vshll.u32 %v261, 16
      %v422 = vrot.slane %v420, 5
      %v423 = vor.u32 %v419, %v422
      %v424 = vrot.slane %v423, 4
      %v426 = vshll.u32 %v262, 16
      %v428 = vrot.slane %v426, 5
      %v429 = vsel %vm319, %v424, %v428
      %v430 = vshrl.u32 %v262, 16
      %v432 = vrot.slane %v430, 4
      %v433 = vor.u32 %v432, %v428
      %v434 = vrot.slane %v433, 4
      %v436 = vshll.u32 %v305, 16
      %v438 = vrot.slane %v436, 5
      %v439 = vsel %vm319, %v434, %v438
      %v441 = vshrl.u32 %v263, 16
      %v443 = vrot.slane %v441, 4
      %v444 = vshll.u32 %v263, 16
      %v446 = vrot.slane %v444, 5
      %v447 = vor.u32 %v443, %v446
      %v448 = vrot.slane %v447, 4
      %v450 = vshll.u32 %v264, 16
      %v452 = vrot.slane %v450, 5
      %v453 = vsel %vm319, %v448, %v452
      %v454 = vshrl.u32 %v264, 16
      %v456 = vrot.slane %v454, 4
      %v457 = vor.u32 %v456, %v452
      %v458 = vrot.slane %v457, 4
      %v460 = vshll.u32 %v306, 16
      %v462 = vrot.slane %v460, 5
      %v463 = vsel %vm319, %v458, %v462
      %v465 = vshrl.u32 %v265, 16
      %v467 = vrot.slane %v465, 4
      %v468 = vshll.u32 %v265, 16
      %v470 = vrot.slane %v468, 5
      %v471 = vor.u32 %v467, %v470
      %v472 = vrot.slane %v471, 4
      %v474 = vshll.u32 %v266, 16
      %v476 = vrot.slane %v474, 5
      %v477 = vsel %vm319, %v472, %v476
      %v478 = vshrl.u32 %v266, 16
      %v480 = vrot.slane %v478, 4
      %v481 = vor.u32 %v480, %v476
      %v482 = vrot.slane %v481, 4
      %v484 = vshll.u32 %v307, 16
      %v486 = vrot.slane %v484, 5
      %v487 = vsel %vm319, %v482, %v486
      %v489 = vshrl.u32 %v267, 16
      %v491 = vrot.slane %v489, 4
      %v492 = vshll.u32 %v267, 16
      %v494 = vrot.slane %v492, 5
      %v495 = vor.u32 %v491, %v494
      %v496 = vrot.slane %v495, 4
      %v498 = vshll.u32 %v268, 16
      %v500 = vrot.slane %v498, 5
      %v501 = vsel %vm319, %v496, %v500
      %v502 = vshrl.u32 %v268, 16
      %v504 = vrot.slane %v502, 4
      %v505 = vor.u32 %v504, %v500
      %v506 = vrot.slane %v505, 4
      %v508 = vshll.u32 %v308, 16
      %v510 = vrot.slane %v508, 5
      %v511 = vsel %vm319, %v506, %v510
      %v513 = vshrl.u32 %v269, 16
      %v515 = vrot.slane %v513, 4
      %v516 = vshll.u32 %v269, 16
      %v518 = vrot.slane %v516, 5
      %v519 = vor.u32 %v515, %v518
      %v520 = vrot.slane %v519, 4
      %v522 = vshll.u32 %v270, 16
      %v524 = vrot.slane %v522, 5
      %v525 = vsel %vm319, %v520, %v524
      %v526 = vshrl.u32 %v270, 16
      %v528 = vrot.slane %v526, 4
      %v529 = vor.u32 %v528, %v524
      %v530 = vrot.slane %v529, 4
      %v532 = vshll.u32 %v309, 16
      %v534 = vrot.slane %v532, 5
      %v535 = vsel %vm319, %v530, %v534
      %v537 = vshrl.u32 %v271, 16
      %v539 = vrot.slane %v537, 4
      %v540 = vshll.u32 %v271, 16
      %v542 = vrot.slane %v540, 5
      %v543 = vor.u32 %v539, %v542
      %v544 = vrot.slane %v543, 4
      %v546 = vshll.u32 %v272, 16
      %v548 = vrot.slane %v546, 5
      %v549 = vsel %vm319, %v544, %v548
      %v550 = vshrl.u32 %v272, 16
      %v552 = vrot.slane %v550, 4
      %v553 = vor.u32 %v552, %v548
      %v554 = vrot.slane %v553, 4
      %v556 = vshll.u32 %v310, 16
      %v558 = vrot.slane %v556, 5
      %v559 = vsel %vm319, %v554, %v558
      %v561 = vshrl.u32 %v273, 16
      %v563 = vrot.slane %v561, 4
      %v564 = vshll.u32 %v273, 16
      %v566 = vrot.slane %v564, 5
      %v567 = vor.u32 %v563, %v566
      %v568 = vrot.slane %v567, 4
      %v570 = vshll.u32 %v274, 16
      %v572 = vrot.slane %v570, 5
      %v573 = vsel %vm319, %v568, %v572
      %v574 = vshrl.u32 %v274, 16
      %v576 = vrot.slane %v574, 4
      %v577 = vor.u32 %v576, %v572
      %v578 = vrot.slane %v577, 4
      %v580 = vshll.u32 %v311, 16
      %v582 = vrot.slane %v580, 5
      %v583 = vsel %vm319, %v578, %v582
      %v585 = vshrl.u32 %v275, 16
      %v587 = vrot.slane %v585, 4
      %v588 = vshll.u32 %v275, 16
      %v590 = vrot.slane %v588, 5
      %v591 = vor.u32 %v587, %v590
      %v592 = vrot.slane %v591, 4
      %v594 = vshll.u32 %v276, 16
      %v596 = vrot.slane %v594, 5
      %v597 = vsel %vm319, %v592, %v596
      %v598 = vshrl.u32 %v276, 16
      %v600 = vrot.slane %v598, 4
      %v601 = vor.u32 %v600, %v596
      %v602 = vrot.slane %v601, 4
      %v604 = vshll.u32 %v312, 16
      %v606 = vrot.slane %v604, 5
      %v607 = vsel %vm319, %v602, %v606
      %v609 = vshrl.u32 %v277, 16
      %v611 = vrot.slane %v609, 4
      %v612 = vshll.u32 %v277, 16
      %v614 = vrot.slane %v612, 5
      %v615 = vor.u32 %v611, %v614
      %v616 = vrot.slane %v615, 4
      %v618 = vshll.u32 %v278, 16
      %v620 = vrot.slane %v618, 5
      %v621 = vsel %vm319, %v616, %v620
      %v622 = vshrl.u32 %v278, 16
      %v624 = vrot.slane %v622, 4
      %v625 = vor.u32 %v624, %v620
      %v626 = vrot.slane %v625, 4
      %v628 = vshll.u32 %v313, 16
      %v630 = vrot.slane %v628, 5
      %v631 = vsel %vm319, %v626, %v630
      %v633 = vshrl.u32 %v279, 16
      %v635 = vrot.slane %v633, 4
      %v636 = vshll.u32 %v279, 16
      %v638 = vrot.slane %v636, 5
      %v639 = vor.u32 %v635, %v638
      %v640 = vrot.slane %v639, 4
      %v642 = vshll.u32 %v280, 16
      %v644 = vrot.slane %v642, 5
      %v645 = vsel %vm319, %v640, %v644
      %v646 = vshrl.u32 %v280, 16
      %v648 = vrot.slane %v646, 4
      %v649 = vor.u32 %v648, %v644
      %v650 = vrot.slane %v649, 4
      %v652 = vshll.u32 %v314, 16
      %v654 = vrot.slane %v652, 5
      %v655 = vsel %vm319, %v650, %v654
      %v657 = vshrl.u32 %v281, 16
      %v659 = vrot.slane %v657, 4
      %v660 = vshll.u32 %v281, 16
      %v662 = vrot.slane %v660, 5
      %v663 = vor.u32 %v659, %v662
      %v664 = vrot.slane %v663, 4
      %v666 = vshll.u32 %v282, 16
      %v668 = vrot.slane %v666, 5
      %v669 = vsel %vm319, %v664, %v668
      %v670 = vshrl.u32 %v282, 16
      %v672 = vrot.slane %v670, 4
      %v673 = vor.u32 %v672, %v668
      %v674 = vrot.slane %v673, 4
      %v676 = vshll.u32 %v315, 16
      %v678 = vrot.slane %v676, 5
      %v679 = vsel %vm319, %v674, %v678
      %v681 = vshrl.u32 %v283, 16
      %v683 = vrot.slane %v681, 4
      %v684 = vshll.u32 %v283, 16
      %v686 = vrot.slane %v684, 5
      %v687 = vor.u32 %v683, %v686
      %v688 = vrot.slane %v687, 4
      %v690 = vshll.u32 %v284, 16
      %v692 = vrot.slane %v690, 5
      %v693 = vsel %vm319, %v688, %v692
      %v694 = vshrl.u32 %v284, 16
      %v696 = vrot.slane %v694, 4
      %v697 = vor.u32 %v696, %v692
      %v698 = vrot.slane %v697, 4
      %v700 = vshll.u32 %v316, 16
      %v702 = vrot.slane %v700, 5
      %v703 = vsel %vm319, %v698, %v702
      %s704 = scalar_lea.vmem %s1, 64
      %v705 = vld [vmem:[%s704] sm:$0xf]
      %v706 = vld [vmem:[%s704 + $0x4] sm:$0xf]
      %v707 = vld [vmem:[%s704 + $0x8] sm:$0xf]
      %v708 = vld [vmem:[%s704 + $0xc] sm:$0xf]
      %v709 = vld [vmem:[%s704 + $0x10] sm:$0xf]
      %v710 = vld [vmem:[%s704 + $0x14] sm:$0xf]
      %v711 = vld [vmem:[%s704 + $0x18] sm:$0xf]
      %v712 = vld [vmem:[%s704 + $0x1c] sm:$0xf]
      %v713 = vld [vmem:[%s704 + $0x20] sm:$0xf]
      %v714 = vld [vmem:[%s704 + $0x24] sm:$0xf]
      %v715 = vld [vmem:[%s704 + $0x28] sm:$0xf]
      %v716 = vld [vmem:[%s704 + $0x2c] sm:$0xf]
      %v717 = vld [vmem:[%s704 + $0x30] sm:$0xf]
      %v718 = vld [vmem:[%s704 + $0x34] sm:$0xf]
      %v719 = vld [vmem:[%s704 + $0x38] sm:$0xf]
      %v720 = vld [vmem:[%s704 + $0x3c] sm:$0xf]
      %v721 = vunpack.c.l.b16 %v333
      %v722 = vunpack.c.l.b16 %v343
      %v723 = vunpack.c.l.b16 %v357
      %v724 = vunpack.c.l.b16 %v367
      %v725 = vunpack.c.l.b16 %v381
      %v726 = vunpack.c.l.b16 %v391
      %v727 = vunpack.c.l.b16 %v405
      %v728 = vunpack.c.l.b16 %v415
      %v729 = vunpack.c.l.b16 %v429
      %v730 = vunpack.c.l.b16 %v439
      %v731 = vunpack.c.l.b16 %v453
      %v732 = vunpack.c.l.b16 %v463
      %v733 = vunpack.c.l.b16 %v477
      %v734 = vunpack.c.l.b16 %v487
      %v735 = vunpack.c.l.b16 %v501
      %v736 = vunpack.c.l.b16 %v511
      %v737 = vunpack.c.l.b16 %v525
      %v738 = vunpack.c.l.b16 %v535
      %v739 = vunpack.c.l.b16 %v549
      %v740 = vunpack.c.l.b16 %v559
      %v741 = vunpack.c.l.b16 %v573
      %v742 = vunpack.c.l.b16 %v583
      %v743 = vunpack.c.l.b16 %v597
      %v744 = vunpack.c.l.b16 %v607
      %v745 = vunpack.c.l.b16 %v621
      %v746 = vunpack.c.l.b16 %v631
      %v747 = vunpack.c.l.b16 %v645
      %v748 = vunpack.c.l.b16 %v655
      %v749 = vunpack.c.l.b16 %v669
      %v750 = vunpack.c.l.b16 %v679
      %v751 = vunpack.c.l.b16 %v693
      %v752 = vunpack.c.l.b16 %v703
      %v753 = vpack.c.b16 %v722, %v721
      %v754 = vpack.c.b16 %v724, %v723
      %v755 = vpack.c.b16 %v726, %v725
      %v756 = vpack.c.b16 %v728, %v727
      %v757 = vpack.c.b16 %v730, %v729
      %v758 = vpack.c.b16 %v732, %v731
      %v759 = vpack.c.b16 %v734, %v733
      %v760 = vpack.c.b16 %v736, %v735
      %v761 = vpack.c.b16 %v738, %v737
      %v762 = vpack.c.b16 %v740, %v739
      %v763 = vpack.c.b16 %v742, %v741
      %v764 = vpack.c.b16 %v744, %v743
      %v765 = vpack.c.b16 %v746, %v745
      %v766 = vpack.c.b16 %v748, %v747
      %v767 = vpack.c.b16 %v750, %v749
      %v768 = vpack.c.b16 %v752, %v751
      %v801 = vunpack.c.l.b16 %v705
      %v802 = vunpack.c.l.b16 %v706
      %v803 = vunpack.c.l.b16 %v707
      %v804 = vunpack.c.l.b16 %v708
      %v805 = vunpack.c.l.b16 %v709
      %v806 = vunpack.c.l.b16 %v710
      %v807 = vunpack.c.l.b16 %v711
      %v808 = vunpack.c.l.b16 %v712
      %v809 = vunpack.c.l.b16 %v713
      %v810 = vunpack.c.l.b16 %v714
      %v811 = vunpack.c.l.b16 %v715
      %v812 = vunpack.c.l.b16 %v716
      %v813 = vunpack.c.l.b16 %v717
      %v814 = vunpack.c.l.b16 %v718
      %v815 = vunpack.c.l.b16 %v719
      %v816 = vunpack.c.l.b16 %v720
      %v817 = vpack.c.b16 %v802, %v801
      %v818 = vpack.c.b16 %v804, %v803
      %v819 = vpack.c.b16 %v806, %v805
      %v820 = vpack.c.b16 %v808, %v807
      %v821 = vpack.c.b16 %v810, %v809
      %v822 = vpack.c.b16 %v812, %v811
      %v823 = vpack.c.b16 %v814, %v813
      %v824 = vpack.c.b16 %v816, %v815
      %833 = vmatpush.bf16.msra.mxu0 %v824
      %834 = vmatpush.bf16.msra.mxu0 %v823
      %835 = vmatpush.bf16.msra.mxu0 %v822
      %836 = vmatpush.bf16.msra.mxu0 %v821
      %837 = vmatpush.bf16.msra.mxu0 %v820
      %838 = vmatpush.bf16.msra.mxu0 %v819
      %839 = vmatpush.bf16.msra.mxu0 %v818
      %840 = vmatpush.bf16.msra.mxu0 %v817
      %841 = vmatmul.bf16.gmra.mxu0 %v753
      %v842 = vpop.f32.mrf.mxu0
      %v843 = vadd.f32 0.0, %v842
      %v844 = vpop.f32.mrf.mxu0
      %v845 = vadd.f32 0.0, %v844
      %846 = vmatmul.bf16.gmra.mxu0 %v754
      %v847 = vpop.f32.mrf.mxu0
      %v848 = vadd.f32 0.0, %v847
      %v849 = vpop.f32.mrf.mxu0
      %v850 = vadd.f32 0.0, %v849
      %851 = vmatmul.bf16.gmra.mxu0 %v755
      %v852 = vpop.f32.mrf.mxu0
      %v853 = vadd.f32 0.0, %v852
      %v854 = vpop.f32.mrf.mxu0
      %v855 = vadd.f32 0.0, %v854
      %856 = vmatmul.bf16.gmra.mxu0 %v756
      %v857 = vpop.f32.mrf.mxu0
      %v858 = vadd.f32 0.0, %v857
      %v859 = vpop.f32.mrf.mxu0
      %v860 = vadd.f32 0.0, %v859
      %861 = vmatmul.bf16.gmra.mxu0 %v757
      %v862 = vpop.f32.mrf.mxu0
      %v863 = vadd.f32 0.0, %v862
      %v864 = vpop.f32.mrf.mxu0
      %v865 = vadd.f32 0.0, %v864
      %866 = vmatmul.bf16.gmra.mxu0 %v758
      %v867 = vpop.f32.mrf.mxu0
      %v868 = vadd.f32 0.0, %v867
      %v869 = vpop.f32.mrf.mxu0
      %v870 = vadd.f32 0.0, %v869
      %871 = vmatmul.bf16.gmra.mxu0 %v759
      %v872 = vpop.f32.mrf.mxu0
      %v873 = vadd.f32 0.0, %v872
      %v874 = vpop.f32.mrf.mxu0
      %v875 = vadd.f32 0.0, %v874
      %876 = vmatmul.bf16.gmra.mxu0 %v760
      %v877 = vpop.f32.mrf.mxu0
      %v878 = vadd.f32 0.0, %v877
      %v879 = vpop.f32.mrf.mxu0
      %v880 = vadd.f32 0.0, %v879
      %881 = vmatmul.bf16.gmra.mxu0 %v761
      %v882 = vpop.f32.mrf.mxu0
      %v883 = vadd.f32 0.0, %v882
      %v884 = vpop.f32.mrf.mxu0
      %v885 = vadd.f32 0.0, %v884
      %886 = vmatmul.bf16.gmra.mxu0 %v762
      %v887 = vpop.f32.mrf.mxu0
      %v888 = vadd.f32 0.0, %v887
      %v889 = vpop.f32.mrf.mxu0
      %v890 = vadd.f32 0.0, %v889
      %891 = vmatmul.bf16.gmra.mxu0 %v763
      %v892 = vpop.f32.mrf.mxu0
      %v893 = vadd.f32 0.0, %v892
      %v894 = vpop.f32.mrf.mxu0
      %v895 = vadd.f32 0.0, %v894
      %896 = vmatmul.bf16.gmra.mxu0 %v764
      %v897 = vpop.f32.mrf.mxu0
      %v898 = vadd.f32 0.0, %v897
      %v899 = vpop.f32.mrf.mxu0
      %v900 = vadd.f32 0.0, %v899
      %901 = vmatmul.bf16.gmra.mxu0 %v765
      %v902 = vpop.f32.mrf.mxu0
      %v903 = vadd.f32 0.0, %v902
      %v904 = vpop.f32.mrf.mxu0
      %v905 = vadd.f32 0.0, %v904
      %906 = vmatmul.bf16.gmra.mxu0 %v766
      %v907 = vpop.f32.mrf.mxu0
      %v908 = vadd.f32 0.0, %v907
      %v909 = vpop.f32.mrf.mxu0
      %v910 = vadd.f32 0.0, %v909
      %911 = vmatmul.bf16.gmra.mxu0 %v767
      %v912 = vpop.f32.mrf.mxu0
      %v913 = vadd.f32 0.0, %v912
      %v914 = vpop.f32.mrf.mxu0
      %v915 = vadd.f32 0.0, %v914
      %916 = vmatmul.bf16.gmra.mxu0 %v768
      %v917 = vpop.f32.mrf.mxu0
      %v918 = vadd.f32 0.0, %v917
      %v919 = vpop.f32.mrf.mxu0
      %v920 = vadd.f32 0.0, %v919
      %921 = vdwg.mxu0
      %v954 = vunpack.c.l.b16 %v253
      %v955 = vunpack.c.l.b16 %v254
      %v956 = vunpack.c.l.b16 %v255
      %v957 = vunpack.c.l.b16 %v256
      %v958 = vunpack.c.l.b16 %v257
      %v959 = vunpack.c.l.b16 %v258
      %v960 = vunpack.c.l.b16 %v259
      %v961 = vunpack.c.l.b16 %v260
      %v962 = vunpack.c.l.b16 %v261
      %v963 = vunpack.c.l.b16 %v262
      %v964 = vunpack.c.l.b16 %v263
      %v965 = vunpack.c.l.b16 %v264
      %v966 = vunpack.c.l.b16 %v265
      %v967 = vunpack.c.l.b16 %v266
      %v968 = vunpack.c.l.b16 %v267
      %v969 = vunpack.c.l.b16 %v268
      %v970 = vunpack.c.l.b16 %v269
      %v971 = vunpack.c.l.b16 %v270
      %v972 = vunpack.c.l.b16 %v271
      %v973 = vunpack.c.l.b16 %v272
      %v974 = vunpack.c.l.b16 %v273
      %v975 = vunpack.c.l.b16 %v274
      %v976 = vunpack.c.l.b16 %v275
      %v977 = vunpack.c.l.b16 %v276
      %v978 = vunpack.c.l.b16 %v277
      %v979 = vunpack.c.l.b16 %v278
      %v980 = vunpack.c.l.b16 %v279
      %v981 = vunpack.c.l.b16 %v280
      %v982 = vunpack.c.l.b16 %v281
      %v983 = vunpack.c.l.b16 %v282
      %v984 = vunpack.c.l.b16 %v283
      %v985 = vunpack.c.l.b16 %v284
      %v986 = vpack.c.b16 %v955, %v954
      %v987 = vpack.c.b16 %v957, %v956
      %v988 = vpack.c.b16 %v959, %v958
      %v989 = vpack.c.b16 %v961, %v960
      %v990 = vpack.c.b16 %v963, %v962
      %v991 = vpack.c.b16 %v965, %v964
      %v992 = vpack.c.b16 %v967, %v966
      %v993 = vpack.c.b16 %v969, %v968
      %v994 = vpack.c.b16 %v971, %v970
      %v995 = vpack.c.b16 %v973, %v972
      %v996 = vpack.c.b16 %v975, %v974
      %v997 = vpack.c.b16 %v977, %v976
      %v998 = vpack.c.b16 %v979, %v978
      %v999 = vpack.c.b16 %v981, %v980
      %v1000 = vpack.c.b16 %v983, %v982
      %v1001 = vpack.c.b16 %v985, %v984
      %v1034 = vunpack.c.l.b16 %v285
      %v1035 = vunpack.c.l.b16 %v286
      %v1036 = vunpack.c.l.b16 %v287
      %v1037 = vunpack.c.l.b16 %v288
      %v1038 = vunpack.c.l.b16 %v289
      %v1039 = vunpack.c.l.b16 %v290
      %v1040 = vunpack.c.l.b16 %v291
      %v1041 = vunpack.c.l.b16 %v292
      %v1042 = vunpack.c.l.b16 %v293
      %v1043 = vunpack.c.l.b16 %v294
      %v1044 = vunpack.c.l.b16 %v295
      %v1045 = vunpack.c.l.b16 %v296
      %v1046 = vunpack.c.l.b16 %v297
      %v1047 = vunpack.c.l.b16 %v298
      %v1048 = vunpack.c.l.b16 %v299
      %v1049 = vunpack.c.l.b16 %v300
      %v1050 = vpack.c.b16 %v1035, %v1034
      %v1051 = vpack.c.b16 %v1037, %v1036
      %v1052 = vpack.c.b16 %v1039, %v1038
      %v1053 = vpack.c.b16 %v1041, %v1040
      %v1054 = vpack.c.b16 %v1043, %v1042
      %v1055 = vpack.c.b16 %v1045, %v1044
      %v1056 = vpack.c.b16 %v1047, %v1046
      %v1057 = vpack.c.b16 %v1049, %v1048
      %1066 = vmatpush.bf16.msra.mxu0 %v1057
      %1067 = vmatpush.bf16.msra.mxu0 %v1056
      %1068 = vmatpush.bf16.msra.mxu0 %v1055
      %1069 = vmatpush.bf16.msra.mxu0 %v1054
      %1070 = vmatpush.bf16.msra.mxu0 %v1053
      %1071 = vmatpush.bf16.msra.mxu0 %v1052
      %1072 = vmatpush.bf16.msra.mxu0 %v1051
      %1073 = vmatpush.bf16.msra.mxu0 %v1050
      %1074 = vmatmul.bf16.gmra.mxu0 %v986
      %v1075 = vpop.f32.mrf.mxu0
      %v1076 = vadd.f32 %v843, %v1075
      %v1077 = vpop.f32.mrf.mxu0
      %v1078 = vadd.f32 %v845, %v1077
      %1079 = vmatmul.bf16.gmra.mxu0 %v987
      %v1080 = vpop.f32.mrf.mxu0
      %v1081 = vadd.f32 %v848, %v1080
      %v1082 = vpop.f32.mrf.mxu0
      %v1083 = vadd.f32 %v850, %v1082
      %1084 = vmatmul.bf16.gmra.mxu0 %v988
      %v1085 = vpop.f32.mrf.mxu0
      %v1086 = vadd.f32 %v853, %v1085
      %v1087 = vpop.f32.mrf.mxu0
      %v1088 = vadd.f32 %v855, %v1087
      %1089 = vmatmul.bf16.gmra.mxu0 %v989
      %v1090 = vpop.f32.mrf.mxu0
      %v1091 = vadd.f32 %v858, %v1090
      %v1092 = vpop.f32.mrf.mxu0
      %v1093 = vadd.f32 %v860, %v1092
      %1094 = vmatmul.bf16.gmra.mxu0 %v990
      %v1095 = vpop.f32.mrf.mxu0
      %v1096 = vadd.f32 %v863, %v1095
      %v1097 = vpop.f32.mrf.mxu0
      %v1098 = vadd.f32 %v865, %v1097
      %1099 = vmatmul.bf16.gmra.mxu0 %v991
      %v1100 = vpop.f32.mrf.mxu0
      %v1101 = vadd.f32 %v868, %v1100
      %v1102 = vpop.f32.mrf.mxu0
      %v1103 = vadd.f32 %v870, %v1102
      %1104 = vmatmul.bf16.gmra.mxu0 %v992
      %v1105 = vpop.f32.mrf.mxu0
      %v1106 = vadd.f32 %v873, %v1105
      %v1107 = vpop.f32.mrf.mxu0
      %v1108 = vadd.f32 %v875, %v1107
      %1109 = vmatmul.bf16.gmra.mxu0 %v993
      %v1110 = vpop.f32.mrf.mxu0
      %v1111 = vadd.f32 %v878, %v1110
      %v1112 = vpop.f32.mrf.mxu0
      %v1113 = vadd.f32 %v880, %v1112
      %1114 = vmatmul.bf16.gmra.mxu0 %v994
      %v1115 = vpop.f32.mrf.mxu0
      %v1116 = vadd.f32 %v883, %v1115
      %v1117 = vpop.f32.mrf.mxu0
      %v1118 = vadd.f32 %v885, %v1117
      %1119 = vmatmul.bf16.gmra.mxu0 %v995
      %v1120 = vpop.f32.mrf.mxu0
      %v1121 = vadd.f32 %v888, %v1120
      %v1122 = vpop.f32.mrf.mxu0
      %v1123 = vadd.f32 %v890, %v1122
      %1124 = vmatmul.bf16.gmra.mxu0 %v996
      %v1125 = vpop.f32.mrf.mxu0
      %v1126 = vadd.f32 %v893, %v1125
      %v1127 = vpop.f32.mrf.mxu0
      %v1128 = vadd.f32 %v895, %v1127
      %1129 = vmatmul.bf16.gmra.mxu0 %v997
      %v1130 = vpop.f32.mrf.mxu0
      %v1131 = vadd.f32 %v898, %v1130
      %v1132 = vpop.f32.mrf.mxu0
      %v1133 = vadd.f32 %v900, %v1132
      %1134 = vmatmul.bf16.gmra.mxu0 %v998
      %v1135 = vpop.f32.mrf.mxu0
      %v1136 = vadd.f32 %v903, %v1135
      %v1137 = vpop.f32.mrf.mxu0
      %v1138 = vadd.f32 %v905, %v1137
      %1139 = vmatmul.bf16.gmra.mxu0 %v999
      %v1140 = vpop.f32.mrf.mxu0
      %v1141 = vadd.f32 %v908, %v1140
      %v1142 = vpop.f32.mrf.mxu0
      %v1143 = vadd.f32 %v910, %v1142
      %1144 = vmatmul.bf16.gmra.mxu0 %v1000
      %v1145 = vpop.f32.mrf.mxu0
      %v1146 = vadd.f32 %v913, %v1145
      %v1147 = vpop.f32.mrf.mxu0
      %v1148 = vadd.f32 %v915, %v1147
      %1149 = vmatmul.bf16.gmra.mxu0 %v1001
      %v1150 = vpop.f32.mrf.mxu0
      %v1151 = vadd.f32 %v918, %v1150
      %v1152 = vpop.f32.mrf.mxu0
      %v1153 = vadd.f32 %v920, %v1152
      %1154 = vdwg.mxu0
      %v1155 = vld [vmem:[%s246] sm:$0xe]
      %v1156 = vld [vmem:[%s246 + $0xc] sm:$0xe]
      %v1157 = vld [vmem:[%s246 + $0x18] sm:$0xe]
      %v1158 = vld [vmem:[%s246 + $0x24] sm:$0xe]
      %v1159 = vld [vmem:[%s246 + $0x30] sm:$0xe]
      %v1160 = vld [vmem:[%s246 + $0x3c] sm:$0xe]
      %v1161 = vld [vmem:[%s246 + $0x48] sm:$0xe]
      %v1162 = vld [vmem:[%s246 + $0x54] sm:$0xe]
      %v1163 = vld [vmem:[%s246 + $0x60] sm:$0xe]
      %v1164 = vld [vmem:[%s246 + $0x6c] sm:$0xe]
      %v1165 = vld [vmem:[%s246 + $0x78] sm:$0xe]
      %v1166 = vld [vmem:[%s246 + $0x84] sm:$0xe]
      %v1167 = vld [vmem:[%s246 + $0x90] sm:$0xe]
      %v1168 = vld [vmem:[%s246 + $0x9c] sm:$0xe]
      %v1169 = vld [vmem:[%s246 + $0xa8] sm:$0xe]
      %v1170 = vld [vmem:[%s246 + $0xb4] sm:$0xe]
      %vm1203 = vcmask 1042432
      %vm1204 = vcmask 1046532
      %vm1205 = vmor %vm1203, %vm1204
      %v1206 = vrot.slane %v1155, 5
      %v1207 = vrot.slane %v1206, 4
      %v1208 = vrot.slane %v254, 5
      %v1209 = vsel %vm1205, %v1207, %v1208
      %v1210 = vrot.slane %v1208, 4
      %v1211 = vrot.slane %v301, 5
      %v1212 = vsel %vm1205, %v1210, %v1211
      %v1213 = vrot.slane %v1156, 5
      %v1214 = vrot.slane %v1213, 4
      %v1215 = vrot.slane %v256, 5
      %v1216 = vsel %vm1205, %v1214, %v1215
      %v1217 = vrot.slane %v1215, 4
      %v1218 = vrot.slane %v302, 5
      %v1219 = vsel %vm1205, %v1217, %v1218
      %v1220 = vrot.slane %v1157, 5
      %v1221 = vrot.slane %v1220, 4
      %v1222 = vrot.slane %v258, 5
      %v1223 = vsel %vm1205, %v1221, %v1222
      %v1224 = vrot.slane %v1222, 4
      %v1225 = vrot.slane %v303, 5
      %v1226 = vsel %vm1205, %v1224, %v1225
      %v1227 = vrot.slane %v1158, 5
      %v1228 = vrot.slane %v1227, 4
      %v1229 = vrot.slane %v260, 5
      %v1230 = vsel %vm1205, %v1228, %v1229
      %v1231 = vrot.slane %v1229, 4
      %v1232 = vrot.slane %v304, 5
      %v1233 = vsel %vm1205, %v1231, %v1232
      %v1234 = vrot.slane %v1159, 5
      %v1235 = vrot.slane %v1234, 4
      %v1236 = vrot.slane %v262, 5
      %v1237 = vsel %vm1205, %v1235, %v1236
      %v1238 = vrot.slane %v1236, 4
      %v1239 = vrot.slane %v305, 5
      %v1240 = vsel %vm1205, %v1238, %v1239
      %v1241 = vrot.slane %v1160, 5
      %v1242 = vrot.slane %v1241, 4
      %v1243 = vrot.slane %v264, 5
      %v1244 = vsel %vm1205, %v1242, %v1243
      %v1245 = vrot.slane %v1243, 4
      %v1246 = vrot.slane %v306, 5
      %v1247 = vsel %vm1205, %v1245, %v1246
      %v1248 = vrot.slane %v1161, 5
      %v1249 = vrot.slane %v1248, 4
      %v1250 = vrot.slane %v266, 5
      %v1251 = vsel %vm1205, %v1249, %v1250
      %v1252 = vrot.slane %v1250, 4
      %v1253 = vrot.slane %v307, 5
      %v1254 = vsel %vm1205, %v1252, %v1253
      %v1255 = vrot.slane %v1162, 5
      %v1256 = vrot.slane %v1255, 4
      %v1257 = vrot.slane %v268, 5
      %v1258 = vsel %vm1205, %v1256, %v1257
      %v1259 = vrot.slane %v1257, 4
      %v1260 = vrot.slane %v308, 5
      %v1261 = vsel %vm1205, %v1259, %v1260
      %v1262 = vrot.slane %v1163, 5
      %v1263 = vrot.slane %v1262, 4
      %v1264 = vrot.slane %v270, 5
      %v1265 = vsel %vm1205, %v1263, %v1264
      %v1266 = vrot.slane %v1264, 4
      %v1267 = vrot.slane %v309, 5
      %v1268 = vsel %vm1205, %v1266, %v1267
      %v1269 = vrot.slane %v1164, 5
      %v1270 = vrot.slane %v1269, 4
      %v1271 = vrot.slane %v272, 5
      %v1272 = vsel %vm1205, %v1270, %v1271
      %v1273 = vrot.slane %v1271, 4
      %v1274 = vrot.slane %v310, 5
      %v1275 = vsel %vm1205, %v1273, %v1274
      %v1276 = vrot.slane %v1165, 5
      %v1277 = vrot.slane %v1276, 4
      %v1278 = vrot.slane %v274, 5
      %v1279 = vsel %vm1205, %v1277, %v1278
      %v1280 = vrot.slane %v1278, 4
      %v1281 = vrot.slane %v311, 5
      %v1282 = vsel %vm1205, %v1280, %v1281
      %v1283 = vrot.slane %v1166, 5
      %v1284 = vrot.slane %v1283, 4
      %v1285 = vrot.slane %v276, 5
      %v1286 = vsel %vm1205, %v1284, %v1285
      %v1287 = vrot.slane %v1285, 4
      %v1288 = vrot.slane %v312, 5
      %v1289 = vsel %vm1205, %v1287, %v1288
      %v1290 = vrot.slane %v1167, 5
      %v1291 = vrot.slane %v1290, 4
      %v1292 = vrot.slane %v278, 5
      %v1293 = vsel %vm1205, %v1291, %v1292
      %v1294 = vrot.slane %v1292, 4
      %v1295 = vrot.slane %v313, 5
      %v1296 = vsel %vm1205, %v1294, %v1295
      %v1297 = vrot.slane %v1168, 5
      %v1298 = vrot.slane %v1297, 4
      %v1299 = vrot.slane %v280, 5
      %v1300 = vsel %vm1205, %v1298, %v1299
      %v1301 = vrot.slane %v1299, 4
      %v1302 = vrot.slane %v314, 5
      %v1303 = vsel %vm1205, %v1301, %v1302
      %v1304 = vrot.slane %v1169, 5
      %v1305 = vrot.slane %v1304, 4
      %v1306 = vrot.slane %v282, 5
      %v1307 = vsel %vm1205, %v1305, %v1306
      %v1308 = vrot.slane %v1306, 4
      %v1309 = vrot.slane %v315, 5
      %v1310 = vsel %vm1205, %v1308, %v1309
      %v1311 = vrot.slane %v1170, 5
      %v1312 = vrot.slane %v1311, 4
      %v1313 = vrot.slane %v284, 5
      %v1314 = vsel %vm1205, %v1312, %v1313
      %v1315 = vrot.slane %v1313, 4
      %v1316 = vrot.slane %v316, 5
      %v1317 = vsel %vm1205, %v1315, %v1316
      %s1318 = scalar_lea.vmem %s1, 128
      %v1319 = vld [vmem:[%s1318] sm:$0xf]
      %v1320 = vld [vmem:[%s1318 + $0x4] sm:$0xf]
      %v1321 = vld [vmem:[%s1318 + $0x8] sm:$0xf]
      %v1322 = vld [vmem:[%s1318 + $0xc] sm:$0xf]
      %v1323 = vld [vmem:[%s1318 + $0x10] sm:$0xf]
      %v1324 = vld [vmem:[%s1318 + $0x14] sm:$0xf]
      %v1325 = vld [vmem:[%s1318 + $0x18] sm:$0xf]
      %v1326 = vld [vmem:[%s1318 + $0x1c] sm:$0xf]
      %v1327 = vld [vmem:[%s1318 + $0x20] sm:$0xf]
      %v1328 = vld [vmem:[%s1318 + $0x24] sm:$0xf]
      %v1329 = vld [vmem:[%s1318 + $0x28] sm:$0xf]
      %v1330 = vld [vmem:[%s1318 + $0x2c] sm:$0xf]
      %v1331 = vld [vmem:[%s1318 + $0x30] sm:$0xf]
      %v1332 = vld [vmem:[%s1318 + $0x34] sm:$0xf]
      %v1333 = vld [vmem:[%s1318 + $0x38] sm:$0xf]
      %v1334 = vld [vmem:[%s1318 + $0x3c] sm:$0xf]
      %v1335 = vunpack.c.l.b16 %v1209
      %v1336 = vunpack.c.l.b16 %v1212
      %v1337 = vunpack.c.l.b16 %v1216
      %v1338 = vunpack.c.l.b16 %v1219
      %v1339 = vunpack.c.l.b16 %v1223
      %v1340 = vunpack.c.l.b16 %v1226
      %v1341 = vunpack.c.l.b16 %v1230
      %v1342 = vunpack.c.l.b16 %v1233
      %v1343 = vunpack.c.l.b16 %v1237
      %v1344 = vunpack.c.l.b16 %v1240
      %v1345 = vunpack.c.l.b16 %v1244
      %v1346 = vunpack.c.l.b16 %v1247
      %v1347 = vunpack.c.l.b16 %v1251
      %v1348 = vunpack.c.l.b16 %v1254
      %v1349 = vunpack.c.l.b16 %v1258
      %v1350 = vunpack.c.l.b16 %v1261
      %v1351 = vunpack.c.l.b16 %v1265
      %v1352 = vunpack.c.l.b16 %v1268
      %v1353 = vunpack.c.l.b16 %v1272
      %v1354 = vunpack.c.l.b16 %v1275
      %v1355 = vunpack.c.l.b16 %v1279
      %v1356 = vunpack.c.l.b16 %v1282
      %v1357 = vunpack.c.l.b16 %v1286
      %v1358 = vunpack.c.l.b16 %v1289
      %v1359 = vunpack.c.l.b16 %v1293
      %v1360 = vunpack.c.l.b16 %v1296
      %v1361 = vunpack.c.l.b16 %v1300
      %v1362 = vunpack.c.l.b16 %v1303
      %v1363 = vunpack.c.l.b16 %v1307
      %v1364 = vunpack.c.l.b16 %v1310
      %v1365 = vunpack.c.l.b16 %v1314
      %v1366 = vunpack.c.l.b16 %v1317
      %v1367 = vpack.c.b16 %v1336, %v1335
      %v1368 = vpack.c.b16 %v1338, %v1337
      %v1369 = vpack.c.b16 %v1340, %v1339
      %v1370 = vpack.c.b16 %v1342, %v1341
      %v1371 = vpack.c.b16 %v1344, %v1343
      %v1372 = vpack.c.b16 %v1346, %v1345
      %v1373 = vpack.c.b16 %v1348, %v1347
      %v1374 = vpack.c.b16 %v1350, %v1349
      %v1375 = vpack.c.b16 %v1352, %v1351
      %v1376 = vpack.c.b16 %v1354, %v1353
      %v1377 = vpack.c.b16 %v1356, %v1355
      %v1378 = vpack.c.b16 %v1358, %v1357
      %v1379 = vpack.c.b16 %v1360, %v1359
      %v1380 = vpack.c.b16 %v1362, %v1361
      %v1381 = vpack.c.b16 %v1364, %v1363
      %v1382 = vpack.c.b16 %v1366, %v1365
      %v1415 = vunpack.c.l.b16 %v1319
      %v1416 = vunpack.c.l.b16 %v1320
      %v1417 = vunpack.c.l.b16 %v1321
      %v1418 = vunpack.c.l.b16 %v1322
      %v1419 = vunpack.c.l.b16 %v1323
      %v1420 = vunpack.c.l.b16 %v1324
      %v1421 = vunpack.c.l.b16 %v1325
      %v1422 = vunpack.c.l.b16 %v1326
      %v1423 = vunpack.c.l.b16 %v1327
      %v1424 = vunpack.c.l.b16 %v1328
      %v1425 = vunpack.c.l.b16 %v1329
      %v1426 = vunpack.c.l.b16 %v1330
      %v1427 = vunpack.c.l.b16 %v1331
      %v1428 = vunpack.c.l.b16 %v1332
      %v1429 = vunpack.c.l.b16 %v1333
      %v1430 = vunpack.c.l.b16 %v1334
      %v1431 = vpack.c.b16 %v1416, %v1415
      %v1432 = vpack.c.b16 %v1418, %v1417
      %v1433 = vpack.c.b16 %v1420, %v1419
      %v1434 = vpack.c.b16 %v1422, %v1421
      %v1435 = vpack.c.b16 %v1424, %v1423
      %v1436 = vpack.c.b16 %v1426, %v1425
      %v1437 = vpack.c.b16 %v1428, %v1427
      %v1438 = vpack.c.b16 %v1430, %v1429
      %1447 = vmatpush.bf16.msra.mxu0 %v1438
      %1448 = vmatpush.bf16.msra.mxu0 %v1437
      %1449 = vmatpush.bf16.msra.mxu0 %v1436
      %1450 = vmatpush.bf16.msra.mxu0 %v1435
      %1451 = vmatpush.bf16.msra.mxu0 %v1434
      %1452 = vmatpush.bf16.msra.mxu0 %v1433
      %1453 = vmatpush.bf16.msra.mxu0 %v1432
      %1454 = vmatpush.bf16.msra.mxu0 %v1431
      %1455 = vmatmul.bf16.gmra.mxu0 %v1367
      %v1456 = vpop.f32.mrf.mxu0
      %v1457 = vadd.f32 0.0, %v1456
      %v1458 = vpop.f32.mrf.mxu0
      %v1459 = vadd.f32 0.0, %v1458
      %1460 = vmatmul.bf16.gmra.mxu0 %v1368
      %v1461 = vpop.f32.mrf.mxu0
      %v1462 = vadd.f32 0.0, %v1461
      %v1463 = vpop.f32.mrf.mxu0
      %v1464 = vadd.f32 0.0, %v1463
      %1465 = vmatmul.bf16.gmra.mxu0 %v1369
      %v1466 = vpop.f32.mrf.mxu0
      %v1467 = vadd.f32 0.0, %v1466
      %v1468 = vpop.f32.mrf.mxu0
      %v1469 = vadd.f32 0.0, %v1468
      %1470 = vmatmul.bf16.gmra.mxu0 %v1370
      %v1471 = vpop.f32.mrf.mxu0
      %v1472 = vadd.f32 0.0, %v1471
      %v1473 = vpop.f32.mrf.mxu0
      %v1474 = vadd.f32 0.0, %v1473
      %1475 = vmatmul.bf16.gmra.mxu0 %v1371
      %v1476 = vpop.f32.mrf.mxu0
      %v1477 = vadd.f32 0.0, %v1476
      %v1478 = vpop.f32.mrf.mxu0
      %v1479 = vadd.f32 0.0, %v1478
      %1480 = vmatmul.bf16.gmra.mxu0 %v1372
      %v1481 = vpop.f32.mrf.mxu0
      %v1482 = vadd.f32 0.0, %v1481
      %v1483 = vpop.f32.mrf.mxu0
      %v1484 = vadd.f32 0.0, %v1483
      %1485 = vmatmul.bf16.gmra.mxu0 %v1373
      %v1486 = vpop.f32.mrf.mxu0
      %v1487 = vadd.f32 0.0, %v1486
      %v1488 = vpop.f32.mrf.mxu0
      %v1489 = vadd.f32 0.0, %v1488
      %1490 = vmatmul.bf16.gmra.mxu0 %v1374
      %v1491 = vpop.f32.mrf.mxu0
      %v1492 = vadd.f32 0.0, %v1491
      %v1493 = vpop.f32.mrf.mxu0
      %v1494 = vadd.f32 0.0, %v1493
      %1495 = vmatmul.bf16.gmra.mxu0 %v1375
      %v1496 = vpop.f32.mrf.mxu0
      %v1497 = vadd.f32 0.0, %v1496
      %v1498 = vpop.f32.mrf.mxu0
      %v1499 = vadd.f32 0.0, %v1498
      %1500 = vmatmul.bf16.gmra.mxu0 %v1376
      %v1501 = vpop.f32.mrf.mxu0
      %v1502 = vadd.f32 0.0, %v1501
      %v1503 = vpop.f32.mrf.mxu0
      %v1504 = vadd.f32 0.0, %v1503
      %1505 = vmatmul.bf16.gmra.mxu0 %v1377
      %v1506 = vpop.f32.mrf.mxu0
      %v1507 = vadd.f32 0.0, %v1506
      %v1508 = vpop.f32.mrf.mxu0
      %v1509 = vadd.f32 0.0, %v1508
      %1510 = vmatmul.bf16.gmra.mxu0 %v1378
      %v1511 = vpop.f32.mrf.mxu0
      %v1512 = vadd.f32 0.0, %v1511
      %v1513 = vpop.f32.mrf.mxu0
      %v1514 = vadd.f32 0.0, %v1513
      %1515 = vmatmul.bf16.gmra.mxu0 %v1379
      %v1516 = vpop.f32.mrf.mxu0
      %v1517 = vadd.f32 0.0, %v1516
      %v1518 = vpop.f32.mrf.mxu0
      %v1519 = vadd.f32 0.0, %v1518
      %1520 = vmatmul.bf16.gmra.mxu0 %v1380
      %v1521 = vpop.f32.mrf.mxu0
      %v1522 = vadd.f32 0.0, %v1521
      %v1523 = vpop.f32.mrf.mxu0
      %v1524 = vadd.f32 0.0, %v1523
      %1525 = vmatmul.bf16.gmra.mxu0 %v1381
      %v1526 = vpop.f32.mrf.mxu0
      %v1527 = vadd.f32 0.0, %v1526
      %v1528 = vpop.f32.mrf.mxu0
      %v1529 = vadd.f32 0.0, %v1528
      %1530 = vmatmul.bf16.gmra.mxu0 %v1382
      %v1531 = vpop.f32.mrf.mxu0
      %v1532 = vadd.f32 0.0, %v1531
      %v1533 = vpop.f32.mrf.mxu0
      %v1534 = vadd.f32 0.0, %v1533
      %1535 = vdwg.mxu0
      %v1536 = vadd.f32 %v1076, %v1457
      %v1537 = vadd.f32 %v1078, %v1459
      %v1538 = vadd.f32 %v1081, %v1462
      %v1539 = vadd.f32 %v1083, %v1464
      %v1540 = vadd.f32 %v1086, %v1467
      %v1541 = vadd.f32 %v1088, %v1469
      %v1542 = vadd.f32 %v1091, %v1472
      %v1543 = vadd.f32 %v1093, %v1474
      %v1544 = vadd.f32 %v1096, %v1477
      %v1545 = vadd.f32 %v1098, %v1479
      %v1546 = vadd.f32 %v1101, %v1482
      %v1547 = vadd.f32 %v1103, %v1484
      %v1548 = vadd.f32 %v1106, %v1487
      %v1549 = vadd.f32 %v1108, %v1489
      %v1550 = vadd.f32 %v1111, %v1492
      %v1551 = vadd.f32 %v1113, %v1494
      %v1552 = vadd.f32 %v1116, %v1497
      %v1553 = vadd.f32 %v1118, %v1499
      %v1554 = vadd.f32 %v1121, %v1502
      %v1555 = vadd.f32 %v1123, %v1504
      %v1556 = vadd.f32 %v1126, %v1507
      %v1557 = vadd.f32 %v1128, %v1509
      %v1558 = vadd.f32 %v1131, %v1512
      %v1559 = vadd.f32 %v1133, %v1514
      %v1560 = vadd.f32 %v1136, %v1517
      %v1561 = vadd.f32 %v1138, %v1519
      %v1562 = vadd.f32 %v1141, %v1522
      %v1563 = vadd.f32 %v1143, %v1524
      %v1564 = vadd.f32 %v1146, %v1527
      %v1565 = vadd.f32 %v1148, %v1529
      %v1566 = vadd.f32 %v1151, %v1532
      %v1567 = vadd.f32 %v1153, %v1534
      %s1568 = scalar_lea.vmem %s246, 12
      %v1569 = vld [vmem:[%s1568] sm:$0xf]
      %v1570 = vld [vmem:[%s1568 + $0x4] sm:$0xf]
      %v1571 = vld [vmem:[%s1568 + $0xc] sm:$0xf]
      %v1572 = vld [vmem:[%s1568 + $0x10] sm:$0xf]
      %v1573 = vld [vmem:[%s1568 + $0x18] sm:$0xf]
      %v1574 = vld [vmem:[%s1568 + $0x1c] sm:$0xf]
      %v1575 = vld [vmem:[%s1568 + $0x24] sm:$0xf]
      %v1576 = vld [vmem:[%s1568 + $0x28] sm:$0xf]
      %v1577 = vld [vmem:[%s1568 + $0x30] sm:$0xf]
      %v1578 = vld [vmem:[%s1568 + $0x34] sm:$0xf]
      %v1579 = vld [vmem:[%s1568 + $0x3c] sm:$0xf]
      %v1580 = vld [vmem:[%s1568 + $0x40] sm:$0xf]
      %v1581 = vld [vmem:[%s1568 + $0x48] sm:$0xf]
      %v1582 = vld [vmem:[%s1568 + $0x4c] sm:$0xf]
      %v1583 = vld [vmem:[%s1568 + $0x54] sm:$0xf]
      %v1584 = vld [vmem:[%s1568 + $0x58] sm:$0xf]
      %v1585 = vld [vmem:[%s1568 + $0x60] sm:$0xf]
      %v1586 = vld [vmem:[%s1568 + $0x64] sm:$0xf]
      %v1587 = vld [vmem:[%s1568 + $0x6c] sm:$0xf]
      %v1588 = vld [vmem:[%s1568 + $0x70] sm:$0xf]
      %v1589 = vld [vmem:[%s1568 + $0x78] sm:$0xf]
      %v1590 = vld [vmem:[%s1568 + $0x7c] sm:$0xf]
      %v1591 = vld [vmem:[%s1568 + $0x84] sm:$0xf]
      %v1592 = vld [vmem:[%s1568 + $0x88] sm:$0xf]
      %v1593 = vld [vmem:[%s1568 + $0x90] sm:$0xf]
      %v1594 = vld [vmem:[%s1568 + $0x94] sm:$0xf]
      %v1595 = vld [vmem:[%s1568 + $0x9c] sm:$0xf]
      %v1596 = vld [vmem:[%s1568 + $0xa0] sm:$0xf]
      %v1597 = vld [vmem:[%s1568 + $0xa8] sm:$0xf]
      %v1598 = vld [vmem:[%s1568 + $0xac] sm:$0xf]
      %v1599 = vld [vmem:[%s1568 + $0xb4] sm:$0xf]
      %v1600 = vld [vmem:[%s1568 + $0xb8] sm:$0xf]
      %s1601 = scalar_lea.vmem %s1, 192
      %v1602 = vld [vmem:[%s1601] sm:$0xf]
      %v1603 = vld [vmem:[%s1601 + $0x4] sm:$0xf]
      %v1604 = vld [vmem:[%s1601 + $0x8] sm:$0xf]
      %v1605 = vld [vmem:[%s1601 + $0xc] sm:$0xf]
      %v1606 = vld [vmem:[%s1601 + $0x10] sm:$0xf]
      %v1607 = vld [vmem:[%s1601 + $0x14] sm:$0xf]
      %v1608 = vld [vmem:[%s1601 + $0x18] sm:$0xf]
      %v1609 = vld [vmem:[%s1601 + $0x1c] sm:$0xf]
      %v1610 = vld [vmem:[%s1601 + $0x20] sm:$0xf]
      %v1611 = vld [vmem:[%s1601 + $0x24] sm:$0xf]
      %v1612 = vld [vmem:[%s1601 + $0x28] sm:$0xf]
      %v1613 = vld [vmem:[%s1601 + $0x2c] sm:$0xf]
      %v1614 = vld [vmem:[%s1601 + $0x30] sm:$0xf]
      %v1615 = vld [vmem:[%s1601 + $0x34] sm:$0xf]
      %v1616 = vld [vmem:[%s1601 + $0x38] sm:$0xf]
      %v1617 = vld [vmem:[%s1601 + $0x3c] sm:$0xf]
      %v1650 = vunpack.c.l.b16 %v1569
      %v1651 = vunpack.c.l.b16 %v1570
      %v1652 = vunpack.c.l.b16 %v1571
      %v1653 = vunpack.c.l.b16 %v1572
      %v1654 = vunpack.c.l.b16 %v1573
      %v1655 = vunpack.c.l.b16 %v1574
      %v1656 = vunpack.c.l.b16 %v1575
      %v1657 = vunpack.c.l.b16 %v1576
      %v1658 = vunpack.c.l.b16 %v1577
      %v1659 = vunpack.c.l.b16 %v1578
      %v1660 = vunpack.c.l.b16 %v1579
      %v1661 = vunpack.c.l.b16 %v1580
      %v1662 = vunpack.c.l.b16 %v1581
      %v1663 = vunpack.c.l.b16 %v1582
      %v1664 = vunpack.c.l.b16 %v1583
      %v1665 = vunpack.c.l.b16 %v1584
      %v1666 = vunpack.c.l.b16 %v1585
      %v1667 = vunpack.c.l.b16 %v1586
      %v1668 = vunpack.c.l.b16 %v1587
      %v1669 = vunpack.c.l.b16 %v1588
      %v1670 = vunpack.c.l.b16 %v1589
      %v1671 = vunpack.c.l.b16 %v1590
      %v1672 = vunpack.c.l.b16 %v1591
      %v1673 = vunpack.c.l.b16 %v1592
      %v1674 = vunpack.c.l.b16 %v1593
      %v1675 = vunpack.c.l.b16 %v1594
      %v1676 = vunpack.c.l.b16 %v1595
      %v1677 = vunpack.c.l.b16 %v1596
      %v1678 = vunpack.c.l.b16 %v1597
      %v1679 = vunpack.c.l.b16 %v1598
      %v1680 = vunpack.c.l.b16 %v1599
      %v1681 = vunpack.c.l.b16 %v1600
      %v1682 = vpack.c.b16 %v1651, %v1650
      %v1683 = vpack.c.b16 %v1653, %v1652
      %v1684 = vpack.c.b16 %v1655, %v1654
      %v1685 = vpack.c.b16 %v1657, %v1656
      %v1686 = vpack.c.b16 %v1659, %v1658
      %v1687 = vpack.c.b16 %v1661, %v1660
      %v1688 = vpack.c.b16 %v1663, %v1662
      %v1689 = vpack.c.b16 %v1665, %v1664
      %v1690 = vpack.c.b16 %v1667, %v1666
      %v1691 = vpack.c.b16 %v1669, %v1668
      %v1692 = vpack.c.b16 %v1671, %v1670
      %v1693 = vpack.c.b16 %v1673, %v1672
      %v1694 = vpack.c.b16 %v1675, %v1674
      %v1695 = vpack.c.b16 %v1677, %v1676
      %v1696 = vpack.c.b16 %v1679, %v1678
      %v1697 = vpack.c.b16 %v1681, %v1680
      %v1730 = vunpack.c.l.b16 %v1602
      %v1731 = vunpack.c.l.b16 %v1603
      %v1732 = vunpack.c.l.b16 %v1604
      %v1733 = vunpack.c.l.b16 %v1605
      %v1734 = vunpack.c.l.b16 %v1606
      %v1735 = vunpack.c.l.b16 %v1607
      %v1736 = vunpack.c.l.b16 %v1608
      %v1737 = vunpack.c.l.b16 %v1609
      %v1738 = vunpack.c.l.b16 %v1610
      %v1739 = vunpack.c.l.b16 %v1611
      %v1740 = vunpack.c.l.b16 %v1612
      %v1741 = vunpack.c.l.b16 %v1613
      %v1742 = vunpack.c.l.b16 %v1614
      %v1743 = vunpack.c.l.b16 %v1615
      %v1744 = vunpack.c.l.b16 %v1616
      %v1745 = vunpack.c.l.b16 %v1617
      %v1746 = vpack.c.b16 %v1731, %v1730
      %v1747 = vpack.c.b16 %v1733, %v1732
      %v1748 = vpack.c.b16 %v1735, %v1734
      %v1749 = vpack.c.b16 %v1737, %v1736
      %v1750 = vpack.c.b16 %v1739, %v1738
      %v1751 = vpack.c.b16 %v1741, %v1740
      %v1752 = vpack.c.b16 %v1743, %v1742
      %v1753 = vpack.c.b16 %v1745, %v1744
      %1762 = vmatpush.bf16.msra.mxu0 %v1753
      %1763 = vmatpush.bf16.msra.mxu0 %v1752
      %1764 = vmatpush.bf16.msra.mxu0 %v1751
      %1765 = vmatpush.bf16.msra.mxu0 %v1750
      %1766 = vmatpush.bf16.msra.mxu0 %v1749
      %1767 = vmatpush.bf16.msra.mxu0 %v1748
      %1768 = vmatpush.bf16.msra.mxu0 %v1747
      %1769 = vmatpush.bf16.msra.mxu0 %v1746
      %1770 = vmatmul.bf16.gmra.mxu0 %v1682
      %v1771 = vpop.f32.mrf.mxu0
      %v1772 = vadd.f32 0.0, %v1771
      %v1773 = vpop.f32.mrf.mxu0
      %v1774 = vadd.f32 0.0, %v1773
      %1775 = vmatmul.bf16.gmra.mxu0 %v1683
      %v1776 = vpop.f32.mrf.mxu0
      %v1777 = vadd.f32 0.0, %v1776
      %v1778 = vpop.f32.mrf.mxu0
      %v1779 = vadd.f32 0.0, %v1778
      %1780 = vmatmul.bf16.gmra.mxu0 %v1684
      %v1781 = vpop.f32.mrf.mxu0
      %v1782 = vadd.f32 0.0, %v1781
      %v1783 = vpop.f32.mrf.mxu0
      %v1784 = vadd.f32 0.0, %v1783
      %1785 = vmatmul.bf16.gmra.mxu0 %v1685
      %v1786 = vpop.f32.mrf.mxu0
      %v1787 = vadd.f32 0.0, %v1786
      %v1788 = vpop.f32.mrf.mxu0
      %v1789 = vadd.f32 0.0, %v1788
      %1790 = vmatmul.bf16.gmra.mxu0 %v1686
      %v1791 = vpop.f32.mrf.mxu0
      %v1792 = vadd.f32 0.0, %v1791
      %v1793 = vpop.f32.mrf.mxu0
      %v1794 = vadd.f32 0.0, %v1793
      %1795 = vmatmul.bf16.gmra.mxu0 %v1687
      %v1796 = vpop.f32.mrf.mxu0
      %v1797 = vadd.f32 0.0, %v1796
      %v1798 = vpop.f32.mrf.mxu0
      %v1799 = vadd.f32 0.0, %v1798
      %1800 = vmatmul.bf16.gmra.mxu0 %v1688
      %v1801 = vpop.f32.mrf.mxu0
      %v1802 = vadd.f32 0.0, %v1801
      %v1803 = vpop.f32.mrf.mxu0
      %v1804 = vadd.f32 0.0, %v1803
      %1805 = vmatmul.bf16.gmra.mxu0 %v1689
      %v1806 = vpop.f32.mrf.mxu0
      %v1807 = vadd.f32 0.0, %v1806
      %v1808 = vpop.f32.mrf.mxu0
      %v1809 = vadd.f32 0.0, %v1808
      %1810 = vmatmul.bf16.gmra.mxu0 %v1690
      %v1811 = vpop.f32.mrf.mxu0
      %v1812 = vadd.f32 0.0, %v1811
      %v1813 = vpop.f32.mrf.mxu0
      %v1814 = vadd.f32 0.0, %v1813
      %1815 = vmatmul.bf16.gmra.mxu0 %v1691
      %v1816 = vpop.f32.mrf.mxu0
      %v1817 = vadd.f32 0.0, %v1816
      %v1818 = vpop.f32.mrf.mxu0
      %v1819 = vadd.f32 0.0, %v1818
      %1820 = vmatmul.bf16.gmra.mxu0 %v1692
      %v1821 = vpop.f32.mrf.mxu0
      %v1822 = vadd.f32 0.0, %v1821
      %v1823 = vpop.f32.mrf.mxu0
      %v1824 = vadd.f32 0.0, %v1823
      %1825 = vmatmul.bf16.gmra.mxu0 %v1693
      %v1826 = vpop.f32.mrf.mxu0
      %v1827 = vadd.f32 0.0, %v1826
      %v1828 = vpop.f32.mrf.mxu0
      %v1829 = vadd.f32 0.0, %v1828
      %1830 = vmatmul.bf16.gmra.mxu0 %v1694
      %v1831 = vpop.f32.mrf.mxu0
      %v1832 = vadd.f32 0.0, %v1831
      %v1833 = vpop.f32.mrf.mxu0
      %v1834 = vadd.f32 0.0, %v1833
      %1835 = vmatmul.bf16.gmra.mxu0 %v1695
      %v1836 = vpop.f32.mrf.mxu0
      %v1837 = vadd.f32 0.0, %v1836
      %v1838 = vpop.f32.mrf.mxu0
      %v1839 = vadd.f32 0.0, %v1838
      %1840 = vmatmul.bf16.gmra.mxu0 %v1696
      %v1841 = vpop.f32.mrf.mxu0
      %v1842 = vadd.f32 0.0, %v1841
      %v1843 = vpop.f32.mrf.mxu0
      %v1844 = vadd.f32 0.0, %v1843
      %1845 = vmatmul.bf16.gmra.mxu0 %v1697
      %v1846 = vpop.f32.mrf.mxu0
      %v1847 = vadd.f32 0.0, %v1846
      %v1848 = vpop.f32.mrf.mxu0
      %v1849 = vadd.f32 0.0, %v1848
      %1850 = vdwg.mxu0
      %v1851 = vadd.f32 %v1536, %v1772
      %v1852 = vadd.f32 %v1537, %v1774
      %v1853 = vadd.f32 %v1538, %v1777
      %v1854 = vadd.f32 %v1539, %v1779
      %v1855 = vadd.f32 %v1540, %v1782
      %v1856 = vadd.f32 %v1541, %v1784
      %v1857 = vadd.f32 %v1542, %v1787
      %v1858 = vadd.f32 %v1543, %v1789
      %v1859 = vadd.f32 %v1544, %v1792
      %v1860 = vadd.f32 %v1545, %v1794
      %v1861 = vadd.f32 %v1546, %v1797
      %v1862 = vadd.f32 %v1547, %v1799
      %v1863 = vadd.f32 %v1548, %v1802
      %v1864 = vadd.f32 %v1549, %v1804
      %v1865 = vadd.f32 %v1550, %v1807
      %v1866 = vadd.f32 %v1551, %v1809
      %v1867 = vadd.f32 %v1552, %v1812
      %v1868 = vadd.f32 %v1553, %v1814
      %v1869 = vadd.f32 %v1554, %v1817
      %v1870 = vadd.f32 %v1555, %v1819
      %v1871 = vadd.f32 %v1556, %v1822
      %v1872 = vadd.f32 %v1557, %v1824
      %v1873 = vadd.f32 %v1558, %v1827
      %v1874 = vadd.f32 %v1559, %v1829
      %v1875 = vadd.f32 %v1560, %v1832
      %v1876 = vadd.f32 %v1561, %v1834
      %v1877 = vadd.f32 %v1562, %v1837
      %v1878 = vadd.f32 %v1563, %v1839
      %v1879 = vadd.f32 %v1564, %v1842
      %v1880 = vadd.f32 %v1565, %v1844
      %v1881 = vadd.f32 %v1566, %v1847
      %v1882 = vadd.f32 %v1567, %v1849
      %v1883 = vld [vmem:[%s1568] sm:$0xf]
      %v1884 = vld [vmem:[%s1568 + $0x4] sm:$0xf]
      %v1885 = vld [vmem:[%s1568 + $0x8] sm:$0x1]
      %v1886 = vld [vmem:[%s1568 + $0xc] sm:$0xf]
      %v1887 = vld [vmem:[%s1568 + $0x10] sm:$0xf]
      %v1888 = vld [vmem:[%s1568 + $0x14] sm:$0x1]
      %v1889 = vld [vmem:[%s1568 + $0x18] sm:$0xf]
      %v1890 = vld [vmem:[%s1568 + $0x1c] sm:$0xf]
      %v1891 = vld [vmem:[%s1568 + $0x20] sm:$0x1]
      %v1892 = vld [vmem:[%s1568 + $0x24] sm:$0xf]
      %v1893 = vld [vmem:[%s1568 + $0x28] sm:$0xf]
      %v1894 = vld [vmem:[%s1568 + $0x2c] sm:$0x1]
      %v1895 = vld [vmem:[%s1568 + $0x30] sm:$0xf]
      %v1896 = vld [vmem:[%s1568 + $0x34] sm:$0xf]
      %v1897 = vld [vmem:[%s1568 + $0x38] sm:$0x1]
      %v1898 = vld [vmem:[%s1568 + $0x3c] sm:$0xf]
      %v1899 = vld [vmem:[%s1568 + $0x40] sm:$0xf]
      %v1900 = vld [vmem:[%s1568 + $0x44] sm:$0x1]
      %v1901 = vld [vmem:[%s1568 + $0x48] sm:$0xf]
      %v1902 = vld [vmem:[%s1568 + $0x4c] sm:$0xf]
      %v1903 = vld [vmem:[%s1568 + $0x50] sm:$0x1]
      %v1904 = vld [vmem:[%s1568 + $0x54] sm:$0xf]
      %v1905 = vld [vmem:[%s1568 + $0x58] sm:$0xf]
      %v1906 = vld [vmem:[%s1568 + $0x5c] sm:$0x1]
      %v1907 = vld [vmem:[%s1568 + $0x60] sm:$0xf]
      %v1908 = vld [vmem:[%s1568 + $0x64] sm:$0xf]
      %v1909 = vld [vmem:[%s1568 + $0x68] sm:$0x1]
      %v1910 = vld [vmem:[%s1568 + $0x6c] sm:$0xf]
      %v1911 = vld [vmem:[%s1568 + $0x70] sm:$0xf]
      %v1912 = vld [vmem:[%s1568 + $0x74] sm:$0x1]
      %v1913 = vld [vmem:[%s1568 + $0x78] sm:$0xf]
      %v1914 = vld [vmem:[%s1568 + $0x7c] sm:$0xf]
      %v1915 = vld [vmem:[%s1568 + $0x80] sm:$0x1]
      %v1916 = vld [vmem:[%s1568 + $0x84] sm:$0xf]
      %v1917 = vld [vmem:[%s1568 + $0x88] sm:$0xf]
      %v1918 = vld [vmem:[%s1568 + $0x8c] sm:$0x1]
      %v1919 = vld [vmem:[%s1568 + $0x90] sm:$0xf]
      %v1920 = vld [vmem:[%s1568 + $0x94] sm:$0xf]
      %v1921 = vld [vmem:[%s1568 + $0x98] sm:$0x1]
      %v1922 = vld [vmem:[%s1568 + $0x9c] sm:$0xf]
      %v1923 = vld [vmem:[%s1568 + $0xa0] sm:$0xf]
      %v1924 = vld [vmem:[%s1568 + $0xa4] sm:$0x1]
      %v1925 = vld [vmem:[%s1568 + $0xa8] sm:$0xf]
      %v1926 = vld [vmem:[%s1568 + $0xac] sm:$0xf]
      %v1927 = vld [vmem:[%s1568 + $0xb0] sm:$0x1]
      %v1928 = vld [vmem:[%s1568 + $0xb4] sm:$0xf]
      %v1929 = vld [vmem:[%s1568 + $0xb8] sm:$0xf]
      %v1930 = vld [vmem:[%s1568 + $0xbc] sm:$0x1]
      %v1932 = vshrl.u32 %v1883, 16
      %v1934 = vrot.slane %v1932, 4
      %v1935 = vshll.u32 %v1883, 16
      %v1937 = vrot.slane %v1935, 5
      %v1938 = vor.u32 %v1934, %v1937
      %v1939 = vrot.slane %v1938, 4
      %v1941 = vshll.u32 %v1884, 16
      %v1943 = vrot.slane %v1941, 5
      %v1944 = vsel %vm319, %v1939, %v1943
      %v1945 = vshrl.u32 %v1884, 16
      %v1947 = vrot.slane %v1945, 4
      %v1948 = vor.u32 %v1947, %v1943
      %v1949 = vrot.slane %v1948, 4
      %v1951 = vshll.u32 %v1885, 16
      %v1953 = vrot.slane %v1951, 5
      %v1954 = vsel %vm319, %v1949, %v1953
      %v1956 = vshrl.u32 %v1886, 16
      %v1958 = vrot.slane %v1956, 4
      %v1959 = vshll.u32 %v1886, 16
      %v1961 = vrot.slane %v1959, 5
      %v1962 = vor.u32 %v1958, %v1961
      %v1963 = vrot.slane %v1962, 4
      %v1965 = vshll.u32 %v1887, 16
      %v1967 = vrot.slane %v1965, 5
      %v1968 = vsel %vm319, %v1963, %v1967
      %v1969 = vshrl.u32 %v1887, 16
      %v1971 = vrot.slane %v1969, 4
      %v1972 = vor.u32 %v1971, %v1967
      %v1973 = vrot.slane %v1972, 4
      %v1975 = vshll.u32 %v1888, 16
      %v1977 = vrot.slane %v1975, 5
      %v1978 = vsel %vm319, %v1973, %v1977
      %v1980 = vshrl.u32 %v1889, 16
      %v1982 = vrot.slane %v1980, 4
      %v1983 = vshll.u32 %v1889, 16
      %v1985 = vrot.slane %v1983, 5
      %v1986 = vor.u32 %v1982, %v1985
      %v1987 = vrot.slane %v1986, 4
      %v1989 = vshll.u32 %v1890, 16
      %v1991 = vrot.slane %v1989, 5
      %v1992 = vsel %vm319, %v1987, %v1991
      %v1993 = vshrl.u32 %v1890, 16
      %v1995 = vrot.slane %v1993, 4
      %v1996 = vor.u32 %v1995, %v1991
      %v1997 = vrot.slane %v1996, 4
      %v1999 = vshll.u32 %v1891, 16
      %v2001 = vrot.slane %v1999, 5
      %v2002 = vsel %vm319, %v1997, %v2001
      %v2004 = vshrl.u32 %v1892, 16
      %v2006 = vrot.slane %v2004, 4
      %v2007 = vshll.u32 %v1892, 16
      %v2009 = vrot.slane %v2007, 5
      %v2010 = vor.u32 %v2006, %v2009
      %v2011 = vrot.slane %v2010, 4
      %v2013 = vshll.u32 %v1893, 16
      %v2015 = vrot.slane %v2013, 5
      %v2016 = vsel %vm319, %v2011, %v2015
      %v2017 = vshrl.u32 %v1893, 16
      %v2019 = vrot.slane %v2017, 4
      %v2020 = vor.u32 %v2019, %v2015
      %v2021 = vrot.slane %v2020, 4
      %v2023 = vshll.u32 %v1894, 16
      %v2025 = vrot.slane %v2023, 5
      %v2026 = vsel %vm319, %v2021, %v2025
      %v2028 = vshrl.u32 %v1895, 16
      %v2030 = vrot.slane %v2028, 4
      %v2031 = vshll.u32 %v1895, 16
      %v2033 = vrot.slane %v2031, 5
      %v2034 = vor.u32 %v2030, %v2033
      %v2035 = vrot.slane %v2034, 4
      %v2037 = vshll.u32 %v1896, 16
      %v2039 = vrot.slane %v2037, 5
      %v2040 = vsel %vm319, %v2035, %v2039
      %v2041 = vshrl.u32 %v1896, 16
      %v2043 = vrot.slane %v2041, 4
      %v2044 = vor.u32 %v2043, %v2039
      %v2045 = vrot.slane %v2044, 4
      %v2047 = vshll.u32 %v1897, 16
      %v2049 = vrot.slane %v2047, 5
      %v2050 = vsel %vm319, %v2045, %v2049
      %v2052 = vshrl.u32 %v1898, 16
      %v2054 = vrot.slane %v2052, 4
      %v2055 = vshll.u32 %v1898, 16
      %v2057 = vrot.slane %v2055, 5
      %v2058 = vor.u32 %v2054, %v2057
      %v2059 = vrot.slane %v2058, 4
      %v2061 = vshll.u32 %v1899, 16
      %v2063 = vrot.slane %v2061, 5
      %v2064 = vsel %vm319, %v2059, %v2063
      %v2065 = vshrl.u32 %v1899, 16
      %v2067 = vrot.slane %v2065, 4
      %v2068 = vor.u32 %v2067, %v2063
      %v2069 = vrot.slane %v2068, 4
      %v2071 = vshll.u32 %v1900, 16
      %v2073 = vrot.slane %v2071, 5
      %v2074 = vsel %vm319, %v2069, %v2073
      %v2076 = vshrl.u32 %v1901, 16
      %v2078 = vrot.slane %v2076, 4
      %v2079 = vshll.u32 %v1901, 16
      %v2081 = vrot.slane %v2079, 5
      %v2082 = vor.u32 %v2078, %v2081
      %v2083 = vrot.slane %v2082, 4
      %v2085 = vshll.u32 %v1902, 16
      %v2087 = vrot.slane %v2085, 5
      %v2088 = vsel %vm319, %v2083, %v2087
      %v2089 = vshrl.u32 %v1902, 16
      %v2091 = vrot.slane %v2089, 4
      %v2092 = vor.u32 %v2091, %v2087
      %v2093 = vrot.slane %v2092, 4
      %v2095 = vshll.u32 %v1903, 16
      %v2097 = vrot.slane %v2095, 5
      %v2098 = vsel %vm319, %v2093, %v2097
      %v2100 = vshrl.u32 %v1904, 16
      %v2102 = vrot.slane %v2100, 4
      %v2103 = vshll.u32 %v1904, 16
      %v2105 = vrot.slane %v2103, 5
      %v2106 = vor.u32 %v2102, %v2105
      %v2107 = vrot.slane %v2106, 4
      %v2109 = vshll.u32 %v1905, 16
      %v2111 = vrot.slane %v2109, 5
      %v2112 = vsel %vm319, %v2107, %v2111
      %v2113 = vshrl.u32 %v1905, 16
      %v2115 = vrot.slane %v2113, 4
      %v2116 = vor.u32 %v2115, %v2111
      %v2117 = vrot.slane %v2116, 4
      %v2119 = vshll.u32 %v1906, 16
      %v2121 = vrot.slane %v2119, 5
      %v2122 = vsel %vm319, %v2117, %v2121
      %v2124 = vshrl.u32 %v1907, 16
      %v2126 = vrot.slane %v2124, 4
      %v2127 = vshll.u32 %v1907, 16
      %v2129 = vrot.slane %v2127, 5
      %v2130 = vor.u32 %v2126, %v2129
      %v2131 = vrot.slane %v2130, 4
      %v2133 = vshll.u32 %v1908, 16
      %v2135 = vrot.slane %v2133, 5
      %v2136 = vsel %vm319, %v2131, %v2135
      %v2137 = vshrl.u32 %v1908, 16
      %v2139 = vrot.slane %v2137, 4
      %v2140 = vor.u32 %v2139, %v2135
      %v2141 = vrot.slane %v2140, 4
      %v2143 = vshll.u32 %v1909, 16
      %v2145 = vrot.slane %v2143, 5
      %v2146 = vsel %vm319, %v2141, %v2145
      %v2148 = vshrl.u32 %v1910, 16
      %v2150 = vrot.slane %v2148, 4
      %v2151 = vshll.u32 %v1910, 16
      %v2153 = vrot.slane %v2151, 5
      %v2154 = vor.u32 %v2150, %v2153
      %v2155 = vrot.slane %v2154, 4
      %v2157 = vshll.u32 %v1911, 16
      %v2159 = vrot.slane %v2157, 5
      %v2160 = vsel %vm319, %v2155, %v2159
      %v2161 = vshrl.u32 %v1911, 16
      %v2163 = vrot.slane %v2161, 4
      %v2164 = vor.u32 %v2163, %v2159
      %v2165 = vrot.slane %v2164, 4
      %v2167 = vshll.u32 %v1912, 16
      %v2169 = vrot.slane %v2167, 5
      %v2170 = vsel %vm319, %v2165, %v2169
      %v2172 = vshrl.u32 %v1913, 16
      %v2174 = vrot.slane %v2172, 4
      %v2175 = vshll.u32 %v1913, 16
      %v2177 = vrot.slane %v2175, 5
      %v2178 = vor.u32 %v2174, %v2177
      %v2179 = vrot.slane %v2178, 4
      %v2181 = vshll.u32 %v1914, 16
      %v2183 = vrot.slane %v2181, 5
      %v2184 = vsel %vm319, %v2179, %v2183
      %v2185 = vshrl.u32 %v1914, 16
      %v2187 = vrot.slane %v2185, 4
      %v2188 = vor.u32 %v2187, %v2183
      %v2189 = vrot.slane %v2188, 4
      %v2191 = vshll.u32 %v1915, 16
      %v2193 = vrot.slane %v2191, 5
      %v2194 = vsel %vm319, %v2189, %v2193
      %v2196 = vshrl.u32 %v1916, 16
      %v2198 = vrot.slane %v2196, 4
      %v2199 = vshll.u32 %v1916, 16
      %v2201 = vrot.slane %v2199, 5
      %v2202 = vor.u32 %v2198, %v2201
      %v2203 = vrot.slane %v2202, 4
      %v2205 = vshll.u32 %v1917, 16
      %v2207 = vrot.slane %v2205, 5
      %v2208 = vsel %vm319, %v2203, %v2207
      %v2209 = vshrl.u32 %v1917, 16
      %v2211 = vrot.slane %v2209, 4
      %v2212 = vor.u32 %v2211, %v2207
      %v2213 = vrot.slane %v2212, 4
      %v2215 = vshll.u32 %v1918, 16
      %v2217 = vrot.slane %v2215, 5
      %v2218 = vsel %vm319, %v2213, %v2217
      %v2220 = vshrl.u32 %v1919, 16
      %v2222 = vrot.slane %v2220, 4
      %v2223 = vshll.u32 %v1919, 16
      %v2225 = vrot.slane %v2223, 5
      %v2226 = vor.u32 %v2222, %v2225
      %v2227 = vrot.slane %v2226, 4
      %v2229 = vshll.u32 %v1920, 16
      %v2231 = vrot.slane %v2229, 5
      %v2232 = vsel %vm319, %v2227, %v2231
      %v2233 = vshrl.u32 %v1920, 16
      %v2235 = vrot.slane %v2233, 4
      %v2236 = vor.u32 %v2235, %v2231
      %v2237 = vrot.slane %v2236, 4
      %v2239 = vshll.u32 %v1921, 16
      %v2241 = vrot.slane %v2239, 5
      %v2242 = vsel %vm319, %v2237, %v2241
      %v2244 = vshrl.u32 %v1922, 16
      %v2246 = vrot.slane %v2244, 4
      %v2247 = vshll.u32 %v1922, 16
      %v2249 = vrot.slane %v2247, 5
      %v2250 = vor.u32 %v2246, %v2249
      %v2251 = vrot.slane %v2250, 4
      %v2253 = vshll.u32 %v1923, 16
      %v2255 = vrot.slane %v2253, 5
      %v2256 = vsel %vm319, %v2251, %v2255
      %v2257 = vshrl.u32 %v1923, 16
      %v2259 = vrot.slane %v2257, 4
      %v2260 = vor.u32 %v2259, %v2255
      %v2261 = vrot.slane %v2260, 4
      %v2263 = vshll.u32 %v1924, 16
      %v2265 = vrot.slane %v2263, 5
      %v2266 = vsel %vm319, %v2261, %v2265
      %v2268 = vshrl.u32 %v1925, 16
      %v2270 = vrot.slane %v2268, 4
      %v2271 = vshll.u32 %v1925, 16
      %v2273 = vrot.slane %v2271, 5
      %v2274 = vor.u32 %v2270, %v2273
      %v2275 = vrot.slane %v2274, 4
      %v2277 = vshll.u32 %v1926, 16
      %v2279 = vrot.slane %v2277, 5
      %v2280 = vsel %vm319, %v2275, %v2279
      %v2281 = vshrl.u32 %v1926, 16
      %v2283 = vrot.slane %v2281, 4
      %v2284 = vor.u32 %v2283, %v2279
      %v2285 = vrot.slane %v2284, 4
      %v2287 = vshll.u32 %v1927, 16
      %v2289 = vrot.slane %v2287, 5
      %v2290 = vsel %vm319, %v2285, %v2289
      %v2292 = vshrl.u32 %v1928, 16
      %v2294 = vrot.slane %v2292, 4
      %v2295 = vshll.u32 %v1928, 16
      %v2297 = vrot.slane %v2295, 5
      %v2298 = vor.u32 %v2294, %v2297
      %v2299 = vrot.slane %v2298, 4
      %v2301 = vshll.u32 %v1929, 16
      %v2303 = vrot.slane %v2301, 5
      %v2304 = vsel %vm319, %v2299, %v2303
      %v2305 = vshrl.u32 %v1929, 16
      %v2307 = vrot.slane %v2305, 4
      %v2308 = vor.u32 %v2307, %v2303
      %v2309 = vrot.slane %v2308, 4
      %v2311 = vshll.u32 %v1930, 16
      %v2313 = vrot.slane %v2311, 5
      %v2314 = vsel %vm319, %v2309, %v2313
      %s2315 = scalar_lea.vmem %s1, 256
      %v2316 = vld [vmem:[%s2315] sm:$0xf]
      %v2317 = vld [vmem:[%s2315 + $0x4] sm:$0xf]
      %v2318 = vld [vmem:[%s2315 + $0x8] sm:$0xf]
      %v2319 = vld [vmem:[%s2315 + $0xc] sm:$0xf]
      %v2320 = vld [vmem:[%s2315 + $0x10] sm:$0xf]
      %v2321 = vld [vmem:[%s2315 + $0x14] sm:$0xf]
      %v2322 = vld [vmem:[%s2315 + $0x18] sm:$0xf]
      %v2323 = vld [vmem:[%s2315 + $0x1c] sm:$0xf]
      %v2324 = vld [vmem:[%s2315 + $0x20] sm:$0xf]
      %v2325 = vld [vmem:[%s2315 + $0x24] sm:$0xf]
      %v2326 = vld [vmem:[%s2315 + $0x28] sm:$0xf]
      %v2327 = vld [vmem:[%s2315 + $0x2c] sm:$0xf]
      %v2328 = vld [vmem:[%s2315 + $0x30] sm:$0xf]
      %v2329 = vld [vmem:[%s2315 + $0x34] sm:$0xf]
      %v2330 = vld [vmem:[%s2315 + $0x38] sm:$0xf]
      %v2331 = vld [vmem:[%s2315 + $0x3c] sm:$0xf]
      %v2332 = vunpack.c.l.b16 %v1944
      %v2333 = vunpack.c.l.b16 %v1954
      %v2334 = vunpack.c.l.b16 %v1968
      %v2335 = vunpack.c.l.b16 %v1978
      %v2336 = vunpack.c.l.b16 %v1992
      %v2337 = vunpack.c.l.b16 %v2002
      %v2338 = vunpack.c.l.b16 %v2016
      %v2339 = vunpack.c.l.b16 %v2026
      %v2340 = vunpack.c.l.b16 %v2040
      %v2341 = vunpack.c.l.b16 %v2050
      %v2342 = vunpack.c.l.b16 %v2064
      %v2343 = vunpack.c.l.b16 %v2074
      %v2344 = vunpack.c.l.b16 %v2088
      %v2345 = vunpack.c.l.b16 %v2098
      %v2346 = vunpack.c.l.b16 %v2112
      %v2347 = vunpack.c.l.b16 %v2122
      %v2348 = vunpack.c.l.b16 %v2136
      %v2349 = vunpack.c.l.b16 %v2146
      %v2350 = vunpack.c.l.b16 %v2160
      %v2351 = vunpack.c.l.b16 %v2170
      %v2352 = vunpack.c.l.b16 %v2184
      %v2353 = vunpack.c.l.b16 %v2194
      %v2354 = vunpack.c.l.b16 %v2208
      %v2355 = vunpack.c.l.b16 %v2218
      %v2356 = vunpack.c.l.b16 %v2232
      %v2357 = vunpack.c.l.b16 %v2242
      %v2358 = vunpack.c.l.b16 %v2256
      %v2359 = vunpack.c.l.b16 %v2266
      %v2360 = vunpack.c.l.b16 %v2280
      %v2361 = vunpack.c.l.b16 %v2290
      %v2362 = vunpack.c.l.b16 %v2304
      %v2363 = vunpack.c.l.b16 %v2314
      %v2364 = vpack.c.b16 %v2333, %v2332
      %v2365 = vpack.c.b16 %v2335, %v2334
      %v2366 = vpack.c.b16 %v2337, %v2336
      %v2367 = vpack.c.b16 %v2339, %v2338
      %v2368 = vpack.c.b16 %v2341, %v2340
      %v2369 = vpack.c.b16 %v2343, %v2342
      %v2370 = vpack.c.b16 %v2345, %v2344
      %v2371 = vpack.c.b16 %v2347, %v2346
      %v2372 = vpack.c.b16 %v2349, %v2348
      %v2373 = vpack.c.b16 %v2351, %v2350
      %v2374 = vpack.c.b16 %v2353, %v2352
      %v2375 = vpack.c.b16 %v2355, %v2354
      %v2376 = vpack.c.b16 %v2357, %v2356
      %v2377 = vpack.c.b16 %v2359, %v2358
      %v2378 = vpack.c.b16 %v2361, %v2360
      %v2379 = vpack.c.b16 %v2363, %v2362
      %v2412 = vunpack.c.l.b16 %v2316
      %v2413 = vunpack.c.l.b16 %v2317
      %v2414 = vunpack.c.l.b16 %v2318
      %v2415 = vunpack.c.l.b16 %v2319
      %v2416 = vunpack.c.l.b16 %v2320
      %v2417 = vunpack.c.l.b16 %v2321
      %v2418 = vunpack.c.l.b16 %v2322
      %v2419 = vunpack.c.l.b16 %v2323
      %v2420 = vunpack.c.l.b16 %v2324
      %v2421 = vunpack.c.l.b16 %v2325
      %v2422 = vunpack.c.l.b16 %v2326
      %v2423 = vunpack.c.l.b16 %v2327
      %v2424 = vunpack.c.l.b16 %v2328
      %v2425 = vunpack.c.l.b16 %v2329
      %v2426 = vunpack.c.l.b16 %v2330
      %v2427 = vunpack.c.l.b16 %v2331
      %v2428 = vpack.c.b16 %v2413, %v2412
      %v2429 = vpack.c.b16 %v2415, %v2414
      %v2430 = vpack.c.b16 %v2417, %v2416
      %v2431 = vpack.c.b16 %v2419, %v2418
      %v2432 = vpack.c.b16 %v2421, %v2420
      %v2433 = vpack.c.b16 %v2423, %v2422
      %v2434 = vpack.c.b16 %v2425, %v2424
      %v2435 = vpack.c.b16 %v2427, %v2426
      %2444 = vmatpush.bf16.msra.mxu0 %v2435
      %2445 = vmatpush.bf16.msra.mxu0 %v2434
      %2446 = vmatpush.bf16.msra.mxu0 %v2433
      %2447 = vmatpush.bf16.msra.mxu0 %v2432
      %2448 = vmatpush.bf16.msra.mxu0 %v2431
      %2449 = vmatpush.bf16.msra.mxu0 %v2430
      %2450 = vmatpush.bf16.msra.mxu0 %v2429
      %2451 = vmatpush.bf16.msra.mxu0 %v2428
      %2452 = vmatmul.bf16.gmra.mxu0 %v2364
      %v2453 = vpop.f32.mrf.mxu0
      %v2454 = vadd.f32 0.0, %v2453
      %v2455 = vpop.f32.mrf.mxu0
      %v2456 = vadd.f32 0.0, %v2455
      %2457 = vmatmul.bf16.gmra.mxu0 %v2365
      %v2458 = vpop.f32.mrf.mxu0
      %v2459 = vadd.f32 0.0, %v2458
      %v2460 = vpop.f32.mrf.mxu0
      %v2461 = vadd.f32 0.0, %v2460
      %2462 = vmatmul.bf16.gmra.mxu0 %v2366
      %v2463 = vpop.f32.mrf.mxu0
      %v2464 = vadd.f32 0.0, %v2463
      %v2465 = vpop.f32.mrf.mxu0
      %v2466 = vadd.f32 0.0, %v2465
      %2467 = vmatmul.bf16.gmra.mxu0 %v2367
      %v2468 = vpop.f32.mrf.mxu0
      %v2469 = vadd.f32 0.0, %v2468
      %v2470 = vpop.f32.mrf.mxu0
      %v2471 = vadd.f32 0.0, %v2470
      %2472 = vmatmul.bf16.gmra.mxu0 %v2368
      %v2473 = vpop.f32.mrf.mxu0
      %v2474 = vadd.f32 0.0, %v2473
      %v2475 = vpop.f32.mrf.mxu0
      %v2476 = vadd.f32 0.0, %v2475
      %2477 = vmatmul.bf16.gmra.mxu0 %v2369
      %v2478 = vpop.f32.mrf.mxu0
      %v2479 = vadd.f32 0.0, %v2478
      %v2480 = vpop.f32.mrf.mxu0
      %v2481 = vadd.f32 0.0, %v2480
      %2482 = vmatmul.bf16.gmra.mxu0 %v2370
      %v2483 = vpop.f32.mrf.mxu0
      %v2484 = vadd.f32 0.0, %v2483
      %v2485 = vpop.f32.mrf.mxu0
      %v2486 = vadd.f32 0.0, %v2485
      %2487 = vmatmul.bf16.gmra.mxu0 %v2371
      %v2488 = vpop.f32.mrf.mxu0
      %v2489 = vadd.f32 0.0, %v2488
      %v2490 = vpop.f32.mrf.mxu0
      %v2491 = vadd.f32 0.0, %v2490
      %2492 = vmatmul.bf16.gmra.mxu0 %v2372
      %v2493 = vpop.f32.mrf.mxu0
      %v2494 = vadd.f32 0.0, %v2493
      %v2495 = vpop.f32.mrf.mxu0
      %v2496 = vadd.f32 0.0, %v2495
      %2497 = vmatmul.bf16.gmra.mxu0 %v2373
      %v2498 = vpop.f32.mrf.mxu0
      %v2499 = vadd.f32 0.0, %v2498
      %v2500 = vpop.f32.mrf.mxu0
      %v2501 = vadd.f32 0.0, %v2500
      %2502 = vmatmul.bf16.gmra.mxu0 %v2374
      %v2503 = vpop.f32.mrf.mxu0
      %v2504 = vadd.f32 0.0, %v2503
      %v2505 = vpop.f32.mrf.mxu0
      %v2506 = vadd.f32 0.0, %v2505
      %2507 = vmatmul.bf16.gmra.mxu0 %v2375
      %v2508 = vpop.f32.mrf.mxu0
      %v2509 = vadd.f32 0.0, %v2508
      %v2510 = vpop.f32.mrf.mxu0
      %v2511 = vadd.f32 0.0, %v2510
      %2512 = vmatmul.bf16.gmra.mxu0 %v2376
      %v2513 = vpop.f32.mrf.mxu0
      %v2514 = vadd.f32 0.0, %v2513
      %v2515 = vpop.f32.mrf.mxu0
      %v2516 = vadd.f32 0.0, %v2515
      %2517 = vmatmul.bf16.gmra.mxu0 %v2377
      %v2518 = vpop.f32.mrf.mxu0
      %v2519 = vadd.f32 0.0, %v2518
      %v2520 = vpop.f32.mrf.mxu0
      %v2521 = vadd.f32 0.0, %v2520
      %2522 = vmatmul.bf16.gmra.mxu0 %v2378
      %v2523 = vpop.f32.mrf.mxu0
      %v2524 = vadd.f32 0.0, %v2523
      %v2525 = vpop.f32.mrf.mxu0
      %v2526 = vadd.f32 0.0, %v2525
      %2527 = vmatmul.bf16.gmra.mxu0 %v2379
      %v2528 = vpop.f32.mrf.mxu0
      %v2529 = vadd.f32 0.0, %v2528
      %v2530 = vpop.f32.mrf.mxu0
      %v2531 = vadd.f32 0.0, %v2530
      %2532 = vdwg.mxu0
      %v2533 = vadd.f32 %v1851, %v2454
      %v2534 = vadd.f32 %v1852, %v2456
      %v2535 = vadd.f32 %v1853, %v2459
      %v2536 = vadd.f32 %v1854, %v2461
      %v2537 = vadd.f32 %v1855, %v2464
      %v2538 = vadd.f32 %v1856, %v2466
      %v2539 = vadd.f32 %v1857, %v2469
      %v2540 = vadd.f32 %v1858, %v2471
      %v2541 = vadd.f32 %v1859, %v2474
      %v2542 = vadd.f32 %v1860, %v2476
      %v2543 = vadd.f32 %v1861, %v2479
      %v2544 = vadd.f32 %v1862, %v2481
      %v2545 = vadd.f32 %v1863, %v2484
      %v2546 = vadd.f32 %v1864, %v2486
      %v2547 = vadd.f32 %v1865, %v2489
      %v2548 = vadd.f32 %v1866, %v2491
      %v2549 = vadd.f32 %v1867, %v2494
      %v2550 = vadd.f32 %v1868, %v2496
      %v2551 = vadd.f32 %v1869, %v2499
      %v2552 = vadd.f32 %v1870, %v2501
      %v2553 = vadd.f32 %v1871, %v2504
      %v2554 = vadd.f32 %v1872, %v2506
      %v2555 = vadd.f32 %v1873, %v2509
      %v2556 = vadd.f32 %v1874, %v2511
      %v2557 = vadd.f32 %v1875, %v2514
      %v2558 = vadd.f32 %v1876, %v2516
      %v2559 = vadd.f32 %v1877, %v2519
      %v2560 = vadd.f32 %v1878, %v2521
      %v2561 = vadd.f32 %v1879, %v2524
      %v2562 = vadd.f32 %v1880, %v2526
      %v2563 = vadd.f32 %v1881, %v2529
      %v2564 = vadd.f32 %v1882, %v2531
      %v2565 = vld [vmem:[%s1568] sm:$0xe]
      %v2566 = vld [vmem:[%s1568 + $0xc] sm:$0xe]
      %v2567 = vld [vmem:[%s1568 + $0x18] sm:$0xe]
      %v2568 = vld [vmem:[%s1568 + $0x24] sm:$0xe]
      %v2569 = vld [vmem:[%s1568 + $0x30] sm:$0xe]
      %v2570 = vld [vmem:[%s1568 + $0x3c] sm:$0xe]
      %v2571 = vld [vmem:[%s1568 + $0x48] sm:$0xe]
      %v2572 = vld [vmem:[%s1568 + $0x54] sm:$0xe]
      %v2573 = vld [vmem:[%s1568 + $0x60] sm:$0xe]
      %v2574 = vld [vmem:[%s1568 + $0x6c] sm:$0xe]
      %v2575 = vld [vmem:[%s1568 + $0x78] sm:$0xe]
      %v2576 = vld [vmem:[%s1568 + $0x84] sm:$0xe]
      %v2577 = vld [vmem:[%s1568 + $0x90] sm:$0xe]
      %v2578 = vld [vmem:[%s1568 + $0x9c] sm:$0xe]
      %v2579 = vld [vmem:[%s1568 + $0xa8] sm:$0xe]
      %v2580 = vld [vmem:[%s1568 + $0xb4] sm:$0xe]
      %v2629 = vrot.slane %v2565, 5
      %v2630 = vrot.slane %v2629, 4
      %v2631 = vrot.slane %v1884, 5
      %v2632 = vsel %vm1205, %v2630, %v2631
      %v2633 = vrot.slane %v2631, 4
      %v2634 = vrot.slane %v1885, 5
      %v2635 = vsel %vm1205, %v2633, %v2634
      %v2636 = vrot.slane %v2566, 5
      %v2637 = vrot.slane %v2636, 4
      %v2638 = vrot.slane %v1887, 5
      %v2639 = vsel %vm1205, %v2637, %v2638
      %v2640 = vrot.slane %v2638, 4
      %v2641 = vrot.slane %v1888, 5
      %v2642 = vsel %vm1205, %v2640, %v2641
      %v2643 = vrot.slane %v2567, 5
      %v2644 = vrot.slane %v2643, 4
      %v2645 = vrot.slane %v1890, 5
      %v2646 = vsel %vm1205, %v2644, %v2645
      %v2647 = vrot.slane %v2645, 4
      %v2648 = vrot.slane %v1891, 5
      %v2649 = vsel %vm1205, %v2647, %v2648
      %v2650 = vrot.slane %v2568, 5
      %v2651 = vrot.slane %v2650, 4
      %v2652 = vrot.slane %v1893, 5
      %v2653 = vsel %vm1205, %v2651, %v2652
      %v2654 = vrot.slane %v2652, 4
      %v2655 = vrot.slane %v1894, 5
      %v2656 = vsel %vm1205, %v2654, %v2655
      %v2657 = vrot.slane %v2569, 5
      %v2658 = vrot.slane %v2657, 4
      %v2659 = vrot.slane %v1896, 5
      %v2660 = vsel %vm1205, %v2658, %v2659
      %v2661 = vrot.slane %v2659, 4
      %v2662 = vrot.slane %v1897, 5
      %v2663 = vsel %vm1205, %v2661, %v2662
      %v2664 = vrot.slane %v2570, 5
      %v2665 = vrot.slane %v2664, 4
      %v2666 = vrot.slane %v1899, 5
      %v2667 = vsel %vm1205, %v2665, %v2666
      %v2668 = vrot.slane %v2666, 4
      %v2669 = vrot.slane %v1900, 5
      %v2670 = vsel %vm1205, %v2668, %v2669
      %v2671 = vrot.slane %v2571, 5
      %v2672 = vrot.slane %v2671, 4
      %v2673 = vrot.slane %v1902, 5
      %v2674 = vsel %vm1205, %v2672, %v2673
      %v2675 = vrot.slane %v2673, 4
      %v2676 = vrot.slane %v1903, 5
      %v2677 = vsel %vm1205, %v2675, %v2676
      %v2678 = vrot.slane %v2572, 5
      %v2679 = vrot.slane %v2678, 4
      %v2680 = vrot.slane %v1905, 5
      %v2681 = vsel %vm1205, %v2679, %v2680
      %v2682 = vrot.slane %v2680, 4
      %v2683 = vrot.slane %v1906, 5
      %v2684 = vsel %vm1205, %v2682, %v2683
      %v2685 = vrot.slane %v2573, 5
      %v2686 = vrot.slane %v2685, 4
      %v2687 = vrot.slane %v1908, 5
      %v2688 = vsel %vm1205, %v2686, %v2687
      %v2689 = vrot.slane %v2687, 4
      %v2690 = vrot.slane %v1909, 5
      %v2691 = vsel %vm1205, %v2689, %v2690
      %v2692 = vrot.slane %v2574, 5
      %v2693 = vrot.slane %v2692, 4
      %v2694 = vrot.slane %v1911, 5
      %v2695 = vsel %vm1205, %v2693, %v2694
      %v2696 = vrot.slane %v2694, 4
      %v2697 = vrot.slane %v1912, 5
      %v2698 = vsel %vm1205, %v2696, %v2697
      %v2699 = vrot.slane %v2575, 5
      %v2700 = vrot.slane %v2699, 4
      %v2701 = vrot.slane %v1914, 5
      %v2702 = vsel %vm1205, %v2700, %v2701
      %v2703 = vrot.slane %v2701, 4
      %v2704 = vrot.slane %v1915, 5
      %v2705 = vsel %vm1205, %v2703, %v2704
      %v2706 = vrot.slane %v2576, 5
      %v2707 = vrot.slane %v2706, 4
      %v2708 = vrot.slane %v1917, 5
      %v2709 = vsel %vm1205, %v2707, %v2708
      %v2710 = vrot.slane %v2708, 4
      %v2711 = vrot.slane %v1918, 5
      %v2712 = vsel %vm1205, %v2710, %v2711
      %v2713 = vrot.slane %v2577, 5
      %v2714 = vrot.slane %v2713, 4
      %v2715 = vrot.slane %v1920, 5
      %v2716 = vsel %vm1205, %v2714, %v2715
      %v2717 = vrot.slane %v2715, 4
      %v2718 = vrot.slane %v1921, 5
      %v2719 = vsel %vm1205, %v2717, %v2718
      %v2720 = vrot.slane %v2578, 5
      %v2721 = vrot.slane %v2720, 4
      %v2722 = vrot.slane %v1923, 5
      %v2723 = vsel %vm1205, %v2721, %v2722
      %v2724 = vrot.slane %v2722, 4
      %v2725 = vrot.slane %v1924, 5
      %v2726 = vsel %vm1205, %v2724, %v2725
      %v2727 = vrot.slane %v2579, 5
      %v2728 = vrot.slane %v2727, 4
      %v2729 = vrot.slane %v1926, 5
      %v2730 = vsel %vm1205, %v2728, %v2729
      %v2731 = vrot.slane %v2729, 4
      %v2732 = vrot.slane %v1927, 5
      %v2733 = vsel %vm1205, %v2731, %v2732
      %v2734 = vrot.slane %v2580, 5
      %v2735 = vrot.slane %v2734, 4
      %v2736 = vrot.slane %v1929, 5
      %v2737 = vsel %vm1205, %v2735, %v2736
      %v2738 = vrot.slane %v2736, 4
      %v2739 = vrot.slane %v1930, 5
      %v2740 = vsel %vm1205, %v2738, %v2739
      %s2741 = scalar_lea.vmem %s1, 320
      %v2742 = vld [vmem:[%s2741] sm:$0xf]
      %v2743 = vld [vmem:[%s2741 + $0x4] sm:$0xf]
      %v2744 = vld [vmem:[%s2741 + $0x8] sm:$0xf]
      %v2745 = vld [vmem:[%s2741 + $0xc] sm:$0xf]
      %v2746 = vld [vmem:[%s2741 + $0x10] sm:$0xf]
      %v2747 = vld [vmem:[%s2741 + $0x14] sm:$0xf]
      %v2748 = vld [vmem:[%s2741 + $0x18] sm:$0xf]
      %v2749 = vld [vmem:[%s2741 + $0x1c] sm:$0xf]
      %v2750 = vld [vmem:[%s2741 + $0x20] sm:$0xf]
      %v2751 = vld [vmem:[%s2741 + $0x24] sm:$0xf]
      %v2752 = vld [vmem:[%s2741 + $0x28] sm:$0xf]
      %v2753 = vld [vmem:[%s2741 + $0x2c] sm:$0xf]
      %v2754 = vld [vmem:[%s2741 + $0x30] sm:$0xf]
      %v2755 = vld [vmem:[%s2741 + $0x34] sm:$0xf]
      %v2756 = vld [vmem:[%s2741 + $0x38] sm:$0xf]
      %v2757 = vld [vmem:[%s2741 + $0x3c] sm:$0xf]
      %v2758 = vunpack.c.l.b16 %v2632
      %v2759 = vunpack.c.l.b16 %v2635
      %v2760 = vunpack.c.l.b16 %v2639
      %v2761 = vunpack.c.l.b16 %v2642
      %v2762 = vunpack.c.l.b16 %v2646
      %v2763 = vunpack.c.l.b16 %v2649
      %v2764 = vunpack.c.l.b16 %v2653
      %v2765 = vunpack.c.l.b16 %v2656
      %v2766 = vunpack.c.l.b16 %v2660
      %v2767 = vunpack.c.l.b16 %v2663
      %v2768 = vunpack.c.l.b16 %v2667
      %v2769 = vunpack.c.l.b16 %v2670
      %v2770 = vunpack.c.l.b16 %v2674
      %v2771 = vunpack.c.l.b16 %v2677
      %v2772 = vunpack.c.l.b16 %v2681
      %v2773 = vunpack.c.l.b16 %v2684
      %v2774 = vunpack.c.l.b16 %v2688
      %v2775 = vunpack.c.l.b16 %v2691
      %v2776 = vunpack.c.l.b16 %v2695
      %v2777 = vunpack.c.l.b16 %v2698
      %v2778 = vunpack.c.l.b16 %v2702
      %v2779 = vunpack.c.l.b16 %v2705
      %v2780 = vunpack.c.l.b16 %v2709
      %v2781 = vunpack.c.l.b16 %v2712
      %v2782 = vunpack.c.l.b16 %v2716
      %v2783 = vunpack.c.l.b16 %v2719
      %v2784 = vunpack.c.l.b16 %v2723
      %v2785 = vunpack.c.l.b16 %v2726
      %v2786 = vunpack.c.l.b16 %v2730
      %v2787 = vunpack.c.l.b16 %v2733
      %v2788 = vunpack.c.l.b16 %v2737
      %v2789 = vunpack.c.l.b16 %v2740
      %v2790 = vpack.c.b16 %v2759, %v2758
      %v2791 = vpack.c.b16 %v2761, %v2760
      %v2792 = vpack.c.b16 %v2763, %v2762
      %v2793 = vpack.c.b16 %v2765, %v2764
      %v2794 = vpack.c.b16 %v2767, %v2766
      %v2795 = vpack.c.b16 %v2769, %v2768
      %v2796 = vpack.c.b16 %v2771, %v2770
      %v2797 = vpack.c.b16 %v2773, %v2772
      %v2798 = vpack.c.b16 %v2775, %v2774
      %v2799 = vpack.c.b16 %v2777, %v2776
      %v2800 = vpack.c.b16 %v2779, %v2778
      %v2801 = vpack.c.b16 %v2781, %v2780
      %v2802 = vpack.c.b16 %v2783, %v2782
      %v2803 = vpack.c.b16 %v2785, %v2784
      %v2804 = vpack.c.b16 %v2787, %v2786
      %v2805 = vpack.c.b16 %v2789, %v2788
      %v2838 = vunpack.c.l.b16 %v2742
      %v2839 = vunpack.c.l.b16 %v2743
      %v2840 = vunpack.c.l.b16 %v2744
      %v2841 = vunpack.c.l.b16 %v2745
      %v2842 = vunpack.c.l.b16 %v2746
      %v2843 = vunpack.c.l.b16 %v2747
      %v2844 = vunpack.c.l.b16 %v2748
      %v2845 = vunpack.c.l.b16 %v2749
      %v2846 = vunpack.c.l.b16 %v2750
      %v2847 = vunpack.c.l.b16 %v2751
      %v2848 = vunpack.c.l.b16 %v2752
      %v2849 = vunpack.c.l.b16 %v2753
      %v2850 = vunpack.c.l.b16 %v2754
      %v2851 = vunpack.c.l.b16 %v2755
      %v2852 = vunpack.c.l.b16 %v2756
      %v2853 = vunpack.c.l.b16 %v2757
      %v2854 = vpack.c.b16 %v2839, %v2838
      %v2855 = vpack.c.b16 %v2841, %v2840
      %v2856 = vpack.c.b16 %v2843, %v2842
      %v2857 = vpack.c.b16 %v2845, %v2844
      %v2858 = vpack.c.b16 %v2847, %v2846
      %v2859 = vpack.c.b16 %v2849, %v2848
      %v2860 = vpack.c.b16 %v2851, %v2850
      %v2861 = vpack.c.b16 %v2853, %v2852
      %2870 = vmatpush.bf16.msra.mxu0 %v2861
      %2871 = vmatpush.bf16.msra.mxu0 %v2860
      %2872 = vmatpush.bf16.msra.mxu0 %v2859
      %2873 = vmatpush.bf16.msra.mxu0 %v2858
      %2874 = vmatpush.bf16.msra.mxu0 %v2857
      %2875 = vmatpush.bf16.msra.mxu0 %v2856
      %2876 = vmatpush.bf16.msra.mxu0 %v2855
      %2877 = vmatpush.bf16.msra.mxu0 %v2854
      %2878 = vmatmul.bf16.gmra.mxu0 %v2790
      %v2879 = vpop.f32.mrf.mxu0
      %v2880 = vadd.f32 0.0, %v2879
      %v2881 = vpop.f32.mrf.mxu0
      %v2882 = vadd.f32 0.0, %v2881
      %2883 = vmatmul.bf16.gmra.mxu0 %v2791
      %v2884 = vpop.f32.mrf.mxu0
      %v2885 = vadd.f32 0.0, %v2884
      %v2886 = vpop.f32.mrf.mxu0
      %v2887 = vadd.f32 0.0, %v2886
      %2888 = vmatmul.bf16.gmra.mxu0 %v2792
      %v2889 = vpop.f32.mrf.mxu0
      %v2890 = vadd.f32 0.0, %v2889
      %v2891 = vpop.f32.mrf.mxu0
      %v2892 = vadd.f32 0.0, %v2891
      %2893 = vmatmul.bf16.gmra.mxu0 %v2793
      %v2894 = vpop.f32.mrf.mxu0
      %v2895 = vadd.f32 0.0, %v2894
      %v2896 = vpop.f32.mrf.mxu0
      %v2897 = vadd.f32 0.0, %v2896
      %2898 = vmatmul.bf16.gmra.mxu0 %v2794
      %v2899 = vpop.f32.mrf.mxu0
      %v2900 = vadd.f32 0.0, %v2899
      %v2901 = vpop.f32.mrf.mxu0
      %v2902 = vadd.f32 0.0, %v2901
      %2903 = vmatmul.bf16.gmra.mxu0 %v2795
      %v2904 = vpop.f32.mrf.mxu0
      %v2905 = vadd.f32 0.0, %v2904
      %v2906 = vpop.f32.mrf.mxu0
      %v2907 = vadd.f32 0.0, %v2906
      %2908 = vmatmul.bf16.gmra.mxu0 %v2796
      %v2909 = vpop.f32.mrf.mxu0
      %v2910 = vadd.f32 0.0, %v2909
      %v2911 = vpop.f32.mrf.mxu0
      %v2912 = vadd.f32 0.0, %v2911
      %2913 = vmatmul.bf16.gmra.mxu0 %v2797
      %v2914 = vpop.f32.mrf.mxu0
      %v2915 = vadd.f32 0.0, %v2914
      %v2916 = vpop.f32.mrf.mxu0
      %v2917 = vadd.f32 0.0, %v2916
      %2918 = vmatmul.bf16.gmra.mxu0 %v2798
      %v2919 = vpop.f32.mrf.mxu0
      %v2920 = vadd.f32 0.0, %v2919
      %v2921 = vpop.f32.mrf.mxu0
      %v2922 = vadd.f32 0.0, %v2921
      %2923 = vmatmul.bf16.gmra.mxu0 %v2799
      %v2924 = vpop.f32.mrf.mxu0
      %v2925 = vadd.f32 0.0, %v2924
      %v2926 = vpop.f32.mrf.mxu0
      %v2927 = vadd.f32 0.0, %v2926
      %2928 = vmatmul.bf16.gmra.mxu0 %v2800
      %v2929 = vpop.f32.mrf.mxu0
      %v2930 = vadd.f32 0.0, %v2929
      %v2931 = vpop.f32.mrf.mxu0
      %v2932 = vadd.f32 0.0, %v2931
      %2933 = vmatmul.bf16.gmra.mxu0 %v2801
      %v2934 = vpop.f32.mrf.mxu0
      %v2935 = vadd.f32 0.0, %v2934
      %v2936 = vpop.f32.mrf.mxu0
      %v2937 = vadd.f32 0.0, %v2936
      %2938 = vmatmul.bf16.gmra.mxu0 %v2802
      %v2939 = vpop.f32.mrf.mxu0
      %v2940 = vadd.f32 0.0, %v2939
      %v2941 = vpop.f32.mrf.mxu0
      %v2942 = vadd.f32 0.0, %v2941
      %2943 = vmatmul.bf16.gmra.mxu0 %v2803
      %v2944 = vpop.f32.mrf.mxu0
      %v2945 = vadd.f32 0.0, %v2944
      %v2946 = vpop.f32.mrf.mxu0
      %v2947 = vadd.f32 0.0, %v2946
      %2948 = vmatmul.bf16.gmra.mxu0 %v2804
      %v2949 = vpop.f32.mrf.mxu0
      %v2950 = vadd.f32 0.0, %v2949
      %v2951 = vpop.f32.mrf.mxu0
      %v2952 = vadd.f32 0.0, %v2951
      %2953 = vmatmul.bf16.gmra.mxu0 %v2805
      %v2954 = vpop.f32.mrf.mxu0
      %v2955 = vadd.f32 0.0, %v2954
      %v2956 = vpop.f32.mrf.mxu0
      %v2957 = vadd.f32 0.0, %v2956
      %2958 = vdwg.mxu0
      %v2959 = vadd.f32 %v2533, %v2880
      %v2960 = vadd.f32 %v2534, %v2882
      %v2961 = vadd.f32 %v2535, %v2885
      %v2962 = vadd.f32 %v2536, %v2887
      %v2963 = vadd.f32 %v2537, %v2890
      %v2964 = vadd.f32 %v2538, %v2892
      %v2965 = vadd.f32 %v2539, %v2895
      %v2966 = vadd.f32 %v2540, %v2897
      %v2967 = vadd.f32 %v2541, %v2900
      %v2968 = vadd.f32 %v2542, %v2902
      %v2969 = vadd.f32 %v2543, %v2905
      %v2970 = vadd.f32 %v2544, %v2907
      %v2971 = vadd.f32 %v2545, %v2910
      %v2972 = vadd.f32 %v2546, %v2912
      %v2973 = vadd.f32 %v2547, %v2915
      %v2974 = vadd.f32 %v2548, %v2917
      %v2975 = vadd.f32 %v2549, %v2920
      %v2976 = vadd.f32 %v2550, %v2922
      %v2977 = vadd.f32 %v2551, %v2925
      %v2978 = vadd.f32 %v2552, %v2927
      %v2979 = vadd.f32 %v2553, %v2930
      %v2980 = vadd.f32 %v2554, %v2932
      %v2981 = vadd.f32 %v2555, %v2935
      %v2982 = vadd.f32 %v2556, %v2937
      %v2983 = vadd.f32 %v2557, %v2940
      %v2984 = vadd.f32 %v2558, %v2942
      %v2985 = vadd.f32 %v2559, %v2945
      %v2986 = vadd.f32 %v2560, %v2947
      %v2987 = vadd.f32 %v2561, %v2950
      %v2988 = vadd.f32 %v2562, %v2952
      %v2989 = vadd.f32 %v2563, %v2955
      %v2990 = vadd.f32 %v2564, %v2957
      %s2991 = scalar_lea.vmem %s246, 24
      %v2992 = vld [vmem:[%s2991] sm:$0xf]
      %v2993 = vld [vmem:[%s2991 + $0x4] sm:$0xf]
      %v2994 = vld [vmem:[%s2991 + $0xc] sm:$0xf]
      %v2995 = vld [vmem:[%s2991 + $0x10] sm:$0xf]
      %v2996 = vld [vmem:[%s2991 + $0x18] sm:$0xf]
      %v2997 = vld [vmem:[%s2991 + $0x1c] sm:$0xf]
      %v2998 = vld [vmem:[%s2991 + $0x24] sm:$0xf]
      %v2999 = vld [vmem:[%s2991 + $0x28] sm:$0xf]
      %v3000 = vld [vmem:[%s2991 + $0x30] sm:$0xf]
      %v3001 = vld [vmem:[%s2991 + $0x34] sm:$0xf]
      %v3002 = vld [vmem:[%s2991 + $0x3c] sm:$0xf]
      %v3003 = vld [vmem:[%s2991 + $0x40] sm:$0xf]
      %v3004 = vld [vmem:[%s2991 + $0x48] sm:$0xf]
      %v3005 = vld [vmem:[%s2991 + $0x4c] sm:$0xf]
      %v3006 = vld [vmem:[%s2991 + $0x54] sm:$0xf]
      %v3007 = vld [vmem:[%s2991 + $0x58] sm:$0xf]
      %v3008 = vld [vmem:[%s2991 + $0x60] sm:$0xf]
      %v3009 = vld [vmem:[%s2991 + $0x64] sm:$0xf]
      %v3010 = vld [vmem:[%s2991 + $0x6c] sm:$0xf]
      %v3011 = vld [vmem:[%s2991 + $0x70] sm:$0xf]
      %v3012 = vld [vmem:[%s2991 + $0x78] sm:$0xf]
      %v3013 = vld [vmem:[%s2991 + $0x7c] sm:$0xf]
      %v3014 = vld [vmem:[%s2991 + $0x84] sm:$0xf]
      %v3015 = vld [vmem:[%s2991 + $0x88] sm:$0xf]
      %v3016 = vld [vmem:[%s2991 + $0x90] sm:$0xf]
      %v3017 = vld [vmem:[%s2991 + $0x94] sm:$0xf]
      %v3018 = vld [vmem:[%s2991 + $0x9c] sm:$0xf]
      %v3019 = vld [vmem:[%s2991 + $0xa0] sm:$0xf]
      %v3020 = vld [vmem:[%s2991 + $0xa8] sm:$0xf]
      %v3021 = vld [vmem:[%s2991 + $0xac] sm:$0xf]
      %v3022 = vld [vmem:[%s2991 + $0xb4] sm:$0xf]
      %v3023 = vld [vmem:[%s2991 + $0xb8] sm:$0xf]
      %s3024 = scalar_lea.vmem %s1, 384
      %v3025 = vld [vmem:[%s3024] sm:$0xf]
      %v3026 = vld [vmem:[%s3024 + $0x4] sm:$0xf]
      %v3027 = vld [vmem:[%s3024 + $0x8] sm:$0xf]
      %v3028 = vld [vmem:[%s3024 + $0xc] sm:$0xf]
      %v3029 = vld [vmem:[%s3024 + $0x10] sm:$0xf]
      %v3030 = vld [vmem:[%s3024 + $0x14] sm:$0xf]
      %v3031 = vld [vmem:[%s3024 + $0x18] sm:$0xf]
      %v3032 = vld [vmem:[%s3024 + $0x1c] sm:$0xf]
      %v3033 = vld [vmem:[%s3024 + $0x20] sm:$0xf]
      %v3034 = vld [vmem:[%s3024 + $0x24] sm:$0xf]
      %v3035 = vld [vmem:[%s3024 + $0x28] sm:$0xf]
      %v3036 = vld [vmem:[%s3024 + $0x2c] sm:$0xf]
      %v3037 = vld [vmem:[%s3024 + $0x30] sm:$0xf]
      %v3038 = vld [vmem:[%s3024 + $0x34] sm:$0xf]
      %v3039 = vld [vmem:[%s3024 + $0x38] sm:$0xf]
      %v3040 = vld [vmem:[%s3024 + $0x3c] sm:$0xf]
      %v3073 = vunpack.c.l.b16 %v2992
      %v3074 = vunpack.c.l.b16 %v2993
      %v3075 = vunpack.c.l.b16 %v2994
      %v3076 = vunpack.c.l.b16 %v2995
      %v3077 = vunpack.c.l.b16 %v2996
      %v3078 = vunpack.c.l.b16 %v2997
      %v3079 = vunpack.c.l.b16 %v2998
      %v3080 = vunpack.c.l.b16 %v2999
      %v3081 = vunpack.c.l.b16 %v3000
      %v3082 = vunpack.c.l.b16 %v3001
      %v3083 = vunpack.c.l.b16 %v3002
      %v3084 = vunpack.c.l.b16 %v3003
      %v3085 = vunpack.c.l.b16 %v3004
      %v3086 = vunpack.c.l.b16 %v3005
      %v3087 = vunpack.c.l.b16 %v3006
      %v3088 = vunpack.c.l.b16 %v3007
      %v3089 = vunpack.c.l.b16 %v3008
      %v3090 = vunpack.c.l.b16 %v3009
      %v3091 = vunpack.c.l.b16 %v3010
      %v3092 = vunpack.c.l.b16 %v3011
      %v3093 = vunpack.c.l.b16 %v3012
      %v3094 = vunpack.c.l.b16 %v3013
      %v3095 = vunpack.c.l.b16 %v3014
      %v3096 = vunpack.c.l.b16 %v3015
      %v3097 = vunpack.c.l.b16 %v3016
      %v3098 = vunpack.c.l.b16 %v3017
      %v3099 = vunpack.c.l.b16 %v3018
      %v3100 = vunpack.c.l.b16 %v3019
      %v3101 = vunpack.c.l.b16 %v3020
      %v3102 = vunpack.c.l.b16 %v3021
      %v3103 = vunpack.c.l.b16 %v3022
      %v3104 = vunpack.c.l.b16 %v3023
      %v3105 = vpack.c.b16 %v3074, %v3073
      %v3106 = vpack.c.b16 %v3076, %v3075
      %v3107 = vpack.c.b16 %v3078, %v3077
      %v3108 = vpack.c.b16 %v3080, %v3079
      %v3109 = vpack.c.b16 %v3082, %v3081
      %v3110 = vpack.c.b16 %v3084, %v3083
      %v3111 = vpack.c.b16 %v3086, %v3085
      %v3112 = vpack.c.b16 %v3088, %v3087
      %v3113 = vpack.c.b16 %v3090, %v3089
      %v3114 = vpack.c.b16 %v3092, %v3091
      %v3115 = vpack.c.b16 %v3094, %v3093
      %v3116 = vpack.c.b16 %v3096, %v3095
      %v3117 = vpack.c.b16 %v3098, %v3097
      %v3118 = vpack.c.b16 %v3100, %v3099
      %v3119 = vpack.c.b16 %v3102, %v3101
      %v3120 = vpack.c.b16 %v3104, %v3103
      %v3153 = vunpack.c.l.b16 %v3025
      %v3154 = vunpack.c.l.b16 %v3026
      %v3155 = vunpack.c.l.b16 %v3027
      %v3156 = vunpack.c.l.b16 %v3028
      %v3157 = vunpack.c.l.b16 %v3029
      %v3158 = vunpack.c.l.b16 %v3030
      %v3159 = vunpack.c.l.b16 %v3031
      %v3160 = vunpack.c.l.b16 %v3032
      %v3161 = vunpack.c.l.b16 %v3033
      %v3162 = vunpack.c.l.b16 %v3034
      %v3163 = vunpack.c.l.b16 %v3035
      %v3164 = vunpack.c.l.b16 %v3036
      %v3165 = vunpack.c.l.b16 %v3037
      %v3166 = vunpack.c.l.b16 %v3038
      %v3167 = vunpack.c.l.b16 %v3039
      %v3168 = vunpack.c.l.b16 %v3040
      %v3169 = vpack.c.b16 %v3154, %v3153
      %v3170 = vpack.c.b16 %v3156, %v3155
      %v3171 = vpack.c.b16 %v3158, %v3157
      %v3172 = vpack.c.b16 %v3160, %v3159
      %v3173 = vpack.c.b16 %v3162, %v3161
      %v3174 = vpack.c.b16 %v3164, %v3163
      %v3175 = vpack.c.b16 %v3166, %v3165
      %v3176 = vpack.c.b16 %v3168, %v3167
      %3185 = vmatpush.bf16.msra.mxu0 %v3176
      %3186 = vmatpush.bf16.msra.mxu0 %v3175
      %3187 = vmatpush.bf16.msra.mxu0 %v3174
      %3188 = vmatpush.bf16.msra.mxu0 %v3173
      %3189 = vmatpush.bf16.msra.mxu0 %v3172
      %3190 = vmatpush.bf16.msra.mxu0 %v3171
      %3191 = vmatpush.bf16.msra.mxu0 %v3170
      %3192 = vmatpush.bf16.msra.mxu0 %v3169
      %3193 = vmatmul.bf16.gmra.mxu0 %v3105
      %v3194 = vpop.f32.mrf.mxu0
      %v3195 = vadd.f32 0.0, %v3194
      %v3196 = vpop.f32.mrf.mxu0
      %v3197 = vadd.f32 0.0, %v3196
      %3198 = vmatmul.bf16.gmra.mxu0 %v3106
      %v3199 = vpop.f32.mrf.mxu0
      %v3200 = vadd.f32 0.0, %v3199
      %v3201 = vpop.f32.mrf.mxu0
      %v3202 = vadd.f32 0.0, %v3201
      %3203 = vmatmul.bf16.gmra.mxu0 %v3107
      %v3204 = vpop.f32.mrf.mxu0
      %v3205 = vadd.f32 0.0, %v3204
      %v3206 = vpop.f32.mrf.mxu0
      %v3207 = vadd.f32 0.0, %v3206
      %3208 = vmatmul.bf16.gmra.mxu0 %v3108
      %v3209 = vpop.f32.mrf.mxu0
      %v3210 = vadd.f32 0.0, %v3209
      %v3211 = vpop.f32.mrf.mxu0
      %v3212 = vadd.f32 0.0, %v3211
      %3213 = vmatmul.bf16.gmra.mxu0 %v3109
      %v3214 = vpop.f32.mrf.mxu0
      %v3215 = vadd.f32 0.0, %v3214
      %v3216 = vpop.f32.mrf.mxu0
      %v3217 = vadd.f32 0.0, %v3216
      %3218 = vmatmul.bf16.gmra.mxu0 %v3110
      %v3219 = vpop.f32.mrf.mxu0
      %v3220 = vadd.f32 0.0, %v3219
      %v3221 = vpop.f32.mrf.mxu0
      %v3222 = vadd.f32 0.0, %v3221
      %3223 = vmatmul.bf16.gmra.mxu0 %v3111
      %v3224 = vpop.f32.mrf.mxu0
      %v3225 = vadd.f32 0.0, %v3224
      %v3226 = vpop.f32.mrf.mxu0
      %v3227 = vadd.f32 0.0, %v3226
      %3228 = vmatmul.bf16.gmra.mxu0 %v3112
      %v3229 = vpop.f32.mrf.mxu0
      %v3230 = vadd.f32 0.0, %v3229
      %v3231 = vpop.f32.mrf.mxu0
      %v3232 = vadd.f32 0.0, %v3231
      %3233 = vmatmul.bf16.gmra.mxu0 %v3113
      %v3234 = vpop.f32.mrf.mxu0
      %v3235 = vadd.f32 0.0, %v3234
      %v3236 = vpop.f32.mrf.mxu0
      %v3237 = vadd.f32 0.0, %v3236
      %3238 = vmatmul.bf16.gmra.mxu0 %v3114
      %v3239 = vpop.f32.mrf.mxu0
      %v3240 = vadd.f32 0.0, %v3239
      %v3241 = vpop.f32.mrf.mxu0
      %v3242 = vadd.f32 0.0, %v3241
      %3243 = vmatmul.bf16.gmra.mxu0 %v3115
      %v3244 = vpop.f32.mrf.mxu0
      %v3245 = vadd.f32 0.0, %v3244
      %v3246 = vpop.f32.mrf.mxu0
      %v3247 = vadd.f32 0.0, %v3246
      %3248 = vmatmul.bf16.gmra.mxu0 %v3116
      %v3249 = vpop.f32.mrf.mxu0
      %v3250 = vadd.f32 0.0, %v3249
      %v3251 = vpop.f32.mrf.mxu0
      %v3252 = vadd.f32 0.0, %v3251
      %3253 = vmatmul.bf16.gmra.mxu0 %v3117
      %v3254 = vpop.f32.mrf.mxu0
      %v3255 = vadd.f32 0.0, %v3254
      %v3256 = vpop.f32.mrf.mxu0
      %v3257 = vadd.f32 0.0, %v3256
      %3258 = vmatmul.bf16.gmra.mxu0 %v3118
      %v3259 = vpop.f32.mrf.mxu0
      %v3260 = vadd.f32 0.0, %v3259
      %v3261 = vpop.f32.mrf.mxu0
      %v3262 = vadd.f32 0.0, %v3261
      %3263 = vmatmul.bf16.gmra.mxu0 %v3119
      %v3264 = vpop.f32.mrf.mxu0
      %v3265 = vadd.f32 0.0, %v3264
      %v3266 = vpop.f32.mrf.mxu0
      %v3267 = vadd.f32 0.0, %v3266
      %3268 = vmatmul.bf16.gmra.mxu0 %v3120
      %v3269 = vpop.f32.mrf.mxu0
      %v3270 = vadd.f32 0.0, %v3269
      %v3271 = vpop.f32.mrf.mxu0
      %v3272 = vadd.f32 0.0, %v3271
      %3273 = vdwg.mxu0
      %v3274 = vadd.f32 %v2959, %v3195
      %v3275 = vadd.f32 %v2960, %v3197
      %v3276 = vadd.f32 %v2961, %v3200
      %v3277 = vadd.f32 %v2962, %v3202
      %v3278 = vadd.f32 %v2963, %v3205
      %v3279 = vadd.f32 %v2964, %v3207
      %v3280 = vadd.f32 %v2965, %v3210
      %v3281 = vadd.f32 %v2966, %v3212
      %v3282 = vadd.f32 %v2967, %v3215
      %v3283 = vadd.f32 %v2968, %v3217
      %v3284 = vadd.f32 %v2969, %v3220
      %v3285 = vadd.f32 %v2970, %v3222
      %v3286 = vadd.f32 %v2971, %v3225
      %v3287 = vadd.f32 %v2972, %v3227
      %v3288 = vadd.f32 %v2973, %v3230
      %v3289 = vadd.f32 %v2974, %v3232
      %v3290 = vadd.f32 %v2975, %v3235
      %v3291 = vadd.f32 %v2976, %v3237
      %v3292 = vadd.f32 %v2977, %v3240
      %v3293 = vadd.f32 %v2978, %v3242
      %v3294 = vadd.f32 %v2979, %v3245
      %v3295 = vadd.f32 %v2980, %v3247
      %v3296 = vadd.f32 %v2981, %v3250
      %v3297 = vadd.f32 %v2982, %v3252
      %v3298 = vadd.f32 %v2983, %v3255
      %v3299 = vadd.f32 %v2984, %v3257
      %v3300 = vadd.f32 %v2985, %v3260
      %v3301 = vadd.f32 %v2986, %v3262
      %v3302 = vadd.f32 %v2987, %v3265
      %v3303 = vadd.f32 %v2988, %v3267
      %v3304 = vadd.f32 %v2989, %v3270
      %v3305 = vadd.f32 %v2990, %v3272
      %v3306 = vld [vmem:[%s2991] sm:$0xf]
      %v3307 = vld [vmem:[%s2991 + $0x4] sm:$0xf]
      %v3308 = vld [vmem:[%s2991 + $0x8] sm:$0x1]
      %v3309 = vld [vmem:[%s2991 + $0xc] sm:$0xf]
      %v3310 = vld [vmem:[%s2991 + $0x10] sm:$0xf]
      %v3311 = vld [vmem:[%s2991 + $0x14] sm:$0x1]
      %v3312 = vld [vmem:[%s2991 + $0x18] sm:$0xf]
      %v3313 = vld [vmem:[%s2991 + $0x1c] sm:$0xf]
      %v3314 = vld [vmem:[%s2991 + $0x20] sm:$0x1]
      %v3315 = vld [vmem:[%s2991 + $0x24] sm:$0xf]
      %v3316 = vld [vmem:[%s2991 + $0x28] sm:$0xf]
      %v3317 = vld [vmem:[%s2991 + $0x2c] sm:$0x1]
      %v3318 = vld [vmem:[%s2991 + $0x30] sm:$0xf]
      %v3319 = vld [vmem:[%s2991 + $0x34] sm:$0xf]
      %v3320 = vld [vmem:[%s2991 + $0x38] sm:$0x1]
      %v3321 = vld [vmem:[%s2991 + $0x3c] sm:$0xf]
      %v3322 = vld [vmem:[%s2991 + $0x40] sm:$0xf]
      %v3323 = vld [vmem:[%s2991 + $0x44] sm:$0x1]
      %v3324 = vld [vmem:[%s2991 + $0x48] sm:$0xf]
      %v3325 = vld [vmem:[%s2991 + $0x4c] sm:$0xf]
      %v3326 = vld [vmem:[%s2991 + $0x50] sm:$0x1]
      %v3327 = vld [vmem:[%s2991 + $0x54] sm:$0xf]
      %v3328 = vld [vmem:[%s2991 + $0x58] sm:$0xf]
      %v3329 = vld [vmem:[%s2991 + $0x5c] sm:$0x1]
      %v3330 = vld [vmem:[%s2991 + $0x60] sm:$0xf]
      %v3331 = vld [vmem:[%s2991 + $0x64] sm:$0xf]
      %v3332 = vld [vmem:[%s2991 + $0x68] sm:$0x1]
      %v3333 = vld [vmem:[%s2991 + $0x6c] sm:$0xf]
      %v3334 = vld [vmem:[%s2991 + $0x70] sm:$0xf]
      %v3335 = vld [vmem:[%s2991 + $0x74] sm:$0x1]
      %v3336 = vld [vmem:[%s2991 + $0x78] sm:$0xf]
      %v3337 = vld [vmem:[%s2991 + $0x7c] sm:$0xf]
      %v3338 = vld [vmem:[%s2991 + $0x80] sm:$0x1]
      %v3339 = vld [vmem:[%s2991 + $0x84] sm:$0xf]
      %v3340 = vld [vmem:[%s2991 + $0x88] sm:$0xf]
      %v3341 = vld [vmem:[%s2991 + $0x8c] sm:$0x1]
      %v3342 = vld [vmem:[%s2991 + $0x90] sm:$0xf]
      %v3343 = vld [vmem:[%s2991 + $0x94] sm:$0xf]
      %v3344 = vld [vmem:[%s2991 + $0x98] sm:$0x1]
      %v3345 = vld [vmem:[%s2991 + $0x9c] sm:$0xf]
      %v3346 = vld [vmem:[%s2991 + $0xa0] sm:$0xf]
      %v3347 = vld [vmem:[%s2991 + $0xa4] sm:$0x1]
      %v3348 = vld [vmem:[%s2991 + $0xa8] sm:$0xf]
      %v3349 = vld [vmem:[%s2991 + $0xac] sm:$0xf]
      %v3350 = vld [vmem:[%s2991 + $0xb0] sm:$0x1]
      %v3351 = vld [vmem:[%s2991 + $0xb4] sm:$0xf]
      %v3352 = vld [vmem:[%s2991 + $0xb8] sm:$0xf]
      %v3353 = vld [vmem:[%s2991 + $0xbc] sm:$0x1]
      %v3355 = vshrl.u32 %v3306, 16
      %v3357 = vrot.slane %v3355, 4
      %v3358 = vshll.u32 %v3306, 16
      %v3360 = vrot.slane %v3358, 5
      %v3361 = vor.u32 %v3357, %v3360
      %v3362 = vrot.slane %v3361, 4
      %v3364 = vshll.u32 %v3307, 16
      %v3366 = vrot.slane %v3364, 5
      %v3367 = vsel %vm319, %v3362, %v3366
      %v3368 = vshrl.u32 %v3307, 16
      %v3370 = vrot.slane %v3368, 4
      %v3371 = vor.u32 %v3370, %v3366
      %v3372 = vrot.slane %v3371, 4
      %v3374 = vshll.u32 %v3308, 16
      %v3376 = vrot.slane %v3374, 5
      %v3377 = vsel %vm319, %v3372, %v3376
      %v3379 = vshrl.u32 %v3309, 16
      %v3381 = vrot.slane %v3379, 4
      %v3382 = vshll.u32 %v3309, 16
      %v3384 = vrot.slane %v3382, 5
      %v3385 = vor.u32 %v3381, %v3384
      %v3386 = vrot.slane %v3385, 4
      %v3388 = vshll.u32 %v3310, 16
      %v3390 = vrot.slane %v3388, 5
      %v3391 = vsel %vm319, %v3386, %v3390
      %v3392 = vshrl.u32 %v3310, 16
      %v3394 = vrot.slane %v3392, 4
      %v3395 = vor.u32 %v3394, %v3390
      %v3396 = vrot.slane %v3395, 4
      %v3398 = vshll.u32 %v3311, 16
      %v3400 = vrot.slane %v3398, 5
      %v3401 = vsel %vm319, %v3396, %v3400
      %v3403 = vshrl.u32 %v3312, 16
      %v3405 = vrot.slane %v3403, 4
      %v3406 = vshll.u32 %v3312, 16
      %v3408 = vrot.slane %v3406, 5
      %v3409 = vor.u32 %v3405, %v3408
      %v3410 = vrot.slane %v3409, 4
      %v3412 = vshll.u32 %v3313, 16
      %v3414 = vrot.slane %v3412, 5
      %v3415 = vsel %vm319, %v3410, %v3414
      %v3416 = vshrl.u32 %v3313, 16
      %v3418 = vrot.slane %v3416, 4
      %v3419 = vor.u32 %v3418, %v3414
      %v3420 = vrot.slane %v3419, 4
      %v3422 = vshll.u32 %v3314, 16
      %v3424 = vrot.slane %v3422, 5
      %v3425 = vsel %vm319, %v3420, %v3424
      %v3427 = vshrl.u32 %v3315, 16
      %v3429 = vrot.slane %v3427, 4
      %v3430 = vshll.u32 %v3315, 16
      %v3432 = vrot.slane %v3430, 5
      %v3433 = vor.u32 %v3429, %v3432
      %v3434 = vrot.slane %v3433, 4
      %v3436 = vshll.u32 %v3316, 16
      %v3438 = vrot.slane %v3436, 5
      %v3439 = vsel %vm319, %v3434, %v3438
      %v3440 = vshrl.u32 %v3316, 16
      %v3442 = vrot.slane %v3440, 4
      %v3443 = vor.u32 %v3442, %v3438
      %v3444 = vrot.slane %v3443, 4
      %v3446 = vshll.u32 %v3317, 16
      %v3448 = vrot.slane %v3446, 5
      %v3449 = vsel %vm319, %v3444, %v3448
      %v3451 = vshrl.u32 %v3318, 16
      %v3453 = vrot.slane %v3451, 4
      %v3454 = vshll.u32 %v3318, 16
      %v3456 = vrot.slane %v3454, 5
      %v3457 = vor.u32 %v3453, %v3456
      %v3458 = vrot.slane %v3457, 4
      %v3460 = vshll.u32 %v3319, 16
      %v3462 = vrot.slane %v3460, 5
      %v3463 = vsel %vm319, %v3458, %v3462
      %v3464 = vshrl.u32 %v3319, 16
      %v3466 = vrot.slane %v3464, 4
      %v3467 = vor.u32 %v3466, %v3462
      %v3468 = vrot.slane %v3467, 4
      %v3470 = vshll.u32 %v3320, 16
      %v3472 = vrot.slane %v3470, 5
      %v3473 = vsel %vm319, %v3468, %v3472
      %v3475 = vshrl.u32 %v3321, 16
      %v3477 = vrot.slane %v3475, 4
      %v3478 = vshll.u32 %v3321, 16
      %v3480 = vrot.slane %v3478, 5
      %v3481 = vor.u32 %v3477, %v3480
      %v3482 = vrot.slane %v3481, 4
      %v3484 = vshll.u32 %v3322, 16
      %v3486 = vrot.slane %v3484, 5
      %v3487 = vsel %vm319, %v3482, %v3486
      %v3488 = vshrl.u32 %v3322, 16
      %v3490 = vrot.slane %v3488, 4
      %v3491 = vor.u32 %v3490, %v3486
      %v3492 = vrot.slane %v3491, 4
      %v3494 = vshll.u32 %v3323, 16
      %v3496 = vrot.slane %v3494, 5
      %v3497 = vsel %vm319, %v3492, %v3496
      %v3499 = vshrl.u32 %v3324, 16
      %v3501 = vrot.slane %v3499, 4
      %v3502 = vshll.u32 %v3324, 16
      %v3504 = vrot.slane %v3502, 5
      %v3505 = vor.u32 %v3501, %v3504
      %v3506 = vrot.slane %v3505, 4
      %v3508 = vshll.u32 %v3325, 16
      %v3510 = vrot.slane %v3508, 5
      %v3511 = vsel %vm319, %v3506, %v3510
      %v3512 = vshrl.u32 %v3325, 16
      %v3514 = vrot.slane %v3512, 4
      %v3515 = vor.u32 %v3514, %v3510
      %v3516 = vrot.slane %v3515, 4
      %v3518 = vshll.u32 %v3326, 16
      %v3520 = vrot.slane %v3518, 5
      %v3521 = vsel %vm319, %v3516, %v3520
      %v3523 = vshrl.u32 %v3327, 16
      %v3525 = vrot.slane %v3523, 4
      %v3526 = vshll.u32 %v3327, 16
      %v3528 = vrot.slane %v3526, 5
      %v3529 = vor.u32 %v3525, %v3528
      %v3530 = vrot.slane %v3529, 4
      %v3532 = vshll.u32 %v3328, 16
      %v3534 = vrot.slane %v3532, 5
      %v3535 = vsel %vm319, %v3530, %v3534
      %v3536 = vshrl.u32 %v3328, 16
      %v3538 = vrot.slane %v3536, 4
      %v3539 = vor.u32 %v3538, %v3534
      %v3540 = vrot.slane %v3539, 4
      %v3542 = vshll.u32 %v3329, 16
      %v3544 = vrot.slane %v3542, 5
      %v3545 = vsel %vm319, %v3540, %v3544
      %v3547 = vshrl.u32 %v3330, 16
      %v3549 = vrot.slane %v3547, 4
      %v3550 = vshll.u32 %v3330, 16
      %v3552 = vrot.slane %v3550, 5
      %v3553 = vor.u32 %v3549, %v3552
      %v3554 = vrot.slane %v3553, 4
      %v3556 = vshll.u32 %v3331, 16
      %v3558 = vrot.slane %v3556, 5
      %v3559 = vsel %vm319, %v3554, %v3558
      %v3560 = vshrl.u32 %v3331, 16
      %v3562 = vrot.slane %v3560, 4
      %v3563 = vor.u32 %v3562, %v3558
      %v3564 = vrot.slane %v3563, 4
      %v3566 = vshll.u32 %v3332, 16
      %v3568 = vrot.slane %v3566, 5
      %v3569 = vsel %vm319, %v3564, %v3568
      %v3571 = vshrl.u32 %v3333, 16
      %v3573 = vrot.slane %v3571, 4
      %v3574 = vshll.u32 %v3333, 16
      %v3576 = vrot.slane %v3574, 5
      %v3577 = vor.u32 %v3573, %v3576
      %v3578 = vrot.slane %v3577, 4
      %v3580 = vshll.u32 %v3334, 16
      %v3582 = vrot.slane %v3580, 5
      %v3583 = vsel %vm319, %v3578, %v3582
      %v3584 = vshrl.u32 %v3334, 16
      %v3586 = vrot.slane %v3584, 4
      %v3587 = vor.u32 %v3586, %v3582
      %v3588 = vrot.slane %v3587, 4
      %v3590 = vshll.u32 %v3335, 16
      %v3592 = vrot.slane %v3590, 5
      %v3593 = vsel %vm319, %v3588, %v3592
      %v3595 = vshrl.u32 %v3336, 16
      %v3597 = vrot.slane %v3595, 4
      %v3598 = vshll.u32 %v3336, 16
      %v3600 = vrot.slane %v3598, 5
      %v3601 = vor.u32 %v3597, %v3600
      %v3602 = vrot.slane %v3601, 4
      %v3604 = vshll.u32 %v3337, 16
      %v3606 = vrot.slane %v3604, 5
      %v3607 = vsel %vm319, %v3602, %v3606
      %v3608 = vshrl.u32 %v3337, 16
      %v3610 = vrot.slane %v3608, 4
      %v3611 = vor.u32 %v3610, %v3606
      %v3612 = vrot.slane %v3611, 4
      %v3614 = vshll.u32 %v3338, 16
      %v3616 = vrot.slane %v3614, 5
      %v3617 = vsel %vm319, %v3612, %v3616
      %v3619 = vshrl.u32 %v3339, 16
      %v3621 = vrot.slane %v3619, 4
      %v3622 = vshll.u32 %v3339, 16
      %v3624 = vrot.slane %v3622, 5
      %v3625 = vor.u32 %v3621, %v3624
      %v3626 = vrot.slane %v3625, 4
      %v3628 = vshll.u32 %v3340, 16
      %v3630 = vrot.slane %v3628, 5
      %v3631 = vsel %vm319, %v3626, %v3630
      %v3632 = vshrl.u32 %v3340, 16
      %v3634 = vrot.slane %v3632, 4
      %v3635 = vor.u32 %v3634, %v3630
      %v3636 = vrot.slane %v3635, 4
      %v3638 = vshll.u32 %v3341, 16
      %v3640 = vrot.slane %v3638, 5
      %v3641 = vsel %vm319, %v3636, %v3640
      %v3643 = vshrl.u32 %v3342, 16
      %v3645 = vrot.slane %v3643, 4
      %v3646 = vshll.u32 %v3342, 16
      %v3648 = vrot.slane %v3646, 5
      %v3649 = vor.u32 %v3645, %v3648
      %v3650 = vrot.slane %v3649, 4
      %v3652 = vshll.u32 %v3343, 16
      %v3654 = vrot.slane %v3652, 5
      %v3655 = vsel %vm319, %v3650, %v3654
      %v3656 = vshrl.u32 %v3343, 16
      %v3658 = vrot.slane %v3656, 4
      %v3659 = vor.u32 %v3658, %v3654
      %v3660 = vrot.slane %v3659, 4
      %v3662 = vshll.u32 %v3344, 16
      %v3664 = vrot.slane %v3662, 5
      %v3665 = vsel %vm319, %v3660, %v3664
      %v3667 = vshrl.u32 %v3345, 16
      %v3669 = vrot.slane %v3667, 4
      %v3670 = vshll.u32 %v3345, 16
      %v3672 = vrot.slane %v3670, 5
      %v3673 = vor.u32 %v3669, %v3672
      %v3674 = vrot.slane %v3673, 4
      %v3676 = vshll.u32 %v3346, 16
      %v3678 = vrot.slane %v3676, 5
      %v3679 = vsel %vm319, %v3674, %v3678
      %v3680 = vshrl.u32 %v3346, 16
      %v3682 = vrot.slane %v3680, 4
      %v3683 = vor.u32 %v3682, %v3678
      %v3684 = vrot.slane %v3683, 4
      %v3686 = vshll.u32 %v3347, 16
      %v3688 = vrot.slane %v3686, 5
      %v3689 = vsel %vm319, %v3684, %v3688
      %v3691 = vshrl.u32 %v3348, 16
      %v3693 = vrot.slane %v3691, 4
      %v3694 = vshll.u32 %v3348, 16
      %v3696 = vrot.slane %v3694, 5
      %v3697 = vor.u32 %v3693, %v3696
      %v3698 = vrot.slane %v3697, 4
      %v3700 = vshll.u32 %v3349, 16
      %v3702 = vrot.slane %v3700, 5
      %v3703 = vsel %vm319, %v3698, %v3702
      %v3704 = vshrl.u32 %v3349, 16
      %v3706 = vrot.slane %v3704, 4
      %v3707 = vor.u32 %v3706, %v3702
      %v3708 = vrot.slane %v3707, 4
      %v3710 = vshll.u32 %v3350, 16
      %v3712 = vrot.slane %v3710, 5
      %v3713 = vsel %vm319, %v3708, %v3712
      %v3715 = vshrl.u32 %v3351, 16
      %v3717 = vrot.slane %v3715, 4
      %v3718 = vshll.u32 %v3351, 16
      %v3720 = vrot.slane %v3718, 5
      %v3721 = vor.u32 %v3717, %v3720
      %v3722 = vrot.slane %v3721, 4
      %v3724 = vshll.u32 %v3352, 16
      %v3726 = vrot.slane %v3724, 5
      %v3727 = vsel %vm319, %v3722, %v3726
      %v3728 = vshrl.u32 %v3352, 16
      %v3730 = vrot.slane %v3728, 4
      %v3731 = vor.u32 %v3730, %v3726
      %v3732 = vrot.slane %v3731, 4
      %v3734 = vshll.u32 %v3353, 16
      %v3736 = vrot.slane %v3734, 5
      %v3737 = vsel %vm319, %v3732, %v3736
      %s3738 = scalar_lea.vmem %s1, 448
      %v3739 = vld [vmem:[%s3738] sm:$0xf]
      %v3740 = vld [vmem:[%s3738 + $0x4] sm:$0xf]
      %v3741 = vld [vmem:[%s3738 + $0x8] sm:$0xf]
      %v3742 = vld [vmem:[%s3738 + $0xc] sm:$0xf]
      %v3743 = vld [vmem:[%s3738 + $0x10] sm:$0xf]
      %v3744 = vld [vmem:[%s3738 + $0x14] sm:$0xf]
      %v3745 = vld [vmem:[%s3738 + $0x18] sm:$0xf]
      %v3746 = vld [vmem:[%s3738 + $0x1c] sm:$0xf]
      %v3747 = vld [vmem:[%s3738 + $0x20] sm:$0xf]
      %v3748 = vld [vmem:[%s3738 + $0x24] sm:$0xf]
      %v3749 = vld [vmem:[%s3738 + $0x28] sm:$0xf]
      %v3750 = vld [vmem:[%s3738 + $0x2c] sm:$0xf]
      %v3751 = vld [vmem:[%s3738 + $0x30] sm:$0xf]
      %v3752 = vld [vmem:[%s3738 + $0x34] sm:$0xf]
      %v3753 = vld [vmem:[%s3738 + $0x38] sm:$0xf]
      %v3754 = vld [vmem:[%s3738 + $0x3c] sm:$0xf]
      %v3755 = vunpack.c.l.b16 %v3367
      %v3756 = vunpack.c.l.b16 %v3377
      %v3757 = vunpack.c.l.b16 %v3391
      %v3758 = vunpack.c.l.b16 %v3401
      %v3759 = vunpack.c.l.b16 %v3415
      %v3760 = vunpack.c.l.b16 %v3425
      %v3761 = vunpack.c.l.b16 %v3439
      %v3762 = vunpack.c.l.b16 %v3449
      %v3763 = vunpack.c.l.b16 %v3463
      %v3764 = vunpack.c.l.b16 %v3473
      %v3765 = vunpack.c.l.b16 %v3487
      %v3766 = vunpack.c.l.b16 %v3497
      %v3767 = vunpack.c.l.b16 %v3511
      %v3768 = vunpack.c.l.b16 %v3521
      %v3769 = vunpack.c.l.b16 %v3535
      %v3770 = vunpack.c.l.b16 %v3545
      %v3771 = vunpack.c.l.b16 %v3559
      %v3772 = vunpack.c.l.b16 %v3569
      %v3773 = vunpack.c.l.b16 %v3583
      %v3774 = vunpack.c.l.b16 %v3593
      %v3775 = vunpack.c.l.b16 %v3607
      %v3776 = vunpack.c.l.b16 %v3617
      %v3777 = vunpack.c.l.b16 %v3631
      %v3778 = vunpack.c.l.b16 %v3641
      %v3779 = vunpack.c.l.b16 %v3655
      %v3780 = vunpack.c.l.b16 %v3665
      %v3781 = vunpack.c.l.b16 %v3679
      %v3782 = vunpack.c.l.b16 %v3689
      %v3783 = vunpack.c.l.b16 %v3703
      %v3784 = vunpack.c.l.b16 %v3713
      %v3785 = vunpack.c.l.b16 %v3727
      %v3786 = vunpack.c.l.b16 %v3737
      %v3787 = vpack.c.b16 %v3756, %v3755
      %v3788 = vpack.c.b16 %v3758, %v3757
      %v3789 = vpack.c.b16 %v3760, %v3759
      %v3790 = vpack.c.b16 %v3762, %v3761
      %v3791 = vpack.c.b16 %v3764, %v3763
      %v3792 = vpack.c.b16 %v3766, %v3765
      %v3793 = vpack.c.b16 %v3768, %v3767
      %v3794 = vpack.c.b16 %v3770, %v3769
      %v3795 = vpack.c.b16 %v3772, %v3771
      %v3796 = vpack.c.b16 %v3774, %v3773
      %v3797 = vpack.c.b16 %v3776, %v3775
      %v3798 = vpack.c.b16 %v3778, %v3777
      %v3799 = vpack.c.b16 %v3780, %v3779
      %v3800 = vpack.c.b16 %v3782, %v3781
      %v3801 = vpack.c.b16 %v3784, %v3783
      %v3802 = vpack.c.b16 %v3786, %v3785
      %v3835 = vunpack.c.l.b16 %v3739
      %v3836 = vunpack.c.l.b16 %v3740
      %v3837 = vunpack.c.l.b16 %v3741
      %v3838 = vunpack.c.l.b16 %v3742
      %v3839 = vunpack.c.l.b16 %v3743
      %v3840 = vunpack.c.l.b16 %v3744
      %v3841 = vunpack.c.l.b16 %v3745
      %v3842 = vunpack.c.l.b16 %v3746
      %v3843 = vunpack.c.l.b16 %v3747
      %v3844 = vunpack.c.l.b16 %v3748
      %v3845 = vunpack.c.l.b16 %v3749
      %v3846 = vunpack.c.l.b16 %v3750
      %v3847 = vunpack.c.l.b16 %v3751
      %v3848 = vunpack.c.l.b16 %v3752
      %v3849 = vunpack.c.l.b16 %v3753
      %v3850 = vunpack.c.l.b16 %v3754
      %v3851 = vpack.c.b16 %v3836, %v3835
      %v3852 = vpack.c.b16 %v3838, %v3837
      %v3853 = vpack.c.b16 %v3840, %v3839
      %v3854 = vpack.c.b16 %v3842, %v3841
      %v3855 = vpack.c.b16 %v3844, %v3843
      %v3856 = vpack.c.b16 %v3846, %v3845
      %v3857 = vpack.c.b16 %v3848, %v3847
      %v3858 = vpack.c.b16 %v3850, %v3849
      %3867 = vmatpush.bf16.msra.mxu0 %v3858
      %3868 = vmatpush.bf16.msra.mxu0 %v3857
      %3869 = vmatpush.bf16.msra.mxu0 %v3856
      %3870 = vmatpush.bf16.msra.mxu0 %v3855
      %3871 = vmatpush.bf16.msra.mxu0 %v3854
      %3872 = vmatpush.bf16.msra.mxu0 %v3853
      %3873 = vmatpush.bf16.msra.mxu0 %v3852
      %3874 = vmatpush.bf16.msra.mxu0 %v3851
      %3875 = vmatmul.bf16.gmra.mxu0 %v3787
      %v3876 = vpop.f32.mrf.mxu0
      %v3877 = vadd.f32 0.0, %v3876
      %v3878 = vpop.f32.mrf.mxu0
      %v3879 = vadd.f32 0.0, %v3878
      %3880 = vmatmul.bf16.gmra.mxu0 %v3788
      %v3881 = vpop.f32.mrf.mxu0
      %v3882 = vadd.f32 0.0, %v3881
      %v3883 = vpop.f32.mrf.mxu0
      %v3884 = vadd.f32 0.0, %v3883
      %3885 = vmatmul.bf16.gmra.mxu0 %v3789
      %v3886 = vpop.f32.mrf.mxu0
      %v3887 = vadd.f32 0.0, %v3886
      %v3888 = vpop.f32.mrf.mxu0
      %v3889 = vadd.f32 0.0, %v3888
      %3890 = vmatmul.bf16.gmra.mxu0 %v3790
      %v3891 = vpop.f32.mrf.mxu0
      %v3892 = vadd.f32 0.0, %v3891
      %v3893 = vpop.f32.mrf.mxu0
      %v3894 = vadd.f32 0.0, %v3893
      %3895 = vmatmul.bf16.gmra.mxu0 %v3791
      %v3896 = vpop.f32.mrf.mxu0
      %v3897 = vadd.f32 0.0, %v3896
      %v3898 = vpop.f32.mrf.mxu0
      %v3899 = vadd.f32 0.0, %v3898
      %3900 = vmatmul.bf16.gmra.mxu0 %v3792
      %v3901 = vpop.f32.mrf.mxu0
      %v3902 = vadd.f32 0.0, %v3901
      %v3903 = vpop.f32.mrf.mxu0
      %v3904 = vadd.f32 0.0, %v3903
      %3905 = vmatmul.bf16.gmra.mxu0 %v3793
      %v3906 = vpop.f32.mrf.mxu0
      %v3907 = vadd.f32 0.0, %v3906
      %v3908 = vpop.f32.mrf.mxu0
      %v3909 = vadd.f32 0.0, %v3908
      %3910 = vmatmul.bf16.gmra.mxu0 %v3794
      %v3911 = vpop.f32.mrf.mxu0
      %v3912 = vadd.f32 0.0, %v3911
      %v3913 = vpop.f32.mrf.mxu0
      %v3914 = vadd.f32 0.0, %v3913
      %3915 = vmatmul.bf16.gmra.mxu0 %v3795
      %v3916 = vpop.f32.mrf.mxu0
      %v3917 = vadd.f32 0.0, %v3916
      %v3918 = vpop.f32.mrf.mxu0
      %v3919 = vadd.f32 0.0, %v3918
      %3920 = vmatmul.bf16.gmra.mxu0 %v3796
      %v3921 = vpop.f32.mrf.mxu0
      %v3922 = vadd.f32 0.0, %v3921
      %v3923 = vpop.f32.mrf.mxu0
      %v3924 = vadd.f32 0.0, %v3923
      %3925 = vmatmul.bf16.gmra.mxu0 %v3797
      %v3926 = vpop.f32.mrf.mxu0
      %v3927 = vadd.f32 0.0, %v3926
      %v3928 = vpop.f32.mrf.mxu0
      %v3929 = vadd.f32 0.0, %v3928
      %3930 = vmatmul.bf16.gmra.mxu0 %v3798
      %v3931 = vpop.f32.mrf.mxu0
      %v3932 = vadd.f32 0.0, %v3931
      %v3933 = vpop.f32.mrf.mxu0
      %v3934 = vadd.f32 0.0, %v3933
      %3935 = vmatmul.bf16.gmra.mxu0 %v3799
      %v3936 = vpop.f32.mrf.mxu0
      %v3937 = vadd.f32 0.0, %v3936
      %v3938 = vpop.f32.mrf.mxu0
      %v3939 = vadd.f32 0.0, %v3938
      %3940 = vmatmul.bf16.gmra.mxu0 %v3800
      %v3941 = vpop.f32.mrf.mxu0
      %v3942 = vadd.f32 0.0, %v3941
      %v3943 = vpop.f32.mrf.mxu0
      %v3944 = vadd.f32 0.0, %v3943
      %3945 = vmatmul.bf16.gmra.mxu0 %v3801
      %v3946 = vpop.f32.mrf.mxu0
      %v3947 = vadd.f32 0.0, %v3946
      %v3948 = vpop.f32.mrf.mxu0
      %v3949 = vadd.f32 0.0, %v3948
      %3950 = vmatmul.bf16.gmra.mxu0 %v3802
      %v3951 = vpop.f32.mrf.mxu0
      %v3952 = vadd.f32 0.0, %v3951
      %v3953 = vpop.f32.mrf.mxu0
      %v3954 = vadd.f32 0.0, %v3953
      %3955 = vdwg.mxu0
      %v3956 = vadd.f32 %v3274, %v3877
      %v3957 = vadd.f32 %v3275, %v3879
      %v3958 = vadd.f32 %v3276, %v3882
      %v3959 = vadd.f32 %v3277, %v3884
      %v3960 = vadd.f32 %v3278, %v3887
      %v3961 = vadd.f32 %v3279, %v3889
      %v3962 = vadd.f32 %v3280, %v3892
      %v3963 = vadd.f32 %v3281, %v3894
      %v3964 = vadd.f32 %v3282, %v3897
      %v3965 = vadd.f32 %v3283, %v3899
      %v3966 = vadd.f32 %v3284, %v3902
      %v3967 = vadd.f32 %v3285, %v3904
      %v3968 = vadd.f32 %v3286, %v3907
      %v3969 = vadd.f32 %v3287, %v3909
      %v3970 = vadd.f32 %v3288, %v3912
      %v3971 = vadd.f32 %v3289, %v3914
      %v3972 = vadd.f32 %v3290, %v3917
      %v3973 = vadd.f32 %v3291, %v3919
      %v3974 = vadd.f32 %v3292, %v3922
      %v3975 = vadd.f32 %v3293, %v3924
      %v3976 = vadd.f32 %v3294, %v3927
      %v3977 = vadd.f32 %v3295, %v3929
      %v3978 = vadd.f32 %v3296, %v3932
      %v3979 = vadd.f32 %v3297, %v3934
      %v3980 = vadd.f32 %v3298, %v3937
      %v3981 = vadd.f32 %v3299, %v3939
      %v3982 = vadd.f32 %v3300, %v3942
      %v3983 = vadd.f32 %v3301, %v3944
      %v3984 = vadd.f32 %v3302, %v3947
      %v3985 = vadd.f32 %v3303, %v3949
      %v3986 = vadd.f32 %v3304, %v3952
      %v3987 = vadd.f32 %v3305, %v3954
      %v3988 = vld [vmem:[%s2991] sm:$0xe]
      %v3989 = vld [vmem:[%s2991 + $0xc] sm:$0xe]
      %v3990 = vld [vmem:[%s2991 + $0x18] sm:$0xe]
      %v3991 = vld [vmem:[%s2991 + $0x24] sm:$0xe]
      %v3992 = vld [vmem:[%s2991 + $0x30] sm:$0xe]
      %v3993 = vld [vmem:[%s2991 + $0x3c] sm:$0xe]
      %v3994 = vld [vmem:[%s2991 + $0x48] sm:$0xe]
      %v3995 = vld [vmem:[%s2991 + $0x54] sm:$0xe]
      %v3996 = vld [vmem:[%s2991 + $0x60] sm:$0xe]
      %v3997 = vld [vmem:[%s2991 + $0x6c] sm:$0xe]
      %v3998 = vld [vmem:[%s2991 + $0x78] sm:$0xe]
      %v3999 = vld [vmem:[%s2991 + $0x84] sm:$0xe]
      %v4000 = vld [vmem:[%s2991 + $0x90] sm:$0xe]
      %v4001 = vld [vmem:[%s2991 + $0x9c] sm:$0xe]
      %v4002 = vld [vmem:[%s2991 + $0xa8] sm:$0xe]
      %v4003 = vld [vmem:[%s2991 + $0xb4] sm:$0xe]
      %v4052 = vrot.slane %v3988, 5
      %v4053 = vrot.slane %v4052, 4
      %v4054 = vrot.slane %v3307, 5
      %v4055 = vsel %vm1205, %v4053, %v4054
      %v4056 = vrot.slane %v4054, 4
      %v4057 = vrot.slane %v3308, 5
      %v4058 = vsel %vm1205, %v4056, %v4057
      %v4059 = vrot.slane %v3989, 5
      %v4060 = vrot.slane %v4059, 4
      %v4061 = vrot.slane %v3310, 5
      %v4062 = vsel %vm1205, %v4060, %v4061
      %v4063 = vrot.slane %v4061, 4
      %v4064 = vrot.slane %v3311, 5
      %v4065 = vsel %vm1205, %v4063, %v4064
      %v4066 = vrot.slane %v3990, 5
      %v4067 = vrot.slane %v4066, 4
      %v4068 = vrot.slane %v3313, 5
      %v4069 = vsel %vm1205, %v4067, %v4068
      %v4070 = vrot.slane %v4068, 4
      %v4071 = vrot.slane %v3314, 5
      %v4072 = vsel %vm1205, %v4070, %v4071
      %v4073 = vrot.slane %v3991, 5
      %v4074 = vrot.slane %v4073, 4
      %v4075 = vrot.slane %v3316, 5
      %v4076 = vsel %vm1205, %v4074, %v4075
      %v4077 = vrot.slane %v4075, 4
      %v4078 = vrot.slane %v3317, 5
      %v4079 = vsel %vm1205, %v4077, %v4078
      %v4080 = vrot.slane %v3992, 5
      %v4081 = vrot.slane %v4080, 4
      %v4082 = vrot.slane %v3319, 5
      %v4083 = vsel %vm1205, %v4081, %v4082
      %v4084 = vrot.slane %v4082, 4
      %v4085 = vrot.slane %v3320, 5
      %v4086 = vsel %vm1205, %v4084, %v4085
      %v4087 = vrot.slane %v3993, 5
      %v4088 = vrot.slane %v4087, 4
      %v4089 = vrot.slane %v3322, 5
      %v4090 = vsel %vm1205, %v4088, %v4089
      %v4091 = vrot.slane %v4089, 4
      %v4092 = vrot.slane %v3323, 5
      %v4093 = vsel %vm1205, %v4091, %v4092
      %v4094 = vrot.slane %v3994, 5
      %v4095 = vrot.slane %v4094, 4
      %v4096 = vrot.slane %v3325, 5
      %v4097 = vsel %vm1205, %v4095, %v4096
      %v4098 = vrot.slane %v4096, 4
      %v4099 = vrot.slane %v3326, 5
      %v4100 = vsel %vm1205, %v4098, %v4099
      %v4101 = vrot.slane %v3995, 5
      %v4102 = vrot.slane %v4101, 4
      %v4103 = vrot.slane %v3328, 5
      %v4104 = vsel %vm1205, %v4102, %v4103
      %v4105 = vrot.slane %v4103, 4
      %v4106 = vrot.slane %v3329, 5
      %v4107 = vsel %vm1205, %v4105, %v4106
      %v4108 = vrot.slane %v3996, 5
      %v4109 = vrot.slane %v4108, 4
      %v4110 = vrot.slane %v3331, 5
      %v4111 = vsel %vm1205, %v4109, %v4110
      %v4112 = vrot.slane %v4110, 4
      %v4113 = vrot.slane %v3332, 5
      %v4114 = vsel %vm1205, %v4112, %v4113
      %v4115 = vrot.slane %v3997, 5
      %v4116 = vrot.slane %v4115, 4
      %v4117 = vrot.slane %v3334, 5
      %v4118 = vsel %vm1205, %v4116, %v4117
      %v4119 = vrot.slane %v4117, 4
      %v4120 = vrot.slane %v3335, 5
      %v4121 = vsel %vm1205, %v4119, %v4120
      %v4122 = vrot.slane %v3998, 5
      %v4123 = vrot.slane %v4122, 4
      %v4124 = vrot.slane %v3337, 5
      %v4125 = vsel %vm1205, %v4123, %v4124
      %v4126 = vrot.slane %v4124, 4
      %v4127 = vrot.slane %v3338, 5
      %v4128 = vsel %vm1205, %v4126, %v4127
      %v4129 = vrot.slane %v3999, 5
      %v4130 = vrot.slane %v4129, 4
      %v4131 = vrot.slane %v3340, 5
      %v4132 = vsel %vm1205, %v4130, %v4131
      %v4133 = vrot.slane %v4131, 4
      %v4134 = vrot.slane %v3341, 5
      %v4135 = vsel %vm1205, %v4133, %v4134
      %v4136 = vrot.slane %v4000, 5
      %v4137 = vrot.slane %v4136, 4
      %v4138 = vrot.slane %v3343, 5
      %v4139 = vsel %vm1205, %v4137, %v4138
      %v4140 = vrot.slane %v4138, 4
      %v4141 = vrot.slane %v3344, 5
      %v4142 = vsel %vm1205, %v4140, %v4141
      %v4143 = vrot.slane %v4001, 5
      %v4144 = vrot.slane %v4143, 4
      %v4145 = vrot.slane %v3346, 5
      %v4146 = vsel %vm1205, %v4144, %v4145
      %v4147 = vrot.slane %v4145, 4
      %v4148 = vrot.slane %v3347, 5
      %v4149 = vsel %vm1205, %v4147, %v4148
      %v4150 = vrot.slane %v4002, 5
      %v4151 = vrot.slane %v4150, 4
      %v4152 = vrot.slane %v3349, 5
      %v4153 = vsel %vm1205, %v4151, %v4152
      %v4154 = vrot.slane %v4152, 4
      %v4155 = vrot.slane %v3350, 5
      %v4156 = vsel %vm1205, %v4154, %v4155
      %v4157 = vrot.slane %v4003, 5
      %v4158 = vrot.slane %v4157, 4
      %v4159 = vrot.slane %v3352, 5
      %v4160 = vsel %vm1205, %v4158, %v4159
      %v4161 = vrot.slane %v4159, 4
      %v4162 = vrot.slane %v3353, 5
      %v4163 = vsel %vm1205, %v4161, %v4162
      %s4164 = scalar_lea.vmem %s1, 512
      %v4165 = vld [vmem:[%s4164] sm:$0xf]
      %v4166 = vld [vmem:[%s4164 + $0x4] sm:$0xf]
      %v4167 = vld [vmem:[%s4164 + $0x8] sm:$0xf]
      %v4168 = vld [vmem:[%s4164 + $0xc] sm:$0xf]
      %v4169 = vld [vmem:[%s4164 + $0x10] sm:$0xf]
      %v4170 = vld [vmem:[%s4164 + $0x14] sm:$0xf]
      %v4171 = vld [vmem:[%s4164 + $0x18] sm:$0xf]
      %v4172 = vld [vmem:[%s4164 + $0x1c] sm:$0xf]
      %v4173 = vld [vmem:[%s4164 + $0x20] sm:$0xf]
      %v4174 = vld [vmem:[%s4164 + $0x24] sm:$0xf]
      %v4175 = vld [vmem:[%s4164 + $0x28] sm:$0xf]
      %v4176 = vld [vmem:[%s4164 + $0x2c] sm:$0xf]
      %v4177 = vld [vmem:[%s4164 + $0x30] sm:$0xf]
      %v4178 = vld [vmem:[%s4164 + $0x34] sm:$0xf]
      %v4179 = vld [vmem:[%s4164 + $0x38] sm:$0xf]
      %v4180 = vld [vmem:[%s4164 + $0x3c] sm:$0xf]
      %v4181 = vunpack.c.l.b16 %v4055
      %v4182 = vunpack.c.l.b16 %v4058
      %v4183 = vunpack.c.l.b16 %v4062
      %v4184 = vunpack.c.l.b16 %v4065
      %v4185 = vunpack.c.l.b16 %v4069
      %v4186 = vunpack.c.l.b16 %v4072
      %v4187 = vunpack.c.l.b16 %v4076
      %v4188 = vunpack.c.l.b16 %v4079
      %v4189 = vunpack.c.l.b16 %v4083
      %v4190 = vunpack.c.l.b16 %v4086
      %v4191 = vunpack.c.l.b16 %v4090
      %v4192 = vunpack.c.l.b16 %v4093
      %v4193 = vunpack.c.l.b16 %v4097
      %v4194 = vunpack.c.l.b16 %v4100
      %v4195 = vunpack.c.l.b16 %v4104
      %v4196 = vunpack.c.l.b16 %v4107
      %v4197 = vunpack.c.l.b16 %v4111
      %v4198 = vunpack.c.l.b16 %v4114
      %v4199 = vunpack.c.l.b16 %v4118
      %v4200 = vunpack.c.l.b16 %v4121
      %v4201 = vunpack.c.l.b16 %v4125
      %v4202 = vunpack.c.l.b16 %v4128
      %v4203 = vunpack.c.l.b16 %v4132
      %v4204 = vunpack.c.l.b16 %v4135
      %v4205 = vunpack.c.l.b16 %v4139
      %v4206 = vunpack.c.l.b16 %v4142
      %v4207 = vunpack.c.l.b16 %v4146
      %v4208 = vunpack.c.l.b16 %v4149
      %v4209 = vunpack.c.l.b16 %v4153
      %v4210 = vunpack.c.l.b16 %v4156
      %v4211 = vunpack.c.l.b16 %v4160
      %v4212 = vunpack.c.l.b16 %v4163
      %v4213 = vpack.c.b16 %v4182, %v4181
      %v4214 = vpack.c.b16 %v4184, %v4183
      %v4215 = vpack.c.b16 %v4186, %v4185
      %v4216 = vpack.c.b16 %v4188, %v4187
      %v4217 = vpack.c.b16 %v4190, %v4189
      %v4218 = vpack.c.b16 %v4192, %v4191
      %v4219 = vpack.c.b16 %v4194, %v4193
      %v4220 = vpack.c.b16 %v4196, %v4195
      %v4221 = vpack.c.b16 %v4198, %v4197
      %v4222 = vpack.c.b16 %v4200, %v4199
      %v4223 = vpack.c.b16 %v4202, %v4201
      %v4224 = vpack.c.b16 %v4204, %v4203
      %v4225 = vpack.c.b16 %v4206, %v4205
      %v4226 = vpack.c.b16 %v4208, %v4207
      %v4227 = vpack.c.b16 %v4210, %v4209
      %v4228 = vpack.c.b16 %v4212, %v4211
      %v4261 = vunpack.c.l.b16 %v4165
      %v4262 = vunpack.c.l.b16 %v4166
      %v4263 = vunpack.c.l.b16 %v4167
      %v4264 = vunpack.c.l.b16 %v4168
      %v4265 = vunpack.c.l.b16 %v4169
      %v4266 = vunpack.c.l.b16 %v4170
      %v4267 = vunpack.c.l.b16 %v4171
      %v4268 = vunpack.c.l.b16 %v4172
      %v4269 = vunpack.c.l.b16 %v4173
      %v4270 = vunpack.c.l.b16 %v4174
      %v4271 = vunpack.c.l.b16 %v4175
      %v4272 = vunpack.c.l.b16 %v4176
      %v4273 = vunpack.c.l.b16 %v4177
      %v4274 = vunpack.c.l.b16 %v4178
      %v4275 = vunpack.c.l.b16 %v4179
      %v4276 = vunpack.c.l.b16 %v4180
      %v4277 = vpack.c.b16 %v4262, %v4261
      %v4278 = vpack.c.b16 %v4264, %v4263
      %v4279 = vpack.c.b16 %v4266, %v4265
      %v4280 = vpack.c.b16 %v4268, %v4267
      %v4281 = vpack.c.b16 %v4270, %v4269
      %v4282 = vpack.c.b16 %v4272, %v4271
      %v4283 = vpack.c.b16 %v4274, %v4273
      %v4284 = vpack.c.b16 %v4276, %v4275
      %4293 = vmatpush.bf16.msra.mxu0 %v4284
      %4294 = vmatpush.bf16.msra.mxu0 %v4283
      %4295 = vmatpush.bf16.msra.mxu0 %v4282
      %4296 = vmatpush.bf16.msra.mxu0 %v4281
      %4297 = vmatpush.bf16.msra.mxu0 %v4280
      %4298 = vmatpush.bf16.msra.mxu0 %v4279
      %4299 = vmatpush.bf16.msra.mxu0 %v4278
      %4300 = vmatpush.bf16.msra.mxu0 %v4277
      %4301 = vmatmul.bf16.gmra.mxu0 %v4213
      %v4302 = vpop.f32.mrf.mxu0
      %v4303 = vadd.f32 0.0, %v4302
      %v4304 = vpop.f32.mrf.mxu0
      %v4305 = vadd.f32 0.0, %v4304
      %4306 = vmatmul.bf16.gmra.mxu0 %v4214
      %v4307 = vpop.f32.mrf.mxu0
      %v4308 = vadd.f32 0.0, %v4307
      %v4309 = vpop.f32.mrf.mxu0
      %v4310 = vadd.f32 0.0, %v4309
      %4311 = vmatmul.bf16.gmra.mxu0 %v4215
      %v4312 = vpop.f32.mrf.mxu0
      %v4313 = vadd.f32 0.0, %v4312
      %v4314 = vpop.f32.mrf.mxu0
      %v4315 = vadd.f32 0.0, %v4314
      %4316 = vmatmul.bf16.gmra.mxu0 %v4216
      %v4317 = vpop.f32.mrf.mxu0
      %v4318 = vadd.f32 0.0, %v4317
      %v4319 = vpop.f32.mrf.mxu0
      %v4320 = vadd.f32 0.0, %v4319
      %4321 = vmatmul.bf16.gmra.mxu0 %v4217
      %v4322 = vpop.f32.mrf.mxu0
      %v4323 = vadd.f32 0.0, %v4322
      %v4324 = vpop.f32.mrf.mxu0
      %v4325 = vadd.f32 0.0, %v4324
      %4326 = vmatmul.bf16.gmra.mxu0 %v4218
      %v4327 = vpop.f32.mrf.mxu0
      %v4328 = vadd.f32 0.0, %v4327
      %v4329 = vpop.f32.mrf.mxu0
      %v4330 = vadd.f32 0.0, %v4329
      %4331 = vmatmul.bf16.gmra.mxu0 %v4219
      %v4332 = vpop.f32.mrf.mxu0
      %v4333 = vadd.f32 0.0, %v4332
      %v4334 = vpop.f32.mrf.mxu0
      %v4335 = vadd.f32 0.0, %v4334
      %4336 = vmatmul.bf16.gmra.mxu0 %v4220
      %v4337 = vpop.f32.mrf.mxu0
      %v4338 = vadd.f32 0.0, %v4337
      %v4339 = vpop.f32.mrf.mxu0
      %v4340 = vadd.f32 0.0, %v4339
      %4341 = vmatmul.bf16.gmra.mxu0 %v4221
      %v4342 = vpop.f32.mrf.mxu0
      %v4343 = vadd.f32 0.0, %v4342
      %v4344 = vpop.f32.mrf.mxu0
      %v4345 = vadd.f32 0.0, %v4344
      %4346 = vmatmul.bf16.gmra.mxu0 %v4222
      %v4347 = vpop.f32.mrf.mxu0
      %v4348 = vadd.f32 0.0, %v4347
      %v4349 = vpop.f32.mrf.mxu0
      %v4350 = vadd.f32 0.0, %v4349
      %4351 = vmatmul.bf16.gmra.mxu0 %v4223
      %v4352 = vpop.f32.mrf.mxu0
      %v4353 = vadd.f32 0.0, %v4352
      %v4354 = vpop.f32.mrf.mxu0
      %v4355 = vadd.f32 0.0, %v4354
      %4356 = vmatmul.bf16.gmra.mxu0 %v4224
      %v4357 = vpop.f32.mrf.mxu0
      %v4358 = vadd.f32 0.0, %v4357
      %v4359 = vpop.f32.mrf.mxu0
      %v4360 = vadd.f32 0.0, %v4359
      %4361 = vmatmul.bf16.gmra.mxu0 %v4225
      %v4362 = vpop.f32.mrf.mxu0
      %v4363 = vadd.f32 0.0, %v4362
      %v4364 = vpop.f32.mrf.mxu0
      %v4365 = vadd.f32 0.0, %v4364
      %4366 = vmatmul.bf16.gmra.mxu0 %v4226
      %v4367 = vpop.f32.mrf.mxu0
      %v4368 = vadd.f32 0.0, %v4367
      %v4369 = vpop.f32.mrf.mxu0
      %v4370 = vadd.f32 0.0, %v4369
      %4371 = vmatmul.bf16.gmra.mxu0 %v4227
      %v4372 = vpop.f32.mrf.mxu0
      %v4373 = vadd.f32 0.0, %v4372
      %v4374 = vpop.f32.mrf.mxu0
      %v4375 = vadd.f32 0.0, %v4374
      %4376 = vmatmul.bf16.gmra.mxu0 %v4228
      %v4377 = vpop.f32.mrf.mxu0
      %v4378 = vadd.f32 0.0, %v4377
      %v4379 = vpop.f32.mrf.mxu0
      %v4380 = vadd.f32 0.0, %v4379
      %4381 = vdwg.mxu0
      %v4382 = vadd.f32 %v3956, %v4303
      %v4383 = vadd.f32 %v3957, %v4305
      %v4384 = vadd.f32 %v3958, %v4308
      %v4385 = vadd.f32 %v3959, %v4310
      %v4386 = vadd.f32 %v3960, %v4313
      %v4387 = vadd.f32 %v3961, %v4315
      %v4388 = vadd.f32 %v3962, %v4318
      %v4389 = vadd.f32 %v3963, %v4320
      %v4390 = vadd.f32 %v3964, %v4323
      %v4391 = vadd.f32 %v3965, %v4325
      %v4392 = vadd.f32 %v3966, %v4328
      %v4393 = vadd.f32 %v3967, %v4330
      %v4394 = vadd.f32 %v3968, %v4333
      %v4395 = vadd.f32 %v3969, %v4335
      %v4396 = vadd.f32 %v3970, %v4338
      %v4397 = vadd.f32 %v3971, %v4340
      %v4398 = vadd.f32 %v3972, %v4343
      %v4399 = vadd.f32 %v3973, %v4345
      %v4400 = vadd.f32 %v3974, %v4348
      %v4401 = vadd.f32 %v3975, %v4350
      %v4402 = vadd.f32 %v3976, %v4353
      %v4403 = vadd.f32 %v3977, %v4355
      %v4404 = vadd.f32 %v3978, %v4358
      %v4405 = vadd.f32 %v3979, %v4360
      %v4406 = vadd.f32 %v3980, %v4363
      %v4407 = vadd.f32 %v3981, %v4365
      %v4408 = vadd.f32 %v3982, %v4368
      %v4409 = vadd.f32 %v3983, %v4370
      %v4410 = vadd.f32 %v3984, %v4373
      %v4411 = vadd.f32 %v3985, %v4375
      %v4412 = vadd.f32 %v3986, %v4378
      %v4413 = vadd.f32 %v3987, %v4380
      %v4414 = vld [vmem:[%s4] sm:$0x1]
      %v4416 = vperm.slane %v4414, 0
      %v4418 = vadd.f32 %v4382, %v4416
      %v4419 = vadd.f32 %v4383, %v4416
      %v4420 = vadd.f32 %v4384, %v4416
      %v4421 = vadd.f32 %v4385, %v4416
      %v4422 = vadd.f32 %v4386, %v4416
      %v4423 = vadd.f32 %v4387, %v4416
      %v4424 = vadd.f32 %v4388, %v4416
      %v4425 = vadd.f32 %v4389, %v4416
      %v4426 = vadd.f32 %v4390, %v4416
      %v4427 = vadd.f32 %v4391, %v4416
      %v4428 = vadd.f32 %v4392, %v4416
      %v4429 = vadd.f32 %v4393, %v4416
      %v4430 = vadd.f32 %v4394, %v4416
      %v4431 = vadd.f32 %v4395, %v4416
      %v4432 = vadd.f32 %v4396, %v4416
      %v4433 = vadd.f32 %v4397, %v4416
      %v4434 = vadd.f32 %v4398, %v4416
      %v4435 = vadd.f32 %v4399, %v4416
      %v4436 = vadd.f32 %v4400, %v4416
      %v4437 = vadd.f32 %v4401, %v4416
      %v4438 = vadd.f32 %v4402, %v4416
      %v4439 = vadd.f32 %v4403, %v4416
      %v4440 = vadd.f32 %v4404, %v4416
      %v4441 = vadd.f32 %v4405, %v4416
      %v4442 = vadd.f32 %v4406, %v4416
      %v4443 = vadd.f32 %v4407, %v4416
      %v4444 = vadd.f32 %v4408, %v4416
      %v4445 = vadd.f32 %v4409, %v4416
      %v4446 = vadd.f32 %v4410, %v4416
      %v4447 = vadd.f32 %v4411, %v4416
      %v4448 = vadd.f32 %v4412, %v4416
      %v4449 = vadd.f32 %v4413, %v4416
      %v4450 = vmax.f32 %v4418, 0.0
      %v4451 = vmax.f32 %v4419, 0.0
      %v4452 = vmax.f32 %v4420, 0.0
      %v4453 = vmax.f32 %v4421, 0.0
      %v4454 = vmax.f32 %v4422, 0.0
      %v4455 = vmax.f32 %v4423, 0.0
      %v4456 = vmax.f32 %v4424, 0.0
      %v4457 = vmax.f32 %v4425, 0.0
      %v4458 = vmax.f32 %v4426, 0.0
      %v4459 = vmax.f32 %v4427, 0.0
      %v4460 = vmax.f32 %v4428, 0.0
      %v4461 = vmax.f32 %v4429, 0.0
      %v4462 = vmax.f32 %v4430, 0.0
      %v4463 = vmax.f32 %v4431, 0.0
      %v4464 = vmax.f32 %v4432, 0.0
      %v4465 = vmax.f32 %v4433, 0.0
      %v4466 = vmax.f32 %v4434, 0.0
      %v4467 = vmax.f32 %v4435, 0.0
      %v4468 = vmax.f32 %v4436, 0.0
      %v4469 = vmax.f32 %v4437, 0.0
      %v4470 = vmax.f32 %v4438, 0.0
      %v4471 = vmax.f32 %v4439, 0.0
      %v4472 = vmax.f32 %v4440, 0.0
      %v4473 = vmax.f32 %v4441, 0.0
      %v4474 = vmax.f32 %v4442, 0.0
      %v4475 = vmax.f32 %v4443, 0.0
      %v4476 = vmax.f32 %v4444, 0.0
      %v4477 = vmax.f32 %v4445, 0.0
      %v4478 = vmax.f32 %v4446, 0.0
      %v4479 = vmax.f32 %v4447, 0.0
      %v4480 = vmax.f32 %v4448, 0.0
      %v4481 = vmax.f32 %v4449, 0.0
      %4482 = vst [vmem:[#allocation2] sm:$0xf] 0
      %4483 = vst [vmem:[#allocation2 + $0x4] sm:$0xf] 0
      %4484 = vst [vmem:[#allocation2 + $0x8] sm:$0x1] 0
      %4485 = vst [vmem:[#allocation2 + $0xc] sm:$0xf] 0
      %4486 = vst [vmem:[#allocation2 + $0x10] sm:$0xf] 0
      %4487 = vst [vmem:[#allocation2 + $0x14] sm:$0x1] 0
      %4488 = vst [vmem:[#allocation2 + $0x18] sm:$0xf] 0
      %4489 = vst [vmem:[#allocation2 + $0x1c] sm:$0xf] 0
      %4490 = vst [vmem:[#allocation2 + $0x20] sm:$0x1] 0
      %4491 = vst [vmem:[#allocation2 + $0x24] sm:$0xf] 0
      %4492 = vst [vmem:[#allocation2 + $0x28] sm:$0xf] 0
      %4493 = vst [vmem:[#allocation2 + $0x2c] sm:$0x1] 0
      %4494 = vst [vmem:[#allocation2 + $0x30] sm:$0xf] 0
      %4495 = vst [vmem:[#allocation2 + $0x34] sm:$0xf] 0
      %4496 = vst [vmem:[#allocation2 + $0x38] sm:$0x1] 0
      %4497 = vst [vmem:[#allocation2 + $0x3c] sm:$0xf] 0
      %4498 = vst [vmem:[#allocation2 + $0x40] sm:$0xf] 0
      %4499 = vst [vmem:[#allocation2 + $0x44] sm:$0x1] 0
      %4500 = vst [vmem:[#allocation2 + $0x48] sm:$0xf] 0
      %4501 = vst [vmem:[#allocation2 + $0x4c] sm:$0xf] 0
      %4502 = vst [vmem:[#allocation2 + $0x50] sm:$0x1] 0
      %4503 = vst [vmem:[#allocation2 + $0x54] sm:$0xf] 0
      %4504 = vst [vmem:[#allocation2 + $0x58] sm:$0xf] 0
      %4505 = vst [vmem:[#allocation2 + $0x5c] sm:$0x1] 0
      %4506 = vst [vmem:[#allocation2 + $0x60] sm:$0xf] 0
      %4507 = vst [vmem:[#allocation2 + $0x64] sm:$0xf] 0
      %4508 = vst [vmem:[#allocation2 + $0x68] sm:$0x1] 0
      %4509 = vst [vmem:[#allocation2 + $0x6c] sm:$0xf] 0
      %4510 = vst [vmem:[#allocation2 + $0x70] sm:$0xf] 0
      %4511 = vst [vmem:[#allocation2 + $0x74] sm:$0x1] 0
      %4512 = vst [vmem:[#allocation2 + $0x78] sm:$0xf] 0
      %4513 = vst [vmem:[#allocation2 + $0x7c] sm:$0xf] 0
      %4514 = vst [vmem:[#allocation2 + $0x80] sm:$0x1] 0
      %4515 = vst [vmem:[#allocation2 + $0x84] sm:$0xf] 0
      %4516 = vst [vmem:[#allocation2 + $0x88] sm:$0xf] 0
      %4517 = vst [vmem:[#allocation2 + $0x8c] sm:$0x1] 0
      %4518 = vst [vmem:[#allocation2 + $0x90] sm:$0xf] 0
      %4519 = vst [vmem:[#allocation2 + $0x94] sm:$0xf] 0
      %4520 = vst [vmem:[#allocation2 + $0x98] sm:$0x1] 0
      %4521 = vst [vmem:[#allocation2 + $0x9c] sm:$0xf] 0
      %4522 = vst [vmem:[#allocation2 + $0xa0] sm:$0xf] 0
      %4523 = vst [vmem:[#allocation2 + $0xa4] sm:$0x1] 0
      %4524 = vst [vmem:[#allocation2 + $0xa8] sm:$0xf] 0
      %4525 = vst [vmem:[#allocation2 + $0xac] sm:$0xf] 0
      %4526 = vst [vmem:[#allocation2 + $0xb0] sm:$0x1] 0
      %4527 = vst [vmem:[#allocation2 + $0xb4] sm:$0xf] 0
      %4528 = vst [vmem:[#allocation2 + $0xb8] sm:$0xf] 0
      %4529 = vst [vmem:[#allocation2 + $0xbc] sm:$0x1] 0
      %4530 = vst [vmem:[#allocation2 + $0xc0] sm:$0xf] 0
      %4531 = vst [vmem:[#allocation2 + $0xc4] sm:$0xf] 0
      %4532 = vst [vmem:[#allocation2 + $0xc8] sm:$0x1] 0
      %4533 = vst [vmem:[#allocation2 + $0xcc] sm:$0xf] 0
      %4534 = vst [vmem:[#allocation2 + $0xd0] sm:$0xf] 0
      %4535 = vst [vmem:[#allocation2 + $0xd4] sm:$0x1] 0
      %v4536 = vpack.c.bf16 %v4450, %v4450
      %v4537 = vpack.c.bf16 %v4451, %v4451
      %v4538 = vpack.c.bf16 %v4452, %v4452
      %v4539 = vpack.c.bf16 %v4453, %v4453
      %v4540 = vpack.c.bf16 %v4454, %v4454
      %v4541 = vpack.c.bf16 %v4455, %v4455
      %v4542 = vpack.c.bf16 %v4456, %v4456
      %v4543 = vpack.c.bf16 %v4457, %v4457
      %v4544 = vpack.c.bf16 %v4458, %v4458
      %v4545 = vpack.c.bf16 %v4459, %v4459
      %v4546 = vpack.c.bf16 %v4460, %v4460
      %v4547 = vpack.c.bf16 %v4461, %v4461
      %v4548 = vpack.c.bf16 %v4462, %v4462
      %v4549 = vpack.c.bf16 %v4463, %v4463
      %v4550 = vpack.c.bf16 %v4464, %v4464
      %v4551 = vpack.c.bf16 %v4465, %v4465
      %v4552 = vpack.c.bf16 %v4466, %v4466
      %v4553 = vpack.c.bf16 %v4467, %v4467
      %v4554 = vpack.c.bf16 %v4468, %v4468
      %v4555 = vpack.c.bf16 %v4469, %v4469
      %v4556 = vpack.c.bf16 %v4470, %v4470
      %v4557 = vpack.c.bf16 %v4471, %v4471
      %v4558 = vpack.c.bf16 %v4472, %v4472
      %v4559 = vpack.c.bf16 %v4473, %v4473
      %v4560 = vpack.c.bf16 %v4474, %v4474
      %v4561 = vpack.c.bf16 %v4475, %v4475
      %v4562 = vpack.c.bf16 %v4476, %v4476
      %v4563 = vpack.c.bf16 %v4477, %v4477
      %v4564 = vpack.c.bf16 %v4478, %v4478
      %v4565 = vpack.c.bf16 %v4479, %v4479
      %v4566 = vpack.c.bf16 %v4480, %v4480
      %v4567 = vpack.c.bf16 %v4481, %v4481
      %vm4568 = vsmask.f32 256
      %vm4569 = vsmask.f32 4368
      %vm4570 = vmor %vm4568, %vm4569
      %v4572 = vshrl.u32 %v4536, 16
      %v4574 = vrot.slane %v4572, 7
      %v4575 = vshll.u32 %v4536, 16
      %v4577 = vor.u32 %v4574, %v4575
      %v4578 = vrot.slane %v4574, 4
      %v4580 = vshrl.u32 %v4537, 16
      %v4582 = vrot.slane %v4580, 7
      %v4583 = vshll.u32 %v4537, 16
      %v4585 = vor.u32 %v4582, %v4583
      %v4586 = vsel %vm4570, %v4578, %v4585
      %v4587 = vrot.slane %v4582, 4
      %v4589 = vshrl.u32 %v4538, 16
      %v4591 = vrot.slane %v4589, 7
      %v4592 = vshll.u32 %v4538, 16
      %v4594 = vor.u32 %v4591, %v4592
      %v4595 = vrot.slane %v4591, 4
      %v4597 = vshrl.u32 %v4539, 16
      %v4599 = vrot.slane %v4597, 7
      %v4600 = vshll.u32 %v4539, 16
      %v4602 = vor.u32 %v4599, %v4600
      %v4603 = vsel %vm4570, %v4595, %v4602
      %v4604 = vrot.slane %v4599, 4
      %v4606 = vshrl.u32 %v4540, 16
      %v4608 = vrot.slane %v4606, 7
      %v4609 = vshll.u32 %v4540, 16
      %v4611 = vor.u32 %v4608, %v4609
      %v4612 = vrot.slane %v4608, 4
      %v4614 = vshrl.u32 %v4541, 16
      %v4616 = vrot.slane %v4614, 7
      %v4617 = vshll.u32 %v4541, 16
      %v4619 = vor.u32 %v4616, %v4617
      %v4620 = vsel %vm4570, %v4612, %v4619
      %v4621 = vrot.slane %v4616, 4
      %v4623 = vshrl.u32 %v4542, 16
      %v4625 = vrot.slane %v4623, 7
      %v4626 = vshll.u32 %v4542, 16
      %v4628 = vor.u32 %v4625, %v4626
      %v4629 = vrot.slane %v4625, 4
      %v4631 = vshrl.u32 %v4543, 16
      %v4633 = vrot.slane %v4631, 7
      %v4634 = vshll.u32 %v4543, 16
      %v4636 = vor.u32 %v4633, %v4634
      %v4637 = vsel %vm4570, %v4629, %v4636
      %v4638 = vrot.slane %v4633, 4
      %v4640 = vshrl.u32 %v4544, 16
      %v4642 = vrot.slane %v4640, 7
      %v4643 = vshll.u32 %v4544, 16
      %v4645 = vor.u32 %v4642, %v4643
      %v4646 = vrot.slane %v4642, 4
      %v4648 = vshrl.u32 %v4545, 16
      %v4650 = vrot.slane %v4648, 7
      %v4651 = vshll.u32 %v4545, 16
      %v4653 = vor.u32 %v4650, %v4651
      %v4654 = vsel %vm4570, %v4646, %v4653
      %v4655 = vrot.slane %v4650, 4
      %v4657 = vshrl.u32 %v4546, 16
      %v4659 = vrot.slane %v4657, 7
      %v4660 = vshll.u32 %v4546, 16
      %v4662 = vor.u32 %v4659, %v4660
      %v4663 = vrot.slane %v4659, 4
      %v4665 = vshrl.u32 %v4547, 16
      %v4667 = vrot.slane %v4665, 7
      %v4668 = vshll.u32 %v4547, 16
      %v4670 = vor.u32 %v4667, %v4668
      %v4671 = vsel %vm4570, %v4663, %v4670
      %v4672 = vrot.slane %v4667, 4
      %v4674 = vshrl.u32 %v4548, 16
      %v4676 = vrot.slane %v4674, 7
      %v4677 = vshll.u32 %v4548, 16
      %v4679 = vor.u32 %v4676, %v4677
      %v4680 = vrot.slane %v4676, 4
      %v4682 = vshrl.u32 %v4549, 16
      %v4684 = vrot.slane %v4682, 7
      %v4685 = vshll.u32 %v4549, 16
      %v4687 = vor.u32 %v4684, %v4685
      %v4688 = vsel %vm4570, %v4680, %v4687
      %v4689 = vrot.slane %v4684, 4
      %v4691 = vshrl.u32 %v4550, 16
      %v4693 = vrot.slane %v4691, 7
      %v4694 = vshll.u32 %v4550, 16
      %v4696 = vor.u32 %v4693, %v4694
      %v4697 = vrot.slane %v4693, 4
      %v4699 = vshrl.u32 %v4551, 16
      %v4701 = vrot.slane %v4699, 7
      %v4702 = vshll.u32 %v4551, 16
      %v4704 = vor.u32 %v4701, %v4702
      %v4705 = vsel %vm4570, %v4697, %v4704
      %v4706 = vrot.slane %v4701, 4
      %v4708 = vshrl.u32 %v4552, 16
      %v4710 = vrot.slane %v4708, 7
      %v4711 = vshll.u32 %v4552, 16
      %v4713 = vor.u32 %v4710, %v4711
      %v4714 = vrot.slane %v4710, 4
      %v4716 = vshrl.u32 %v4553, 16
      %v4718 = vrot.slane %v4716, 7
      %v4719 = vshll.u32 %v4553, 16
      %v4721 = vor.u32 %v4718, %v4719
      %v4722 = vsel %vm4570, %v4714, %v4721
      %v4723 = vrot.slane %v4718, 4
      %v4725 = vshrl.u32 %v4554, 16
      %v4727 = vrot.slane %v4725, 7
      %v4728 = vshll.u32 %v4554, 16
      %v4730 = vor.u32 %v4727, %v4728
      %v4731 = vrot.slane %v4727, 4
      %v4733 = vshrl.u32 %v4555, 16
      %v4735 = vrot.slane %v4733, 7
      %v4736 = vshll.u32 %v4555, 16
      %v4738 = vor.u32 %v4735, %v4736
      %v4739 = vsel %vm4570, %v4731, %v4738
      %v4740 = vrot.slane %v4735, 4
      %v4742 = vshrl.u32 %v4556, 16
      %v4744 = vrot.slane %v4742, 7
      %v4745 = vshll.u32 %v4556, 16
      %v4747 = vor.u32 %v4744, %v4745
      %v4748 = vrot.slane %v4744, 4
      %v4750 = vshrl.u32 %v4557, 16
      %v4752 = vrot.slane %v4750, 7
      %v4753 = vshll.u32 %v4557, 16
      %v4755 = vor.u32 %v4752, %v4753
      %v4756 = vsel %vm4570, %v4748, %v4755
      %v4757 = vrot.slane %v4752, 4
      %v4759 = vshrl.u32 %v4558, 16
      %v4761 = vrot.slane %v4759, 7
      %v4762 = vshll.u32 %v4558, 16
      %v4764 = vor.u32 %v4761, %v4762
      %v4765 = vrot.slane %v4761, 4
      %v4767 = vshrl.u32 %v4559, 16
      %v4769 = vrot.slane %v4767, 7
      %v4770 = vshll.u32 %v4559, 16
      %v4772 = vor.u32 %v4769, %v4770
      %v4773 = vsel %vm4570, %v4765, %v4772
      %v4774 = vrot.slane %v4769, 4
      %v4776 = vshrl.u32 %v4560, 16
      %v4778 = vrot.slane %v4776, 7
      %v4779 = vshll.u32 %v4560, 16
      %v4781 = vor.u32 %v4778, %v4779
      %v4782 = vrot.slane %v4778, 4
      %v4784 = vshrl.u32 %v4561, 16
      %v4786 = vrot.slane %v4784, 7
      %v4787 = vshll.u32 %v4561, 16
      %v4789 = vor.u32 %v4786, %v4787
      %v4790 = vsel %vm4570, %v4782, %v4789
      %v4791 = vrot.slane %v4786, 4
      %v4793 = vshrl.u32 %v4562, 16
      %v4795 = vrot.slane %v4793, 7
      %v4796 = vshll.u32 %v4562, 16
      %v4798 = vor.u32 %v4795, %v4796
      %v4799 = vrot.slane %v4795, 4
      %v4801 = vshrl.u32 %v4563, 16
      %v4803 = vrot.slane %v4801, 7
      %v4804 = vshll.u32 %v4563, 16
      %v4806 = vor.u32 %v4803, %v4804
      %v4807 = vsel %vm4570, %v4799, %v4806
      %v4808 = vrot.slane %v4803, 4
      %v4810 = vshrl.u32 %v4564, 16
      %v4812 = vrot.slane %v4810, 7
      %v4813 = vshll.u32 %v4564, 16
      %v4815 = vor.u32 %v4812, %v4813
      %v4816 = vrot.slane %v4812, 4
      %v4818 = vshrl.u32 %v4565, 16
      %v4820 = vrot.slane %v4818, 7
      %v4821 = vshll.u32 %v4565, 16
      %v4823 = vor.u32 %v4820, %v4821
      %v4824 = vsel %vm4570, %v4816, %v4823
      %v4825 = vrot.slane %v4820, 4
      %v4827 = vshrl.u32 %v4566, 16
      %v4829 = vrot.slane %v4827, 7
      %v4830 = vshll.u32 %v4566, 16
      %v4832 = vor.u32 %v4829, %v4830
      %v4833 = vrot.slane %v4829, 4
      %v4835 = vshrl.u32 %v4567, 16
      %v4837 = vrot.slane %v4835, 7
      %v4838 = vshll.u32 %v4567, 16
      %v4840 = vor.u32 %v4837, %v4838
      %v4841 = vsel %vm4570, %v4833, %v4840
      %v4842 = vrot.slane %v4837, 4
      %s4891 = scalar_lea.vmem [#allocation2], 12
      %vm4892 = vcmask 1043456
      %vm4893 = vsmask.f32 7938
      %vm4894 = vmand %vm4892, %vm4893
      %v4895 = vld [vmem:[%s4891] sm:$0xf]
      %v4896 = vsel %vm4894, %v4577, %v4895
      %4897 = vst [vmem:[%s4891] sm:$0xf] %v4896
      %4898 = vst [vmem:[%s4891 + $0x4] sm:$0xf] %v4586
      %vm4899 = vcmask 1040384
      %vm4900 = vmand %vm4899, %vm4568
      %v4901 = vld [vmem:[%s4891 + $0x8] sm:$0x1]
      %v4902 = vsel %vm4900, %v4587, %v4901
      %4903 = vst [vmem:[%s4891 + $0x8] sm:$0x1] %v4902
      %v4904 = vld [vmem:[%s4891 + $0xc] sm:$0xf]
      %v4905 = vsel %vm4894, %v4594, %v4904
      %4906 = vst [vmem:[%s4891 + $0xc] sm:$0xf] %v4905
      %4907 = vst [vmem:[%s4891 + $0x10] sm:$0xf] %v4603
      %v4908 = vld [vmem:[%s4891 + $0x14] sm:$0x1]
      %v4909 = vsel %vm4900, %v4604, %v4908
      %4910 = vst [vmem:[%s4891 + $0x14] sm:$0x1] %v4909
      %v4911 = vld [vmem:[%s4891 + $0x18] sm:$0xf]
      %v4912 = vsel %vm4894, %v4611, %v4911
      %4913 = vst [vmem:[%s4891 + $0x18] sm:$0xf] %v4912
      %4914 = vst [vmem:[%s4891 + $0x1c] sm:$0xf] %v4620
      %v4915 = vld [vmem:[%s4891 + $0x20] sm:$0x1]
      %v4916 = vsel %vm4900, %v4621, %v4915
      %4917 = vst [vmem:[%s4891 + $0x20] sm:$0x1] %v4916
      %v4918 = vld [vmem:[%s4891 + $0x24] sm:$0xf]
      %v4919 = vsel %vm4894, %v4628, %v4918
      %4920 = vst [vmem:[%s4891 + $0x24] sm:$0xf] %v4919
      %4921 = vst [vmem:[%s4891 + $0x28] sm:$0xf] %v4637
      %v4922 = vld [vmem:[%s4891 + $0x2c] sm:$0x1]
      %v4923 = vsel %vm4900, %v4638, %v4922
      %4924 = vst [vmem:[%s4891 + $0x2c] sm:$0x1] %v4923
      %v4925 = vld [vmem:[%s4891 + $0x30] sm:$0xf]
      %v4926 = vsel %vm4894, %v4645, %v4925
      %4927 = vst [vmem:[%s4891 + $0x30] sm:$0xf] %v4926
      %4928 = vst [vmem:[%s4891 + $0x34] sm:$0xf] %v4654
      %v4929 = vld [vmem:[%s4891 + $0x38] sm:$0x1]
      %v4930 = vsel %vm4900, %v4655, %v4929
      %4931 = vst [vmem:[%s4891 + $0x38] sm:$0x1] %v4930
      %v4932 = vld [vmem:[%s4891 + $0x3c] sm:$0xf]
      %v4933 = vsel %vm4894, %v4662, %v4932
      %4934 = vst [vmem:[%s4891 + $0x3c] sm:$0xf] %v4933
      %4935 = vst [vmem:[%s4891 + $0x40] sm:$0xf] %v4671
      %v4936 = vld [vmem:[%s4891 + $0x44] sm:$0x1]
      %v4937 = vsel %vm4900, %v4672, %v4936
      %4938 = vst [vmem:[%s4891 + $0x44] sm:$0x1] %v4937
      %v4939 = vld [vmem:[%s4891 + $0x48] sm:$0xf]
      %v4940 = vsel %vm4894, %v4679, %v4939
      %4941 = vst [vmem:[%s4891 + $0x48] sm:$0xf] %v4940
      %4942 = vst [vmem:[%s4891 + $0x4c] sm:$0xf] %v4688
      %v4943 = vld [vmem:[%s4891 + $0x50] sm:$0x1]
      %v4944 = vsel %vm4900, %v4689, %v4943
      %4945 = vst [vmem:[%s4891 + $0x50] sm:$0x1] %v4944
      %v4946 = vld [vmem:[%s4891 + $0x54] sm:$0xf]
      %v4947 = vsel %vm4894, %v4696, %v4946
      %4948 = vst [vmem:[%s4891 + $0x54] sm:$0xf] %v4947
      %4949 = vst [vmem:[%s4891 + $0x58] sm:$0xf] %v4705
      %v4950 = vld [vmem:[%s4891 + $0x5c] sm:$0x1]
      %v4951 = vsel %vm4900, %v4706, %v4950
      %4952 = vst [vmem:[%s4891 + $0x5c] sm:$0x1] %v4951
      %v4953 = vld [vmem:[%s4891 + $0x60] sm:$0xf]
      %v4954 = vsel %vm4894, %v4713, %v4953
      %4955 = vst [vmem:[%s4891 + $0x60] sm:$0xf] %v4954
      %4956 = vst [vmem:[%s4891 + $0x64] sm:$0xf] %v4722
      %v4957 = vld [vmem:[%s4891 + $0x68] sm:$0x1]
      %v4958 = vsel %vm4900, %v4723, %v4957
      %4959 = vst [vmem:[%s4891 + $0x68] sm:$0x1] %v4958
      %v4960 = vld [vmem:[%s4891 + $0x6c] sm:$0xf]
      %v4961 = vsel %vm4894, %v4730, %v4960
      %4962 = vst [vmem:[%s4891 + $0x6c] sm:$0xf] %v4961
      %4963 = vst [vmem:[%s4891 + $0x70] sm:$0xf] %v4739
      %v4964 = vld [vmem:[%s4891 + $0x74] sm:$0x1]
      %v4965 = vsel %vm4900, %v4740, %v4964
      %4966 = vst [vmem:[%s4891 + $0x74] sm:$0x1] %v4965
      %v4967 = vld [vmem:[%s4891 + $0x78] sm:$0xf]
      %v4968 = vsel %vm4894, %v4747, %v4967
      %4969 = vst [vmem:[%s4891 + $0x78] sm:$0xf] %v4968
      %4970 = vst [vmem:[%s4891 + $0x7c] sm:$0xf] %v4756
      %v4971 = vld [vmem:[%s4891 + $0x80] sm:$0x1]
      %v4972 = vsel %vm4900, %v4757, %v4971
      %4973 = vst [vmem:[%s4891 + $0x80] sm:$0x1] %v4972
      %v4974 = vld [vmem:[%s4891 + $0x84] sm:$0xf]
      %v4975 = vsel %vm4894, %v4764, %v4974
      %4976 = vst [vmem:[%s4891 + $0x84] sm:$0xf] %v4975
      %4977 = vst [vmem:[%s4891 + $0x88] sm:$0xf] %v4773
      %v4978 = vld [vmem:[%s4891 + $0x8c] sm:$0x1]
      %v4979 = vsel %vm4900, %v4774, %v4978
      %4980 = vst [vmem:[%s4891 + $0x8c] sm:$0x1] %v4979
      %v4981 = vld [vmem:[%s4891 + $0x90] sm:$0xf]
      %v4982 = vsel %vm4894, %v4781, %v4981
      %4983 = vst [vmem:[%s4891 + $0x90] sm:$0xf] %v4982
      %4984 = vst [vmem:[%s4891 + $0x94] sm:$0xf] %v4790
      %v4985 = vld [vmem:[%s4891 + $0x98] sm:$0x1]
      %v4986 = vsel %vm4900, %v4791, %v4985
      %4987 = vst [vmem:[%s4891 + $0x98] sm:$0x1] %v4986
      %v4988 = vld [vmem:[%s4891 + $0x9c] sm:$0xf]
      %v4989 = vsel %vm4894, %v4798, %v4988
      %4990 = vst [vmem:[%s4891 + $0x9c] sm:$0xf] %v4989
      %4991 = vst [vmem:[%s4891 + $0xa0] sm:$0xf] %v4807
      %v4992 = vld [vmem:[%s4891 + $0xa4] sm:$0x1]
      %v4993 = vsel %vm4900, %v4808, %v4992
      %4994 = vst [vmem:[%s4891 + $0xa4] sm:$0x1] %v4993
      %v4995 = vld [vmem:[%s4891 + $0xa8] sm:$0xf]
      %v4996 = vsel %vm4894, %v4815, %v4995
      %4997 = vst [vmem:[%s4891 + $0xa8] sm:$0xf] %v4996
      %4998 = vst [vmem:[%s4891 + $0xac] sm:$0xf] %v4824
      %v4999 = vld [vmem:[%s4891 + $0xb0] sm:$0x1]
      %v5000 = vsel %vm4900, %v4825, %v4999
      %5001 = vst [vmem:[%s4891 + $0xb0] sm:$0x1] %v5000
      %v5002 = vld [vmem:[%s4891 + $0xb4] sm:$0xf]
      %v5003 = vsel %vm4894, %v4832, %v5002
      %5004 = vst [vmem:[%s4891 + $0xb4] sm:$0xf] %v5003
      %5005 = vst [vmem:[%s4891 + $0xb8] sm:$0xf] %v4841
      %v5006 = vld [vmem:[%s4891 + $0xbc] sm:$0x1]
      %v5007 = vsel %vm4900, %v4842, %v5006
      %5008 = vst [vmem:[%s4891 + $0xbc] sm:$0x1] %v5007
      %v5009 = vld [vmem:[#allocation2] sm:$0xf]
      %v5010 = vld [vmem:[#allocation2 + $0x4] sm:$0xf]
      %v5011 = vld [vmem:[#allocation2 + $0xc] sm:$0xf]
      %v5012 = vld [vmem:[#allocation2 + $0x10] sm:$0xf]
      %v5013 = vld [vmem:[#allocation2 + $0x18] sm:$0xf]
      %v5014 = vld [vmem:[#allocation2 + $0x1c] sm:$0xf]
      %v5015 = vld [vmem:[#allocation2 + $0x24] sm:$0xf]
      %v5016 = vld [vmem:[#allocation2 + $0x28] sm:$0xf]
      %v5017 = vld [vmem:[#allocation2 + $0x30] sm:$0xf]
      %v5018 = vld [vmem:[#allocation2 + $0x34] sm:$0xf]
      %v5019 = vld [vmem:[#allocation2 + $0x3c] sm:$0xf]
      %v5020 = vld [vmem:[#allocation2 + $0x40] sm:$0xf]
      %v5021 = vld [vmem:[#allocation2 + $0x48] sm:$0xf]
      %v5022 = vld [vmem:[#allocation2 + $0x4c] sm:$0xf]
      %v5023 = vld [vmem:[#allocation2 + $0x54] sm:$0xf]
      %v5024 = vld [vmem:[#allocation2 + $0x58] sm:$0xf]
      %v5025 = vld [vmem:[#allocation2 + $0x60] sm:$0xf]
      %v5026 = vld [vmem:[#allocation2 + $0x64] sm:$0xf]
      %v5027 = vld [vmem:[#allocation2 + $0x6c] sm:$0xf]
      %v5028 = vld [vmem:[#allocation2 + $0x70] sm:$0xf]
      %v5029 = vld [vmem:[#allocation2 + $0x78] sm:$0xf]
      %v5030 = vld [vmem:[#allocation2 + $0x7c] sm:$0xf]
      %v5031 = vld [vmem:[#allocation2 + $0x84] sm:$0xf]
      %v5032 = vld [vmem:[#allocation2 + $0x88] sm:$0xf]
      %v5033 = vld [vmem:[#allocation2 + $0x90] sm:$0xf]
      %v5034 = vld [vmem:[#allocation2 + $0x94] sm:$0xf]
      %v5035 = vld [vmem:[#allocation2 + $0x9c] sm:$0xf]
      %v5036 = vld [vmem:[#allocation2 + $0xa0] sm:$0xf]
      %v5037 = vld [vmem:[#allocation2 + $0xa8] sm:$0xf]
      %v5038 = vld [vmem:[#allocation2 + $0xac] sm:$0xf]
      %v5039 = vld [vmem:[#allocation2 + $0xb4] sm:$0xf]
      %v5040 = vld [vmem:[#allocation2 + $0xb8] sm:$0xf]
      %v5041 = vld [vmem:[%s2] sm:$0xf]
      %v5042 = vld [vmem:[%s2 + $0x4] sm:$0xf]
      %v5043 = vld [vmem:[%s2 + $0x8] sm:$0xf]
      %v5044 = vld [vmem:[%s2 + $0xc] sm:$0xf]
      %v5045 = vld [vmem:[%s2 + $0x10] sm:$0xf]
      %v5046 = vld [vmem:[%s2 + $0x14] sm:$0xf]
      %v5047 = vld [vmem:[%s2 + $0x18] sm:$0xf]
      %v5048 = vld [vmem:[%s2 + $0x1c] sm:$0xf]
      %v5049 = vld [vmem:[%s2 + $0x20] sm:$0xf]
      %v5050 = vld [vmem:[%s2 + $0x24] sm:$0xf]
      %v5051 = vld [vmem:[%s2 + $0x28] sm:$0xf]
      %v5052 = vld [vmem:[%s2 + $0x2c] sm:$0xf]
      %v5053 = vld [vmem:[%s2 + $0x30] sm:$0xf]
      %v5054 = vld [vmem:[%s2 + $0x34] sm:$0xf]
      %v5055 = vld [vmem:[%s2 + $0x38] sm:$0xf]
      %v5056 = vld [vmem:[%s2 + $0x3c] sm:$0xf]
      %v5057 = vld [vmem:[#allocation2 + $0x8] sm:$0x1]
      %v5058 = vld [vmem:[#allocation2 + $0x14] sm:$0x1]
      %v5059 = vld [vmem:[#allocation2 + $0x20] sm:$0x1]
      %v5060 = vld [vmem:[#allocation2 + $0x2c] sm:$0x1]
      %v5061 = vld [vmem:[#allocation2 + $0x38] sm:$0x1]
      %v5062 = vld [vmem:[#allocation2 + $0x44] sm:$0x1]
      %v5063 = vld [vmem:[#allocation2 + $0x50] sm:$0x1]
      %v5064 = vld [vmem:[#allocation2 + $0x5c] sm:$0x1]
      %v5065 = vld [vmem:[#allocation2 + $0x68] sm:$0x1]
      %v5066 = vld [vmem:[#allocation2 + $0x74] sm:$0x1]
      %v5067 = vld [vmem:[#allocation2 + $0x80] sm:$0x1]
      %v5068 = vld [vmem:[#allocation2 + $0x8c] sm:$0x1]
      %v5069 = vld [vmem:[#allocation2 + $0x98] sm:$0x1]
      %v5070 = vld [vmem:[#allocation2 + $0xa4] sm:$0x1]
      %v5071 = vld [vmem:[#allocation2 + $0xb0] sm:$0x1]
      %v5072 = vld [vmem:[#allocation2 + $0xbc] sm:$0x1]
      %v5074 = vshrl.u32 %v5009, 16
      %v5076 = vrot.slane %v5074, 4
      %v5077 = vshll.u32 %v5009, 16
      %v5079 = vrot.slane %v5077, 5
      %v5080 = vor.u32 %v5076, %v5079
      %v5081 = vrot.slane %v5080, 4
      %v5083 = vshll.u32 %v5010, 16
      %v5085 = vrot.slane %v5083, 5
      %v5086 = vsel %vm319, %v5081, %v5085
      %v5087 = vshrl.u32 %v5010, 16
      %v5089 = vrot.slane %v5087, 4
      %v5090 = vor.u32 %v5089, %v5085
      %v5091 = vrot.slane %v5090, 4
      %v5093 = vshll.u32 %v5057, 16
      %v5095 = vrot.slane %v5093, 5
      %v5096 = vsel %vm319, %v5091, %v5095
      %v5098 = vshrl.u32 %v5011, 16
      %v5100 = vrot.slane %v5098, 4
      %v5101 = vshll.u32 %v5011, 16
      %v5103 = vrot.slane %v5101, 5
      %v5104 = vor.u32 %v5100, %v5103
      %v5105 = vrot.slane %v5104, 4
      %v5107 = vshll.u32 %v5012, 16
      %v5109 = vrot.slane %v5107, 5
      %v5110 = vsel %vm319, %v5105, %v5109
      %v5111 = vshrl.u32 %v5012, 16
      %v5113 = vrot.slane %v5111, 4
      %v5114 = vor.u32 %v5113, %v5109
      %v5115 = vrot.slane %v5114, 4
      %v5117 = vshll.u32 %v5058, 16
      %v5119 = vrot.slane %v5117, 5
      %v5120 = vsel %vm319, %v5115, %v5119
      %v5122 = vshrl.u32 %v5013, 16
      %v5124 = vrot.slane %v5122, 4
      %v5125 = vshll.u32 %v5013, 16
      %v5127 = vrot.slane %v5125, 5
      %v5128 = vor.u32 %v5124, %v5127
      %v5129 = vrot.slane %v5128, 4
      %v5131 = vshll.u32 %v5014, 16
      %v5133 = vrot.slane %v5131, 5
      %v5134 = vsel %vm319, %v5129, %v5133
      %v5135 = vshrl.u32 %v5014, 16
      %v5137 = vrot.slane %v5135, 4
      %v5138 = vor.u32 %v5137, %v5133
      %v5139 = vrot.slane %v5138, 4
      %v5141 = vshll.u32 %v5059, 16
      %v5143 = vrot.slane %v5141, 5
      %v5144 = vsel %vm319, %v5139, %v5143
      %v5146 = vshrl.u32 %v5015, 16
      %v5148 = vrot.slane %v5146, 4
      %v5149 = vshll.u32 %v5015, 16
      %v5151 = vrot.slane %v5149, 5
      %v5152 = vor.u32 %v5148, %v5151
      %v5153 = vrot.slane %v5152, 4
      %v5155 = vshll.u32 %v5016, 16
      %v5157 = vrot.slane %v5155, 5
      %v5158 = vsel %vm319, %v5153, %v5157
      %v5159 = vshrl.u32 %v5016, 16
      %v5161 = vrot.slane %v5159, 4
      %v5162 = vor.u32 %v5161, %v5157
      %v5163 = vrot.slane %v5162, 4
      %v5165 = vshll.u32 %v5060, 16
      %v5167 = vrot.slane %v5165, 5
      %v5168 = vsel %vm319, %v5163, %v5167
      %v5170 = vshrl.u32 %v5017, 16
      %v5172 = vrot.slane %v5170, 4
      %v5173 = vshll.u32 %v5017, 16
      %v5175 = vrot.slane %v5173, 5
      %v5176 = vor.u32 %v5172, %v5175
      %v5177 = vrot.slane %v5176, 4
      %v5179 = vshll.u32 %v5018, 16
      %v5181 = vrot.slane %v5179, 5
      %v5182 = vsel %vm319, %v5177, %v5181
      %v5183 = vshrl.u32 %v5018, 16
      %v5185 = vrot.slane %v5183, 4
      %v5186 = vor.u32 %v5185, %v5181
      %v5187 = vrot.slane %v5186, 4
      %v5189 = vshll.u32 %v5061, 16
      %v5191 = vrot.slane %v5189, 5
      %v5192 = vsel %vm319, %v5187, %v5191
      %v5194 = vshrl.u32 %v5019, 16
      %v5196 = vrot.slane %v5194, 4
      %v5197 = vshll.u32 %v5019, 16
      %v5199 = vrot.slane %v5197, 5
      %v5200 = vor.u32 %v5196, %v5199
      %v5201 = vrot.slane %v5200, 4
      %v5203 = vshll.u32 %v5020, 16
      %v5205 = vrot.slane %v5203, 5
      %v5206 = vsel %vm319, %v5201, %v5205
      %v5207 = vshrl.u32 %v5020, 16
      %v5209 = vrot.slane %v5207, 4
      %v5210 = vor.u32 %v5209, %v5205
      %v5211 = vrot.slane %v5210, 4
      %v5213 = vshll.u32 %v5062, 16
      %v5215 = vrot.slane %v5213, 5
      %v5216 = vsel %vm319, %v5211, %v5215
      %v5218 = vshrl.u32 %v5021, 16
      %v5220 = vrot.slane %v5218, 4
      %v5221 = vshll.u32 %v5021, 16
      %v5223 = vrot.slane %v5221, 5
      %v5224 = vor.u32 %v5220, %v5223
      %v5225 = vrot.slane %v5224, 4
      %v5227 = vshll.u32 %v5022, 16
      %v5229 = vrot.slane %v5227, 5
      %v5230 = vsel %vm319, %v5225, %v5229
      %v5231 = vshrl.u32 %v5022, 16
      %v5233 = vrot.slane %v5231, 4
      %v5234 = vor.u32 %v5233, %v5229
      %v5235 = vrot.slane %v5234, 4
      %v5237 = vshll.u32 %v5063, 16
      %v5239 = vrot.slane %v5237, 5
      %v5240 = vsel %vm319, %v5235, %v5239
      %v5242 = vshrl.u32 %v5023, 16
      %v5244 = vrot.slane %v5242, 4
      %v5245 = vshll.u32 %v5023, 16
      %v5247 = vrot.slane %v5245, 5
      %v5248 = vor.u32 %v5244, %v5247
      %v5249 = vrot.slane %v5248, 4
      %v5251 = vshll.u32 %v5024, 16
      %v5253 = vrot.slane %v5251, 5
      %v5254 = vsel %vm319, %v5249, %v5253
      %v5255 = vshrl.u32 %v5024, 16
      %v5257 = vrot.slane %v5255, 4
      %v5258 = vor.u32 %v5257, %v5253
      %v5259 = vrot.slane %v5258, 4
      %v5261 = vshll.u32 %v5064, 16
      %v5263 = vrot.slane %v5261, 5
      %v5264 = vsel %vm319, %v5259, %v5263
      %v5266 = vshrl.u32 %v5025, 16
      %v5268 = vrot.slane %v5266, 4
      %v5269 = vshll.u32 %v5025, 16
      %v5271 = vrot.slane %v5269, 5
      %v5272 = vor.u32 %v5268, %v5271
      %v5273 = vrot.slane %v5272, 4
      %v5275 = vshll.u32 %v5026, 16
      %v5277 = vrot.slane %v5275, 5
      %v5278 = vsel %vm319, %v5273, %v5277
      %v5279 = vshrl.u32 %v5026, 16
      %v5281 = vrot.slane %v5279, 4
      %v5282 = vor.u32 %v5281, %v5277
      %v5283 = vrot.slane %v5282, 4
      %v5285 = vshll.u32 %v5065, 16
      %v5287 = vrot.slane %v5285, 5
      %v5288 = vsel %vm319, %v5283, %v5287
      %v5290 = vshrl.u32 %v5027, 16
      %v5292 = vrot.slane %v5290, 4
      %v5293 = vshll.u32 %v5027, 16
      %v5295 = vrot.slane %v5293, 5
      %v5296 = vor.u32 %v5292, %v5295
      %v5297 = vrot.slane %v5296, 4
      %v5299 = vshll.u32 %v5028, 16
      %v5301 = vrot.slane %v5299, 5
      %v5302 = vsel %vm319, %v5297, %v5301
      %v5303 = vshrl.u32 %v5028, 16
      %v5305 = vrot.slane %v5303, 4
      %v5306 = vor.u32 %v5305, %v5301
      %v5307 = vrot.slane %v5306, 4
      %v5309 = vshll.u32 %v5066, 16
      %v5311 = vrot.slane %v5309, 5
      %v5312 = vsel %vm319, %v5307, %v5311
      %v5314 = vshrl.u32 %v5029, 16
      %v5316 = vrot.slane %v5314, 4
      %v5317 = vshll.u32 %v5029, 16
      %v5319 = vrot.slane %v5317, 5
      %v5320 = vor.u32 %v5316, %v5319
      %v5321 = vrot.slane %v5320, 4
      %v5323 = vshll.u32 %v5030, 16
      %v5325 = vrot.slane %v5323, 5
      %v5326 = vsel %vm319, %v5321, %v5325
      %v5327 = vshrl.u32 %v5030, 16
      %v5329 = vrot.slane %v5327, 4
      %v5330 = vor.u32 %v5329, %v5325
      %v5331 = vrot.slane %v5330, 4
      %v5333 = vshll.u32 %v5067, 16
      %v5335 = vrot.slane %v5333, 5
      %v5336 = vsel %vm319, %v5331, %v5335
      %v5338 = vshrl.u32 %v5031, 16
      %v5340 = vrot.slane %v5338, 4
      %v5341 = vshll.u32 %v5031, 16
      %v5343 = vrot.slane %v5341, 5
      %v5344 = vor.u32 %v5340, %v5343
      %v5345 = vrot.slane %v5344, 4
      %v5347 = vshll.u32 %v5032, 16
      %v5349 = vrot.slane %v5347, 5
      %v5350 = vsel %vm319, %v5345, %v5349
      %v5351 = vshrl.u32 %v5032, 16
      %v5353 = vrot.slane %v5351, 4
      %v5354 = vor.u32 %v5353, %v5349
      %v5355 = vrot.slane %v5354, 4
      %v5357 = vshll.u32 %v5068, 16
      %v5359 = vrot.slane %v5357, 5
      %v5360 = vsel %vm319, %v5355, %v5359
      %v5362 = vshrl.u32 %v5033, 16
      %v5364 = vrot.slane %v5362, 4
      %v5365 = vshll.u32 %v5033, 16
      %v5367 = vrot.slane %v5365, 5
      %v5368 = vor.u32 %v5364, %v5367
      %v5369 = vrot.slane %v5368, 4
      %v5371 = vshll.u32 %v5034, 16
      %v5373 = vrot.slane %v5371, 5
      %v5374 = vsel %vm319, %v5369, %v5373
      %v5375 = vshrl.u32 %v5034, 16
      %v5377 = vrot.slane %v5375, 4
      %v5378 = vor.u32 %v5377, %v5373
      %v5379 = vrot.slane %v5378, 4
      %v5381 = vshll.u32 %v5069, 16
      %v5383 = vrot.slane %v5381, 5
      %v5384 = vsel %vm319, %v5379, %v5383
      %v5386 = vshrl.u32 %v5035, 16
      %v5388 = vrot.slane %v5386, 4
      %v5389 = vshll.u32 %v5035, 16
      %v5391 = vrot.slane %v5389, 5
      %v5392 = vor.u32 %v5388, %v5391
      %v5393 = vrot.slane %v5392, 4
      %v5395 = vshll.u32 %v5036, 16
      %v5397 = vrot.slane %v5395, 5
      %v5398 = vsel %vm319, %v5393, %v5397
      %v5399 = vshrl.u32 %v5036, 16
      %v5401 = vrot.slane %v5399, 4
      %v5402 = vor.u32 %v5401, %v5397
      %v5403 = vrot.slane %v5402, 4
      %v5405 = vshll.u32 %v5070, 16
      %v5407 = vrot.slane %v5405, 5
      %v5408 = vsel %vm319, %v5403, %v5407
      %v5410 = vshrl.u32 %v5037, 16
      %v5412 = vrot.slane %v5410, 4
      %v5413 = vshll.u32 %v5037, 16
      %v5415 = vrot.slane %v5413, 5
      %v5416 = vor.u32 %v5412, %v5415
      %v5417 = vrot.slane %v5416, 4
      %v5419 = vshll.u32 %v5038, 16
      %v5421 = vrot.slane %v5419, 5
      %v5422 = vsel %vm319, %v5417, %v5421
      %v5423 = vshrl.u32 %v5038, 16
      %v5425 = vrot.slane %v5423, 4
      %v5426 = vor.u32 %v5425, %v5421
      %v5427 = vrot.slane %v5426, 4
      %v5429 = vshll.u32 %v5071, 16
      %v5431 = vrot.slane %v5429, 5
      %v5432 = vsel %vm319, %v5427, %v5431
      %v5434 = vshrl.u32 %v5039, 16
      %v5436 = vrot.slane %v5434, 4
      %v5437 = vshll.u32 %v5039, 16
      %v5439 = vrot.slane %v5437, 5
      %v5440 = vor.u32 %v5436, %v5439
      %v5441 = vrot.slane %v5440, 4
      %v5443 = vshll.u32 %v5040, 16
      %v5445 = vrot.slane %v5443, 5
      %v5446 = vsel %vm319, %v5441, %v5445
      %v5447 = vshrl.u32 %v5040, 16
      %v5449 = vrot.slane %v5447, 4
      %v5450 = vor.u32 %v5449, %v5445
      %v5451 = vrot.slane %v5450, 4
      %v5453 = vshll.u32 %v5072, 16
      %v5455 = vrot.slane %v5453, 5
      %v5456 = vsel %vm319, %v5451, %v5455
      %s5457 = scalar_lea.vmem %s2, 64
      %v5458 = vld [vmem:[%s5457] sm:$0xf]
      %v5459 = vld [vmem:[%s5457 + $0x4] sm:$0xf]
      %v5460 = vld [vmem:[%s5457 + $0x8] sm:$0xf]
      %v5461 = vld [vmem:[%s5457 + $0xc] sm:$0xf]
      %v5462 = vld [vmem:[%s5457 + $0x10] sm:$0xf]
      %v5463 = vld [vmem:[%s5457 + $0x14] sm:$0xf]
      %v5464 = vld [vmem:[%s5457 + $0x18] sm:$0xf]
      %v5465 = vld [vmem:[%s5457 + $0x1c] sm:$0xf]
      %v5466 = vld [vmem:[%s5457 + $0x20] sm:$0xf]
      %v5467 = vld [vmem:[%s5457 + $0x24] sm:$0xf]
      %v5468 = vld [vmem:[%s5457 + $0x28] sm:$0xf]
      %v5469 = vld [vmem:[%s5457 + $0x2c] sm:$0xf]
      %v5470 = vld [vmem:[%s5457 + $0x30] sm:$0xf]
      %v5471 = vld [vmem:[%s5457 + $0x34] sm:$0xf]
      %v5472 = vld [vmem:[%s5457 + $0x38] sm:$0xf]
      %v5473 = vld [vmem:[%s5457 + $0x3c] sm:$0xf]
      %v5474 = vunpack.c.l.b16 %v5086
      %v5475 = vunpack.c.l.b16 %v5096
      %v5476 = vunpack.c.l.b16 %v5110
      %v5477 = vunpack.c.l.b16 %v5120
      %v5478 = vunpack.c.l.b16 %v5134
      %v5479 = vunpack.c.l.b16 %v5144
      %v5480 = vunpack.c.l.b16 %v5158
      %v5481 = vunpack.c.l.b16 %v5168
      %v5482 = vunpack.c.l.b16 %v5182
      %v5483 = vunpack.c.l.b16 %v5192
      %v5484 = vunpack.c.l.b16 %v5206
      %v5485 = vunpack.c.l.b16 %v5216
      %v5486 = vunpack.c.l.b16 %v5230
      %v5487 = vunpack.c.l.b16 %v5240
      %v5488 = vunpack.c.l.b16 %v5254
      %v5489 = vunpack.c.l.b16 %v5264
      %v5490 = vunpack.c.l.b16 %v5278
      %v5491 = vunpack.c.l.b16 %v5288
      %v5492 = vunpack.c.l.b16 %v5302
      %v5493 = vunpack.c.l.b16 %v5312
      %v5494 = vunpack.c.l.b16 %v5326
      %v5495 = vunpack.c.l.b16 %v5336
      %v5496 = vunpack.c.l.b16 %v5350
      %v5497 = vunpack.c.l.b16 %v5360
      %v5498 = vunpack.c.l.b16 %v5374
      %v5499 = vunpack.c.l.b16 %v5384
      %v5500 = vunpack.c.l.b16 %v5398
      %v5501 = vunpack.c.l.b16 %v5408
      %v5502 = vunpack.c.l.b16 %v5422
      %v5503 = vunpack.c.l.b16 %v5432
      %v5504 = vunpack.c.l.b16 %v5446
      %v5505 = vunpack.c.l.b16 %v5456
      %v5506 = vpack.c.b16 %v5475, %v5474
      %v5507 = vpack.c.b16 %v5477, %v5476
      %v5508 = vpack.c.b16 %v5479, %v5478
      %v5509 = vpack.c.b16 %v5481, %v5480
      %v5510 = vpack.c.b16 %v5483, %v5482
      %v5511 = vpack.c.b16 %v5485, %v5484
      %v5512 = vpack.c.b16 %v5487, %v5486
      %v5513 = vpack.c.b16 %v5489, %v5488
      %v5514 = vpack.c.b16 %v5491, %v5490
      %v5515 = vpack.c.b16 %v5493, %v5492
      %v5516 = vpack.c.b16 %v5495, %v5494
      %v5517 = vpack.c.b16 %v5497, %v5496
      %v5518 = vpack.c.b16 %v5499, %v5498
      %v5519 = vpack.c.b16 %v5501, %v5500
      %v5520 = vpack.c.b16 %v5503, %v5502
      %v5521 = vpack.c.b16 %v5505, %v5504
      %v5554 = vunpack.c.l.b16 %v5458
      %v5555 = vunpack.c.l.b16 %v5459
      %v5556 = vunpack.c.l.b16 %v5460
      %v5557 = vunpack.c.l.b16 %v5461
      %v5558 = vunpack.c.l.b16 %v5462
      %v5559 = vunpack.c.l.b16 %v5463
      %v5560 = vunpack.c.l.b16 %v5464
      %v5561 = vunpack.c.l.b16 %v5465
      %v5562 = vunpack.c.l.b16 %v5466
      %v5563 = vunpack.c.l.b16 %v5467
      %v5564 = vunpack.c.l.b16 %v5468
      %v5565 = vunpack.c.l.b16 %v5469
      %v5566 = vunpack.c.l.b16 %v5470
      %v5567 = vunpack.c.l.b16 %v5471
      %v5568 = vunpack.c.l.b16 %v5472
      %v5569 = vunpack.c.l.b16 %v5473
      %v5570 = vpack.c.b16 %v5555, %v5554
      %v5571 = vpack.c.b16 %v5557, %v5556
      %v5572 = vpack.c.b16 %v5559, %v5558
      %v5573 = vpack.c.b16 %v5561, %v5560
      %v5574 = vpack.c.b16 %v5563, %v5562
      %v5575 = vpack.c.b16 %v5565, %v5564
      %v5576 = vpack.c.b16 %v5567, %v5566
      %v5577 = vpack.c.b16 %v5569, %v5568
      %5586 = vmatpush.bf16.msra.mxu0 %v5577
      %5587 = vmatpush.bf16.msra.mxu0 %v5576
      %5588 = vmatpush.bf16.msra.mxu0 %v5575
      %5589 = vmatpush.bf16.msra.mxu0 %v5574
      %5590 = vmatpush.bf16.msra.mxu0 %v5573
      %5591 = vmatpush.bf16.msra.mxu0 %v5572
      %5592 = vmatpush.bf16.msra.mxu0 %v5571
      %5593 = vmatpush.bf16.msra.mxu0 %v5570
      %5594 = vmatmul.bf16.gmra.mxu0 %v5506
      %v5595 = vpop.f32.mrf.mxu0
      %v5596 = vadd.f32 0.0, %v5595
      %v5597 = vpop.f32.mrf.mxu0
      %v5598 = vadd.f32 0.0, %v5597
      %5599 = vmatmul.bf16.gmra.mxu0 %v5507
      %v5600 = vpop.f32.mrf.mxu0
      %v5601 = vadd.f32 0.0, %v5600
      %v5602 = vpop.f32.mrf.mxu0
      %v5603 = vadd.f32 0.0, %v5602
      %5604 = vmatmul.bf16.gmra.mxu0 %v5508
      %v5605 = vpop.f32.mrf.mxu0
      %v5606 = vadd.f32 0.0, %v5605
      %v5607 = vpop.f32.mrf.mxu0
      %v5608 = vadd.f32 0.0, %v5607
      %5609 = vmatmul.bf16.gmra.mxu0 %v5509
      %v5610 = vpop.f32.mrf.mxu0
      %v5611 = vadd.f32 0.0, %v5610
      %v5612 = vpop.f32.mrf.mxu0
      %v5613 = vadd.f32 0.0, %v5612
      %5614 = vmatmul.bf16.gmra.mxu0 %v5510
      %v5615 = vpop.f32.mrf.mxu0
      %v5616 = vadd.f32 0.0, %v5615
      %v5617 = vpop.f32.mrf.mxu0
      %v5618 = vadd.f32 0.0, %v5617
      %5619 = vmatmul.bf16.gmra.mxu0 %v5511
      %v5620 = vpop.f32.mrf.mxu0
      %v5621 = vadd.f32 0.0, %v5620
      %v5622 = vpop.f32.mrf.mxu0
      %v5623 = vadd.f32 0.0, %v5622
      %5624 = vmatmul.bf16.gmra.mxu0 %v5512
      %v5625 = vpop.f32.mrf.mxu0
      %v5626 = vadd.f32 0.0, %v5625
      %v5627 = vpop.f32.mrf.mxu0
      %v5628 = vadd.f32 0.0, %v5627
      %5629 = vmatmul.bf16.gmra.mxu0 %v5513
      %v5630 = vpop.f32.mrf.mxu0
      %v5631 = vadd.f32 0.0, %v5630
      %v5632 = vpop.f32.mrf.mxu0
      %v5633 = vadd.f32 0.0, %v5632
      %5634 = vmatmul.bf16.gmra.mxu0 %v5514
      %v5635 = vpop.f32.mrf.mxu0
      %v5636 = vadd.f32 0.0, %v5635
      %v5637 = vpop.f32.mrf.mxu0
      %v5638 = vadd.f32 0.0, %v5637
      %5639 = vmatmul.bf16.gmra.mxu0 %v5515
      %v5640 = vpop.f32.mrf.mxu0
      %v5641 = vadd.f32 0.0, %v5640
      %v5642 = vpop.f32.mrf.mxu0
      %v5643 = vadd.f32 0.0, %v5642
      %5644 = vmatmul.bf16.gmra.mxu0 %v5516
      %v5645 = vpop.f32.mrf.mxu0
      %v5646 = vadd.f32 0.0, %v5645
      %v5647 = vpop.f32.mrf.mxu0
      %v5648 = vadd.f32 0.0, %v5647
      %5649 = vmatmul.bf16.gmra.mxu0 %v5517
      %v5650 = vpop.f32.mrf.mxu0
      %v5651 = vadd.f32 0.0, %v5650
      %v5652 = vpop.f32.mrf.mxu0
      %v5653 = vadd.f32 0.0, %v5652
      %5654 = vmatmul.bf16.gmra.mxu0 %v5518
      %v5655 = vpop.f32.mrf.mxu0
      %v5656 = vadd.f32 0.0, %v5655
      %v5657 = vpop.f32.mrf.mxu0
      %v5658 = vadd.f32 0.0, %v5657
      %5659 = vmatmul.bf16.gmra.mxu0 %v5519
      %v5660 = vpop.f32.mrf.mxu0
      %v5661 = vadd.f32 0.0, %v5660
      %v5662 = vpop.f32.mrf.mxu0
      %v5663 = vadd.f32 0.0, %v5662
      %5664 = vmatmul.bf16.gmra.mxu0 %v5520
      %v5665 = vpop.f32.mrf.mxu0
      %v5666 = vadd.f32 0.0, %v5665
      %v5667 = vpop.f32.mrf.mxu0
      %v5668 = vadd.f32 0.0, %v5667
      %5669 = vmatmul.bf16.gmra.mxu0 %v5521
      %v5670 = vpop.f32.mrf.mxu0
      %v5671 = vadd.f32 0.0, %v5670
      %v5672 = vpop.f32.mrf.mxu0
      %v5673 = vadd.f32 0.0, %v5672
      %5674 = vdwg.mxu0
      %v5707 = vunpack.c.l.b16 %v5009
      %v5708 = vunpack.c.l.b16 %v5010
      %v5709 = vunpack.c.l.b16 %v5011
      %v5710 = vunpack.c.l.b16 %v5012
      %v5711 = vunpack.c.l.b16 %v5013
      %v5712 = vunpack.c.l.b16 %v5014
      %v5713 = vunpack.c.l.b16 %v5015
      %v5714 = vunpack.c.l.b16 %v5016
      %v5715 = vunpack.c.l.b16 %v5017
      %v5716 = vunpack.c.l.b16 %v5018
      %v5717 = vunpack.c.l.b16 %v5019
      %v5718 = vunpack.c.l.b16 %v5020
      %v5719 = vunpack.c.l.b16 %v5021
      %v5720 = vunpack.c.l.b16 %v5022
      %v5721 = vunpack.c.l.b16 %v5023
      %v5722 = vunpack.c.l.b16 %v5024
      %v5723 = vunpack.c.l.b16 %v5025
      %v5724 = vunpack.c.l.b16 %v5026
      %v5725 = vunpack.c.l.b16 %v5027
      %v5726 = vunpack.c.l.b16 %v5028
      %v5727 = vunpack.c.l.b16 %v5029
      %v5728 = vunpack.c.l.b16 %v5030
      %v5729 = vunpack.c.l.b16 %v5031
      %v5730 = vunpack.c.l.b16 %v5032
      %v5731 = vunpack.c.l.b16 %v5033
      %v5732 = vunpack.c.l.b16 %v5034
      %v5733 = vunpack.c.l.b16 %v5035
      %v5734 = vunpack.c.l.b16 %v5036
      %v5735 = vunpack.c.l.b16 %v5037
      %v5736 = vunpack.c.l.b16 %v5038
      %v5737 = vunpack.c.l.b16 %v5039
      %v5738 = vunpack.c.l.b16 %v5040
      %v5739 = vpack.c.b16 %v5708, %v5707
      %v5740 = vpack.c.b16 %v5710, %v5709
      %v5741 = vpack.c.b16 %v5712, %v5711
      %v5742 = vpack.c.b16 %v5714, %v5713
      %v5743 = vpack.c.b16 %v5716, %v5715
      %v5744 = vpack.c.b16 %v5718, %v5717
      %v5745 = vpack.c.b16 %v5720, %v5719
      %v5746 = vpack.c.b16 %v5722, %v5721
      %v5747 = vpack.c.b16 %v5724, %v5723
      %v5748 = vpack.c.b16 %v5726, %v5725
      %v5749 = vpack.c.b16 %v5728, %v5727
      %v5750 = vpack.c.b16 %v5730, %v5729
      %v5751 = vpack.c.b16 %v5732, %v5731
      %v5752 = vpack.c.b16 %v5734, %v5733
      %v5753 = vpack.c.b16 %v5736, %v5735
      %v5754 = vpack.c.b16 %v5738, %v5737
      %v5787 = vunpack.c.l.b16 %v5041
      %v5788 = vunpack.c.l.b16 %v5042
      %v5789 = vunpack.c.l.b16 %v5043
      %v5790 = vunpack.c.l.b16 %v5044
      %v5791 = vunpack.c.l.b16 %v5045
      %v5792 = vunpack.c.l.b16 %v5046
      %v5793 = vunpack.c.l.b16 %v5047
      %v5794 = vunpack.c.l.b16 %v5048
      %v5795 = vunpack.c.l.b16 %v5049
      %v5796 = vunpack.c.l.b16 %v5050
      %v5797 = vunpack.c.l.b16 %v5051
      %v5798 = vunpack.c.l.b16 %v5052
      %v5799 = vunpack.c.l.b16 %v5053
      %v5800 = vunpack.c.l.b16 %v5054
      %v5801 = vunpack.c.l.b16 %v5055
      %v5802 = vunpack.c.l.b16 %v5056
      %v5803 = vpack.c.b16 %v5788, %v5787
      %v5804 = vpack.c.b16 %v5790, %v5789
      %v5805 = vpack.c.b16 %v5792, %v5791
      %v5806 = vpack.c.b16 %v5794, %v5793
      %v5807 = vpack.c.b16 %v5796, %v5795
      %v5808 = vpack.c.b16 %v5798, %v5797
      %v5809 = vpack.c.b16 %v5800, %v5799
      %v5810 = vpack.c.b16 %v5802, %v5801
      %5819 = vmatpush.bf16.msra.mxu0 %v5810
      %5820 = vmatpush.bf16.msra.mxu0 %v5809
      %5821 = vmatpush.bf16.msra.mxu0 %v5808
      %5822 = vmatpush.bf16.msra.mxu0 %v5807
      %5823 = vmatpush.bf16.msra.mxu0 %v5806
      %5824 = vmatpush.bf16.msra.mxu0 %v5805
      %5825 = vmatpush.bf16.msra.mxu0 %v5804
      %5826 = vmatpush.bf16.msra.mxu0 %v5803
      %5827 = vmatmul.bf16.gmra.mxu0 %v5739
      %v5828 = vpop.f32.mrf.mxu0
      %v5829 = vadd.f32 %v5596, %v5828
      %v5830 = vpop.f32.mrf.mxu0
      %v5831 = vadd.f32 %v5598, %v5830
      %5832 = vmatmul.bf16.gmra.mxu0 %v5740
      %v5833 = vpop.f32.mrf.mxu0
      %v5834 = vadd.f32 %v5601, %v5833
      %v5835 = vpop.f32.mrf.mxu0
      %v5836 = vadd.f32 %v5603, %v5835
      %5837 = vmatmul.bf16.gmra.mxu0 %v5741
      %v5838 = vpop.f32.mrf.mxu0
      %v5839 = vadd.f32 %v5606, %v5838
      %v5840 = vpop.f32.mrf.mxu0
      %v5841 = vadd.f32 %v5608, %v5840
      %5842 = vmatmul.bf16.gmra.mxu0 %v5742
      %v5843 = vpop.f32.mrf.mxu0
      %v5844 = vadd.f32 %v5611, %v5843
      %v5845 = vpop.f32.mrf.mxu0
      %v5846 = vadd.f32 %v5613, %v5845
      %5847 = vmatmul.bf16.gmra.mxu0 %v5743
      %v5848 = vpop.f32.mrf.mxu0
      %v5849 = vadd.f32 %v5616, %v5848
      %v5850 = vpop.f32.mrf.mxu0
      %v5851 = vadd.f32 %v5618, %v5850
      %5852 = vmatmul.bf16.gmra.mxu0 %v5744
      %v5853 = vpop.f32.mrf.mxu0
      %v5854 = vadd.f32 %v5621, %v5853
      %v5855 = vpop.f32.mrf.mxu0
      %v5856 = vadd.f32 %v5623, %v5855
      %5857 = vmatmul.bf16.gmra.mxu0 %v5745
      %v5858 = vpop.f32.mrf.mxu0
      %v5859 = vadd.f32 %v5626, %v5858
      %v5860 = vpop.f32.mrf.mxu0
      %v5861 = vadd.f32 %v5628, %v5860
      %5862 = vmatmul.bf16.gmra.mxu0 %v5746
      %v5863 = vpop.f32.mrf.mxu0
      %v5864 = vadd.f32 %v5631, %v5863
      %v5865 = vpop.f32.mrf.mxu0
      %v5866 = vadd.f32 %v5633, %v5865
      %5867 = vmatmul.bf16.gmra.mxu0 %v5747
      %v5868 = vpop.f32.mrf.mxu0
      %v5869 = vadd.f32 %v5636, %v5868
      %v5870 = vpop.f32.mrf.mxu0
      %v5871 = vadd.f32 %v5638, %v5870
      %5872 = vmatmul.bf16.gmra.mxu0 %v5748
      %v5873 = vpop.f32.mrf.mxu0
      %v5874 = vadd.f32 %v5641, %v5873
      %v5875 = vpop.f32.mrf.mxu0
      %v5876 = vadd.f32 %v5643, %v5875
      %5877 = vmatmul.bf16.gmra.mxu0 %v5749
      %v5878 = vpop.f32.mrf.mxu0
      %v5879 = vadd.f32 %v5646, %v5878
      %v5880 = vpop.f32.mrf.mxu0
      %v5881 = vadd.f32 %v5648, %v5880
      %5882 = vmatmul.bf16.gmra.mxu0 %v5750
      %v5883 = vpop.f32.mrf.mxu0
      %v5884 = vadd.f32 %v5651, %v5883
      %v5885 = vpop.f32.mrf.mxu0
      %v5886 = vadd.f32 %v5653, %v5885
      %5887 = vmatmul.bf16.gmra.mxu0 %v5751
      %v5888 = vpop.f32.mrf.mxu0
      %v5889 = vadd.f32 %v5656, %v5888
      %v5890 = vpop.f32.mrf.mxu0
      %v5891 = vadd.f32 %v5658, %v5890
      %5892 = vmatmul.bf16.gmra.mxu0 %v5752
      %v5893 = vpop.f32.mrf.mxu0
      %v5894 = vadd.f32 %v5661, %v5893
      %v5895 = vpop.f32.mrf.mxu0
      %v5896 = vadd.f32 %v5663, %v5895
      %5897 = vmatmul.bf16.gmra.mxu0 %v5753
      %v5898 = vpop.f32.mrf.mxu0
      %v5899 = vadd.f32 %v5666, %v5898
      %v5900 = vpop.f32.mrf.mxu0
      %v5901 = vadd.f32 %v5668, %v5900
      %5902 = vmatmul.bf16.gmra.mxu0 %v5754
      %v5903 = vpop.f32.mrf.mxu0
      %v5904 = vadd.f32 %v5671, %v5903
      %v5905 = vpop.f32.mrf.mxu0
      %v5906 = vadd.f32 %v5673, %v5905
      %5907 = vdwg.mxu0
      %v5908 = vld [vmem:[#allocation2] sm:$0xe]
      %v5909 = vld [vmem:[#allocation2 + $0xc] sm:$0xe]
      %v5910 = vld [vmem:[#allocation2 + $0x18] sm:$0xe]
      %v5911 = vld [vmem:[#allocation2 + $0x24] sm:$0xe]
      %v5912 = vld [vmem:[#allocation2 + $0x30] sm:$0xe]
      %v5913 = vld [vmem:[#allocation2 + $0x3c] sm:$0xe]
      %v5914 = vld [vmem:[#allocation2 + $0x48] sm:$0xe]
      %v5915 = vld [vmem:[#allocation2 + $0x54] sm:$0xe]
      %v5916 = vld [vmem:[#allocation2 + $0x60] sm:$0xe]
      %v5917 = vld [vmem:[#allocation2 + $0x6c] sm:$0xe]
      %v5918 = vld [vmem:[#allocation2 + $0x78] sm:$0xe]
      %v5919 = vld [vmem:[#allocation2 + $0x84] sm:$0xe]
      %v5920 = vld [vmem:[#allocation2 + $0x90] sm:$0xe]
      %v5921 = vld [vmem:[#allocation2 + $0x9c] sm:$0xe]
      %v5922 = vld [vmem:[#allocation2 + $0xa8] sm:$0xe]
      %v5923 = vld [vmem:[#allocation2 + $0xb4] sm:$0xe]
      %v5956 = vrot.slane %v5908, 5
      %v5957 = vrot.slane %v5956, 4
      %v5958 = vrot.slane %v5010, 5
      %v5959 = vsel %vm1205, %v5957, %v5958
      %v5960 = vrot.slane %v5958, 4
      %v5961 = vrot.slane %v5057, 5
      %v5962 = vsel %vm1205, %v5960, %v5961
      %v5963 = vrot.slane %v5909, 5
      %v5964 = vrot.slane %v5963, 4
      %v5965 = vrot.slane %v5012, 5
      %v5966 = vsel %vm1205, %v5964, %v5965
      %v5967 = vrot.slane %v5965, 4
      %v5968 = vrot.slane %v5058, 5
      %v5969 = vsel %vm1205, %v5967, %v5968
      %v5970 = vrot.slane %v5910, 5
      %v5971 = vrot.slane %v5970, 4
      %v5972 = vrot.slane %v5014, 5
      %v5973 = vsel %vm1205, %v5971, %v5972
      %v5974 = vrot.slane %v5972, 4
      %v5975 = vrot.slane %v5059, 5
      %v5976 = vsel %vm1205, %v5974, %v5975
      %v5977 = vrot.slane %v5911, 5
      %v5978 = vrot.slane %v5977, 4
      %v5979 = vrot.slane %v5016, 5
      %v5980 = vsel %vm1205, %v5978, %v5979
      %v5981 = vrot.slane %v5979, 4
      %v5982 = vrot.slane %v5060, 5
      %v5983 = vsel %vm1205, %v5981, %v5982
      %v5984 = vrot.slane %v5912, 5
      %v5985 = vrot.slane %v5984, 4
      %v5986 = vrot.slane %v5018, 5
      %v5987 = vsel %vm1205, %v5985, %v5986
      %v5988 = vrot.slane %v5986, 4
      %v5989 = vrot.slane %v5061, 5
      %v5990 = vsel %vm1205, %v5988, %v5989
      %v5991 = vrot.slane %v5913, 5
      %v5992 = vrot.slane %v5991, 4
      %v5993 = vrot.slane %v5020, 5
      %v5994 = vsel %vm1205, %v5992, %v5993
      %v5995 = vrot.slane %v5993, 4
      %v5996 = vrot.slane %v5062, 5
      %v5997 = vsel %vm1205, %v5995, %v5996
      %v5998 = vrot.slane %v5914, 5
      %v5999 = vrot.slane %v5998, 4
      %v6000 = vrot.slane %v5022, 5
      %v6001 = vsel %vm1205, %v5999, %v6000
      %v6002 = vrot.slane %v6000, 4
      %v6003 = vrot.slane %v5063, 5
      %v6004 = vsel %vm1205, %v6002, %v6003
      %v6005 = vrot.slane %v5915, 5
      %v6006 = vrot.slane %v6005, 4
      %v6007 = vrot.slane %v5024, 5
      %v6008 = vsel %vm1205, %v6006, %v6007
      %v6009 = vrot.slane %v6007, 4
      %v6010 = vrot.slane %v5064, 5
      %v6011 = vsel %vm1205, %v6009, %v6010
      %v6012 = vrot.slane %v5916, 5
      %v6013 = vrot.slane %v6012, 4
      %v6014 = vrot.slane %v5026, 5
      %v6015 = vsel %vm1205, %v6013, %v6014
      %v6016 = vrot.slane %v6014, 4
      %v6017 = vrot.slane %v5065, 5
      %v6018 = vsel %vm1205, %v6016, %v6017
      %v6019 = vrot.slane %v5917, 5
      %v6020 = vrot.slane %v6019, 4
      %v6021 = vrot.slane %v5028, 5
      %v6022 = vsel %vm1205, %v6020, %v6021
      %v6023 = vrot.slane %v6021, 4
      %v6024 = vrot.slane %v5066, 5
      %v6025 = vsel %vm1205, %v6023, %v6024
      %v6026 = vrot.slane %v5918, 5
      %v6027 = vrot.slane %v6026, 4
      %v6028 = vrot.slane %v5030, 5
      %v6029 = vsel %vm1205, %v6027, %v6028
      %v6030 = vrot.slane %v6028, 4
      %v6031 = vrot.slane %v5067, 5
      %v6032 = vsel %vm1205, %v6030, %v6031
      %v6033 = vrot.slane %v5919, 5
      %v6034 = vrot.slane %v6033, 4
      %v6035 = vrot.slane %v5032, 5
      %v6036 = vsel %vm1205, %v6034, %v6035
      %v6037 = vrot.slane %v6035, 4
      %v6038 = vrot.slane %v5068, 5
      %v6039 = vsel %vm1205, %v6037, %v6038
      %v6040 = vrot.slane %v5920, 5
      %v6041 = vrot.slane %v6040, 4
      %v6042 = vrot.slane %v5034, 5
      %v6043 = vsel %vm1205, %v6041, %v6042
      %v6044 = vrot.slane %v6042, 4
      %v6045 = vrot.slane %v5069, 5
      %v6046 = vsel %vm1205, %v6044, %v6045
      %v6047 = vrot.slane %v5921, 5
      %v6048 = vrot.slane %v6047, 4
      %v6049 = vrot.slane %v5036, 5
      %v6050 = vsel %vm1205, %v6048, %v6049
      %v6051 = vrot.slane %v6049, 4
      %v6052 = vrot.slane %v5070, 5
      %v6053 = vsel %vm1205, %v6051, %v6052
      %v6054 = vrot.slane %v5922, 5
      %v6055 = vrot.slane %v6054, 4
      %v6056 = vrot.slane %v5038, 5
      %v6057 = vsel %vm1205, %v6055, %v6056
      %v6058 = vrot.slane %v6056, 4
      %v6059 = vrot.slane %v5071, 5
      %v6060 = vsel %vm1205, %v6058, %v6059
      %v6061 = vrot.slane %v5923, 5
      %v6062 = vrot.slane %v6061, 4
      %v6063 = vrot.slane %v5040, 5
      %v6064 = vsel %vm1205, %v6062, %v6063
      %v6065 = vrot.slane %v6063, 4
      %v6066 = vrot.slane %v5072, 5
      %v6067 = vsel %vm1205, %v6065, %v6066
      %s6068 = scalar_lea.vmem %s2, 128
      %v6069 = vld [vmem:[%s6068] sm:$0xf]
      %v6070 = vld [vmem:[%s6068 + $0x4] sm:$0xf]
      %v6071 = vld [vmem:[%s6068 + $0x8] sm:$0xf]
      %v6072 = vld [vmem:[%s6068 + $0xc] sm:$0xf]
      %v6073 = vld [vmem:[%s6068 + $0x10] sm:$0xf]
      %v6074 = vld [vmem:[%s6068 + $0x14] sm:$0xf]
      %v6075 = vld [vmem:[%s6068 + $0x18] sm:$0xf]
      %v6076 = vld [vmem:[%s6068 + $0x1c] sm:$0xf]
      %v6077 = vld [vmem:[%s6068 + $0x20] sm:$0xf]
      %v6078 = vld [vmem:[%s6068 + $0x24] sm:$0xf]
      %v6079 = vld [vmem:[%s6068 + $0x28] sm:$0xf]
      %v6080 = vld [vmem:[%s6068 + $0x2c] sm:$0xf]
      %v6081 = vld [vmem:[%s6068 + $0x30] sm:$0xf]
      %v6082 = vld [vmem:[%s6068 + $0x34] sm:$0xf]
      %v6083 = vld [vmem:[%s6068 + $0x38] sm:$0xf]
      %v6084 = vld [vmem:[%s6068 + $0x3c] sm:$0xf]
      %v6085 = vunpack.c.l.b16 %v5959
      %v6086 = vunpack.c.l.b16 %v5962
      %v6087 = vunpack.c.l.b16 %v5966
      %v6088 = vunpack.c.l.b16 %v5969
      %v6089 = vunpack.c.l.b16 %v5973
      %v6090 = vunpack.c.l.b16 %v5976
      %v6091 = vunpack.c.l.b16 %v5980
      %v6092 = vunpack.c.l.b16 %v5983
      %v6093 = vunpack.c.l.b16 %v5987
      %v6094 = vunpack.c.l.b16 %v5990
      %v6095 = vunpack.c.l.b16 %v5994
      %v6096 = vunpack.c.l.b16 %v5997
      %v6097 = vunpack.c.l.b16 %v6001
      %v6098 = vunpack.c.l.b16 %v6004
      %v6099 = vunpack.c.l.b16 %v6008
      %v6100 = vunpack.c.l.b16 %v6011
      %v6101 = vunpack.c.l.b16 %v6015
      %v6102 = vunpack.c.l.b16 %v6018
      %v6103 = vunpack.c.l.b16 %v6022
      %v6104 = vunpack.c.l.b16 %v6025
      %v6105 = vunpack.c.l.b16 %v6029
      %v6106 = vunpack.c.l.b16 %v6032
      %v6107 = vunpack.c.l.b16 %v6036
      %v6108 = vunpack.c.l.b16 %v6039
      %v6109 = vunpack.c.l.b16 %v6043
      %v6110 = vunpack.c.l.b16 %v6046
      %v6111 = vunpack.c.l.b16 %v6050
      %v6112 = vunpack.c.l.b16 %v6053
      %v6113 = vunpack.c.l.b16 %v6057
      %v6114 = vunpack.c.l.b16 %v6060
      %v6115 = vunpack.c.l.b16 %v6064
      %v6116 = vunpack.c.l.b16 %v6067
      %v6117 = vpack.c.b16 %v6086, %v6085
      %v6118 = vpack.c.b16 %v6088, %v6087
      %v6119 = vpack.c.b16 %v6090, %v6089
      %v6120 = vpack.c.b16 %v6092, %v6091
      %v6121 = vpack.c.b16 %v6094, %v6093
      %v6122 = vpack.c.b16 %v6096, %v6095
      %v6123 = vpack.c.b16 %v6098, %v6097
      %v6124 = vpack.c.b16 %v6100, %v6099
      %v6125 = vpack.c.b16 %v6102, %v6101
      %v6126 = vpack.c.b16 %v6104, %v6103
      %v6127 = vpack.c.b16 %v6106, %v6105
      %v6128 = vpack.c.b16 %v6108, %v6107
      %v6129 = vpack.c.b16 %v6110, %v6109
      %v6130 = vpack.c.b16 %v6112, %v6111
      %v6131 = vpack.c.b16 %v6114, %v6113
      %v6132 = vpack.c.b16 %v6116, %v6115
      %v6165 = vunpack.c.l.b16 %v6069
      %v6166 = vunpack.c.l.b16 %v6070
      %v6167 = vunpack.c.l.b16 %v6071
      %v6168 = vunpack.c.l.b16 %v6072
      %v6169 = vunpack.c.l.b16 %v6073
      %v6170 = vunpack.c.l.b16 %v6074
      %v6171 = vunpack.c.l.b16 %v6075
      %v6172 = vunpack.c.l.b16 %v6076
      %v6173 = vunpack.c.l.b16 %v6077
      %v6174 = vunpack.c.l.b16 %v6078
      %v6175 = vunpack.c.l.b16 %v6079
      %v6176 = vunpack.c.l.b16 %v6080
      %v6177 = vunpack.c.l.b16 %v6081
      %v6178 = vunpack.c.l.b16 %v6082
      %v6179 = vunpack.c.l.b16 %v6083
      %v6180 = vunpack.c.l.b16 %v6084
      %v6181 = vpack.c.b16 %v6166, %v6165
      %v6182 = vpack.c.b16 %v6168, %v6167
      %v6183 = vpack.c.b16 %v6170, %v6169
      %v6184 = vpack.c.b16 %v6172, %v6171
      %v6185 = vpack.c.b16 %v6174, %v6173
      %v6186 = vpack.c.b16 %v6176, %v6175
      %v6187 = vpack.c.b16 %v6178, %v6177
      %v6188 = vpack.c.b16 %v6180, %v6179
      %6197 = vmatpush.bf16.msra.mxu0 %v6188
      %6198 = vmatpush.bf16.msra.mxu0 %v6187
      %6199 = vmatpush.bf16.msra.mxu0 %v6186
      %6200 = vmatpush.bf16.msra.mxu0 %v6185
      %6201 = vmatpush.bf16.msra.mxu0 %v6184
      %6202 = vmatpush.bf16.msra.mxu0 %v6183
      %6203 = vmatpush.bf16.msra.mxu0 %v6182
      %6204 = vmatpush.bf16.msra.mxu0 %v6181
      %6205 = vmatmul.bf16.gmra.mxu0 %v6117
      %v6206 = vpop.f32.mrf.mxu0
      %v6207 = vadd.f32 0.0, %v6206
      %v6208 = vpop.f32.mrf.mxu0
      %v6209 = vadd.f32 0.0, %v6208
      %6210 = vmatmul.bf16.gmra.mxu0 %v6118
      %v6211 = vpop.f32.mrf.mxu0
      %v6212 = vadd.f32 0.0, %v6211
      %v6213 = vpop.f32.mrf.mxu0
      %v6214 = vadd.f32 0.0, %v6213
      %6215 = vmatmul.bf16.gmra.mxu0 %v6119
      %v6216 = vpop.f32.mrf.mxu0
      %v6217 = vadd.f32 0.0, %v6216
      %v6218 = vpop.f32.mrf.mxu0
      %v6219 = vadd.f32 0.0, %v6218
      %6220 = vmatmul.bf16.gmra.mxu0 %v6120
      %v6221 = vpop.f32.mrf.mxu0
      %v6222 = vadd.f32 0.0, %v6221
      %v6223 = vpop.f32.mrf.mxu0
      %v6224 = vadd.f32 0.0, %v6223
      %6225 = vmatmul.bf16.gmra.mxu0 %v6121
      %v6226 = vpop.f32.mrf.mxu0
      %v6227 = vadd.f32 0.0, %v6226
      %v6228 = vpop.f32.mrf.mxu0
      %v6229 = vadd.f32 0.0, %v6228
      %6230 = vmatmul.bf16.gmra.mxu0 %v6122
      %v6231 = vpop.f32.mrf.mxu0
      %v6232 = vadd.f32 0.0, %v6231
      %v6233 = vpop.f32.mrf.mxu0
      %v6234 = vadd.f32 0.0, %v6233
      %6235 = vmatmul.bf16.gmra.mxu0 %v6123
      %v6236 = vpop.f32.mrf.mxu0
      %v6237 = vadd.f32 0.0, %v6236
      %v6238 = vpop.f32.mrf.mxu0
      %v6239 = vadd.f32 0.0, %v6238
      %6240 = vmatmul.bf16.gmra.mxu0 %v6124
      %v6241 = vpop.f32.mrf.mxu0
      %v6242 = vadd.f32 0.0, %v6241
      %v6243 = vpop.f32.mrf.mxu0
      %v6244 = vadd.f32 0.0, %v6243
      %6245 = vmatmul.bf16.gmra.mxu0 %v6125
      %v6246 = vpop.f32.mrf.mxu0
      %v6247 = vadd.f32 0.0, %v6246
      %v6248 = vpop.f32.mrf.mxu0
      %v6249 = vadd.f32 0.0, %v6248
      %6250 = vmatmul.bf16.gmra.mxu0 %v6126
      %v6251 = vpop.f32.mrf.mxu0
      %v6252 = vadd.f32 0.0, %v6251
      %v6253 = vpop.f32.mrf.mxu0
      %v6254 = vadd.f32 0.0, %v6253
      %6255 = vmatmul.bf16.gmra.mxu0 %v6127
      %v6256 = vpop.f32.mrf.mxu0
      %v6257 = vadd.f32 0.0, %v6256
      %v6258 = vpop.f32.mrf.mxu0
      %v6259 = vadd.f32 0.0, %v6258
      %6260 = vmatmul.bf16.gmra.mxu0 %v6128
      %v6261 = vpop.f32.mrf.mxu0
      %v6262 = vadd.f32 0.0, %v6261
      %v6263 = vpop.f32.mrf.mxu0
      %v6264 = vadd.f32 0.0, %v6263
      %6265 = vmatmul.bf16.gmra.mxu0 %v6129
      %v6266 = vpop.f32.mrf.mxu0
      %v6267 = vadd.f32 0.0, %v6266
      %v6268 = vpop.f32.mrf.mxu0
      %v6269 = vadd.f32 0.0, %v6268
      %6270 = vmatmul.bf16.gmra.mxu0 %v6130
      %v6271 = vpop.f32.mrf.mxu0
      %v6272 = vadd.f32 0.0, %v6271
      %v6273 = vpop.f32.mrf.mxu0
      %v6274 = vadd.f32 0.0, %v6273
      %6275 = vmatmul.bf16.gmra.mxu0 %v6131
      %v6276 = vpop.f32.mrf.mxu0
      %v6277 = vadd.f32 0.0, %v6276
      %v6278 = vpop.f32.mrf.mxu0
      %v6279 = vadd.f32 0.0, %v6278
      %6280 = vmatmul.bf16.gmra.mxu0 %v6132
      %v6281 = vpop.f32.mrf.mxu0
      %v6282 = vadd.f32 0.0, %v6281
      %v6283 = vpop.f32.mrf.mxu0
      %v6284 = vadd.f32 0.0, %v6283
      %6285 = vdwg.mxu0
      %v6286 = vadd.f32 %v5829, %v6207
      %v6287 = vadd.f32 %v5831, %v6209
      %v6288 = vadd.f32 %v5834, %v6212
      %v6289 = vadd.f32 %v5836, %v6214
      %v6290 = vadd.f32 %v5839, %v6217
      %v6291 = vadd.f32 %v5841, %v6219
      %v6292 = vadd.f32 %v5844, %v6222
      %v6293 = vadd.f32 %v5846, %v6224
      %v6294 = vadd.f32 %v5849, %v6227
      %v6295 = vadd.f32 %v5851, %v6229
      %v6296 = vadd.f32 %v5854, %v6232
      %v6297 = vadd.f32 %v5856, %v6234
      %v6298 = vadd.f32 %v5859, %v6237
      %v6299 = vadd.f32 %v5861, %v6239
      %v6300 = vadd.f32 %v5864, %v6242
      %v6301 = vadd.f32 %v5866, %v6244
      %v6302 = vadd.f32 %v5869, %v6247
      %v6303 = vadd.f32 %v5871, %v6249
      %v6304 = vadd.f32 %v5874, %v6252
      %v6305 = vadd.f32 %v5876, %v6254
      %v6306 = vadd.f32 %v5879, %v6257
      %v6307 = vadd.f32 %v5881, %v6259
      %v6308 = vadd.f32 %v5884, %v6262
      %v6309 = vadd.f32 %v5886, %v6264
      %v6310 = vadd.f32 %v5889, %v6267
      %v6311 = vadd.f32 %v5891, %v6269
      %v6312 = vadd.f32 %v5894, %v6272
      %v6313 = vadd.f32 %v5896, %v6274
      %v6314 = vadd.f32 %v5899, %v6277
      %v6315 = vadd.f32 %v5901, %v6279
      %v6316 = vadd.f32 %v5904, %v6282
      %v6317 = vadd.f32 %v5906, %v6284
      %v6318 = vld [vmem:[%s4891] sm:$0xf]
      %v6319 = vld [vmem:[%s4891 + $0x4] sm:$0xf]
      %v6320 = vld [vmem:[%s4891 + $0xc] sm:$0xf]
      %v6321 = vld [vmem:[%s4891 + $0x10] sm:$0xf]
      %v6322 = vld [vmem:[%s4891 + $0x18] sm:$0xf]
      %v6323 = vld [vmem:[%s4891 + $0x1c] sm:$0xf]
      %v6324 = vld [vmem:[%s4891 + $0x24] sm:$0xf]
      %v6325 = vld [vmem:[%s4891 + $0x28] sm:$0xf]
      %v6326 = vld [vmem:[%s4891 + $0x30] sm:$0xf]
      %v6327 = vld [vmem:[%s4891 + $0x34] sm:$0xf]
      %v6328 = vld [vmem:[%s4891 + $0x3c] sm:$0xf]
      %v6329 = vld [vmem:[%s4891 + $0x40] sm:$0xf]
      %v6330 = vld [vmem:[%s4891 + $0x48] sm:$0xf]
      %v6331 = vld [vmem:[%s4891 + $0x4c] sm:$0xf]
      %v6332 = vld [vmem:[%s4891 + $0x54] sm:$0xf]
      %v6333 = vld [vmem:[%s4891 + $0x58] sm:$0xf]
      %v6334 = vld [vmem:[%s4891 + $0x60] sm:$0xf]
      %v6335 = vld [vmem:[%s4891 + $0x64] sm:$0xf]
      %v6336 = vld [vmem:[%s4891 + $0x6c] sm:$0xf]
      %v6337 = vld [vmem:[%s4891 + $0x70] sm:$0xf]
      %v6338 = vld [vmem:[%s4891 + $0x78] sm:$0xf]
      %v6339 = vld [vmem:[%s4891 + $0x7c] sm:$0xf]
      %v6340 = vld [vmem:[%s4891 + $0x84] sm:$0xf]
      %v6341 = vld [vmem:[%s4891 + $0x88] sm:$0xf]
      %v6342 = vld [vmem:[%s4891 + $0x90] sm:$0xf]
      %v6343 = vld [vmem:[%s4891 + $0x94] sm:$0xf]
      %v6344 = vld [vmem:[%s4891 + $0x9c] sm:$0xf]
      %v6345 = vld [vmem:[%s4891 + $0xa0] sm:$0xf]
      %v6346 = vld [vmem:[%s4891 + $0xa8] sm:$0xf]
      %v6347 = vld [vmem:[%s4891 + $0xac] sm:$0xf]
      %v6348 = vld [vmem:[%s4891 + $0xb4] sm:$0xf]
      %v6349 = vld [vmem:[%s4891 + $0xb8] sm:$0xf]
      %s6350 = scalar_lea.vmem %s2, 192
      %v6351 = vld [vmem:[%s6350] sm:$0xf]
      %v6352 = vld [vmem:[%s6350 + $0x4] sm:$0xf]
      %v6353 = vld [vmem:[%s6350 + $0x8] sm:$0xf]
      %v6354 = vld [vmem:[%s6350 + $0xc] sm:$0xf]
      %v6355 = vld [vmem:[%s6350 + $0x10] sm:$0xf]
      %v6356 = vld [vmem:[%s6350 + $0x14] sm:$0xf]
      %v6357 = vld [vmem:[%s6350 + $0x18] sm:$0xf]
      %v6358 = vld [vmem:[%s6350 + $0x1c] sm:$0xf]
      %v6359 = vld [vmem:[%s6350 + $0x20] sm:$0xf]
      %v6360 = vld [vmem:[%s6350 + $0x24] sm:$0xf]
      %v6361 = vld [vmem:[%s6350 + $0x28] sm:$0xf]
      %v6362 = vld [vmem:[%s6350 + $0x2c] sm:$0xf]
      %v6363 = vld [vmem:[%s6350 + $0x30] sm:$0xf]
      %v6364 = vld [vmem:[%s6350 + $0x34] sm:$0xf]
      %v6365 = vld [vmem:[%s6350 + $0x38] sm:$0xf]
      %v6366 = vld [vmem:[%s6350 + $0x3c] sm:$0xf]
      %v6399 = vunpack.c.l.b16 %v6318
      %v6400 = vunpack.c.l.b16 %v6319
      %v6401 = vunpack.c.l.b16 %v6320
      %v6402 = vunpack.c.l.b16 %v6321
      %v6403 = vunpack.c.l.b16 %v6322
      %v6404 = vunpack.c.l.b16 %v6323
      %v6405 = vunpack.c.l.b16 %v6324
      %v6406 = vunpack.c.l.b16 %v6325
      %v6407 = vunpack.c.l.b16 %v6326
      %v6408 = vunpack.c.l.b16 %v6327
      %v6409 = vunpack.c.l.b16 %v6328
      %v6410 = vunpack.c.l.b16 %v6329
      %v6411 = vunpack.c.l.b16 %v6330
      %v6412 = vunpack.c.l.b16 %v6331
      %v6413 = vunpack.c.l.b16 %v6332
      %v6414 = vunpack.c.l.b16 %v6333
      %v6415 = vunpack.c.l.b16 %v6334
      %v6416 = vunpack.c.l.b16 %v6335
      %v6417 = vunpack.c.l.b16 %v6336
      %v6418 = vunpack.c.l.b16 %v6337
      %v6419 = vunpack.c.l.b16 %v6338
      %v6420 = vunpack.c.l.b16 %v6339
      %v6421 = vunpack.c.l.b16 %v6340
      %v6422 = vunpack.c.l.b16 %v6341
      %v6423 = vunpack.c.l.b16 %v6342
      %v6424 = vunpack.c.l.b16 %v6343
      %v6425 = vunpack.c.l.b16 %v6344
      %v6426 = vunpack.c.l.b16 %v6345
      %v6427 = vunpack.c.l.b16 %v6346
      %v6428 = vunpack.c.l.b16 %v6347
      %v6429 = vunpack.c.l.b16 %v6348
      %v6430 = vunpack.c.l.b16 %v6349
      %v6431 = vpack.c.b16 %v6400, %v6399
      %v6432 = vpack.c.b16 %v6402, %v6401
      %v6433 = vpack.c.b16 %v6404, %v6403
      %v6434 = vpack.c.b16 %v6406, %v6405
      %v6435 = vpack.c.b16 %v6408, %v6407
      %v6436 = vpack.c.b16 %v6410, %v6409
      %v6437 = vpack.c.b16 %v6412, %v6411
      %v6438 = vpack.c.b16 %v6414, %v6413
      %v6439 = vpack.c.b16 %v6416, %v6415
      %v6440 = vpack.c.b16 %v6418, %v6417
      %v6441 = vpack.c.b16 %v6420, %v6419
      %v6442 = vpack.c.b16 %v6422, %v6421
      %v6443 = vpack.c.b16 %v6424, %v6423
      %v6444 = vpack.c.b16 %v6426, %v6425
      %v6445 = vpack.c.b16 %v6428, %v6427
      %v6446 = vpack.c.b16 %v6430, %v6429
      %v6479 = vunpack.c.l.b16 %v6351
      %v6480 = vunpack.c.l.b16 %v6352
      %v6481 = vunpack.c.l.b16 %v6353
      %v6482 = vunpack.c.l.b16 %v6354
      %v6483 = vunpack.c.l.b16 %v6355
      %v6484 = vunpack.c.l.b16 %v6356
      %v6485 = vunpack.c.l.b16 %v6357
      %v6486 = vunpack.c.l.b16 %v6358
      %v6487 = vunpack.c.l.b16 %v6359
      %v6488 = vunpack.c.l.b16 %v6360
      %v6489 = vunpack.c.l.b16 %v6361
      %v6490 = vunpack.c.l.b16 %v6362
      %v6491 = vunpack.c.l.b16 %v6363
      %v6492 = vunpack.c.l.b16 %v6364
      %v6493 = vunpack.c.l.b16 %v6365
      %v6494 = vunpack.c.l.b16 %v6366
      %v6495 = vpack.c.b16 %v6480, %v6479
      %v6496 = vpack.c.b16 %v6482, %v6481
      %v6497 = vpack.c.b16 %v6484, %v6483
      %v6498 = vpack.c.b16 %v6486, %v6485
      %v6499 = vpack.c.b16 %v6488, %v6487
      %v6500 = vpack.c.b16 %v6490, %v6489
      %v6501 = vpack.c.b16 %v6492, %v6491
      %v6502 = vpack.c.b16 %v6494, %v6493
      %6511 = vmatpush.bf16.msra.mxu0 %v6502
      %6512 = vmatpush.bf16.msra.mxu0 %v6501
      %6513 = vmatpush.bf16.msra.mxu0 %v6500
      %6514 = vmatpush.bf16.msra.mxu0 %v6499
      %6515 = vmatpush.bf16.msra.mxu0 %v6498
      %6516 = vmatpush.bf16.msra.mxu0 %v6497
      %6517 = vmatpush.bf16.msra.mxu0 %v6496
      %6518 = vmatpush.bf16.msra.mxu0 %v6495
      %6519 = vmatmul.bf16.gmra.mxu0 %v6431
      %v6520 = vpop.f32.mrf.mxu0
      %v6521 = vadd.f32 0.0, %v6520
      %v6522 = vpop.f32.mrf.mxu0
      %v6523 = vadd.f32 0.0, %v6522
      %6524 = vmatmul.bf16.gmra.mxu0 %v6432
      %v6525 = vpop.f32.mrf.mxu0
      %v6526 = vadd.f32 0.0, %v6525
      %v6527 = vpop.f32.mrf.mxu0
      %v6528 = vadd.f32 0.0, %v6527
      %6529 = vmatmul.bf16.gmra.mxu0 %v6433
      %v6530 = vpop.f32.mrf.mxu0
      %v6531 = vadd.f32 0.0, %v6530
      %v6532 = vpop.f32.mrf.mxu0
      %v6533 = vadd.f32 0.0, %v6532
      %6534 = vmatmul.bf16.gmra.mxu0 %v6434
      %v6535 = vpop.f32.mrf.mxu0
      %v6536 = vadd.f32 0.0, %v6535
      %v6537 = vpop.f32.mrf.mxu0
      %v6538 = vadd.f32 0.0, %v6537
      %6539 = vmatmul.bf16.gmra.mxu0 %v6435
      %v6540 = vpop.f32.mrf.mxu0
      %v6541 = vadd.f32 0.0, %v6540
      %v6542 = vpop.f32.mrf.mxu0
      %v6543 = vadd.f32 0.0, %v6542
      %6544 = vmatmul.bf16.gmra.mxu0 %v6436
      %v6545 = vpop.f32.mrf.mxu0
      %v6546 = vadd.f32 0.0, %v6545
      %v6547 = vpop.f32.mrf.mxu0
      %v6548 = vadd.f32 0.0, %v6547
      %6549 = vmatmul.bf16.gmra.mxu0 %v6437
      %v6550 = vpop.f32.mrf.mxu0
      %v6551 = vadd.f32 0.0, %v6550
      %v6552 = vpop.f32.mrf.mxu0
      %v6553 = vadd.f32 0.0, %v6552
      %6554 = vmatmul.bf16.gmra.mxu0 %v6438
      %v6555 = vpop.f32.mrf.mxu0
      %v6556 = vadd.f32 0.0, %v6555
      %v6557 = vpop.f32.mrf.mxu0
      %v6558 = vadd.f32 0.0, %v6557
      %6559 = vmatmul.bf16.gmra.mxu0 %v6439
      %v6560 = vpop.f32.mrf.mxu0
      %v6561 = vadd.f32 0.0, %v6560
      %v6562 = vpop.f32.mrf.mxu0
      %v6563 = vadd.f32 0.0, %v6562
      %6564 = vmatmul.bf16.gmra.mxu0 %v6440
      %v6565 = vpop.f32.mrf.mxu0
      %v6566 = vadd.f32 0.0, %v6565
      %v6567 = vpop.f32.mrf.mxu0
      %v6568 = vadd.f32 0.0, %v6567
      %6569 = vmatmul.bf16.gmra.mxu0 %v6441
      %v6570 = vpop.f32.mrf.mxu0
      %v6571 = vadd.f32 0.0, %v6570
      %v6572 = vpop.f32.mrf.mxu0
      %v6573 = vadd.f32 0.0, %v6572
      %6574 = vmatmul.bf16.gmra.mxu0 %v6442
      %v6575 = vpop.f32.mrf.mxu0
      %v6576 = vadd.f32 0.0, %v6575
      %v6577 = vpop.f32.mrf.mxu0
      %v6578 = vadd.f32 0.0, %v6577
      %6579 = vmatmul.bf16.gmra.mxu0 %v6443
      %v6580 = vpop.f32.mrf.mxu0
      %v6581 = vadd.f32 0.0, %v6580
      %v6582 = vpop.f32.mrf.mxu0
      %v6583 = vadd.f32 0.0, %v6582
      %6584 = vmatmul.bf16.gmra.mxu0 %v6444
      %v6585 = vpop.f32.mrf.mxu0
      %v6586 = vadd.f32 0.0, %v6585
      %v6587 = vpop.f32.mrf.mxu0
      %v6588 = vadd.f32 0.0, %v6587
      %6589 = vmatmul.bf16.gmra.mxu0 %v6445
      %v6590 = vpop.f32.mrf.mxu0
      %v6591 = vadd.f32 0.0, %v6590
      %v6592 = vpop.f32.mrf.mxu0
      %v6593 = vadd.f32 0.0, %v6592
      %6594 = vmatmul.bf16.gmra.mxu0 %v6446
      %v6595 = vpop.f32.mrf.mxu0
      %v6596 = vadd.f32 0.0, %v6595
      %v6597 = vpop.f32.mrf.mxu0
      %v6598 = vadd.f32 0.0, %v6597
      %6599 = vdwg.mxu0
      %v6600 = vadd.f32 %v6286, %v6521
      %v6601 = vadd.f32 %v6287, %v6523
      %v6602 = vadd.f32 %v6288, %v6526
      %v6603 = vadd.f32 %v6289, %v6528
      %v6604 = vadd.f32 %v6290, %v6531
      %v6605 = vadd.f32 %v6291, %v6533
      %v6606 = vadd.f32 %v6292, %v6536
      %v6607 = vadd.f32 %v6293, %v6538
      %v6608 = vadd.f32 %v6294, %v6541
      %v6609 = vadd.f32 %v6295, %v6543
      %v6610 = vadd.f32 %v6296, %v6546
      %v6611 = vadd.f32 %v6297, %v6548
      %v6612 = vadd.f32 %v6298, %v6551
      %v6613 = vadd.f32 %v6299, %v6553
      %v6614 = vadd.f32 %v6300, %v6556
      %v6615 = vadd.f32 %v6301, %v6558
      %v6616 = vadd.f32 %v6302, %v6561
      %v6617 = vadd.f32 %v6303, %v6563
      %v6618 = vadd.f32 %v6304, %v6566
      %v6619 = vadd.f32 %v6305, %v6568
      %v6620 = vadd.f32 %v6306, %v6571
      %v6621 = vadd.f32 %v6307, %v6573
      %v6622 = vadd.f32 %v6308, %v6576
      %v6623 = vadd.f32 %v6309, %v6578
      %v6624 = vadd.f32 %v6310, %v6581
      %v6625 = vadd.f32 %v6311, %v6583
      %v6626 = vadd.f32 %v6312, %v6586
      %v6627 = vadd.f32 %v6313, %v6588
      %v6628 = vadd.f32 %v6314, %v6591
      %v6629 = vadd.f32 %v6315, %v6593
      %v6630 = vadd.f32 %v6316, %v6596
      %v6631 = vadd.f32 %v6317, %v6598
      %v6632 = vld [vmem:[%s4891] sm:$0xf]
      %v6633 = vld [vmem:[%s4891 + $0x4] sm:$0xf]
      %v6634 = vld [vmem:[%s4891 + $0x8] sm:$0x1]
      %v6635 = vld [vmem:[%s4891 + $0xc] sm:$0xf]
      %v6636 = vld [vmem:[%s4891 + $0x10] sm:$0xf]
      %v6637 = vld [vmem:[%s4891 + $0x14] sm:$0x1]
      %v6638 = vld [vmem:[%s4891 + $0x18] sm:$0xf]
      %v6639 = vld [vmem:[%s4891 + $0x1c] sm:$0xf]
      %v6640 = vld [vmem:[%s4891 + $0x20] sm:$0x1]
      %v6641 = vld [vmem:[%s4891 + $0x24] sm:$0xf]
      %v6642 = vld [vmem:[%s4891 + $0x28] sm:$0xf]
      %v6643 = vld [vmem:[%s4891 + $0x2c] sm:$0x1]
      %v6644 = vld [vmem:[%s4891 + $0x30] sm:$0xf]
      %v6645 = vld [vmem:[%s4891 + $0x34] sm:$0xf]
      %v6646 = vld [vmem:[%s4891 + $0x38] sm:$0x1]
      %v6647 = vld [vmem:[%s4891 + $0x3c] sm:$0xf]
      %v6648 = vld [vmem:[%s4891 + $0x40] sm:$0xf]
      %v6649 = vld [vmem:[%s4891 + $0x44] sm:$0x1]
      %v6650 = vld [vmem:[%s4891 + $0x48] sm:$0xf]
      %v6651 = vld [vmem:[%s4891 + $0x4c] sm:$0xf]
      %v6652 = vld [vmem:[%s4891 + $0x50] sm:$0x1]
      %v6653 = vld [vmem:[%s4891 + $0x54] sm:$0xf]
      %v6654 = vld [vmem:[%s4891 + $0x58] sm:$0xf]
      %v6655 = vld [vmem:[%s4891 + $0x5c] sm:$0x1]
      %v6656 = vld [vmem:[%s4891 + $0x60] sm:$0xf]
      %v6657 = vld [vmem:[%s4891 + $0x64] sm:$0xf]
      %v6658 = vld [vmem:[%s4891 + $0x68] sm:$0x1]
      %v6659 = vld [vmem:[%s4891 + $0x6c] sm:$0xf]
      %v6660 = vld [vmem:[%s4891 + $0x70] sm:$0xf]
      %v6661 = vld [vmem:[%s4891 + $0x74] sm:$0x1]
      %v6662 = vld [vmem:[%s4891 + $0x78] sm:$0xf]
      %v6663 = vld [vmem:[%s4891 + $0x7c] sm:$0xf]
      %v6664 = vld [vmem:[%s4891 + $0x80] sm:$0x1]
      %v6665 = vld [vmem:[%s4891 + $0x84] sm:$0xf]
      %v6666 = vld [vmem:[%s4891 + $0x88] sm:$0xf]
      %v6667 = vld [vmem:[%s4891 + $0x8c] sm:$0x1]
      %v6668 = vld [vmem:[%s4891 + $0x90] sm:$0xf]
      %v6669 = vld [vmem:[%s4891 + $0x94] sm:$0xf]
      %v6670 = vld [vmem:[%s4891 + $0x98] sm:$0x1]
      %v6671 = vld [vmem:[%s4891 + $0x9c] sm:$0xf]
      %v6672 = vld [vmem:[%s4891 + $0xa0] sm:$0xf]
      %v6673 = vld [vmem:[%s4891 + $0xa4] sm:$0x1]
      %v6674 = vld [vmem:[%s4891 + $0xa8] sm:$0xf]
      %v6675 = vld [vmem:[%s4891 + $0xac] sm:$0xf]
      %v6676 = vld [vmem:[%s4891 + $0xb0] sm:$0x1]
      %v6677 = vld [vmem:[%s4891 + $0xb4] sm:$0xf]
      %v6678 = vld [vmem:[%s4891 + $0xb8] sm:$0xf]
      %v6679 = vld [vmem:[%s4891 + $0xbc] sm:$0x1]
      %v6681 = vshrl.u32 %v6632, 16
      %v6683 = vrot.slane %v6681, 4
      %v6684 = vshll.u32 %v6632, 16
      %v6686 = vrot.slane %v6684, 5
      %v6687 = vor.u32 %v6683, %v6686
      %v6688 = vrot.slane %v6687, 4
      %v6690 = vshll.u32 %v6633, 16
      %v6692 = vrot.slane %v6690, 5
      %v6693 = vsel %vm319, %v6688, %v6692
      %v6694 = vshrl.u32 %v6633, 16
      %v6696 = vrot.slane %v6694, 4
      %v6697 = vor.u32 %v6696, %v6692
      %v6698 = vrot.slane %v6697, 4
      %v6700 = vshll.u32 %v6634, 16
      %v6702 = vrot.slane %v6700, 5
      %v6703 = vsel %vm319, %v6698, %v6702
      %v6705 = vshrl.u32 %v6635, 16
      %v6707 = vrot.slane %v6705, 4
      %v6708 = vshll.u32 %v6635, 16
      %v6710 = vrot.slane %v6708, 5
      %v6711 = vor.u32 %v6707, %v6710
      %v6712 = vrot.slane %v6711, 4
      %v6714 = vshll.u32 %v6636, 16
      %v6716 = vrot.slane %v6714, 5
      %v6717 = vsel %vm319, %v6712, %v6716
      %v6718 = vshrl.u32 %v6636, 16
      %v6720 = vrot.slane %v6718, 4
      %v6721 = vor.u32 %v6720, %v6716
      %v6722 = vrot.slane %v6721, 4
      %v6724 = vshll.u32 %v6637, 16
      %v6726 = vrot.slane %v6724, 5
      %v6727 = vsel %vm319, %v6722, %v6726
      %v6729 = vshrl.u32 %v6638, 16
      %v6731 = vrot.slane %v6729, 4
      %v6732 = vshll.u32 %v6638, 16
      %v6734 = vrot.slane %v6732, 5
      %v6735 = vor.u32 %v6731, %v6734
      %v6736 = vrot.slane %v6735, 4
      %v6738 = vshll.u32 %v6639, 16
      %v6740 = vrot.slane %v6738, 5
      %v6741 = vsel %vm319, %v6736, %v6740
      %v6742 = vshrl.u32 %v6639, 16
      %v6744 = vrot.slane %v6742, 4
      %v6745 = vor.u32 %v6744, %v6740
      %v6746 = vrot.slane %v6745, 4
      %v6748 = vshll.u32 %v6640, 16
      %v6750 = vrot.slane %v6748, 5
      %v6751 = vsel %vm319, %v6746, %v6750
      %v6753 = vshrl.u32 %v6641, 16
      %v6755 = vrot.slane %v6753, 4
      %v6756 = vshll.u32 %v6641, 16
      %v6758 = vrot.slane %v6756, 5
      %v6759 = vor.u32 %v6755, %v6758
      %v6760 = vrot.slane %v6759, 4
      %v6762 = vshll.u32 %v6642, 16
      %v6764 = vrot.slane %v6762, 5
      %v6765 = vsel %vm319, %v6760, %v6764
      %v6766 = vshrl.u32 %v6642, 16
      %v6768 = vrot.slane %v6766, 4
      %v6769 = vor.u32 %v6768, %v6764
      %v6770 = vrot.slane %v6769, 4
      %v6772 = vshll.u32 %v6643, 16
      %v6774 = vrot.slane %v6772, 5
      %v6775 = vsel %vm319, %v6770, %v6774
      %v6777 = vshrl.u32 %v6644, 16
      %v6779 = vrot.slane %v6777, 4
      %v6780 = vshll.u32 %v6644, 16
      %v6782 = vrot.slane %v6780, 5
      %v6783 = vor.u32 %v6779, %v6782
      %v6784 = vrot.slane %v6783, 4
      %v6786 = vshll.u32 %v6645, 16
      %v6788 = vrot.slane %v6786, 5
      %v6789 = vsel %vm319, %v6784, %v6788
      %v6790 = vshrl.u32 %v6645, 16
      %v6792 = vrot.slane %v6790, 4
      %v6793 = vor.u32 %v6792, %v6788
      %v6794 = vrot.slane %v6793, 4
      %v6796 = vshll.u32 %v6646, 16
      %v6798 = vrot.slane %v6796, 5
      %v6799 = vsel %vm319, %v6794, %v6798
      %v6801 = vshrl.u32 %v6647, 16
      %v6803 = vrot.slane %v6801, 4
      %v6804 = vshll.u32 %v6647, 16
      %v6806 = vrot.slane %v6804, 5
      %v6807 = vor.u32 %v6803, %v6806
      %v6808 = vrot.slane %v6807, 4
      %v6810 = vshll.u32 %v6648, 16
      %v6812 = vrot.slane %v6810, 5
      %v6813 = vsel %vm319, %v6808, %v6812
      %v6814 = vshrl.u32 %v6648, 16
      %v6816 = vrot.slane %v6814, 4
      %v6817 = vor.u32 %v6816, %v6812
      %v6818 = vrot.slane %v6817, 4
      %v6820 = vshll.u32 %v6649, 16
      %v6822 = vrot.slane %v6820, 5
      %v6823 = vsel %vm319, %v6818, %v6822
      %v6825 = vshrl.u32 %v6650, 16
      %v6827 = vrot.slane %v6825, 4
      %v6828 = vshll.u32 %v6650, 16
      %v6830 = vrot.slane %v6828, 5
      %v6831 = vor.u32 %v6827, %v6830
      %v6832 = vrot.slane %v6831, 4
      %v6834 = vshll.u32 %v6651, 16
      %v6836 = vrot.slane %v6834, 5
      %v6837 = vsel %vm319, %v6832, %v6836
      %v6838 = vshrl.u32 %v6651, 16
      %v6840 = vrot.slane %v6838, 4
      %v6841 = vor.u32 %v6840, %v6836
      %v6842 = vrot.slane %v6841, 4
      %v6844 = vshll.u32 %v6652, 16
      %v6846 = vrot.slane %v6844, 5
      %v6847 = vsel %vm319, %v6842, %v6846
      %v6849 = vshrl.u32 %v6653, 16
      %v6851 = vrot.slane %v6849, 4
      %v6852 = vshll.u32 %v6653, 16
      %v6854 = vrot.slane %v6852, 5
      %v6855 = vor.u32 %v6851, %v6854
      %v6856 = vrot.slane %v6855, 4
      %v6858 = vshll.u32 %v6654, 16
      %v6860 = vrot.slane %v6858, 5
      %v6861 = vsel %vm319, %v6856, %v6860
      %v6862 = vshrl.u32 %v6654, 16
      %v6864 = vrot.slane %v6862, 4
      %v6865 = vor.u32 %v6864, %v6860
      %v6866 = vrot.slane %v6865, 4
      %v6868 = vshll.u32 %v6655, 16
      %v6870 = vrot.slane %v6868, 5
      %v6871 = vsel %vm319, %v6866, %v6870
      %v6873 = vshrl.u32 %v6656, 16
      %v6875 = vrot.slane %v6873, 4
      %v6876 = vshll.u32 %v6656, 16
      %v6878 = vrot.slane %v6876, 5
      %v6879 = vor.u32 %v6875, %v6878
      %v6880 = vrot.slane %v6879, 4
      %v6882 = vshll.u32 %v6657, 16
      %v6884 = vrot.slane %v6882, 5
      %v6885 = vsel %vm319, %v6880, %v6884
      %v6886 = vshrl.u32 %v6657, 16
      %v6888 = vrot.slane %v6886, 4
      %v6889 = vor.u32 %v6888, %v6884
      %v6890 = vrot.slane %v6889, 4
      %v6892 = vshll.u32 %v6658, 16
      %v6894 = vrot.slane %v6892, 5
      %v6895 = vsel %vm319, %v6890, %v6894
      %v6897 = vshrl.u32 %v6659, 16
      %v6899 = vrot.slane %v6897, 4
      %v6900 = vshll.u32 %v6659, 16
      %v6902 = vrot.slane %v6900, 5
      %v6903 = vor.u32 %v6899, %v6902
      %v6904 = vrot.slane %v6903, 4
      %v6906 = vshll.u32 %v6660, 16
      %v6908 = vrot.slane %v6906, 5
      %v6909 = vsel %vm319, %v6904, %v6908
      %v6910 = vshrl.u32 %v6660, 16
      %v6912 = vrot.slane %v6910, 4
      %v6913 = vor.u32 %v6912, %v6908
      %v6914 = vrot.slane %v6913, 4
      %v6916 = vshll.u32 %v6661, 16
      %v6918 = vrot.slane %v6916, 5
      %v6919 = vsel %vm319, %v6914, %v6918
      %v6921 = vshrl.u32 %v6662, 16
      %v6923 = vrot.slane %v6921, 4
      %v6924 = vshll.u32 %v6662, 16
      %v6926 = vrot.slane %v6924, 5
      %v6927 = vor.u32 %v6923, %v6926
      %v6928 = vrot.slane %v6927, 4
      %v6930 = vshll.u32 %v6663, 16
      %v6932 = vrot.slane %v6930, 5
      %v6933 = vsel %vm319, %v6928, %v6932
      %v6934 = vshrl.u32 %v6663, 16
      %v6936 = vrot.slane %v6934, 4
      %v6937 = vor.u32 %v6936, %v6932
      %v6938 = vrot.slane %v6937, 4
      %v6940 = vshll.u32 %v6664, 16
      %v6942 = vrot.slane %v6940, 5
      %v6943 = vsel %vm319, %v6938, %v6942
      %v6945 = vshrl.u32 %v6665, 16
      %v6947 = vrot.slane %v6945, 4
      %v6948 = vshll.u32 %v6665, 16
      %v6950 = vrot.slane %v6948, 5
      %v6951 = vor.u32 %v6947, %v6950
      %v6952 = vrot.slane %v6951, 4
      %v6954 = vshll.u32 %v6666, 16
      %v6956 = vrot.slane %v6954, 5
      %v6957 = vsel %vm319, %v6952, %v6956
      %v6958 = vshrl.u32 %v6666, 16
      %v6960 = vrot.slane %v6958, 4
      %v6961 = vor.u32 %v6960, %v6956
      %v6962 = vrot.slane %v6961, 4
      %v6964 = vshll.u32 %v6667, 16
      %v6966 = vrot.slane %v6964, 5
      %v6967 = vsel %vm319, %v6962, %v6966
      %v6969 = vshrl.u32 %v6668, 16
      %v6971 = vrot.slane %v6969, 4
      %v6972 = vshll.u32 %v6668, 16
      %v6974 = vrot.slane %v6972, 5
      %v6975 = vor.u32 %v6971, %v6974
      %v6976 = vrot.slane %v6975, 4
      %v6978 = vshll.u32 %v6669, 16
      %v6980 = vrot.slane %v6978, 5
      %v6981 = vsel %vm319, %v6976, %v6980
      %v6982 = vshrl.u32 %v6669, 16
      %v6984 = vrot.slane %v6982, 4
      %v6985 = vor.u32 %v6984, %v6980
      %v6986 = vrot.slane %v6985, 4
      %v6988 = vshll.u32 %v6670, 16
      %v6990 = vrot.slane %v6988, 5
      %v6991 = vsel %vm319, %v6986, %v6990
      %v6993 = vshrl.u32 %v6671, 16
      %v6995 = vrot.slane %v6993, 4
      %v6996 = vshll.u32 %v6671, 16
      %v6998 = vrot.slane %v6996, 5
      %v6999 = vor.u32 %v6995, %v6998
      %v7000 = vrot.slane %v6999, 4
      %v7002 = vshll.u32 %v6672, 16
      %v7004 = vrot.slane %v7002, 5
      %v7005 = vsel %vm319, %v7000, %v7004
      %v7006 = vshrl.u32 %v6672, 16
      %v7008 = vrot.slane %v7006, 4
      %v7009 = vor.u32 %v7008, %v7004
      %v7010 = vrot.slane %v7009, 4
      %v7012 = vshll.u32 %v6673, 16
      %v7014 = vrot.slane %v7012, 5
      %v7015 = vsel %vm319, %v7010, %v7014
      %v7017 = vshrl.u32 %v6674, 16
      %v7019 = vrot.slane %v7017, 4
      %v7020 = vshll.u32 %v6674, 16
      %v7022 = vrot.slane %v7020, 5
      %v7023 = vor.u32 %v7019, %v7022
      %v7024 = vrot.slane %v7023, 4
      %v7026 = vshll.u32 %v6675, 16
      %v7028 = vrot.slane %v7026, 5
      %v7029 = vsel %vm319, %v7024, %v7028
      %v7030 = vshrl.u32 %v6675, 16
      %v7032 = vrot.slane %v7030, 4
      %v7033 = vor.u32 %v7032, %v7028
      %v7034 = vrot.slane %v7033, 4
      %v7036 = vshll.u32 %v6676, 16
      %v7038 = vrot.slane %v7036, 5
      %v7039 = vsel %vm319, %v7034, %v7038
      %v7041 = vshrl.u32 %v6677, 16
      %v7043 = vrot.slane %v7041, 4
      %v7044 = vshll.u32 %v6677, 16
      %v7046 = vrot.slane %v7044, 5
      %v7047 = vor.u32 %v7043, %v7046
      %v7048 = vrot.slane %v7047, 4
      %v7050 = vshll.u32 %v6678, 16
      %v7052 = vrot.slane %v7050, 5
      %v7053 = vsel %vm319, %v7048, %v7052
      %v7054 = vshrl.u32 %v6678, 16
      %v7056 = vrot.slane %v7054, 4
      %v7057 = vor.u32 %v7056, %v7052
      %v7058 = vrot.slane %v7057, 4
      %v7060 = vshll.u32 %v6679, 16
      %v7062 = vrot.slane %v7060, 5
      %v7063 = vsel %vm319, %v7058, %v7062
      %s7064 = scalar_lea.vmem %s2, 256
      %v7065 = vld [vmem:[%s7064] sm:$0xf]
      %v7066 = vld [vmem:[%s7064 + $0x4] sm:$0xf]
      %v7067 = vld [vmem:[%s7064 + $0x8] sm:$0xf]
      %v7068 = vld [vmem:[%s7064 + $0xc] sm:$0xf]
      %v7069 = vld [vmem:[%s7064 + $0x10] sm:$0xf]
      %v7070 = vld [vmem:[%s7064 + $0x14] sm:$0xf]
      %v7071 = vld [vmem:[%s7064 + $0x18] sm:$0xf]
      %v7072 = vld [vmem:[%s7064 + $0x1c] sm:$0xf]
      %v7073 = vld [vmem:[%s7064 + $0x20] sm:$0xf]
      %v7074 = vld [vmem:[%s7064 + $0x24] sm:$0xf]
      %v7075 = vld [vmem:[%s7064 + $0x28] sm:$0xf]
      %v7076 = vld [vmem:[%s7064 + $0x2c] sm:$0xf]
      %v7077 = vld [vmem:[%s7064 + $0x30] sm:$0xf]
      %v7078 = vld [vmem:[%s7064 + $0x34] sm:$0xf]
      %v7079 = vld [vmem:[%s7064 + $0x38] sm:$0xf]
      %v7080 = vld [vmem:[%s7064 + $0x3c] sm:$0xf]
      %v7081 = vunpack.c.l.b16 %v6693
      %v7082 = vunpack.c.l.b16 %v6703
      %v7083 = vunpack.c.l.b16 %v6717
      %v7084 = vunpack.c.l.b16 %v6727
      %v7085 = vunpack.c.l.b16 %v6741
      %v7086 = vunpack.c.l.b16 %v6751
      %v7087 = vunpack.c.l.b16 %v6765
      %v7088 = vunpack.c.l.b16 %v6775
      %v7089 = vunpack.c.l.b16 %v6789
      %v7090 = vunpack.c.l.b16 %v6799
      %v7091 = vunpack.c.l.b16 %v6813
      %v7092 = vunpack.c.l.b16 %v6823
      %v7093 = vunpack.c.l.b16 %v6837
      %v7094 = vunpack.c.l.b16 %v6847
      %v7095 = vunpack.c.l.b16 %v6861
      %v7096 = vunpack.c.l.b16 %v6871
      %v7097 = vunpack.c.l.b16 %v6885
      %v7098 = vunpack.c.l.b16 %v6895
      %v7099 = vunpack.c.l.b16 %v6909
      %v7100 = vunpack.c.l.b16 %v6919
      %v7101 = vunpack.c.l.b16 %v6933
      %v7102 = vunpack.c.l.b16 %v6943
      %v7103 = vunpack.c.l.b16 %v6957
      %v7104 = vunpack.c.l.b16 %v6967
      %v7105 = vunpack.c.l.b16 %v6981
      %v7106 = vunpack.c.l.b16 %v6991
      %v7107 = vunpack.c.l.b16 %v7005
      %v7108 = vunpack.c.l.b16 %v7015
      %v7109 = vunpack.c.l.b16 %v7029
      %v7110 = vunpack.c.l.b16 %v7039
      %v7111 = vunpack.c.l.b16 %v7053
      %v7112 = vunpack.c.l.b16 %v7063
      %v7113 = vpack.c.b16 %v7082, %v7081
      %v7114 = vpack.c.b16 %v7084, %v7083
      %v7115 = vpack.c.b16 %v7086, %v7085
      %v7116 = vpack.c.b16 %v7088, %v7087
      %v7117 = vpack.c.b16 %v7090, %v7089
      %v7118 = vpack.c.b16 %v7092, %v7091
      %v7119 = vpack.c.b16 %v7094, %v7093
      %v7120 = vpack.c.b16 %v7096, %v7095
      %v7121 = vpack.c.b16 %v7098, %v7097
      %v7122 = vpack.c.b16 %v7100, %v7099
      %v7123 = vpack.c.b16 %v7102, %v7101
      %v7124 = vpack.c.b16 %v7104, %v7103
      %v7125 = vpack.c.b16 %v7106, %v7105
      %v7126 = vpack.c.b16 %v7108, %v7107
      %v7127 = vpack.c.b16 %v7110, %v7109
      %v7128 = vpack.c.b16 %v7112, %v7111
      %v7161 = vunpack.c.l.b16 %v7065
      %v7162 = vunpack.c.l.b16 %v7066
      %v7163 = vunpack.c.l.b16 %v7067
      %v7164 = vunpack.c.l.b16 %v7068
      %v7165 = vunpack.c.l.b16 %v7069
      %v7166 = vunpack.c.l.b16 %v7070
      %v7167 = vunpack.c.l.b16 %v7071
      %v7168 = vunpack.c.l.b16 %v7072
      %v7169 = vunpack.c.l.b16 %v7073
      %v7170 = vunpack.c.l.b16 %v7074
      %v7171 = vunpack.c.l.b16 %v7075
      %v7172 = vunpack.c.l.b16 %v7076
      %v7173 = vunpack.c.l.b16 %v7077
      %v7174 = vunpack.c.l.b16 %v7078
      %v7175 = vunpack.c.l.b16 %v7079
      %v7176 = vunpack.c.l.b16 %v7080
      %v7177 = vpack.c.b16 %v7162, %v7161
      %v7178 = vpack.c.b16 %v7164, %v7163
      %v7179 = vpack.c.b16 %v7166, %v7165
      %v7180 = vpack.c.b16 %v7168, %v7167
      %v7181 = vpack.c.b16 %v7170, %v7169
      %v7182 = vpack.c.b16 %v7172, %v7171
      %v7183 = vpack.c.b16 %v7174, %v7173
      %v7184 = vpack.c.b16 %v7176, %v7175
      %7193 = vmatpush.bf16.msra.mxu0 %v7184
      %7194 = vmatpush.bf16.msra.mxu0 %v7183
      %7195 = vmatpush.bf16.msra.mxu0 %v7182
      %7196 = vmatpush.bf16.msra.mxu0 %v7181
      %7197 = vmatpush.bf16.msra.mxu0 %v7180
      %7198 = vmatpush.bf16.msra.mxu0 %v7179
      %7199 = vmatpush.bf16.msra.mxu0 %v7178
      %7200 = vmatpush.bf16.msra.mxu0 %v7177
      %7201 = vmatmul.bf16.gmra.mxu0 %v7113
      %v7202 = vpop.f32.mrf.mxu0
      %v7203 = vadd.f32 0.0, %v7202
      %v7204 = vpop.f32.mrf.mxu0
      %v7205 = vadd.f32 0.0, %v7204
      %7206 = vmatmul.bf16.gmra.mxu0 %v7114
      %v7207 = vpop.f32.mrf.mxu0
      %v7208 = vadd.f32 0.0, %v7207
      %v7209 = vpop.f32.mrf.mxu0
      %v7210 = vadd.f32 0.0, %v7209
      %7211 = vmatmul.bf16.gmra.mxu0 %v7115
      %v7212 = vpop.f32.mrf.mxu0
      %v7213 = vadd.f32 0.0, %v7212
      %v7214 = vpop.f32.mrf.mxu0
      %v7215 = vadd.f32 0.0, %v7214
      %7216 = vmatmul.bf16.gmra.mxu0 %v7116
      %v7217 = vpop.f32.mrf.mxu0
      %v7218 = vadd.f32 0.0, %v7217
      %v7219 = vpop.f32.mrf.mxu0
      %v7220 = vadd.f32 0.0, %v7219
      %7221 = vmatmul.bf16.gmra.mxu0 %v7117
      %v7222 = vpop.f32.mrf.mxu0
      %v7223 = vadd.f32 0.0, %v7222
      %v7224 = vpop.f32.mrf.mxu0
      %v7225 = vadd.f32 0.0, %v7224
      %7226 = vmatmul.bf16.gmra.mxu0 %v7118
      %v7227 = vpop.f32.mrf.mxu0
      %v7228 = vadd.f32 0.0, %v7227
      %v7229 = vpop.f32.mrf.mxu0
      %v7230 = vadd.f32 0.0, %v7229
      %7231 = vmatmul.bf16.gmra.mxu0 %v7119
      %v7232 = vpop.f32.mrf.mxu0
      %v7233 = vadd.f32 0.0, %v7232
      %v7234 = vpop.f32.mrf.mxu0
      %v7235 = vadd.f32 0.0, %v7234
      %7236 = vmatmul.bf16.gmra.mxu0 %v7120
      %v7237 = vpop.f32.mrf.mxu0
      %v7238 = vadd.f32 0.0, %v7237
      %v7239 = vpop.f32.mrf.mxu0
      %v7240 = vadd.f32 0.0, %v7239
      %7241 = vmatmul.bf16.gmra.mxu0 %v7121
      %v7242 = vpop.f32.mrf.mxu0
      %v7243 = vadd.f32 0.0, %v7242
      %v7244 = vpop.f32.mrf.mxu0
      %v7245 = vadd.f32 0.0, %v7244
      %7246 = vmatmul.bf16.gmra.mxu0 %v7122
      %v7247 = vpop.f32.mrf.mxu0
      %v7248 = vadd.f32 0.0, %v7247
      %v7249 = vpop.f32.mrf.mxu0
      %v7250 = vadd.f32 0.0, %v7249
      %7251 = vmatmul.bf16.gmra.mxu0 %v7123
      %v7252 = vpop.f32.mrf.mxu0
      %v7253 = vadd.f32 0.0, %v7252
      %v7254 = vpop.f32.mrf.mxu0
      %v7255 = vadd.f32 0.0, %v7254
      %7256 = vmatmul.bf16.gmra.mxu0 %v7124
      %v7257 = vpop.f32.mrf.mxu0
      %v7258 = vadd.f32 0.0, %v7257
      %v7259 = vpop.f32.mrf.mxu0
      %v7260 = vadd.f32 0.0, %v7259
      %7261 = vmatmul.bf16.gmra.mxu0 %v7125
      %v7262 = vpop.f32.mrf.mxu0
      %v7263 = vadd.f32 0.0, %v7262
      %v7264 = vpop.f32.mrf.mxu0
      %v7265 = vadd.f32 0.0, %v7264
      %7266 = vmatmul.bf16.gmra.mxu0 %v7126
      %v7267 = vpop.f32.mrf.mxu0
      %v7268 = vadd.f32 0.0, %v7267
      %v7269 = vpop.f32.mrf.mxu0
      %v7270 = vadd.f32 0.0, %v7269
      %7271 = vmatmul.bf16.gmra.mxu0 %v7127
      %v7272 = vpop.f32.mrf.mxu0
      %v7273 = vadd.f32 0.0, %v7272
      %v7274 = vpop.f32.mrf.mxu0
      %v7275 = vadd.f32 0.0, %v7274
      %7276 = vmatmul.bf16.gmra.mxu0 %v7128
      %v7277 = vpop.f32.mrf.mxu0
      %v7278 = vadd.f32 0.0, %v7277
      %v7279 = vpop.f32.mrf.mxu0
      %v7280 = vadd.f32 0.0, %v7279
      %7281 = vdwg.mxu0
      %v7282 = vadd.f32 %v6600, %v7203
      %v7283 = vadd.f32 %v6601, %v7205
      %v7284 = vadd.f32 %v6602, %v7208
      %v7285 = vadd.f32 %v6603, %v7210
      %v7286 = vadd.f32 %v6604, %v7213
      %v7287 = vadd.f32 %v6605, %v7215
      %v7288 = vadd.f32 %v6606, %v7218
      %v7289 = vadd.f32 %v6607, %v7220
      %v7290 = vadd.f32 %v6608, %v7223
      %v7291 = vadd.f32 %v6609, %v7225
      %v7292 = vadd.f32 %v6610, %v7228
      %v7293 = vadd.f32 %v6611, %v7230
      %v7294 = vadd.f32 %v6612, %v7233
      %v7295 = vadd.f32 %v6613, %v7235
      %v7296 = vadd.f32 %v6614, %v7238
      %v7297 = vadd.f32 %v6615, %v7240
      %v7298 = vadd.f32 %v6616, %v7243
      %v7299 = vadd.f32 %v6617, %v7245
      %v7300 = vadd.f32 %v6618, %v7248
      %v7301 = vadd.f32 %v6619, %v7250
      %v7302 = vadd.f32 %v6620, %v7253
      %v7303 = vadd.f32 %v6621, %v7255
      %v7304 = vadd.f32 %v6622, %v7258
      %v7305 = vadd.f32 %v6623, %v7260
      %v7306 = vadd.f32 %v6624, %v7263
      %v7307 = vadd.f32 %v6625, %v7265
      %v7308 = vadd.f32 %v6626, %v7268
      %v7309 = vadd.f32 %v6627, %v7270
      %v7310 = vadd.f32 %v6628, %v7273
      %v7311 = vadd.f32 %v6629, %v7275
      %v7312 = vadd.f32 %v6630, %v7278
      %v7313 = vadd.f32 %v6631, %v7280
      %v7314 = vld [vmem:[%s4891] sm:$0xe]
      %v7315 = vld [vmem:[%s4891 + $0xc] sm:$0xe]
      %v7316 = vld [vmem:[%s4891 + $0x18] sm:$0xe]
      %v7317 = vld [vmem:[%s4891 + $0x24] sm:$0xe]
      %v7318 = vld [vmem:[%s4891 + $0x30] sm:$0xe]
      %v7319 = vld [vmem:[%s4891 + $0x3c] sm:$0xe]
      %v7320 = vld [vmem:[%s4891 + $0x48] sm:$0xe]
      %v7321 = vld [vmem:[%s4891 + $0x54] sm:$0xe]
      %v7322 = vld [vmem:[%s4891 + $0x60] sm:$0xe]
      %v7323 = vld [vmem:[%s4891 + $0x6c] sm:$0xe]
      %v7324 = vld [vmem:[%s4891 + $0x78] sm:$0xe]
      %v7325 = vld [vmem:[%s4891 + $0x84] sm:$0xe]
      %v7326 = vld [vmem:[%s4891 + $0x90] sm:$0xe]
      %v7327 = vld [vmem:[%s4891 + $0x9c] sm:$0xe]
      %v7328 = vld [vmem:[%s4891 + $0xa8] sm:$0xe]
      %v7329 = vld [vmem:[%s4891 + $0xb4] sm:$0xe]
      %v7378 = vrot.slane %v7314, 5
      %v7379 = vrot.slane %v7378, 4
      %v7380 = vrot.slane %v6633, 5
      %v7381 = vsel %vm1205, %v7379, %v7380
      %v7382 = vrot.slane %v7380, 4
      %v7383 = vrot.slane %v6634, 5
      %v7384 = vsel %vm1205, %v7382, %v7383
      %v7385 = vrot.slane %v7315, 5
      %v7386 = vrot.slane %v7385, 4
      %v7387 = vrot.slane %v6636, 5
      %v7388 = vsel %vm1205, %v7386, %v7387
      %v7389 = vrot.slane %v7387, 4
      %v7390 = vrot.slane %v6637, 5
      %v7391 = vsel %vm1205, %v7389, %v7390
      %v7392 = vrot.slane %v7316, 5
      %v7393 = vrot.slane %v7392, 4
      %v7394 = vrot.slane %v6639, 5
      %v7395 = vsel %vm1205, %v7393, %v7394
      %v7396 = vrot.slane %v7394, 4
      %v7397 = vrot.slane %v6640, 5
      %v7398 = vsel %vm1205, %v7396, %v7397
      %v7399 = vrot.slane %v7317, 5
      %v7400 = vrot.slane %v7399, 4
      %v7401 = vrot.slane %v6642, 5
      %v7402 = vsel %vm1205, %v7400, %v7401
      %v7403 = vrot.slane %v7401, 4
      %v7404 = vrot.slane %v6643, 5
      %v7405 = vsel %vm1205, %v7403, %v7404
      %v7406 = vrot.slane %v7318, 5
      %v7407 = vrot.slane %v7406, 4
      %v7408 = vrot.slane %v6645, 5
      %v7409 = vsel %vm1205, %v7407, %v7408
      %v7410 = vrot.slane %v7408, 4
      %v7411 = vrot.slane %v6646, 5
      %v7412 = vsel %vm1205, %v7410, %v7411
      %v7413 = vrot.slane %v7319, 5
      %v7414 = vrot.slane %v7413, 4
      %v7415 = vrot.slane %v6648, 5
      %v7416 = vsel %vm1205, %v7414, %v7415
      %v7417 = vrot.slane %v7415, 4
      %v7418 = vrot.slane %v6649, 5
      %v7419 = vsel %vm1205, %v7417, %v7418
      %v7420 = vrot.slane %v7320, 5
      %v7421 = vrot.slane %v7420, 4
      %v7422 = vrot.slane %v6651, 5
      %v7423 = vsel %vm1205, %v7421, %v7422
      %v7424 = vrot.slane %v7422, 4
      %v7425 = vrot.slane %v6652, 5
      %v7426 = vsel %vm1205, %v7424, %v7425
      %v7427 = vrot.slane %v7321, 5
      %v7428 = vrot.slane %v7427, 4
      %v7429 = vrot.slane %v6654, 5
      %v7430 = vsel %vm1205, %v7428, %v7429
      %v7431 = vrot.slane %v7429, 4
      %v7432 = vrot.slane %v6655, 5
      %v7433 = vsel %vm1205, %v7431, %v7432
      %v7434 = vrot.slane %v7322, 5
      %v7435 = vrot.slane %v7434, 4
      %v7436 = vrot.slane %v6657, 5
      %v7437 = vsel %vm1205, %v7435, %v7436
      %v7438 = vrot.slane %v7436, 4
      %v7439 = vrot.slane %v6658, 5
      %v7440 = vsel %vm1205, %v7438, %v7439
      %v7441 = vrot.slane %v7323, 5
      %v7442 = vrot.slane %v7441, 4
      %v7443 = vrot.slane %v6660, 5
      %v7444 = vsel %vm1205, %v7442, %v7443
      %v7445 = vrot.slane %v7443, 4
      %v7446 = vrot.slane %v6661, 5
      %v7447 = vsel %vm1205, %v7445, %v7446
      %v7448 = vrot.slane %v7324, 5
      %v7449 = vrot.slane %v7448, 4
      %v7450 = vrot.slane %v6663, 5
      %v7451 = vsel %vm1205, %v7449, %v7450
      %v7452 = vrot.slane %v7450, 4
      %v7453 = vrot.slane %v6664, 5
      %v7454 = vsel %vm1205, %v7452, %v7453
      %v7455 = vrot.slane %v7325, 5
      %v7456 = vrot.slane %v7455, 4
      %v7457 = vrot.slane %v6666, 5
      %v7458 = vsel %vm1205, %v7456, %v7457
      %v7459 = vrot.slane %v7457, 4
      %v7460 = vrot.slane %v6667, 5
      %v7461 = vsel %vm1205, %v7459, %v7460
      %v7462 = vrot.slane %v7326, 5
      %v7463 = vrot.slane %v7462, 4
      %v7464 = vrot.slane %v6669, 5
      %v7465 = vsel %vm1205, %v7463, %v7464
      %v7466 = vrot.slane %v7464, 4
      %v7467 = vrot.slane %v6670, 5
      %v7468 = vsel %vm1205, %v7466, %v7467
      %v7469 = vrot.slane %v7327, 5
      %v7470 = vrot.slane %v7469, 4
      %v7471 = vrot.slane %v6672, 5
      %v7472 = vsel %vm1205, %v7470, %v7471
      %v7473 = vrot.slane %v7471, 4
      %v7474 = vrot.slane %v6673, 5
      %v7475 = vsel %vm1205, %v7473, %v7474
      %v7476 = vrot.slane %v7328, 5
      %v7477 = vrot.slane %v7476, 4
      %v7478 = vrot.slane %v6675, 5
      %v7479 = vsel %vm1205, %v7477, %v7478
      %v7480 = vrot.slane %v7478, 4
      %v7481 = vrot.slane %v6676, 5
      %v7482 = vsel %vm1205, %v7480, %v7481
      %v7483 = vrot.slane %v7329, 5
      %v7484 = vrot.slane %v7483, 4
      %v7485 = vrot.slane %v6678, 5
      %v7486 = vsel %vm1205, %v7484, %v7485
      %v7487 = vrot.slane %v7485, 4
      %v7488 = vrot.slane %v6679, 5
      %v7489 = vsel %vm1205, %v7487, %v7488
      %s7490 = scalar_lea.vmem %s2, 320
      %v7491 = vld [vmem:[%s7490] sm:$0xf]
      %v7492 = vld [vmem:[%s7490 + $0x4] sm:$0xf]
      %v7493 = vld [vmem:[%s7490 + $0x8] sm:$0xf]
      %v7494 = vld [vmem:[%s7490 + $0xc] sm:$0xf]
      %v7495 = vld [vmem:[%s7490 + $0x10] sm:$0xf]
      %v7496 = vld [vmem:[%s7490 + $0x14] sm:$0xf]
      %v7497 = vld [vmem:[%s7490 + $0x18] sm:$0xf]
      %v7498 = vld [vmem:[%s7490 + $0x1c] sm:$0xf]
      %v7499 = vld [vmem:[%s7490 + $0x20] sm:$0xf]
      %v7500 = vld [vmem:[%s7490 + $0x24] sm:$0xf]
      %v7501 = vld [vmem:[%s7490 + $0x28] sm:$0xf]
      %v7502 = vld [vmem:[%s7490 + $0x2c] sm:$0xf]
      %v7503 = vld [vmem:[%s7490 + $0x30] sm:$0xf]
      %v7504 = vld [vmem:[%s7490 + $0x34] sm:$0xf]
      %v7505 = vld [vmem:[%s7490 + $0x38] sm:$0xf]
      %v7506 = vld [vmem:[%s7490 + $0x3c] sm:$0xf]
      %v7507 = vunpack.c.l.b16 %v7381
      %v7508 = vunpack.c.l.b16 %v7384
      %v7509 = vunpack.c.l.b16 %v7388
      %v7510 = vunpack.c.l.b16 %v7391
      %v7511 = vunpack.c.l.b16 %v7395
      %v7512 = vunpack.c.l.b16 %v7398
      %v7513 = vunpack.c.l.b16 %v7402
      %v7514 = vunpack.c.l.b16 %v7405
      %v7515 = vunpack.c.l.b16 %v7409
      %v7516 = vunpack.c.l.b16 %v7412
      %v7517 = vunpack.c.l.b16 %v7416
      %v7518 = vunpack.c.l.b16 %v7419
      %v7519 = vunpack.c.l.b16 %v7423
      %v7520 = vunpack.c.l.b16 %v7426
      %v7521 = vunpack.c.l.b16 %v7430
      %v7522 = vunpack.c.l.b16 %v7433
      %v7523 = vunpack.c.l.b16 %v7437
      %v7524 = vunpack.c.l.b16 %v7440
      %v7525 = vunpack.c.l.b16 %v7444
      %v7526 = vunpack.c.l.b16 %v7447
      %v7527 = vunpack.c.l.b16 %v7451
      %v7528 = vunpack.c.l.b16 %v7454
      %v7529 = vunpack.c.l.b16 %v7458
      %v7530 = vunpack.c.l.b16 %v7461
      %v7531 = vunpack.c.l.b16 %v7465
      %v7532 = vunpack.c.l.b16 %v7468
      %v7533 = vunpack.c.l.b16 %v7472
      %v7534 = vunpack.c.l.b16 %v7475
      %v7535 = vunpack.c.l.b16 %v7479
      %v7536 = vunpack.c.l.b16 %v7482
      %v7537 = vunpack.c.l.b16 %v7486
      %v7538 = vunpack.c.l.b16 %v7489
      %v7539 = vpack.c.b16 %v7508, %v7507
      %v7540 = vpack.c.b16 %v7510, %v7509
      %v7541 = vpack.c.b16 %v7512, %v7511
      %v7542 = vpack.c.b16 %v7514, %v7513
      %v7543 = vpack.c.b16 %v7516, %v7515
      %v7544 = vpack.c.b16 %v7518, %v7517
      %v7545 = vpack.c.b16 %v7520, %v7519
      %v7546 = vpack.c.b16 %v7522, %v7521
      %v7547 = vpack.c.b16 %v7524, %v7523
      %v7548 = vpack.c.b16 %v7526, %v7525
      %v7549 = vpack.c.b16 %v7528, %v7527
      %v7550 = vpack.c.b16 %v7530, %v7529
      %v7551 = vpack.c.b16 %v7532, %v7531
      %v7552 = vpack.c.b16 %v7534, %v7533
      %v7553 = vpack.c.b16 %v7536, %v7535
      %v7554 = vpack.c.b16 %v7538, %v7537
      %v7587 = vunpack.c.l.b16 %v7491
      %v7588 = vunpack.c.l.b16 %v7492
      %v7589 = vunpack.c.l.b16 %v7493
      %v7590 = vunpack.c.l.b16 %v7494
      %v7591 = vunpack.c.l.b16 %v7495
      %v7592 = vunpack.c.l.b16 %v7496
      %v7593 = vunpack.c.l.b16 %v7497
      %v7594 = vunpack.c.l.b16 %v7498
      %v7595 = vunpack.c.l.b16 %v7499
      %v7596 = vunpack.c.l.b16 %v7500
      %v7597 = vunpack.c.l.b16 %v7501
      %v7598 = vunpack.c.l.b16 %v7502
      %v7599 = vunpack.c.l.b16 %v7503
      %v7600 = vunpack.c.l.b16 %v7504
      %v7601 = vunpack.c.l.b16 %v7505
      %v7602 = vunpack.c.l.b16 %v7506
      %v7603 = vpack.c.b16 %v7588, %v7587
      %v7604 = vpack.c.b16 %v7590, %v7589
      %v7605 = vpack.c.b16 %v7592, %v7591
      %v7606 = vpack.c.b16 %v7594, %v7593
      %v7607 = vpack.c.b16 %v7596, %v7595
      %v7608 = vpack.c.b16 %v7598, %v7597
      %v7609 = vpack.c.b16 %v7600, %v7599
      %v7610 = vpack.c.b16 %v7602, %v7601
      %7619 = vmatpush.bf16.msra.mxu0 %v7610
      %7620 = vmatpush.bf16.msra.mxu0 %v7609
      %7621 = vmatpush.bf16.msra.mxu0 %v7608
      %7622 = vmatpush.bf16.msra.mxu0 %v7607
      %7623 = vmatpush.bf16.msra.mxu0 %v7606
      %7624 = vmatpush.bf16.msra.mxu0 %v7605
      %7625 = vmatpush.bf16.msra.mxu0 %v7604
      %7626 = vmatpush.bf16.msra.mxu0 %v7603
      %7627 = vmatmul.bf16.gmra.mxu0 %v7539
      %v7628 = vpop.f32.mrf.mxu0
      %v7629 = vadd.f32 0.0, %v7628
      %v7630 = vpop.f32.mrf.mxu0
      %v7631 = vadd.f32 0.0, %v7630
      %7632 = vmatmul.bf16.gmra.mxu0 %v7540
      %v7633 = vpop.f32.mrf.mxu0
      %v7634 = vadd.f32 0.0, %v7633
      %v7635 = vpop.f32.mrf.mxu0
      %v7636 = vadd.f32 0.0, %v7635
      %7637 = vmatmul.bf16.gmra.mxu0 %v7541
      %v7638 = vpop.f32.mrf.mxu0
      %v7639 = vadd.f32 0.0, %v7638
      %v7640 = vpop.f32.mrf.mxu0
      %v7641 = vadd.f32 0.0, %v7640
      %7642 = vmatmul.bf16.gmra.mxu0 %v7542
      %v7643 = vpop.f32.mrf.mxu0
      %v7644 = vadd.f32 0.0, %v7643
      %v7645 = vpop.f32.mrf.mxu0
      %v7646 = vadd.f32 0.0, %v7645
      %7647 = vmatmul.bf16.gmra.mxu0 %v7543
      %v7648 = vpop.f32.mrf.mxu0
      %v7649 = vadd.f32 0.0, %v7648
      %v7650 = vpop.f32.mrf.mxu0
      %v7651 = vadd.f32 0.0, %v7650
      %7652 = vmatmul.bf16.gmra.mxu0 %v7544
      %v7653 = vpop.f32.mrf.mxu0
      %v7654 = vadd.f32 0.0, %v7653
      %v7655 = vpop.f32.mrf.mxu0
      %v7656 = vadd.f32 0.0, %v7655
      %7657 = vmatmul.bf16.gmra.mxu0 %v7545
      %v7658 = vpop.f32.mrf.mxu0
      %v7659 = vadd.f32 0.0, %v7658
      %v7660 = vpop.f32.mrf.mxu0
      %v7661 = vadd.f32 0.0, %v7660
      %7662 = vmatmul.bf16.gmra.mxu0 %v7546
      %v7663 = vpop.f32.mrf.mxu0
      %v7664 = vadd.f32 0.0, %v7663
      %v7665 = vpop.f32.mrf.mxu0
      %v7666 = vadd.f32 0.0, %v7665
      %7667 = vmatmul.bf16.gmra.mxu0 %v7547
      %v7668 = vpop.f32.mrf.mxu0
      %v7669 = vadd.f32 0.0, %v7668
      %v7670 = vpop.f32.mrf.mxu0
      %v7671 = vadd.f32 0.0, %v7670
      %7672 = vmatmul.bf16.gmra.mxu0 %v7548
      %v7673 = vpop.f32.mrf.mxu0
      %v7674 = vadd.f32 0.0, %v7673
      %v7675 = vpop.f32.mrf.mxu0
      %v7676 = vadd.f32 0.0, %v7675
      %7677 = vmatmul.bf16.gmra.mxu0 %v7549
      %v7678 = vpop.f32.mrf.mxu0
      %v7679 = vadd.f32 0.0, %v7678
      %v7680 = vpop.f32.mrf.mxu0
      %v7681 = vadd.f32 0.0, %v7680
      %7682 = vmatmul.bf16.gmra.mxu0 %v7550
      %v7683 = vpop.f32.mrf.mxu0
      %v7684 = vadd.f32 0.0, %v7683
      %v7685 = vpop.f32.mrf.mxu0
      %v7686 = vadd.f32 0.0, %v7685
      %7687 = vmatmul.bf16.gmra.mxu0 %v7551
      %v7688 = vpop.f32.mrf.mxu0
      %v7689 = vadd.f32 0.0, %v7688
      %v7690 = vpop.f32.mrf.mxu0
      %v7691 = vadd.f32 0.0, %v7690
      %7692 = vmatmul.bf16.gmra.mxu0 %v7552
      %v7693 = vpop.f32.mrf.mxu0
      %v7694 = vadd.f32 0.0, %v7693
      %v7695 = vpop.f32.mrf.mxu0
      %v7696 = vadd.f32 0.0, %v7695
      %7697 = vmatmul.bf16.gmra.mxu0 %v7553
      %v7698 = vpop.f32.mrf.mxu0
      %v7699 = vadd.f32 0.0, %v7698
      %v7700 = vpop.f32.mrf.mxu0
      %v7701 = vadd.f32 0.0, %v7700
      %7702 = vmatmul.bf16.gmra.mxu0 %v7554
      %v7703 = vpop.f32.mrf.mxu0
      %v7704 = vadd.f32 0.0, %v7703
      %v7705 = vpop.f32.mrf.mxu0
      %v7706 = vadd.f32 0.0, %v7705
      %7707 = vdwg.mxu0
      %v7708 = vadd.f32 %v7282, %v7629
      %v7709 = vadd.f32 %v7283, %v7631
      %v7710 = vadd.f32 %v7284, %v7634
      %v7711 = vadd.f32 %v7285, %v7636
      %v7712 = vadd.f32 %v7286, %v7639
      %v7713 = vadd.f32 %v7287, %v7641
      %v7714 = vadd.f32 %v7288, %v7644
      %v7715 = vadd.f32 %v7289, %v7646
      %v7716 = vadd.f32 %v7290, %v7649
      %v7717 = vadd.f32 %v7291, %v7651
      %v7718 = vadd.f32 %v7292, %v7654
      %v7719 = vadd.f32 %v7293, %v7656
      %v7720 = vadd.f32 %v7294, %v7659
      %v7721 = vadd.f32 %v7295, %v7661
      %v7722 = vadd.f32 %v7296, %v7664
      %v7723 = vadd.f32 %v7297, %v7666
      %v7724 = vadd.f32 %v7298, %v7669
      %v7725 = vadd.f32 %v7299, %v7671
      %v7726 = vadd.f32 %v7300, %v7674
      %v7727 = vadd.f32 %v7301, %v7676
      %v7728 = vadd.f32 %v7302, %v7679
      %v7729 = vadd.f32 %v7303, %v7681
      %v7730 = vadd.f32 %v7304, %v7684
      %v7731 = vadd.f32 %v7305, %v7686
      %v7732 = vadd.f32 %v7306, %v7689
      %v7733 = vadd.f32 %v7307, %v7691
      %v7734 = vadd.f32 %v7308, %v7694
      %v7735 = vadd.f32 %v7309, %v7696
      %v7736 = vadd.f32 %v7310, %v7699
      %v7737 = vadd.f32 %v7311, %v7701
      %v7738 = vadd.f32 %v7312, %v7704
      %v7739 = vadd.f32 %v7313, %v7706
      %s7740 = scalar_lea.vmem [#allocation2], 24
      %v7741 = vld [vmem:[%s7740] sm:$0xf]
      %v7742 = vld [vmem:[%s7740 + $0x4] sm:$0xf]
      %v7743 = vld [vmem:[%s7740 + $0xc] sm:$0xf]
      %v7744 = vld [vmem:[%s7740 + $0x10] sm:$0xf]
      %v7745 = vld [vmem:[%s7740 + $0x18] sm:$0xf]
      %v7746 = vld [vmem:[%s7740 + $0x1c] sm:$0xf]
      %v7747 = vld [vmem:[%s7740 + $0x24] sm:$0xf]
      %v7748 = vld [vmem:[%s7740 + $0x28] sm:$0xf]
      %v7749 = vld [vmem:[%s7740 + $0x30] sm:$0xf]
      %v7750 = vld [vmem:[%s7740 + $0x34] sm:$0xf]
      %v7751 = vld [vmem:[%s7740 + $0x3c] sm:$0xf]
      %v7752 = vld [vmem:[%s7740 + $0x40] sm:$0xf]
      %v7753 = vld [vmem:[%s7740 + $0x48] sm:$0xf]
      %v7754 = vld [vmem:[%s7740 + $0x4c] sm:$0xf]
      %v7755 = vld [vmem:[%s7740 + $0x54] sm:$0xf]
      %v7756 = vld [vmem:[%s7740 + $0x58] sm:$0xf]
      %v7757 = vld [vmem:[%s7740 + $0x60] sm:$0xf]
      %v7758 = vld [vmem:[%s7740 + $0x64] sm:$0xf]
      %v7759 = vld [vmem:[%s7740 + $0x6c] sm:$0xf]
      %v7760 = vld [vmem:[%s7740 + $0x70] sm:$0xf]
      %v7761 = vld [vmem:[%s7740 + $0x78] sm:$0xf]
      %v7762 = vld [vmem:[%s7740 + $0x7c] sm:$0xf]
      %v7763 = vld [vmem:[%s7740 + $0x84] sm:$0xf]
      %v7764 = vld [vmem:[%s7740 + $0x88] sm:$0xf]
      %v7765 = vld [vmem:[%s7740 + $0x90] sm:$0xf]
      %v7766 = vld [vmem:[%s7740 + $0x94] sm:$0xf]
      %v7767 = vld [vmem:[%s7740 + $0x9c] sm:$0xf]
      %v7768 = vld [vmem:[%s7740 + $0xa0] sm:$0xf]
      %v7769 = vld [vmem:[%s7740 + $0xa8] sm:$0xf]
      %v7770 = vld [vmem:[%s7740 + $0xac] sm:$0xf]
      %v7771 = vld [vmem:[%s7740 + $0xb4] sm:$0xf]
      %v7772 = vld [vmem:[%s7740 + $0xb8] sm:$0xf]
      %s7773 = scalar_lea.vmem %s2, 384
      %v7774 = vld [vmem:[%s7773] sm:$0xf]
      %v7775 = vld [vmem:[%s7773 + $0x4] sm:$0xf]
      %v7776 = vld [vmem:[%s7773 + $0x8] sm:$0xf]
      %v7777 = vld [vmem:[%s7773 + $0xc] sm:$0xf]
      %v7778 = vld [vmem:[%s7773 + $0x10] sm:$0xf]
      %v7779 = vld [vmem:[%s7773 + $0x14] sm:$0xf]
      %v7780 = vld [vmem:[%s7773 + $0x18] sm:$0xf]
      %v7781 = vld [vmem:[%s7773 + $0x1c] sm:$0xf]
      %v7782 = vld [vmem:[%s7773 + $0x20] sm:$0xf]
      %v7783 = vld [vmem:[%s7773 + $0x24] sm:$0xf]
      %v7784 = vld [vmem:[%s7773 + $0x28] sm:$0xf]
      %v7785 = vld [vmem:[%s7773 + $0x2c] sm:$0xf]
      %v7786 = vld [vmem:[%s7773 + $0x30] sm:$0xf]
      %v7787 = vld [vmem:[%s7773 + $0x34] sm:$0xf]
      %v7788 = vld [vmem:[%s7773 + $0x38] sm:$0xf]
      %v7789 = vld [vmem:[%s7773 + $0x3c] sm:$0xf]
      %v7822 = vunpack.c.l.b16 %v7741
      %v7823 = vunpack.c.l.b16 %v7742
      %v7824 = vunpack.c.l.b16 %v7743
      %v7825 = vunpack.c.l.b16 %v7744
      %v7826 = vunpack.c.l.b16 %v7745
      %v7827 = vunpack.c.l.b16 %v7746
      %v7828 = vunpack.c.l.b16 %v7747
      %v7829 = vunpack.c.l.b16 %v7748
      %v7830 = vunpack.c.l.b16 %v7749
      %v7831 = vunpack.c.l.b16 %v7750
      %v7832 = vunpack.c.l.b16 %v7751
      %v7833 = vunpack.c.l.b16 %v7752
      %v7834 = vunpack.c.l.b16 %v7753
      %v7835 = vunpack.c.l.b16 %v7754
      %v7836 = vunpack.c.l.b16 %v7755
      %v7837 = vunpack.c.l.b16 %v7756
      %v7838 = vunpack.c.l.b16 %v7757
      %v7839 = vunpack.c.l.b16 %v7758
      %v7840 = vunpack.c.l.b16 %v7759
      %v7841 = vunpack.c.l.b16 %v7760
      %v7842 = vunpack.c.l.b16 %v7761
      %v7843 = vunpack.c.l.b16 %v7762
      %v7844 = vunpack.c.l.b16 %v7763
      %v7845 = vunpack.c.l.b16 %v7764
      %v7846 = vunpack.c.l.b16 %v7765
      %v7847 = vunpack.c.l.b16 %v7766
      %v7848 = vunpack.c.l.b16 %v7767
      %v7849 = vunpack.c.l.b16 %v7768
      %v7850 = vunpack.c.l.b16 %v7769
      %v7851 = vunpack.c.l.b16 %v7770
      %v7852 = vunpack.c.l.b16 %v7771
      %v7853 = vunpack.c.l.b16 %v7772
      %v7854 = vpack.c.b16 %v7823, %v7822
      %v7855 = vpack.c.b16 %v7825, %v7824
      %v7856 = vpack.c.b16 %v7827, %v7826
      %v7857 = vpack.c.b16 %v7829, %v7828
      %v7858 = vpack.c.b16 %v7831, %v7830
      %v7859 = vpack.c.b16 %v7833, %v7832
      %v7860 = vpack.c.b16 %v7835, %v7834
      %v7861 = vpack.c.b16 %v7837, %v7836
      %v7862 = vpack.c.b16 %v7839, %v7838
      %v7863 = vpack.c.b16 %v7841, %v7840
      %v7864 = vpack.c.b16 %v7843, %v7842
      %v7865 = vpack.c.b16 %v7845, %v7844
      %v7866 = vpack.c.b16 %v7847, %v7846
      %v7867 = vpack.c.b16 %v7849, %v7848
      %v7868 = vpack.c.b16 %v7851, %v7850
      %v7869 = vpack.c.b16 %v7853, %v7852
      %v7902 = vunpack.c.l.b16 %v7774
      %v7903 = vunpack.c.l.b16 %v7775
      %v7904 = vunpack.c.l.b16 %v7776
      %v7905 = vunpack.c.l.b16 %v7777
      %v7906 = vunpack.c.l.b16 %v7778
      %v7907 = vunpack.c.l.b16 %v7779
      %v7908 = vunpack.c.l.b16 %v7780
      %v7909 = vunpack.c.l.b16 %v7781
      %v7910 = vunpack.c.l.b16 %v7782
      %v7911 = vunpack.c.l.b16 %v7783
      %v7912 = vunpack.c.l.b16 %v7784
      %v7913 = vunpack.c.l.b16 %v7785
      %v7914 = vunpack.c.l.b16 %v7786
      %v7915 = vunpack.c.l.b16 %v7787
      %v7916 = vunpack.c.l.b16 %v7788
      %v7917 = vunpack.c.l.b16 %v7789
      %v7918 = vpack.c.b16 %v7903, %v7902
      %v7919 = vpack.c.b16 %v7905, %v7904
      %v7920 = vpack.c.b16 %v7907, %v7906
      %v7921 = vpack.c.b16 %v7909, %v7908
      %v7922 = vpack.c.b16 %v7911, %v7910
      %v7923 = vpack.c.b16 %v7913, %v7912
      %v7924 = vpack.c.b16 %v7915, %v7914
      %v7925 = vpack.c.b16 %v7917, %v7916
      %7934 = vmatpush.bf16.msra.mxu0 %v7925
      %7935 = vmatpush.bf16.msra.mxu0 %v7924
      %7936 = vmatpush.bf16.msra.mxu0 %v7923
      %7937 = vmatpush.bf16.msra.mxu0 %v7922
      %7938 = vmatpush.bf16.msra.mxu0 %v7921
      %7939 = vmatpush.bf16.msra.mxu0 %v7920
      %7940 = vmatpush.bf16.msra.mxu0 %v7919
      %7941 = vmatpush.bf16.msra.mxu0 %v7918
      %7942 = vmatmul.bf16.gmra.mxu0 %v7854
      %v7943 = vpop.f32.mrf.mxu0
      %v7944 = vadd.f32 0.0, %v7943
      %v7945 = vpop.f32.mrf.mxu0
      %v7946 = vadd.f32 0.0, %v7945
      %7947 = vmatmul.bf16.gmra.mxu0 %v7855
      %v7948 = vpop.f32.mrf.mxu0
      %v7949 = vadd.f32 0.0, %v7948
      %v7950 = vpop.f32.mrf.mxu0
      %v7951 = vadd.f32 0.0, %v7950
      %7952 = vmatmul.bf16.gmra.mxu0 %v7856
      %v7953 = vpop.f32.mrf.mxu0
      %v7954 = vadd.f32 0.0, %v7953
      %v7955 = vpop.f32.mrf.mxu0
      %v7956 = vadd.f32 0.0, %v7955
      %7957 = vmatmul.bf16.gmra.mxu0 %v7857
      %v7958 = vpop.f32.mrf.mxu0
      %v7959 = vadd.f32 0.0, %v7958
      %v7960 = vpop.f32.mrf.mxu0
      %v7961 = vadd.f32 0.0, %v7960
      %7962 = vmatmul.bf16.gmra.mxu0 %v7858
      %v7963 = vpop.f32.mrf.mxu0
      %v7964 = vadd.f32 0.0, %v7963
      %v7965 = vpop.f32.mrf.mxu0
      %v7966 = vadd.f32 0.0, %v7965
      %7967 = vmatmul.bf16.gmra.mxu0 %v7859
      %v7968 = vpop.f32.mrf.mxu0
      %v7969 = vadd.f32 0.0, %v7968
      %v7970 = vpop.f32.mrf.mxu0
      %v7971 = vadd.f32 0.0, %v7970
      %7972 = vmatmul.bf16.gmra.mxu0 %v7860
      %v7973 = vpop.f32.mrf.mxu0
      %v7974 = vadd.f32 0.0, %v7973
      %v7975 = vpop.f32.mrf.mxu0
      %v7976 = vadd.f32 0.0, %v7975
      %7977 = vmatmul.bf16.gmra.mxu0 %v7861
      %v7978 = vpop.f32.mrf.mxu0
      %v7979 = vadd.f32 0.0, %v7978
      %v7980 = vpop.f32.mrf.mxu0
      %v7981 = vadd.f32 0.0, %v7980
      %7982 = vmatmul.bf16.gmra.mxu0 %v7862
      %v7983 = vpop.f32.mrf.mxu0
      %v7984 = vadd.f32 0.0, %v7983
      %v7985 = vpop.f32.mrf.mxu0
      %v7986 = vadd.f32 0.0, %v7985
      %7987 = vmatmul.bf16.gmra.mxu0 %v7863
      %v7988 = vpop.f32.mrf.mxu0
      %v7989 = vadd.f32 0.0, %v7988
      %v7990 = vpop.f32.mrf.mxu0
      %v7991 = vadd.f32 0.0, %v7990
      %7992 = vmatmul.bf16.gmra.mxu0 %v7864
      %v7993 = vpop.f32.mrf.mxu0
      %v7994 = vadd.f32 0.0, %v7993
      %v7995 = vpop.f32.mrf.mxu0
      %v7996 = vadd.f32 0.0, %v7995
      %7997 = vmatmul.bf16.gmra.mxu0 %v7865
      %v7998 = vpop.f32.mrf.mxu0
      %v7999 = vadd.f32 0.0, %v7998
      %v8000 = vpop.f32.mrf.mxu0
      %v8001 = vadd.f32 0.0, %v8000
      %8002 = vmatmul.bf16.gmra.mxu0 %v7866
      %v8003 = vpop.f32.mrf.mxu0
      %v8004 = vadd.f32 0.0, %v8003
      %v8005 = vpop.f32.mrf.mxu0
      %v8006 = vadd.f32 0.0, %v8005
      %8007 = vmatmul.bf16.gmra.mxu0 %v7867
      %v8008 = vpop.f32.mrf.mxu0
      %v8009 = vadd.f32 0.0, %v8008
      %v8010 = vpop.f32.mrf.mxu0
      %v8011 = vadd.f32 0.0, %v8010
      %8012 = vmatmul.bf16.gmra.mxu0 %v7868
      %v8013 = vpop.f32.mrf.mxu0
      %v8014 = vadd.f32 0.0, %v8013
      %v8015 = vpop.f32.mrf.mxu0
      %v8016 = vadd.f32 0.0, %v8015
      %8017 = vmatmul.bf16.gmra.mxu0 %v7869
      %v8018 = vpop.f32.mrf.mxu0
      %v8019 = vadd.f32 0.0, %v8018
      %v8020 = vpop.f32.mrf.mxu0
      %v8021 = vadd.f32 0.0, %v8020
      %8022 = vdwg.mxu0
      %v8023 = vadd.f32 %v7708, %v7944
      %v8024 = vadd.f32 %v7709, %v7946
      %v8025 = vadd.f32 %v7710, %v7949
      %v8026 = vadd.f32 %v7711, %v7951
      %v8027 = vadd.f32 %v7712, %v7954
      %v8028 = vadd.f32 %v7713, %v7956
      %v8029 = vadd.f32 %v7714, %v7959
      %v8030 = vadd.f32 %v7715, %v7961
      %v8031 = vadd.f32 %v7716, %v7964
      %v8032 = vadd.f32 %v7717, %v7966
      %v8033 = vadd.f32 %v7718, %v7969
      %v8034 = vadd.f32 %v7719, %v7971
      %v8035 = vadd.f32 %v7720, %v7974
      %v8036 = vadd.f32 %v7721, %v7976
      %v8037 = vadd.f32 %v7722, %v7979
      %v8038 = vadd.f32 %v7723, %v7981
      %v8039 = vadd.f32 %v7724, %v7984
      %v8040 = vadd.f32 %v7725, %v7986
      %v8041 = vadd.f32 %v7726, %v7989
      %v8042 = vadd.f32 %v7727, %v7991
      %v8043 = vadd.f32 %v7728, %v7994
      %v8044 = vadd.f32 %v7729, %v7996
      %v8045 = vadd.f32 %v7730, %v7999
      %v8046 = vadd.f32 %v7731, %v8001
      %v8047 = vadd.f32 %v7732, %v8004
      %v8048 = vadd.f32 %v7733, %v8006
      %v8049 = vadd.f32 %v7734, %v8009
      %v8050 = vadd.f32 %v7735, %v8011
      %v8051 = vadd.f32 %v7736, %v8014
      %v8052 = vadd.f32 %v7737, %v8016
      %v8053 = vadd.f32 %v7738, %v8019
      %v8054 = vadd.f32 %v7739, %v8021
      %v8055 = vld [vmem:[%s7740] sm:$0xf]
      %v8056 = vld [vmem:[%s7740 + $0x4] sm:$0xf]
      %v8057 = vld [vmem:[%s7740 + $0x8] sm:$0x1]
      %v8058 = vld [vmem:[%s7740 + $0xc] sm:$0xf]
      %v8059 = vld [vmem:[%s7740 + $0x10] sm:$0xf]
      %v8060 = vld [vmem:[%s7740 + $0x14] sm:$0x1]
      %v8061 = vld [vmem:[%s7740 + $0x18] sm:$0xf]
      %v8062 = vld [vmem:[%s7740 + $0x1c] sm:$0xf]
      %v8063 = vld [vmem:[%s7740 + $0x20] sm:$0x1]
      %v8064 = vld [vmem:[%s7740 + $0x24] sm:$0xf]
      %v8065 = vld [vmem:[%s7740 + $0x28] sm:$0xf]
      %v8066 = vld [vmem:[%s7740 + $0x2c] sm:$0x1]
      %v8067 = vld [vmem:[%s7740 + $0x30] sm:$0xf]
      %v8068 = vld [vmem:[%s7740 + $0x34] sm:$0xf]
      %v8069 = vld [vmem:[%s7740 + $0x38] sm:$0x1]
      %v8070 = vld [vmem:[%s7740 + $0x3c] sm:$0xf]
      %v8071 = vld [vmem:[%s7740 + $0x40] sm:$0xf]
      %v8072 = vld [vmem:[%s7740 + $0x44] sm:$0x1]
      %v8073 = vld [vmem:[%s7740 + $0x48] sm:$0xf]
      %v8074 = vld [vmem:[%s7740 + $0x4c] sm:$0xf]
      %v8075 = vld [vmem:[%s7740 + $0x50] sm:$0x1]
      %v8076 = vld [vmem:[%s7740 + $0x54] sm:$0xf]
      %v8077 = vld [vmem:[%s7740 + $0x58] sm:$0xf]
      %v8078 = vld [vmem:[%s7740 + $0x5c] sm:$0x1]
      %v8079 = vld [vmem:[%s7740 + $0x60] sm:$0xf]
      %v8080 = vld [vmem:[%s7740 + $0x64] sm:$0xf]
      %v8081 = vld [vmem:[%s7740 + $0x68] sm:$0x1]
      %v8082 = vld [vmem:[%s7740 + $0x6c] sm:$0xf]
      %v8083 = vld [vmem:[%s7740 + $0x70] sm:$0xf]
      %v8084 = vld [vmem:[%s7740 + $0x74] sm:$0x1]
      %v8085 = vld [vmem:[%s7740 + $0x78] sm:$0xf]
      %v8086 = vld [vmem:[%s7740 + $0x7c] sm:$0xf]
      %v8087 = vld [vmem:[%s7740 + $0x80] sm:$0x1]
      %v8088 = vld [vmem:[%s7740 + $0x84] sm:$0xf]
      %v8089 = vld [vmem:[%s7740 + $0x88] sm:$0xf]
      %v8090 = vld [vmem:[%s7740 + $0x8c] sm:$0x1]
      %v8091 = vld [vmem:[%s7740 + $0x90] sm:$0xf]
      %v8092 = vld [vmem:[%s7740 + $0x94] sm:$0xf]
      %v8093 = vld [vmem:[%s7740 + $0x98] sm:$0x1]
      %v8094 = vld [vmem:[%s7740 + $0x9c] sm:$0xf]
      %v8095 = vld [vmem:[%s7740 + $0xa0] sm:$0xf]
      %v8096 = vld [vmem:[%s7740 + $0xa4] sm:$0x1]
      %v8097 = vld [vmem:[%s7740 + $0xa8] sm:$0xf]
      %v8098 = vld [vmem:[%s7740 + $0xac] sm:$0xf]
      %v8099 = vld [vmem:[%s7740 + $0xb0] sm:$0x1]
      %v8100 = vld [vmem:[%s7740 + $0xb4] sm:$0xf]
      %v8101 = vld [vmem:[%s7740 + $0xb8] sm:$0xf]
      %v8102 = vld [vmem:[%s7740 + $0xbc] sm:$0x1]
      %v8104 = vshrl.u32 %v8055, 16
      %v8106 = vrot.slane %v8104, 4
      %v8107 = vshll.u32 %v8055, 16
      %v8109 = vrot.slane %v8107, 5
      %v8110 = vor.u32 %v8106, %v8109
      %v8111 = vrot.slane %v8110, 4
      %v8113 = vshll.u32 %v8056, 16
      %v8115 = vrot.slane %v8113, 5
      %v8116 = vsel %vm319, %v8111, %v8115
      %v8117 = vshrl.u32 %v8056, 16
      %v8119 = vrot.slane %v8117, 4
      %v8120 = vor.u32 %v8119, %v8115
      %v8121 = vrot.slane %v8120, 4
      %v8123 = vshll.u32 %v8057, 16
      %v8125 = vrot.slane %v8123, 5
      %v8126 = vsel %vm319, %v8121, %v8125
      %v8128 = vshrl.u32 %v8058, 16
      %v8130 = vrot.slane %v8128, 4
      %v8131 = vshll.u32 %v8058, 16
      %v8133 = vrot.slane %v8131, 5
      %v8134 = vor.u32 %v8130, %v8133
      %v8135 = vrot.slane %v8134, 4
      %v8137 = vshll.u32 %v8059, 16
      %v8139 = vrot.slane %v8137, 5
      %v8140 = vsel %vm319, %v8135, %v8139
      %v8141 = vshrl.u32 %v8059, 16
      %v8143 = vrot.slane %v8141, 4
      %v8144 = vor.u32 %v8143, %v8139
      %v8145 = vrot.slane %v8144, 4
      %v8147 = vshll.u32 %v8060, 16
      %v8149 = vrot.slane %v8147, 5
      %v8150 = vsel %vm319, %v8145, %v8149
      %v8152 = vshrl.u32 %v8061, 16
      %v8154 = vrot.slane %v8152, 4
      %v8155 = vshll.u32 %v8061, 16
      %v8157 = vrot.slane %v8155, 5
      %v8158 = vor.u32 %v8154, %v8157
      %v8159 = vrot.slane %v8158, 4
      %v8161 = vshll.u32 %v8062, 16
      %v8163 = vrot.slane %v8161, 5
      %v8164 = vsel %vm319, %v8159, %v8163
      %v8165 = vshrl.u32 %v8062, 16
      %v8167 = vrot.slane %v8165, 4
      %v8168 = vor.u32 %v8167, %v8163
      %v8169 = vrot.slane %v8168, 4
      %v8171 = vshll.u32 %v8063, 16
      %v8173 = vrot.slane %v8171, 5
      %v8174 = vsel %vm319, %v8169, %v8173
      %v8176 = vshrl.u32 %v8064, 16
      %v8178 = vrot.slane %v8176, 4
      %v8179 = vshll.u32 %v8064, 16
      %v8181 = vrot.slane %v8179, 5
      %v8182 = vor.u32 %v8178, %v8181
      %v8183 = vrot.slane %v8182, 4
      %v8185 = vshll.u32 %v8065, 16
      %v8187 = vrot.slane %v8185, 5
      %v8188 = vsel %vm319, %v8183, %v8187
      %v8189 = vshrl.u32 %v8065, 16
      %v8191 = vrot.slane %v8189, 4
      %v8192 = vor.u32 %v8191, %v8187
      %v8193 = vrot.slane %v8192, 4
      %v8195 = vshll.u32 %v8066, 16
      %v8197 = vrot.slane %v8195, 5
      %v8198 = vsel %vm319, %v8193, %v8197
      %v8200 = vshrl.u32 %v8067, 16
      %v8202 = vrot.slane %v8200, 4
      %v8203 = vshll.u32 %v8067, 16
      %v8205 = vrot.slane %v8203, 5
      %v8206 = vor.u32 %v8202, %v8205
      %v8207 = vrot.slane %v8206, 4
      %v8209 = vshll.u32 %v8068, 16
      %v8211 = vrot.slane %v8209, 5
      %v8212 = vsel %vm319, %v8207, %v8211
      %v8213 = vshrl.u32 %v8068, 16
      %v8215 = vrot.slane %v8213, 4
      %v8216 = vor.u32 %v8215, %v8211
      %v8217 = vrot.slane %v8216, 4
      %v8219 = vshll.u32 %v8069, 16
      %v8221 = vrot.slane %v8219, 5
      %v8222 = vsel %vm319, %v8217, %v8221
      %v8224 = vshrl.u32 %v8070, 16
      %v8226 = vrot.slane %v8224, 4
      %v8227 = vshll.u32 %v8070, 16
      %v8229 = vrot.slane %v8227, 5
      %v8230 = vor.u32 %v8226, %v8229
      %v8231 = vrot.slane %v8230, 4
      %v8233 = vshll.u32 %v8071, 16
      %v8235 = vrot.slane %v8233, 5
      %v8236 = vsel %vm319, %v8231, %v8235
      %v8237 = vshrl.u32 %v8071, 16
      %v8239 = vrot.slane %v8237, 4
      %v8240 = vor.u32 %v8239, %v8235
      %v8241 = vrot.slane %v8240, 4
      %v8243 = vshll.u32 %v8072, 16
      %v8245 = vrot.slane %v8243, 5
      %v8246 = vsel %vm319, %v8241, %v8245
      %v8248 = vshrl.u32 %v8073, 16
      %v8250 = vrot.slane %v8248, 4
      %v8251 = vshll.u32 %v8073, 16
      %v8253 = vrot.slane %v8251, 5
      %v8254 = vor.u32 %v8250, %v8253
      %v8255 = vrot.slane %v8254, 4
      %v8257 = vshll.u32 %v8074, 16
      %v8259 = vrot.slane %v8257, 5
      %v8260 = vsel %vm319, %v8255, %v8259
      %v8261 = vshrl.u32 %v8074, 16
      %v8263 = vrot.slane %v8261, 4
      %v8264 = vor.u32 %v8263, %v8259
      %v8265 = vrot.slane %v8264, 4
      %v8267 = vshll.u32 %v8075, 16
      %v8269 = vrot.slane %v8267, 5
      %v8270 = vsel %vm319, %v8265, %v8269
      %v8272 = vshrl.u32 %v8076, 16
      %v8274 = vrot.slane %v8272, 4
      %v8275 = vshll.u32 %v8076, 16
      %v8277 = vrot.slane %v8275, 5
      %v8278 = vor.u32 %v8274, %v8277
      %v8279 = vrot.slane %v8278, 4
      %v8281 = vshll.u32 %v8077, 16
      %v8283 = vrot.slane %v8281, 5
      %v8284 = vsel %vm319, %v8279, %v8283
      %v8285 = vshrl.u32 %v8077, 16
      %v8287 = vrot.slane %v8285, 4
      %v8288 = vor.u32 %v8287, %v8283
      %v8289 = vrot.slane %v8288, 4
      %v8291 = vshll.u32 %v8078, 16
      %v8293 = vrot.slane %v8291, 5
      %v8294 = vsel %vm319, %v8289, %v8293
      %v8296 = vshrl.u32 %v8079, 16
      %v8298 = vrot.slane %v8296, 4
      %v8299 = vshll.u32 %v8079, 16
      %v8301 = vrot.slane %v8299, 5
      %v8302 = vor.u32 %v8298, %v8301
      %v8303 = vrot.slane %v8302, 4
      %v8305 = vshll.u32 %v8080, 16
      %v8307 = vrot.slane %v8305, 5
      %v8308 = vsel %vm319, %v8303, %v8307
      %v8309 = vshrl.u32 %v8080, 16
      %v8311 = vrot.slane %v8309, 4
      %v8312 = vor.u32 %v8311, %v8307
      %v8313 = vrot.slane %v8312, 4
      %v8315 = vshll.u32 %v8081, 16
      %v8317 = vrot.slane %v8315, 5
      %v8318 = vsel %vm319, %v8313, %v8317
      %v8320 = vshrl.u32 %v8082, 16
      %v8322 = vrot.slane %v8320, 4
      %v8323 = vshll.u32 %v8082, 16
      %v8325 = vrot.slane %v8323, 5
      %v8326 = vor.u32 %v8322, %v8325
      %v8327 = vrot.slane %v8326, 4
      %v8329 = vshll.u32 %v8083, 16
      %v8331 = vrot.slane %v8329, 5
      %v8332 = vsel %vm319, %v8327, %v8331
      %v8333 = vshrl.u32 %v8083, 16
      %v8335 = vrot.slane %v8333, 4
      %v8336 = vor.u32 %v8335, %v8331
      %v8337 = vrot.slane %v8336, 4
      %v8339 = vshll.u32 %v8084, 16
      %v8341 = vrot.slane %v8339, 5
      %v8342 = vsel %vm319, %v8337, %v8341
      %v8344 = vshrl.u32 %v8085, 16
      %v8346 = vrot.slane %v8344, 4
      %v8347 = vshll.u32 %v8085, 16
      %v8349 = vrot.slane %v8347, 5
      %v8350 = vor.u32 %v8346, %v8349
      %v8351 = vrot.slane %v8350, 4
      %v8353 = vshll.u32 %v8086, 16
      %v8355 = vrot.slane %v8353, 5
      %v8356 = vsel %vm319, %v8351, %v8355
      %v8357 = vshrl.u32 %v8086, 16
      %v8359 = vrot.slane %v8357, 4
      %v8360 = vor.u32 %v8359, %v8355
      %v8361 = vrot.slane %v8360, 4
      %v8363 = vshll.u32 %v8087, 16
      %v8365 = vrot.slane %v8363, 5
      %v8366 = vsel %vm319, %v8361, %v8365
      %v8368 = vshrl.u32 %v8088, 16
      %v8370 = vrot.slane %v8368, 4
      %v8371 = vshll.u32 %v8088, 16
      %v8373 = vrot.slane %v8371, 5
      %v8374 = vor.u32 %v8370, %v8373
      %v8375 = vrot.slane %v8374, 4
      %v8377 = vshll.u32 %v8089, 16
      %v8379 = vrot.slane %v8377, 5
      %v8380 = vsel %vm319, %v8375, %v8379
      %v8381 = vshrl.u32 %v8089, 16
      %v8383 = vrot.slane %v8381, 4
      %v8384 = vor.u32 %v8383, %v8379
      %v8385 = vrot.slane %v8384, 4
      %v8387 = vshll.u32 %v8090, 16
      %v8389 = vrot.slane %v8387, 5
      %v8390 = vsel %vm319, %v8385, %v8389
      %v8392 = vshrl.u32 %v8091, 16
      %v8394 = vrot.slane %v8392, 4
      %v8395 = vshll.u32 %v8091, 16
      %v8397 = vrot.slane %v8395, 5
      %v8398 = vor.u32 %v8394, %v8397
      %v8399 = vrot.slane %v8398, 4
      %v8401 = vshll.u32 %v8092, 16
      %v8403 = vrot.slane %v8401, 5
      %v8404 = vsel %vm319, %v8399, %v8403
      %v8405 = vshrl.u32 %v8092, 16
      %v8407 = vrot.slane %v8405, 4
      %v8408 = vor.u32 %v8407, %v8403
      %v8409 = vrot.slane %v8408, 4
      %v8411 = vshll.u32 %v8093, 16
      %v8413 = vrot.slane %v8411, 5
      %v8414 = vsel %vm319, %v8409, %v8413
      %v8416 = vshrl.u32 %v8094, 16
      %v8418 = vrot.slane %v8416, 4
      %v8419 = vshll.u32 %v8094, 16
      %v8421 = vrot.slane %v8419, 5
      %v8422 = vor.u32 %v8418, %v8421
      %v8423 = vrot.slane %v8422, 4
      %v8425 = vshll.u32 %v8095, 16
      %v8427 = vrot.slane %v8425, 5
      %v8428 = vsel %vm319, %v8423, %v8427
      %v8429 = vshrl.u32 %v8095, 16
      %v8431 = vrot.slane %v8429, 4
      %v8432 = vor.u32 %v8431, %v8427
      %v8433 = vrot.slane %v8432, 4
      %v8435 = vshll.u32 %v8096, 16
      %v8437 = vrot.slane %v8435, 5
      %v8438 = vsel %vm319, %v8433, %v8437
      %v8440 = vshrl.u32 %v8097, 16
      %v8442 = vrot.slane %v8440, 4
      %v8443 = vshll.u32 %v8097, 16
      %v8445 = vrot.slane %v8443, 5
      %v8446 = vor.u32 %v8442, %v8445
      %v8447 = vrot.slane %v8446, 4
      %v8449 = vshll.u32 %v8098, 16
      %v8451 = vrot.slane %v8449, 5
      %v8452 = vsel %vm319, %v8447, %v8451
      %v8453 = vshrl.u32 %v8098, 16
      %v8455 = vrot.slane %v8453, 4
      %v8456 = vor.u32 %v8455, %v8451
      %v8457 = vrot.slane %v8456, 4
      %v8459 = vshll.u32 %v8099, 16
      %v8461 = vrot.slane %v8459, 5
      %v8462 = vsel %vm319, %v8457, %v8461
      %v8464 = vshrl.u32 %v8100, 16
      %v8466 = vrot.slane %v8464, 4
      %v8467 = vshll.u32 %v8100, 16
      %v8469 = vrot.slane %v8467, 5
      %v8470 = vor.u32 %v8466, %v8469
      %v8471 = vrot.slane %v8470, 4
      %v8473 = vshll.u32 %v8101, 16
      %v8475 = vrot.slane %v8473, 5
      %v8476 = vsel %vm319, %v8471, %v8475
      %v8477 = vshrl.u32 %v8101, 16
      %v8479 = vrot.slane %v8477, 4
      %v8480 = vor.u32 %v8479, %v8475
      %v8481 = vrot.slane %v8480, 4
      %v8483 = vshll.u32 %v8102, 16
      %v8485 = vrot.slane %v8483, 5
      %v8486 = vsel %vm319, %v8481, %v8485
      %s8487 = scalar_lea.vmem %s2, 448
      %v8488 = vld [vmem:[%s8487] sm:$0xf]
      %v8489 = vld [vmem:[%s8487 + $0x4] sm:$0xf]
      %v8490 = vld [vmem:[%s8487 + $0x8] sm:$0xf]
      %v8491 = vld [vmem:[%s8487 + $0xc] sm:$0xf]
      %v8492 = vld [vmem:[%s8487 + $0x10] sm:$0xf]
      %v8493 = vld [vmem:[%s8487 + $0x14] sm:$0xf]
      %v8494 = vld [vmem:[%s8487 + $0x18] sm:$0xf]
      %v8495 = vld [vmem:[%s8487 + $0x1c] sm:$0xf]
      %v8496 = vld [vmem:[%s8487 + $0x20] sm:$0xf]
      %v8497 = vld [vmem:[%s8487 + $0x24] sm:$0xf]
      %v8498 = vld [vmem:[%s8487 + $0x28] sm:$0xf]
      %v8499 = vld [vmem:[%s8487 + $0x2c] sm:$0xf]
      %v8500 = vld [vmem:[%s8487 + $0x30] sm:$0xf]
      %v8501 = vld [vmem:[%s8487 + $0x34] sm:$0xf]
      %v8502 = vld [vmem:[%s8487 + $0x38] sm:$0xf]
      %v8503 = vld [vmem:[%s8487 + $0x3c] sm:$0xf]
      %v8504 = vunpack.c.l.b16 %v8116
      %v8505 = vunpack.c.l.b16 %v8126
      %v8506 = vunpack.c.l.b16 %v8140
      %v8507 = vunpack.c.l.b16 %v8150
      %v8508 = vunpack.c.l.b16 %v8164
      %v8509 = vunpack.c.l.b16 %v8174
      %v8510 = vunpack.c.l.b16 %v8188
      %v8511 = vunpack.c.l.b16 %v8198
      %v8512 = vunpack.c.l.b16 %v8212
      %v8513 = vunpack.c.l.b16 %v8222
      %v8514 = vunpack.c.l.b16 %v8236
      %v8515 = vunpack.c.l.b16 %v8246
      %v8516 = vunpack.c.l.b16 %v8260
      %v8517 = vunpack.c.l.b16 %v8270
      %v8518 = vunpack.c.l.b16 %v8284
      %v8519 = vunpack.c.l.b16 %v8294
      %v8520 = vunpack.c.l.b16 %v8308
      %v8521 = vunpack.c.l.b16 %v8318
      %v8522 = vunpack.c.l.b16 %v8332
      %v8523 = vunpack.c.l.b16 %v8342
      %v8524 = vunpack.c.l.b16 %v8356
      %v8525 = vunpack.c.l.b16 %v8366
      %v8526 = vunpack.c.l.b16 %v8380
      %v8527 = vunpack.c.l.b16 %v8390
      %v8528 = vunpack.c.l.b16 %v8404
      %v8529 = vunpack.c.l.b16 %v8414
      %v8530 = vunpack.c.l.b16 %v8428
      %v8531 = vunpack.c.l.b16 %v8438
      %v8532 = vunpack.c.l.b16 %v8452
      %v8533 = vunpack.c.l.b16 %v8462
      %v8534 = vunpack.c.l.b16 %v8476
      %v8535 = vunpack.c.l.b16 %v8486
      %v8536 = vpack.c.b16 %v8505, %v8504
      %v8537 = vpack.c.b16 %v8507, %v8506
      %v8538 = vpack.c.b16 %v8509, %v8508
      %v8539 = vpack.c.b16 %v8511, %v8510
      %v8540 = vpack.c.b16 %v8513, %v8512
      %v8541 = vpack.c.b16 %v8515, %v8514
      %v8542 = vpack.c.b16 %v8517, %v8516
      %v8543 = vpack.c.b16 %v8519, %v8518
      %v8544 = vpack.c.b16 %v8521, %v8520
      %v8545 = vpack.c.b16 %v8523, %v8522
      %v8546 = vpack.c.b16 %v8525, %v8524
      %v8547 = vpack.c.b16 %v8527, %v8526
      %v8548 = vpack.c.b16 %v8529, %v8528
      %v8549 = vpack.c.b16 %v8531, %v8530
      %v8550 = vpack.c.b16 %v8533, %v8532
      %v8551 = vpack.c.b16 %v8535, %v8534
      %v8584 = vunpack.c.l.b16 %v8488
      %v8585 = vunpack.c.l.b16 %v8489
      %v8586 = vunpack.c.l.b16 %v8490
      %v8587 = vunpack.c.l.b16 %v8491
      %v8588 = vunpack.c.l.b16 %v8492
      %v8589 = vunpack.c.l.b16 %v8493
      %v8590 = vunpack.c.l.b16 %v8494
      %v8591 = vunpack.c.l.b16 %v8495
      %v8592 = vunpack.c.l.b16 %v8496
      %v8593 = vunpack.c.l.b16 %v8497
      %v8594 = vunpack.c.l.b16 %v8498
      %v8595 = vunpack.c.l.b16 %v8499
      %v8596 = vunpack.c.l.b16 %v8500
      %v8597 = vunpack.c.l.b16 %v8501
      %v8598 = vunpack.c.l.b16 %v8502
      %v8599 = vunpack.c.l.b16 %v8503
      %v8600 = vpack.c.b16 %v8585, %v8584
      %v8601 = vpack.c.b16 %v8587, %v8586
      %v8602 = vpack.c.b16 %v8589, %v8588
      %v8603 = vpack.c.b16 %v8591, %v8590
      %v8604 = vpack.c.b16 %v8593, %v8592
      %v8605 = vpack.c.b16 %v8595, %v8594
      %v8606 = vpack.c.b16 %v8597, %v8596
      %v8607 = vpack.c.b16 %v8599, %v8598
      %8616 = vmatpush.bf16.msra.mxu0 %v8607
      %8617 = vmatpush.bf16.msra.mxu0 %v8606
      %8618 = vmatpush.bf16.msra.mxu0 %v8605
      %8619 = vmatpush.bf16.msra.mxu0 %v8604
      %8620 = vmatpush.bf16.msra.mxu0 %v8603
      %8621 = vmatpush.bf16.msra.mxu0 %v8602
      %8622 = vmatpush.bf16.msra.mxu0 %v8601
      %8623 = vmatpush.bf16.msra.mxu0 %v8600
      %8624 = vmatmul.bf16.gmra.mxu0 %v8536
      %v8625 = vpop.f32.mrf.mxu0
      %v8626 = vadd.f32 0.0, %v8625
      %v8627 = vpop.f32.mrf.mxu0
      %v8628 = vadd.f32 0.0, %v8627
      %8629 = vmatmul.bf16.gmra.mxu0 %v8537
      %v8630 = vpop.f32.mrf.mxu0
      %v8631 = vadd.f32 0.0, %v8630
      %v8632 = vpop.f32.mrf.mxu0
      %v8633 = vadd.f32 0.0, %v8632
      %8634 = vmatmul.bf16.gmra.mxu0 %v8538
      %v8635 = vpop.f32.mrf.mxu0
      %v8636 = vadd.f32 0.0, %v8635
      %v8637 = vpop.f32.mrf.mxu0
      %v8638 = vadd.f32 0.0, %v8637
      %8639 = vmatmul.bf16.gmra.mxu0 %v8539
      %v8640 = vpop.f32.mrf.mxu0
      %v8641 = vadd.f32 0.0, %v8640
      %v8642 = vpop.f32.mrf.mxu0
      %v8643 = vadd.f32 0.0, %v8642
      %8644 = vmatmul.bf16.gmra.mxu0 %v8540
      %v8645 = vpop.f32.mrf.mxu0
      %v8646 = vadd.f32 0.0, %v8645
      %v8647 = vpop.f32.mrf.mxu0
      %v8648 = vadd.f32 0.0, %v8647
      %8649 = vmatmul.bf16.gmra.mxu0 %v8541
      %v8650 = vpop.f32.mrf.mxu0
      %v8651 = vadd.f32 0.0, %v8650
      %v8652 = vpop.f32.mrf.mxu0
      %v8653 = vadd.f32 0.0, %v8652
      %8654 = vmatmul.bf16.gmra.mxu0 %v8542
      %v8655 = vpop.f32.mrf.mxu0
      %v8656 = vadd.f32 0.0, %v8655
      %v8657 = vpop.f32.mrf.mxu0
      %v8658 = vadd.f32 0.0, %v8657
      %8659 = vmatmul.bf16.gmra.mxu0 %v8543
      %v8660 = vpop.f32.mrf.mxu0
      %v8661 = vadd.f32 0.0, %v8660
      %v8662 = vpop.f32.mrf.mxu0
      %v8663 = vadd.f32 0.0, %v8662
      %8664 = vmatmul.bf16.gmra.mxu0 %v8544
      %v8665 = vpop.f32.mrf.mxu0
      %v8666 = vadd.f32 0.0, %v8665
      %v8667 = vpop.f32.mrf.mxu0
      %v8668 = vadd.f32 0.0, %v8667
      %8669 = vmatmul.bf16.gmra.mxu0 %v8545
      %v8670 = vpop.f32.mrf.mxu0
      %v8671 = vadd.f32 0.0, %v8670
      %v8672 = vpop.f32.mrf.mxu0
      %v8673 = vadd.f32 0.0, %v8672
      %8674 = vmatmul.bf16.gmra.mxu0 %v8546
      %v8675 = vpop.f32.mrf.mxu0
      %v8676 = vadd.f32 0.0, %v8675
      %v8677 = vpop.f32.mrf.mxu0
      %v8678 = vadd.f32 0.0, %v8677
      %8679 = vmatmul.bf16.gmra.mxu0 %v8547
      %v8680 = vpop.f32.mrf.mxu0
      %v8681 = vadd.f32 0.0, %v8680
      %v8682 = vpop.f32.mrf.mxu0
      %v8683 = vadd.f32 0.0, %v8682
      %8684 = vmatmul.bf16.gmra.mxu0 %v8548
      %v8685 = vpop.f32.mrf.mxu0
      %v8686 = vadd.f32 0.0, %v8685
      %v8687 = vpop.f32.mrf.mxu0
      %v8688 = vadd.f32 0.0, %v8687
      %8689 = vmatmul.bf16.gmra.mxu0 %v8549
      %v8690 = vpop.f32.mrf.mxu0
      %v8691 = vadd.f32 0.0, %v8690
      %v8692 = vpop.f32.mrf.mxu0
      %v8693 = vadd.f32 0.0, %v8692
      %8694 = vmatmul.bf16.gmra.mxu0 %v8550
      %v8695 = vpop.f32.mrf.mxu0
      %v8696 = vadd.f32 0.0, %v8695
      %v8697 = vpop.f32.mrf.mxu0
      %v8698 = vadd.f32 0.0, %v8697
      %8699 = vmatmul.bf16.gmra.mxu0 %v8551
      %v8700 = vpop.f32.mrf.mxu0
      %v8701 = vadd.f32 0.0, %v8700
      %v8702 = vpop.f32.mrf.mxu0
      %v8703 = vadd.f32 0.0, %v8702
      %8704 = vdwg.mxu0
      %v8705 = vadd.f32 %v8023, %v8626
      %v8706 = vadd.f32 %v8024, %v8628
      %v8707 = vadd.f32 %v8025, %v8631
      %v8708 = vadd.f32 %v8026, %v8633
      %v8709 = vadd.f32 %v8027, %v8636
      %v8710 = vadd.f32 %v8028, %v8638
      %v8711 = vadd.f32 %v8029, %v8641
      %v8712 = vadd.f32 %v8030, %v8643
      %v8713 = vadd.f32 %v8031, %v8646
      %v8714 = vadd.f32 %v8032, %v8648
      %v8715 = vadd.f32 %v8033, %v8651
      %v8716 = vadd.f32 %v8034, %v8653
      %v8717 = vadd.f32 %v8035, %v8656
      %v8718 = vadd.f32 %v8036, %v8658
      %v8719 = vadd.f32 %v8037, %v8661
      %v8720 = vadd.f32 %v8038, %v8663
      %v8721 = vadd.f32 %v8039, %v8666
      %v8722 = vadd.f32 %v8040, %v8668
      %v8723 = vadd.f32 %v8041, %v8671
      %v8724 = vadd.f32 %v8042, %v8673
      %v8725 = vadd.f32 %v8043, %v8676
      %v8726 = vadd.f32 %v8044, %v8678
      %v8727 = vadd.f32 %v8045, %v8681
      %v8728 = vadd.f32 %v8046, %v8683
      %v8729 = vadd.f32 %v8047, %v8686
      %v8730 = vadd.f32 %v8048, %v8688
      %v8731 = vadd.f32 %v8049, %v8691
      %v8732 = vadd.f32 %v8050, %v8693
      %v8733 = vadd.f32 %v8051, %v8696
      %v8734 = vadd.f32 %v8052, %v8698
      %v8735 = vadd.f32 %v8053, %v8701
      %v8736 = vadd.f32 %v8054, %v8703
      %v8737 = vld [vmem:[%s7740] sm:$0xe]
      %v8738 = vld [vmem:[%s7740 + $0xc] sm:$0xe]
      %v8739 = vld [vmem:[%s7740 + $0x18] sm:$0xe]
      %v8740 = vld [vmem:[%s7740 + $0x24] sm:$0xe]
      %v8741 = vld [vmem:[%s7740 + $0x30] sm:$0xe]
      %v8742 = vld [vmem:[%s7740 + $0x3c] sm:$0xe]
      %v8743 = vld [vmem:[%s7740 + $0x48] sm:$0xe]
      %v8744 = vld [vmem:[%s7740 + $0x54] sm:$0xe]
      %v8745 = vld [vmem:[%s7740 + $0x60] sm:$0xe]
      %v8746 = vld [vmem:[%s7740 + $0x6c] sm:$0xe]
      %v8747 = vld [vmem:[%s7740 + $0x78] sm:$0xe]
      %v8748 = vld [vmem:[%s7740 + $0x84] sm:$0xe]
      %v8749 = vld [vmem:[%s7740 + $0x90] sm:$0xe]
      %v8750 = vld [vmem:[%s7740 + $0x9c] sm:$0xe]
      %v8751 = vld [vmem:[%s7740 + $0xa8] sm:$0xe]
      %v8752 = vld [vmem:[%s7740 + $0xb4] sm:$0xe]
      %v8801 = vrot.slane %v8737, 5
      %v8802 = vrot.slane %v8801, 4
      %v8803 = vrot.slane %v8056, 5
      %v8804 = vsel %vm1205, %v8802, %v8803
      %v8805 = vrot.slane %v8803, 4
      %v8806 = vrot.slane %v8057, 5
      %v8807 = vsel %vm1205, %v8805, %v8806
      %v8808 = vrot.slane %v8738, 5
      %v8809 = vrot.slane %v8808, 4
      %v8810 = vrot.slane %v8059, 5
      %v8811 = vsel %vm1205, %v8809, %v8810
      %v8812 = vrot.slane %v8810, 4
      %v8813 = vrot.slane %v8060, 5
      %v8814 = vsel %vm1205, %v8812, %v8813
      %v8815 = vrot.slane %v8739, 5
      %v8816 = vrot.slane %v8815, 4
      %v8817 = vrot.slane %v8062, 5
      %v8818 = vsel %vm1205, %v8816, %v8817
      %v8819 = vrot.slane %v8817, 4
      %v8820 = vrot.slane %v8063, 5
      %v8821 = vsel %vm1205, %v8819, %v8820
      %v8822 = vrot.slane %v8740, 5
      %v8823 = vrot.slane %v8822, 4
      %v8824 = vrot.slane %v8065, 5
      %v8825 = vsel %vm1205, %v8823, %v8824
      %v8826 = vrot.slane %v8824, 4
      %v8827 = vrot.slane %v8066, 5
      %v8828 = vsel %vm1205, %v8826, %v8827
      %v8829 = vrot.slane %v8741, 5
      %v8830 = vrot.slane %v8829, 4
      %v8831 = vrot.slane %v8068, 5
      %v8832 = vsel %vm1205, %v8830, %v8831
      %v8833 = vrot.slane %v8831, 4
      %v8834 = vrot.slane %v8069, 5
      %v8835 = vsel %vm1205, %v8833, %v8834
      %v8836 = vrot.slane %v8742, 5
      %v8837 = vrot.slane %v8836, 4
      %v8838 = vrot.slane %v8071, 5
      %v8839 = vsel %vm1205, %v8837, %v8838
      %v8840 = vrot.slane %v8838, 4
      %v8841 = vrot.slane %v8072, 5
      %v8842 = vsel %vm1205, %v8840, %v8841
      %v8843 = vrot.slane %v8743, 5
      %v8844 = vrot.slane %v8843, 4
      %v8845 = vrot.slane %v8074, 5
      %v8846 = vsel %vm1205, %v8844, %v8845
      %v8847 = vrot.slane %v8845, 4
      %v8848 = vrot.slane %v8075, 5
      %v8849 = vsel %vm1205, %v8847, %v8848
      %v8850 = vrot.slane %v8744, 5
      %v8851 = vrot.slane %v8850, 4
      %v8852 = vrot.slane %v8077, 5
      %v8853 = vsel %vm1205, %v8851, %v8852
      %v8854 = vrot.slane %v8852, 4
      %v8855 = vrot.slane %v8078, 5
      %v8856 = vsel %vm1205, %v8854, %v8855
      %v8857 = vrot.slane %v8745, 5
      %v8858 = vrot.slane %v8857, 4
      %v8859 = vrot.slane %v8080, 5
      %v8860 = vsel %vm1205, %v8858, %v8859
      %v8861 = vrot.slane %v8859, 4
      %v8862 = vrot.slane %v8081, 5
      %v8863 = vsel %vm1205, %v8861, %v8862
      %v8864 = vrot.slane %v8746, 5
      %v8865 = vrot.slane %v8864, 4
      %v8866 = vrot.slane %v8083, 5
      %v8867 = vsel %vm1205, %v8865, %v8866
      %v8868 = vrot.slane %v8866, 4
      %v8869 = vrot.slane %v8084, 5
      %v8870 = vsel %vm1205, %v8868, %v8869
      %v8871 = vrot.slane %v8747, 5
      %v8872 = vrot.slane %v8871, 4
      %v8873 = vrot.slane %v8086, 5
      %v8874 = vsel %vm1205, %v8872, %v8873
      %v8875 = vrot.slane %v8873, 4
      %v8876 = vrot.slane %v8087, 5
      %v8877 = vsel %vm1205, %v8875, %v8876
      %v8878 = vrot.slane %v8748, 5
      %v8879 = vrot.slane %v8878, 4
      %v8880 = vrot.slane %v8089, 5
      %v8881 = vsel %vm1205, %v8879, %v8880
      %v8882 = vrot.slane %v8880, 4
      %v8883 = vrot.slane %v8090, 5
      %v8884 = vsel %vm1205, %v8882, %v8883
      %v8885 = vrot.slane %v8749, 5
      %v8886 = vrot.slane %v8885, 4
      %v8887 = vrot.slane %v8092, 5
      %v8888 = vsel %vm1205, %v8886, %v8887
      %v8889 = vrot.slane %v8887, 4
      %v8890 = vrot.slane %v8093, 5
      %v8891 = vsel %vm1205, %v8889, %v8890
      %v8892 = vrot.slane %v8750, 5
      %v8893 = vrot.slane %v8892, 4
      %v8894 = vrot.slane %v8095, 5
      %v8895 = vsel %vm1205, %v8893, %v8894
      %v8896 = vrot.slane %v8894, 4
      %v8897 = vrot.slane %v8096, 5
      %v8898 = vsel %vm1205, %v8896, %v8897
      %v8899 = vrot.slane %v8751, 5
      %v8900 = vrot.slane %v8899, 4
      %v8901 = vrot.slane %v8098, 5
      %v8902 = vsel %vm1205, %v8900, %v8901
      %v8903 = vrot.slane %v8901, 4
      %v8904 = vrot.slane %v8099, 5
      %v8905 = vsel %vm1205, %v8903, %v8904
      %v8906 = vrot.slane %v8752, 5
      %v8907 = vrot.slane %v8906, 4
      %v8908 = vrot.slane %v8101, 5
      %v8909 = vsel %vm1205, %v8907, %v8908
      %v8910 = vrot.slane %v8908, 4
      %v8911 = vrot.slane %v8102, 5
      %v8912 = vsel %vm1205, %v8910, %v8911
      %s8913 = scalar_lea.vmem %s2, 512
      %v8914 = vld [vmem:[%s8913] sm:$0xf]
      %v8915 = vld [vmem:[%s8913 + $0x4] sm:$0xf]
      %v8916 = vld [vmem:[%s8913 + $0x8] sm:$0xf]
      %v8917 = vld [vmem:[%s8913 + $0xc] sm:$0xf]
      %v8918 = vld [vmem:[%s8913 + $0x10] sm:$0xf]
      %v8919 = vld [vmem:[%s8913 + $0x14] sm:$0xf]
      %v8920 = vld [vmem:[%s8913 + $0x18] sm:$0xf]
      %v8921 = vld [vmem:[%s8913 + $0x1c] sm:$0xf]
      %v8922 = vld [vmem:[%s8913 + $0x20] sm:$0xf]
      %v8923 = vld [vmem:[%s8913 + $0x24] sm:$0xf]
      %v8924 = vld [vmem:[%s8913 + $0x28] sm:$0xf]
      %v8925 = vld [vmem:[%s8913 + $0x2c] sm:$0xf]
      %v8926 = vld [vmem:[%s8913 + $0x30] sm:$0xf]
      %v8927 = vld [vmem:[%s8913 + $0x34] sm:$0xf]
      %v8928 = vld [vmem:[%s8913 + $0x38] sm:$0xf]
      %v8929 = vld [vmem:[%s8913 + $0x3c] sm:$0xf]
      %v8930 = vunpack.c.l.b16 %v8804
      %v8931 = vunpack.c.l.b16 %v8807
      %v8932 = vunpack.c.l.b16 %v8811
      %v8933 = vunpack.c.l.b16 %v8814
      %v8934 = vunpack.c.l.b16 %v8818
      %v8935 = vunpack.c.l.b16 %v8821
      %v8936 = vunpack.c.l.b16 %v8825
      %v8937 = vunpack.c.l.b16 %v8828
      %v8938 = vunpack.c.l.b16 %v8832
      %v8939 = vunpack.c.l.b16 %v8835
      %v8940 = vunpack.c.l.b16 %v8839
      %v8941 = vunpack.c.l.b16 %v8842
      %v8942 = vunpack.c.l.b16 %v8846
      %v8943 = vunpack.c.l.b16 %v8849
      %v8944 = vunpack.c.l.b16 %v8853
      %v8945 = vunpack.c.l.b16 %v8856
      %v8946 = vunpack.c.l.b16 %v8860
      %v8947 = vunpack.c.l.b16 %v8863
      %v8948 = vunpack.c.l.b16 %v8867
      %v8949 = vunpack.c.l.b16 %v8870
      %v8950 = vunpack.c.l.b16 %v8874
      %v8951 = vunpack.c.l.b16 %v8877
      %v8952 = vunpack.c.l.b16 %v8881
      %v8953 = vunpack.c.l.b16 %v8884
      %v8954 = vunpack.c.l.b16 %v8888
      %v8955 = vunpack.c.l.b16 %v8891
      %v8956 = vunpack.c.l.b16 %v8895
      %v8957 = vunpack.c.l.b16 %v8898
      %v8958 = vunpack.c.l.b16 %v8902
      %v8959 = vunpack.c.l.b16 %v8905
      %v8960 = vunpack.c.l.b16 %v8909
      %v8961 = vunpack.c.l.b16 %v8912
      %v8962 = vpack.c.b16 %v8931, %v8930
      %v8963 = vpack.c.b16 %v8933, %v8932
      %v8964 = vpack.c.b16 %v8935, %v8934
      %v8965 = vpack.c.b16 %v8937, %v8936
      %v8966 = vpack.c.b16 %v8939, %v8938
      %v8967 = vpack.c.b16 %v8941, %v8940
      %v8968 = vpack.c.b16 %v8943, %v8942
      %v8969 = vpack.c.b16 %v8945, %v8944
      %v8970 = vpack.c.b16 %v8947, %v8946
      %v8971 = vpack.c.b16 %v8949, %v8948
      %v8972 = vpack.c.b16 %v8951, %v8950
      %v8973 = vpack.c.b16 %v8953, %v8952
      %v8974 = vpack.c.b16 %v8955, %v8954
      %v8975 = vpack.c.b16 %v8957, %v8956
      %v8976 = vpack.c.b16 %v8959, %v8958
      %v8977 = vpack.c.b16 %v8961, %v8960
      %v9010 = vunpack.c.l.b16 %v8914
      %v9011 = vunpack.c.l.b16 %v8915
      %v9012 = vunpack.c.l.b16 %v8916
      %v9013 = vunpack.c.l.b16 %v8917
      %v9014 = vunpack.c.l.b16 %v8918
      %v9015 = vunpack.c.l.b16 %v8919
      %v9016 = vunpack.c.l.b16 %v8920
      %v9017 = vunpack.c.l.b16 %v8921
      %v9018 = vunpack.c.l.b16 %v8922
      %v9019 = vunpack.c.l.b16 %v8923
      %v9020 = vunpack.c.l.b16 %v8924
      %v9021 = vunpack.c.l.b16 %v8925
      %v9022 = vunpack.c.l.b16 %v8926
      %v9023 = vunpack.c.l.b16 %v8927
      %v9024 = vunpack.c.l.b16 %v8928
      %v9025 = vunpack.c.l.b16 %v8929
      %v9026 = vpack.c.b16 %v9011, %v9010
      %v9027 = vpack.c.b16 %v9013, %v9012
      %v9028 = vpack.c.b16 %v9015, %v9014
      %v9029 = vpack.c.b16 %v9017, %v9016
      %v9030 = vpack.c.b16 %v9019, %v9018
      %v9031 = vpack.c.b16 %v9021, %v9020
      %v9032 = vpack.c.b16 %v9023, %v9022
      %v9033 = vpack.c.b16 %v9025, %v9024
      %9042 = vmatpush.bf16.msra.mxu0 %v9033
      %9043 = vmatpush.bf16.msra.mxu0 %v9032
      %9044 = vmatpush.bf16.msra.mxu0 %v9031
      %9045 = vmatpush.bf16.msra.mxu0 %v9030
      %9046 = vmatpush.bf16.msra.mxu0 %v9029
      %9047 = vmatpush.bf16.msra.mxu0 %v9028
      %9048 = vmatpush.bf16.msra.mxu0 %v9027
      %9049 = vmatpush.bf16.msra.mxu0 %v9026
      %9050 = vmatmul.bf16.gmra.mxu0 %v8962
      %v9051 = vpop.f32.mrf.mxu0
      %v9052 = vadd.f32 0.0, %v9051
      %v9053 = vpop.f32.mrf.mxu0
      %v9054 = vadd.f32 0.0, %v9053
      %9055 = vmatmul.bf16.gmra.mxu0 %v8963
      %v9056 = vpop.f32.mrf.mxu0
      %v9057 = vadd.f32 0.0, %v9056
      %v9058 = vpop.f32.mrf.mxu0
      %v9059 = vadd.f32 0.0, %v9058
      %9060 = vmatmul.bf16.gmra.mxu0 %v8964
      %v9061 = vpop.f32.mrf.mxu0
      %v9062 = vadd.f32 0.0, %v9061
      %v9063 = vpop.f32.mrf.mxu0
      %v9064 = vadd.f32 0.0, %v9063
      %9065 = vmatmul.bf16.gmra.mxu0 %v8965
      %v9066 = vpop.f32.mrf.mxu0
      %v9067 = vadd.f32 0.0, %v9066
      %v9068 = vpop.f32.mrf.mxu0
      %v9069 = vadd.f32 0.0, %v9068
      %9070 = vmatmul.bf16.gmra.mxu0 %v8966
      %v9071 = vpop.f32.mrf.mxu0
      %v9072 = vadd.f32 0.0, %v9071
      %v9073 = vpop.f32.mrf.mxu0
      %v9074 = vadd.f32 0.0, %v9073
      %9075 = vmatmul.bf16.gmra.mxu0 %v8967
      %v9076 = vpop.f32.mrf.mxu0
      %v9077 = vadd.f32 0.0, %v9076
      %v9078 = vpop.f32.mrf.mxu0
      %v9079 = vadd.f32 0.0, %v9078
      %9080 = vmatmul.bf16.gmra.mxu0 %v8968
      %v9081 = vpop.f32.mrf.mxu0
      %v9082 = vadd.f32 0.0, %v9081
      %v9083 = vpop.f32.mrf.mxu0
      %v9084 = vadd.f32 0.0, %v9083
      %9085 = vmatmul.bf16.gmra.mxu0 %v8969
      %v9086 = vpop.f32.mrf.mxu0
      %v9087 = vadd.f32 0.0, %v9086
      %v9088 = vpop.f32.mrf.mxu0
      %v9089 = vadd.f32 0.0, %v9088
      %9090 = vmatmul.bf16.gmra.mxu0 %v8970
      %v9091 = vpop.f32.mrf.mxu0
      %v9092 = vadd.f32 0.0, %v9091
      %v9093 = vpop.f32.mrf.mxu0
      %v9094 = vadd.f32 0.0, %v9093
      %9095 = vmatmul.bf16.gmra.mxu0 %v8971
      %v9096 = vpop.f32.mrf.mxu0
      %v9097 = vadd.f32 0.0, %v9096
      %v9098 = vpop.f32.mrf.mxu0
      %v9099 = vadd.f32 0.0, %v9098
      %9100 = vmatmul.bf16.gmra.mxu0 %v8972
      %v9101 = vpop.f32.mrf.mxu0
      %v9102 = vadd.f32 0.0, %v9101
      %v9103 = vpop.f32.mrf.mxu0
      %v9104 = vadd.f32 0.0, %v9103
      %9105 = vmatmul.bf16.gmra.mxu0 %v8973
      %v9106 = vpop.f32.mrf.mxu0
      %v9107 = vadd.f32 0.0, %v9106
      %v9108 = vpop.f32.mrf.mxu0
      %v9109 = vadd.f32 0.0, %v9108
      %9110 = vmatmul.bf16.gmra.mxu0 %v8974
      %v9111 = vpop.f32.mrf.mxu0
      %v9112 = vadd.f32 0.0, %v9111
      %v9113 = vpop.f32.mrf.mxu0
      %v9114 = vadd.f32 0.0, %v9113
      %9115 = vmatmul.bf16.gmra.mxu0 %v8975
      %v9116 = vpop.f32.mrf.mxu0
      %v9117 = vadd.f32 0.0, %v9116
      %v9118 = vpop.f32.mrf.mxu0
      %v9119 = vadd.f32 0.0, %v9118
      %9120 = vmatmul.bf16.gmra.mxu0 %v8976
      %v9121 = vpop.f32.mrf.mxu0
      %v9122 = vadd.f32 0.0, %v9121
      %v9123 = vpop.f32.mrf.mxu0
      %v9124 = vadd.f32 0.0, %v9123
      %9125 = vmatmul.bf16.gmra.mxu0 %v8977
      %v9126 = vpop.f32.mrf.mxu0
      %v9127 = vadd.f32 0.0, %v9126
      %v9128 = vpop.f32.mrf.mxu0
      %v9129 = vadd.f32 0.0, %v9128
      %9130 = vdwg.mxu0
      %v9131 = vadd.f32 %v8705, %v9052
      %v9132 = vadd.f32 %v8706, %v9054
      %v9133 = vadd.f32 %v8707, %v9057
      %v9134 = vadd.f32 %v8708, %v9059
      %v9135 = vadd.f32 %v8709, %v9062
      %v9136 = vadd.f32 %v8710, %v9064
      %v9137 = vadd.f32 %v8711, %v9067
      %v9138 = vadd.f32 %v8712, %v9069
      %v9139 = vadd.f32 %v8713, %v9072
      %v9140 = vadd.f32 %v8714, %v9074
      %v9141 = vadd.f32 %v8715, %v9077
      %v9142 = vadd.f32 %v8716, %v9079
      %v9143 = vadd.f32 %v8717, %v9082
      %v9144 = vadd.f32 %v8718, %v9084
      %v9145 = vadd.f32 %v8719, %v9087
      %v9146 = vadd.f32 %v8720, %v9089
      %v9147 = vadd.f32 %v8721, %v9092
      %v9148 = vadd.f32 %v8722, %v9094
      %v9149 = vadd.f32 %v8723, %v9097
      %v9150 = vadd.f32 %v8724, %v9099
      %v9151 = vadd.f32 %v8725, %v9102
      %v9152 = vadd.f32 %v8726, %v9104
      %v9153 = vadd.f32 %v8727, %v9107
      %v9154 = vadd.f32 %v8728, %v9109
      %v9155 = vadd.f32 %v8729, %v9112
      %v9156 = vadd.f32 %v8730, %v9114
      %v9157 = vadd.f32 %v8731, %v9117
      %v9158 = vadd.f32 %v8732, %v9119
      %v9159 = vadd.f32 %v8733, %v9122
      %v9160 = vadd.f32 %v8734, %v9124
      %v9161 = vadd.f32 %v8735, %v9127
      %v9162 = vadd.f32 %v8736, %v9129
      %v9163 = vld [vmem:[%s1568] sm:$0xf]
      %v9164 = vld [vmem:[%s1568 + $0x4] sm:$0xf]
      %v9165 = vld [vmem:[%s1568 + $0x8] sm:$0x1]
      %v9166 = vld [vmem:[%s1568 + $0xc] sm:$0xf]
      %v9167 = vld [vmem:[%s1568 + $0x10] sm:$0xf]
      %v9168 = vld [vmem:[%s1568 + $0x14] sm:$0x1]
      %v9169 = vld [vmem:[%s1568 + $0x18] sm:$0xf]
      %v9170 = vld [vmem:[%s1568 + $0x1c] sm:$0xf]
      %v9171 = vld [vmem:[%s1568 + $0x20] sm:$0x1]
      %v9172 = vld [vmem:[%s1568 + $0x24] sm:$0xf]
      %v9173 = vld [vmem:[%s1568 + $0x28] sm:$0xf]
      %v9174 = vld [vmem:[%s1568 + $0x2c] sm:$0x1]
      %v9175 = vld [vmem:[%s1568 + $0x30] sm:$0xf]
      %v9176 = vld [vmem:[%s1568 + $0x34] sm:$0xf]
      %v9177 = vld [vmem:[%s1568 + $0x38] sm:$0x1]
      %v9178 = vld [vmem:[%s1568 + $0x3c] sm:$0xf]
      %v9179 = vld [vmem:[%s1568 + $0x40] sm:$0xf]
      %v9180 = vld [vmem:[%s1568 + $0x44] sm:$0x1]
      %v9181 = vld [vmem:[%s1568 + $0x48] sm:$0xf]
      %v9182 = vld [vmem:[%s1568 + $0x4c] sm:$0xf]
      %v9183 = vld [vmem:[%s1568 + $0x50] sm:$0x1]
      %v9184 = vld [vmem:[%s1568 + $0x54] sm:$0xf]
      %v9185 = vld [vmem:[%s1568 + $0x58] sm:$0xf]
      %v9186 = vld [vmem:[%s1568 + $0x5c] sm:$0x1]
      %v9187 = vld [vmem:[%s1568 + $0x60] sm:$0xf]
      %v9188 = vld [vmem:[%s1568 + $0x64] sm:$0xf]
      %v9189 = vld [vmem:[%s1568 + $0x68] sm:$0x1]
      %v9190 = vld [vmem:[%s1568 + $0x6c] sm:$0xf]
      %v9191 = vld [vmem:[%s1568 + $0x70] sm:$0xf]
      %v9192 = vld [vmem:[%s1568 + $0x74] sm:$0x1]
      %v9193 = vld [vmem:[%s1568 + $0x78] sm:$0xf]
      %v9194 = vld [vmem:[%s1568 + $0x7c] sm:$0xf]
      %v9195 = vld [vmem:[%s1568 + $0x80] sm:$0x1]
      %v9196 = vld [vmem:[%s1568 + $0x84] sm:$0xf]
      %v9197 = vld [vmem:[%s1568 + $0x88] sm:$0xf]
      %v9198 = vld [vmem:[%s1568 + $0x8c] sm:$0x1]
      %v9199 = vld [vmem:[%s1568 + $0x90] sm:$0xf]
      %v9200 = vld [vmem:[%s1568 + $0x94] sm:$0xf]
      %v9201 = vld [vmem:[%s1568 + $0x98] sm:$0x1]
      %v9202 = vld [vmem:[%s1568 + $0x9c] sm:$0xf]
      %v9203 = vld [vmem:[%s1568 + $0xa0] sm:$0xf]
      %v9204 = vld [vmem:[%s1568 + $0xa4] sm:$0x1]
      %v9205 = vld [vmem:[%s1568 + $0xa8] sm:$0xf]
      %v9206 = vld [vmem:[%s1568 + $0xac] sm:$0xf]
      %v9207 = vld [vmem:[%s1568 + $0xb0] sm:$0x1]
      %v9208 = vld [vmem:[%s1568 + $0xb4] sm:$0xf]
      %v9209 = vld [vmem:[%s1568 + $0xb8] sm:$0xf]
      %v9210 = vld [vmem:[%s1568 + $0xbc] sm:$0x1]
      %v9212 = vshrl.u32 %v9163, 16
      %v9214 = vrot.slane %v9212, 4
      %v9215 = vshll.u32 %v9163, 16
      %v9217 = vrot.slane %v9215, 5
      %v9218 = vor.u32 %v9214, %v9217
      %v9219 = vrot.slane %v9218, 4
      %v9221 = vshll.u32 %v9164, 16
      %v9223 = vrot.slane %v9221, 5
      %v9224 = vsel %vm319, %v9219, %v9223
      %v9225 = vshrl.u32 %v9164, 16
      %v9227 = vrot.slane %v9225, 4
      %v9228 = vor.u32 %v9227, %v9223
      %v9229 = vrot.slane %v9228, 4
      %v9231 = vshll.u32 %v9165, 16
      %v9233 = vrot.slane %v9231, 5
      %v9234 = vsel %vm319, %v9229, %v9233
      %v9236 = vshrl.u32 %v9166, 16
      %v9238 = vrot.slane %v9236, 4
      %v9239 = vshll.u32 %v9166, 16
      %v9241 = vrot.slane %v9239, 5
      %v9242 = vor.u32 %v9238, %v9241
      %v9243 = vrot.slane %v9242, 4
      %v9245 = vshll.u32 %v9167, 16
      %v9247 = vrot.slane %v9245, 5
      %v9248 = vsel %vm319, %v9243, %v9247
      %v9249 = vshrl.u32 %v9167, 16
      %v9251 = vrot.slane %v9249, 4
      %v9252 = vor.u32 %v9251, %v9247
      %v9253 = vrot.slane %v9252, 4
      %v9255 = vshll.u32 %v9168, 16
      %v9257 = vrot.slane %v9255, 5
      %v9258 = vsel %vm319, %v9253, %v9257
      %v9260 = vshrl.u32 %v9169, 16
      %v9262 = vrot.slane %v9260, 4
      %v9263 = vshll.u32 %v9169, 16
      %v9265 = vrot.slane %v9263, 5
      %v9266 = vor.u32 %v9262, %v9265
      %v9267 = vrot.slane %v9266, 4
      %v9269 = vshll.u32 %v9170, 16
      %v9271 = vrot.slane %v9269, 5
      %v9272 = vsel %vm319, %v9267, %v9271
      %v9273 = vshrl.u32 %v9170, 16
      %v9275 = vrot.slane %v9273, 4
      %v9276 = vor.u32 %v9275, %v9271
      %v9277 = vrot.slane %v9276, 4
      %v9279 = vshll.u32 %v9171, 16
      %v9281 = vrot.slane %v9279, 5
      %v9282 = vsel %vm319, %v9277, %v9281
      %v9284 = vshrl.u32 %v9172, 16
      %v9286 = vrot.slane %v9284, 4
      %v9287 = vshll.u32 %v9172, 16
      %v9289 = vrot.slane %v9287, 5
      %v9290 = vor.u32 %v9286, %v9289
      %v9291 = vrot.slane %v9290, 4
      %v9293 = vshll.u32 %v9173, 16
      %v9295 = vrot.slane %v9293, 5
      %v9296 = vsel %vm319, %v9291, %v9295
      %v9297 = vshrl.u32 %v9173, 16
      %v9299 = vrot.slane %v9297, 4
      %v9300 = vor.u32 %v9299, %v9295
      %v9301 = vrot.slane %v9300, 4
      %v9303 = vshll.u32 %v9174, 16
      %v9305 = vrot.slane %v9303, 5
      %v9306 = vsel %vm319, %v9301, %v9305
      %v9308 = vshrl.u32 %v9175, 16
      %v9310 = vrot.slane %v9308, 4
      %v9311 = vshll.u32 %v9175, 16
      %v9313 = vrot.slane %v9311, 5
      %v9314 = vor.u32 %v9310, %v9313
      %v9315 = vrot.slane %v9314, 4
      %v9317 = vshll.u32 %v9176, 16
      %v9319 = vrot.slane %v9317, 5
      %v9320 = vsel %vm319, %v9315, %v9319
      %v9321 = vshrl.u32 %v9176, 16
      %v9323 = vrot.slane %v9321, 4
      %v9324 = vor.u32 %v9323, %v9319
      %v9325 = vrot.slane %v9324, 4
      %v9327 = vshll.u32 %v9177, 16
      %v9329 = vrot.slane %v9327, 5
      %v9330 = vsel %vm319, %v9325, %v9329
      %v9332 = vshrl.u32 %v9178, 16
      %v9334 = vrot.slane %v9332, 4
      %v9335 = vshll.u32 %v9178, 16
      %v9337 = vrot.slane %v9335, 5
      %v9338 = vor.u32 %v9334, %v9337
      %v9339 = vrot.slane %v9338, 4
      %v9341 = vshll.u32 %v9179, 16
      %v9343 = vrot.slane %v9341, 5
      %v9344 = vsel %vm319, %v9339, %v9343
      %v9345 = vshrl.u32 %v9179, 16
      %v9347 = vrot.slane %v9345, 4
      %v9348 = vor.u32 %v9347, %v9343
      %v9349 = vrot.slane %v9348, 4
      %v9351 = vshll.u32 %v9180, 16
      %v9353 = vrot.slane %v9351, 5
      %v9354 = vsel %vm319, %v9349, %v9353
      %v9356 = vshrl.u32 %v9181, 16
      %v9358 = vrot.slane %v9356, 4
      %v9359 = vshll.u32 %v9181, 16
      %v9361 = vrot.slane %v9359, 5
      %v9362 = vor.u32 %v9358, %v9361
      %v9363 = vrot.slane %v9362, 4
      %v9365 = vshll.u32 %v9182, 16
      %v9367 = vrot.slane %v9365, 5
      %v9368 = vsel %vm319, %v9363, %v9367
      %v9369 = vshrl.u32 %v9182, 16
      %v9371 = vrot.slane %v9369, 4
      %v9372 = vor.u32 %v9371, %v9367
      %v9373 = vrot.slane %v9372, 4
      %v9375 = vshll.u32 %v9183, 16
      %v9377 = vrot.slane %v9375, 5
      %v9378 = vsel %vm319, %v9373, %v9377
      %v9380 = vshrl.u32 %v9184, 16
      %v9382 = vrot.slane %v9380, 4
      %v9383 = vshll.u32 %v9184, 16
      %v9385 = vrot.slane %v9383, 5
      %v9386 = vor.u32 %v9382, %v9385
      %v9387 = vrot.slane %v9386, 4
      %v9389 = vshll.u32 %v9185, 16
      %v9391 = vrot.slane %v9389, 5
      %v9392 = vsel %vm319, %v9387, %v9391
      %v9393 = vshrl.u32 %v9185, 16
      %v9395 = vrot.slane %v9393, 4
      %v9396 = vor.u32 %v9395, %v9391
      %v9397 = vrot.slane %v9396, 4
      %v9399 = vshll.u32 %v9186, 16
      %v9401 = vrot.slane %v9399, 5
      %v9402 = vsel %vm319, %v9397, %v9401
      %v9404 = vshrl.u32 %v9187, 16
      %v9406 = vrot.slane %v9404, 4
      %v9407 = vshll.u32 %v9187, 16
      %v9409 = vrot.slane %v9407, 5
      %v9410 = vor.u32 %v9406, %v9409
      %v9411 = vrot.slane %v9410, 4
      %v9413 = vshll.u32 %v9188, 16
      %v9415 = vrot.slane %v9413, 5
      %v9416 = vsel %vm319, %v9411, %v9415
      %v9417 = vshrl.u32 %v9188, 16
      %v9419 = vrot.slane %v9417, 4
      %v9420 = vor.u32 %v9419, %v9415
      %v9421 = vrot.slane %v9420, 4
      %v9423 = vshll.u32 %v9189, 16
      %v9425 = vrot.slane %v9423, 5
      %v9426 = vsel %vm319, %v9421, %v9425
      %v9428 = vshrl.u32 %v9190, 16
      %v9430 = vrot.slane %v9428, 4
      %v9431 = vshll.u32 %v9190, 16
      %v9433 = vrot.slane %v9431, 5
      %v9434 = vor.u32 %v9430, %v9433
      %v9435 = vrot.slane %v9434, 4
      %v9437 = vshll.u32 %v9191, 16
      %v9439 = vrot.slane %v9437, 5
      %v9440 = vsel %vm319, %v9435, %v9439
      %v9441 = vshrl.u32 %v9191, 16
      %v9443 = vrot.slane %v9441, 4
      %v9444 = vor.u32 %v9443, %v9439
      %v9445 = vrot.slane %v9444, 4
      %v9447 = vshll.u32 %v9192, 16
      %v9449 = vrot.slane %v9447, 5
      %v9450 = vsel %vm319, %v9445, %v9449
      %v9452 = vshrl.u32 %v9193, 16
      %v9454 = vrot.slane %v9452, 4
      %v9455 = vshll.u32 %v9193, 16
      %v9457 = vrot.slane %v9455, 5
      %v9458 = vor.u32 %v9454, %v9457
      %v9459 = vrot.slane %v9458, 4
      %v9461 = vshll.u32 %v9194, 16
      %v9463 = vrot.slane %v9461, 5
      %v9464 = vsel %vm319, %v9459, %v9463
      %v9465 = vshrl.u32 %v9194, 16
      %v9467 = vrot.slane %v9465, 4
      %v9468 = vor.u32 %v9467, %v9463
      %v9469 = vrot.slane %v9468, 4
      %v9471 = vshll.u32 %v9195, 16
      %v9473 = vrot.slane %v9471, 5
      %v9474 = vsel %vm319, %v9469, %v9473
      %v9476 = vshrl.u32 %v9196, 16
      %v9478 = vrot.slane %v9476, 4
      %v9479 = vshll.u32 %v9196, 16
      %v9481 = vrot.slane %v9479, 5
      %v9482 = vor.u32 %v9478, %v9481
      %v9483 = vrot.slane %v9482, 4
      %v9485 = vshll.u32 %v9197, 16
      %v9487 = vrot.slane %v9485, 5
      %v9488 = vsel %vm319, %v9483, %v9487
      %v9489 = vshrl.u32 %v9197, 16
      %v9491 = vrot.slane %v9489, 4
      %v9492 = vor.u32 %v9491, %v9487
      %v9493 = vrot.slane %v9492, 4
      %v9495 = vshll.u32 %v9198, 16
      %v9497 = vrot.slane %v9495, 5
      %v9498 = vsel %vm319, %v9493, %v9497
      %v9500 = vshrl.u32 %v9199, 16
      %v9502 = vrot.slane %v9500, 4
      %v9503 = vshll.u32 %v9199, 16
      %v9505 = vrot.slane %v9503, 5
      %v9506 = vor.u32 %v9502, %v9505
      %v9507 = vrot.slane %v9506, 4
      %v9509 = vshll.u32 %v9200, 16
      %v9511 = vrot.slane %v9509, 5
      %v9512 = vsel %vm319, %v9507, %v9511
      %v9513 = vshrl.u32 %v9200, 16
      %v9515 = vrot.slane %v9513, 4
      %v9516 = vor.u32 %v9515, %v9511
      %v9517 = vrot.slane %v9516, 4
      %v9519 = vshll.u32 %v9201, 16
      %v9521 = vrot.slane %v9519, 5
      %v9522 = vsel %vm319, %v9517, %v9521
      %v9524 = vshrl.u32 %v9202, 16
      %v9526 = vrot.slane %v9524, 4
      %v9527 = vshll.u32 %v9202, 16
      %v9529 = vrot.slane %v9527, 5
      %v9530 = vor.u32 %v9526, %v9529
      %v9531 = vrot.slane %v9530, 4
      %v9533 = vshll.u32 %v9203, 16
      %v9535 = vrot.slane %v9533, 5
      %v9536 = vsel %vm319, %v9531, %v9535
      %v9537 = vshrl.u32 %v9203, 16
      %v9539 = vrot.slane %v9537, 4
      %v9540 = vor.u32 %v9539, %v9535
      %v9541 = vrot.slane %v9540, 4
      %v9543 = vshll.u32 %v9204, 16
      %v9545 = vrot.slane %v9543, 5
      %v9546 = vsel %vm319, %v9541, %v9545
      %v9548 = vshrl.u32 %v9205, 16
      %v9550 = vrot.slane %v9548, 4
      %v9551 = vshll.u32 %v9205, 16
      %v9553 = vrot.slane %v9551, 5
      %v9554 = vor.u32 %v9550, %v9553
      %v9555 = vrot.slane %v9554, 4
      %v9557 = vshll.u32 %v9206, 16
      %v9559 = vrot.slane %v9557, 5
      %v9560 = vsel %vm319, %v9555, %v9559
      %v9561 = vshrl.u32 %v9206, 16
      %v9563 = vrot.slane %v9561, 4
      %v9564 = vor.u32 %v9563, %v9559
      %v9565 = vrot.slane %v9564, 4
      %v9567 = vshll.u32 %v9207, 16
      %v9569 = vrot.slane %v9567, 5
      %v9570 = vsel %vm319, %v9565, %v9569
      %v9572 = vshrl.u32 %v9208, 16
      %v9574 = vrot.slane %v9572, 4
      %v9575 = vshll.u32 %v9208, 16
      %v9577 = vrot.slane %v9575, 5
      %v9578 = vor.u32 %v9574, %v9577
      %v9579 = vrot.slane %v9578, 4
      %v9581 = vshll.u32 %v9209, 16
      %v9583 = vrot.slane %v9581, 5
      %v9584 = vsel %vm319, %v9579, %v9583
      %v9585 = vshrl.u32 %v9209, 16
      %v9587 = vrot.slane %v9585, 4
      %v9588 = vor.u32 %v9587, %v9583
      %v9589 = vrot.slane %v9588, 4
      %v9591 = vshll.u32 %v9210, 16
      %v9593 = vrot.slane %v9591, 5
      %v9594 = vsel %vm319, %v9589, %v9593
      %v9595 = vld [vmem:[%s3] sm:$0xf]
      %v9596 = vld [vmem:[%s3 + $0x4] sm:$0xf]
      %v9597 = vld [vmem:[%s3 + $0x8] sm:$0xf]
      %v9598 = vld [vmem:[%s3 + $0xc] sm:$0xf]
      %v9599 = vld [vmem:[%s3 + $0x10] sm:$0xf]
      %v9600 = vld [vmem:[%s3 + $0x14] sm:$0xf]
      %v9601 = vld [vmem:[%s3 + $0x18] sm:$0xf]
      %v9602 = vld [vmem:[%s3 + $0x1c] sm:$0xf]
      %v9603 = vld [vmem:[%s3 + $0x20] sm:$0xf]
      %v9604 = vld [vmem:[%s3 + $0x24] sm:$0xf]
      %v9605 = vld [vmem:[%s3 + $0x28] sm:$0xf]
      %v9606 = vld [vmem:[%s3 + $0x2c] sm:$0xf]
      %v9607 = vld [vmem:[%s3 + $0x30] sm:$0xf]
      %v9608 = vld [vmem:[%s3 + $0x34] sm:$0xf]
      %v9609 = vld [vmem:[%s3 + $0x38] sm:$0xf]
      %v9610 = vld [vmem:[%s3 + $0x3c] sm:$0xf]
      %v9611 = vunpack.c.l.b16 %v9224
      %v9612 = vunpack.c.l.b16 %v9234
      %v9613 = vunpack.c.l.b16 %v9248
      %v9614 = vunpack.c.l.b16 %v9258
      %v9615 = vunpack.c.l.b16 %v9272
      %v9616 = vunpack.c.l.b16 %v9282
      %v9617 = vunpack.c.l.b16 %v9296
      %v9618 = vunpack.c.l.b16 %v9306
      %v9619 = vunpack.c.l.b16 %v9320
      %v9620 = vunpack.c.l.b16 %v9330
      %v9621 = vunpack.c.l.b16 %v9344
      %v9622 = vunpack.c.l.b16 %v9354
      %v9623 = vunpack.c.l.b16 %v9368
      %v9624 = vunpack.c.l.b16 %v9378
      %v9625 = vunpack.c.l.b16 %v9392
      %v9626 = vunpack.c.l.b16 %v9402
      %v9627 = vunpack.c.l.b16 %v9416
      %v9628 = vunpack.c.l.b16 %v9426
      %v9629 = vunpack.c.l.b16 %v9440
      %v9630 = vunpack.c.l.b16 %v9450
      %v9631 = vunpack.c.l.b16 %v9464
      %v9632 = vunpack.c.l.b16 %v9474
      %v9633 = vunpack.c.l.b16 %v9488
      %v9634 = vunpack.c.l.b16 %v9498
      %v9635 = vunpack.c.l.b16 %v9512
      %v9636 = vunpack.c.l.b16 %v9522
      %v9637 = vunpack.c.l.b16 %v9536
      %v9638 = vunpack.c.l.b16 %v9546
      %v9639 = vunpack.c.l.b16 %v9560
      %v9640 = vunpack.c.l.b16 %v9570
      %v9641 = vunpack.c.l.b16 %v9584
      %v9642 = vunpack.c.l.b16 %v9594
      %v9643 = vpack.c.b16 %v9612, %v9611
      %v9644 = vpack.c.b16 %v9614, %v9613
      %v9645 = vpack.c.b16 %v9616, %v9615
      %v9646 = vpack.c.b16 %v9618, %v9617
      %v9647 = vpack.c.b16 %v9620, %v9619
      %v9648 = vpack.c.b16 %v9622, %v9621
      %v9649 = vpack.c.b16 %v9624, %v9623
      %v9650 = vpack.c.b16 %v9626, %v9625
      %v9651 = vpack.c.b16 %v9628, %v9627
      %v9652 = vpack.c.b16 %v9630, %v9629
      %v9653 = vpack.c.b16 %v9632, %v9631
      %v9654 = vpack.c.b16 %v9634, %v9633
      %v9655 = vpack.c.b16 %v9636, %v9635
      %v9656 = vpack.c.b16 %v9638, %v9637
      %v9657 = vpack.c.b16 %v9640, %v9639
      %v9658 = vpack.c.b16 %v9642, %v9641
      %v9691 = vunpack.c.l.b16 %v9595
      %v9692 = vunpack.c.l.b16 %v9596
      %v9693 = vunpack.c.l.b16 %v9597
      %v9694 = vunpack.c.l.b16 %v9598
      %v9695 = vunpack.c.l.b16 %v9599
      %v9696 = vunpack.c.l.b16 %v9600
      %v9697 = vunpack.c.l.b16 %v9601
      %v9698 = vunpack.c.l.b16 %v9602
      %v9699 = vunpack.c.l.b16 %v9603
      %v9700 = vunpack.c.l.b16 %v9604
      %v9701 = vunpack.c.l.b16 %v9605
      %v9702 = vunpack.c.l.b16 %v9606
      %v9703 = vunpack.c.l.b16 %v9607
      %v9704 = vunpack.c.l.b16 %v9608
      %v9705 = vunpack.c.l.b16 %v9609
      %v9706 = vunpack.c.l.b16 %v9610
      %v9707 = vpack.c.b16 %v9692, %v9691
      %v9708 = vpack.c.b16 %v9694, %v9693
      %v9709 = vpack.c.b16 %v9696, %v9695
      %v9710 = vpack.c.b16 %v9698, %v9697
      %v9711 = vpack.c.b16 %v9700, %v9699
      %v9712 = vpack.c.b16 %v9702, %v9701
      %v9713 = vpack.c.b16 %v9704, %v9703
      %v9714 = vpack.c.b16 %v9706, %v9705
      %9723 = vmatpush.bf16.msra.mxu0 %v9714
      %9724 = vmatpush.bf16.msra.mxu0 %v9713
      %9725 = vmatpush.bf16.msra.mxu0 %v9712
      %9726 = vmatpush.bf16.msra.mxu0 %v9711
      %9727 = vmatpush.bf16.msra.mxu0 %v9710
      %9728 = vmatpush.bf16.msra.mxu0 %v9709
      %9729 = vmatpush.bf16.msra.mxu0 %v9708
      %9730 = vmatpush.bf16.msra.mxu0 %v9707
      %9731 = vmatmul.bf16.gmra.mxu0 %v9643
      %v9732 = vpop.f32.mrf.mxu0
      %v9733 = vadd.f32 0.0, %v9732
      %v9734 = vpop.f32.mrf.mxu0
      %v9735 = vadd.f32 0.0, %v9734
      %9736 = vmatmul.bf16.gmra.mxu0 %v9644
      %v9737 = vpop.f32.mrf.mxu0
      %v9738 = vadd.f32 0.0, %v9737
      %v9739 = vpop.f32.mrf.mxu0
      %v9740 = vadd.f32 0.0, %v9739
      %9741 = vmatmul.bf16.gmra.mxu0 %v9645
      %v9742 = vpop.f32.mrf.mxu0
      %v9743 = vadd.f32 0.0, %v9742
      %v9744 = vpop.f32.mrf.mxu0
      %v9745 = vadd.f32 0.0, %v9744
      %9746 = vmatmul.bf16.gmra.mxu0 %v9646
      %v9747 = vpop.f32.mrf.mxu0
      %v9748 = vadd.f32 0.0, %v9747
      %v9749 = vpop.f32.mrf.mxu0
      %v9750 = vadd.f32 0.0, %v9749
      %9751 = vmatmul.bf16.gmra.mxu0 %v9647
      %v9752 = vpop.f32.mrf.mxu0
      %v9753 = vadd.f32 0.0, %v9752
      %v9754 = vpop.f32.mrf.mxu0
      %v9755 = vadd.f32 0.0, %v9754
      %9756 = vmatmul.bf16.gmra.mxu0 %v9648
      %v9757 = vpop.f32.mrf.mxu0
      %v9758 = vadd.f32 0.0, %v9757
      %v9759 = vpop.f32.mrf.mxu0
      %v9760 = vadd.f32 0.0, %v9759
      %9761 = vmatmul.bf16.gmra.mxu0 %v9649
      %v9762 = vpop.f32.mrf.mxu0
      %v9763 = vadd.f32 0.0, %v9762
      %v9764 = vpop.f32.mrf.mxu0
      %v9765 = vadd.f32 0.0, %v9764
      %9766 = vmatmul.bf16.gmra.mxu0 %v9650
      %v9767 = vpop.f32.mrf.mxu0
      %v9768 = vadd.f32 0.0, %v9767
      %v9769 = vpop.f32.mrf.mxu0
      %v9770 = vadd.f32 0.0, %v9769
      %9771 = vmatmul.bf16.gmra.mxu0 %v9651
      %v9772 = vpop.f32.mrf.mxu0
      %v9773 = vadd.f32 0.0, %v9772
      %v9774 = vpop.f32.mrf.mxu0
      %v9775 = vadd.f32 0.0, %v9774
      %9776 = vmatmul.bf16.gmra.mxu0 %v9652
      %v9777 = vpop.f32.mrf.mxu0
      %v9778 = vadd.f32 0.0, %v9777
      %v9779 = vpop.f32.mrf.mxu0
      %v9780 = vadd.f32 0.0, %v9779
      %9781 = vmatmul.bf16.gmra.mxu0 %v9653
      %v9782 = vpop.f32.mrf.mxu0
      %v9783 = vadd.f32 0.0, %v9782
      %v9784 = vpop.f32.mrf.mxu0
      %v9785 = vadd.f32 0.0, %v9784
      %9786 = vmatmul.bf16.gmra.mxu0 %v9654
      %v9787 = vpop.f32.mrf.mxu0
      %v9788 = vadd.f32 0.0, %v9787
      %v9789 = vpop.f32.mrf.mxu0
      %v9790 = vadd.f32 0.0, %v9789
      %9791 = vmatmul.bf16.gmra.mxu0 %v9655
      %v9792 = vpop.f32.mrf.mxu0
      %v9793 = vadd.f32 0.0, %v9792
      %v9794 = vpop.f32.mrf.mxu0
      %v9795 = vadd.f32 0.0, %v9794
      %9796 = vmatmul.bf16.gmra.mxu0 %v9656
      %v9797 = vpop.f32.mrf.mxu0
      %v9798 = vadd.f32 0.0, %v9797
      %v9799 = vpop.f32.mrf.mxu0
      %v9800 = vadd.f32 0.0, %v9799
      %9801 = vmatmul.bf16.gmra.mxu0 %v9657
      %v9802 = vpop.f32.mrf.mxu0
      %v9803 = vadd.f32 0.0, %v9802
      %v9804 = vpop.f32.mrf.mxu0
      %v9805 = vadd.f32 0.0, %v9804
      %9806 = vmatmul.bf16.gmra.mxu0 %v9658
      %v9807 = vpop.f32.mrf.mxu0
      %v9808 = vadd.f32 0.0, %v9807
      %v9809 = vpop.f32.mrf.mxu0
      %v9810 = vadd.f32 0.0, %v9809
      %9811 = vdwg.mxu0
      %v9812 = vadd.f32 %v9131, %v9733
      %v9813 = vadd.f32 %v9132, %v9735
      %v9814 = vadd.f32 %v9133, %v9738
      %v9815 = vadd.f32 %v9134, %v9740
      %v9816 = vadd.f32 %v9135, %v9743
      %v9817 = vadd.f32 %v9136, %v9745
      %v9818 = vadd.f32 %v9137, %v9748
      %v9819 = vadd.f32 %v9138, %v9750
      %v9820 = vadd.f32 %v9139, %v9753
      %v9821 = vadd.f32 %v9140, %v9755
      %v9822 = vadd.f32 %v9141, %v9758
      %v9823 = vadd.f32 %v9142, %v9760
      %v9824 = vadd.f32 %v9143, %v9763
      %v9825 = vadd.f32 %v9144, %v9765
      %v9826 = vadd.f32 %v9145, %v9768
      %v9827 = vadd.f32 %v9146, %v9770
      %v9828 = vadd.f32 %v9147, %v9773
      %v9829 = vadd.f32 %v9148, %v9775
      %v9830 = vadd.f32 %v9149, %v9778
      %v9831 = vadd.f32 %v9150, %v9780
      %v9832 = vadd.f32 %v9151, %v9783
      %v9833 = vadd.f32 %v9152, %v9785
      %v9834 = vadd.f32 %v9153, %v9788
      %v9835 = vadd.f32 %v9154, %v9790
      %v9836 = vadd.f32 %v9155, %v9793
      %v9837 = vadd.f32 %v9156, %v9795
      %v9838 = vadd.f32 %v9157, %v9798
      %v9839 = vadd.f32 %v9158, %v9800
      %v9840 = vadd.f32 %v9159, %v9803
      %v9841 = vadd.f32 %v9160, %v9805
      %v9842 = vadd.f32 %v9161, %v9808
      %v9843 = vadd.f32 %v9162, %v9810
      %v9844 = vld [vmem:[%s5] sm:$0x1]
      %v9846 = vperm.slane %v9844, 0
      %v9848 = vadd.f32 %v9812, %v9846
      %v9849 = vadd.f32 %v9813, %v9846
      %v9850 = vadd.f32 %v9814, %v9846
      %v9851 = vadd.f32 %v9815, %v9846
      %v9852 = vadd.f32 %v9816, %v9846
      %v9853 = vadd.f32 %v9817, %v9846
      %v9854 = vadd.f32 %v9818, %v9846
      %v9855 = vadd.f32 %v9819, %v9846
      %v9856 = vadd.f32 %v9820, %v9846
      %v9857 = vadd.f32 %v9821, %v9846
      %v9858 = vadd.f32 %v9822, %v9846
      %v9859 = vadd.f32 %v9823, %v9846
      %v9860 = vadd.f32 %v9824, %v9846
      %v9861 = vadd.f32 %v9825, %v9846
      %v9862 = vadd.f32 %v9826, %v9846
      %v9863 = vadd.f32 %v9827, %v9846
      %v9864 = vadd.f32 %v9828, %v9846
      %v9865 = vadd.f32 %v9829, %v9846
      %v9866 = vadd.f32 %v9830, %v9846
      %v9867 = vadd.f32 %v9831, %v9846
      %v9868 = vadd.f32 %v9832, %v9846
      %v9869 = vadd.f32 %v9833, %v9846
      %v9870 = vadd.f32 %v9834, %v9846
      %v9871 = vadd.f32 %v9835, %v9846
      %v9872 = vadd.f32 %v9836, %v9846
      %v9873 = vadd.f32 %v9837, %v9846
      %v9874 = vadd.f32 %v9838, %v9846
      %v9875 = vadd.f32 %v9839, %v9846
      %v9876 = vadd.f32 %v9840, %v9846
      %v9877 = vadd.f32 %v9841, %v9846
      %v9878 = vadd.f32 %v9842, %v9846
      %v9879 = vadd.f32 %v9843, %v9846
      %v9880 = vmax.f32 %v9848, 0.0
      %v9881 = vmax.f32 %v9849, 0.0
      %v9882 = vmax.f32 %v9850, 0.0
      %v9883 = vmax.f32 %v9851, 0.0
      %v9884 = vmax.f32 %v9852, 0.0
      %v9885 = vmax.f32 %v9853, 0.0
      %v9886 = vmax.f32 %v9854, 0.0
      %v9887 = vmax.f32 %v9855, 0.0
      %v9888 = vmax.f32 %v9856, 0.0
      %v9889 = vmax.f32 %v9857, 0.0
      %v9890 = vmax.f32 %v9858, 0.0
      %v9891 = vmax.f32 %v9859, 0.0
      %v9892 = vmax.f32 %v9860, 0.0
      %v9893 = vmax.f32 %v9861, 0.0
      %v9894 = vmax.f32 %v9862, 0.0
      %v9895 = vmax.f32 %v9863, 0.0
      %v9896 = vmax.f32 %v9864, 0.0
      %v9897 = vmax.f32 %v9865, 0.0
      %v9898 = vmax.f32 %v9866, 0.0
      %v9899 = vmax.f32 %v9867, 0.0
      %v9900 = vmax.f32 %v9868, 0.0
      %v9901 = vmax.f32 %v9869, 0.0
      %v9902 = vmax.f32 %v9870, 0.0
      %v9903 = vmax.f32 %v9871, 0.0
      %v9904 = vmax.f32 %v9872, 0.0
      %v9905 = vmax.f32 %v9873, 0.0
      %v9906 = vmax.f32 %v9874, 0.0
      %v9907 = vmax.f32 %v9875, 0.0
      %v9908 = vmax.f32 %v9876, 0.0
      %v9909 = vmax.f32 %v9877, 0.0
      %v9910 = vmax.f32 %v9878, 0.0
      %v9911 = vmax.f32 %v9879, 0.0
      %9912 = vst [vmem:[%s251] sm:$0xff] %v9880
      %9913 = vst [vmem:[%s251 + $0x8] sm:$0xff] %v9881
      %9914 = vst [vmem:[%s251 + $0x10] sm:$0xff] %v9882
      %9915 = vst [vmem:[%s251 + $0x18] sm:$0xff] %v9883
      %9916 = vst [vmem:[%s251 + $0x20] sm:$0xff] %v9884
      %9917 = vst [vmem:[%s251 + $0x28] sm:$0xff] %v9885
      %9918 = vst [vmem:[%s251 + $0x30] sm:$0xff] %v9886
      %9919 = vst [vmem:[%s251 + $0x38] sm:$0xff] %v9887
      %9920 = vst [vmem:[%s251 + $0x40] sm:$0xff] %v9888
      %9921 = vst [vmem:[%s251 + $0x48] sm:$0xff] %v9889
      %9922 = vst [vmem:[%s251 + $0x50] sm:$0xff] %v9890
      %9923 = vst [vmem:[%s251 + $0x58] sm:$0xff] %v9891
      %9924 = vst [vmem:[%s251 + $0x60] sm:$0xff] %v9892
      %9925 = vst [vmem:[%s251 + $0x68] sm:$0xff] %v9893
      %9926 = vst [vmem:[%s251 + $0x70] sm:$0xff] %v9894
      %9927 = vst [vmem:[%s251 + $0x78] sm:$0xff] %v9895
      %9928 = vst [vmem:[%s251 + $0x80] sm:$0xff] %v9896
      %9929 = vst [vmem:[%s251 + $0x88] sm:$0xff] %v9897
      %9930 = vst [vmem:[%s251 + $0x90] sm:$0xff] %v9898
      %9931 = vst [vmem:[%s251 + $0x98] sm:$0xff] %v9899
      %9932 = vst [vmem:[%s251 + $0xa0] sm:$0xff] %v9900
      %9933 = vst [vmem:[%s251 + $0xa8] sm:$0xff] %v9901
      %9934 = vst [vmem:[%s251 + $0xb0] sm:$0xff] %v9902
      %9935 = vst [vmem:[%s251 + $0xb8] sm:$0xff] %v9903
      %9936 = vst [vmem:[%s251 + $0xc0] sm:$0xff] %v9904
      %9937 = vst [vmem:[%s251 + $0xc8] sm:$0xff] %v9905
      %9938 = vst [vmem:[%s251 + $0xd0] sm:$0xff] %v9906
      %9939 = vst [vmem:[%s251 + $0xd8] sm:$0xff] %v9907
      %9940 = vst [vmem:[%s251 + $0xe0] sm:$0xff] %v9908
      %9941 = vst [vmem:[%s251 + $0xe8] sm:$0xff] %v9909
      %9942 = vst [vmem:[%s251 + $0xf0] sm:$0xff] %v9910
      %9943 = vst [vmem:[%s251 + $0xf8] sm:$0xff] %v9911
      %p9944 = scmp.lt.s32.totalorder %s17, 1
      %s9945 = scalar_select %p9944, %s17, 1
      %s9946 = smul.addr %s9945, 32
      %s9947 = smul.addr %s9946, 8
      %s9948 = scalar_lea.vmem %s6, %s9947
      // Predicated region
      $region45: #{basic_block_forward.1} parent=43 // pred_check
        %p9949 = pneg %p166
      $region46: #{basic_block_forward.1} parent=43 // pred_check_branch
        %9951 = sbr.rel (%p9949) target = $region48
      $region47: #{basic_block_forward.1} parent=43 // pred_region
        _
      $region48: #{basic_block_forward.1} parent=43 // pred_fallthru
        _
    $region44: #{basic_block_forward.1} parent=5 // pred_fallthru
      _
    %p9952 = scmp.le.s32.totalorder 2, %s12
    // Predicated region
    $region49: #{basic_block_forward.1} parent=5 // pred_check
      %p9953 = pneg %p9952
    $region50: #{basic_block_forward.1} parent=5 // pred_check_branch
      %9955 = sbr.rel (%p9953) target = $region52
    $region51: #{basic_block_forward.1} parent=5 // pred_region
      %s9956 = ssub.s32 %s12, 2
      // Predicated region
      $region53: #{basic_block_forward.1} parent=51 // pred_check
        %p9957 = pneg %p172
      $region54: #{basic_block_forward.1} parent=51 // pred_check_branch
        %9959 = sbr.rel (%p9957) target = $region56
      $region55: #{basic_block_forward.1} parent=51 // pred_region
        %p9960 = scmp.lt.s32.totalorder %s18, 1
        %s9961 = scalar_select %p9960, %s18, 1
        %s9962 = smul.addr %s9961, 32
        %s9963 = smul.addr %s9962, 8
        %s9964 = scalar_lea.vmem %s6, %s9963
      $region56: #{basic_block_forward.1} parent=51 // pred_fallthru
        _
    $region52: #{basic_block_forward.1} parent=5 // pred_fallthru
      _
  $region6: #{basic_block_forward.1} parent=0 // loop_footer
    %s16 = sadd.s32 1, %s12
  $region7: #{basic_block_forward.1} parent=0 // loop_footer_branch
    %11 = sbr.rel target = $region3
  $region8: #{basic_block_forward.1} parent=0 // loop_exit
    _

</llo_original>
